<compile_context>
chip_gen: v7x
topology: tpu7x:2x2x1
jax: 0.10.0
libtpu: 0.0.40
codegen_flags: <defaults>
</compile_context>

<pallas_src>
import jax
import jax.numpy as jnp
from jax.experimental import pallas as pl
from jax.experimental.pallas import tpu as pltpu

_MiB = 1024 * 1024


def _vmem_plan():
    """Generation-aware (tile_pair_budget_bytes, vmem_limit_bytes)."""
    vmem_cap = None
    try:
        info = pltpu.get_tpu_info()
        vmem_cap = int(getattr(info, "vmem_capacity_bytes", 0)) or None
    except Exception:
        vmem_cap = None
    if vmem_cap is None:
        # Unknown generation: conservative numbers that are safe everywhere.
        return 4 * _MiB, 40 * _MiB
    if vmem_cap <= 96 * _MiB:
        # v7x-class: 64 MiB VMEM, ~3.2 TB/s HBM -> tighter tiles, modest limit.
        return 3 * _MiB, 44 * _MiB
    # v5e / v6e: 128 MiB VMEM -> bigger tiles, deeper headroom for buffering.
    return 6 * _MiB, 80 * _MiB


def _choose_blocks(N, Co, H, W, s, itemsize, pair_budget_bytes):
    """Pick (bco, bh): channel-block and H-block sizes.

    Goals (in order): in+out tile pair fits the byte budget; >= MIN_STEPS grid
    steps (feeds both v7x TCs + the pipeline) as long as tiles stay >= ~1 MiB;
    otherwise just take the largest fitting tile.
    """
    MIN_STEPS = 8
    TILE_FLOOR = 1 * _MiB

    # bh must keep the (8, 128) block constraint on the input's (H, W) minor
    # dims and on the output's (s*H, s*W) minor dims: multiple of 8, or full H.
    bh_cands = sorted({d for d in range(8, H + 1, 8) if H % d == 0} | {H})
    bco_cands = [d for d in range(1, Co + 1) if Co % d == 0]

    def tile_pair_bytes(bco, bh):
        return 2 * (s * s) * bco * bh * W * itemsize

    def steps(bco, bh):
        return N * (Co // bco) * (H // bh)

    cands = [(bco, bh) for bco in bco_cands for bh in bh_cands]
    fitting = [c for c in cands if tile_pair_bytes(*c) <= pair_budget_bytes]
    if not fitting:
        # Even the smallest legal tile overshoots the budget: take the smallest.
        return min(cands, key=lambda c: (tile_pair_bytes(*c), -steps(*c)))

    good = [c for c in fitting
            if steps(*c) >= MIN_STEPS and tile_pair_bytes(*c) >= TILE_FLOOR]
    pool = good if good else fitting
    # Largest tile first (amortize ~0.35us/step + big DMAs), then more steps.
    return max(pool, key=lambda c: (tile_pair_bytes(*c), steps(*c)))


def _make_expand_kernel(s: int):
    """Kernel for one (batch, channel-block, H-block) tile.

    x_ref: (1, s*s, bco, bh, W)   -- the s*s channel-phase groups of the block
    o_ref: (1, bco, s*bh, s*W)    -- corresponding output tile
    """

    def kernel(x_ref, o_ref):
        _, _, bco, bh, w = x_ref.shape

        rows = []
        for s1 in range(s):
            # Per-phase loads straight from the ref (no full-slab materialize).
            cols = [x_ref[0, s1 * s + s2] for s2 in range(s)]   # (bco, bh, W)
            # W (lane) interleave: row[c, h, s*w + s2] = cols[s2][c, h, w]
            rows.append(jnp.stack(cols, axis=-1).reshape(bco, bh, s * w))

        # H (sublane) interleave: out[c, s*h + s1, :] = rows[s1][c, h, :]
        out = jnp.stack(rows, axis=2).reshape(bco, s * bh, s * w)

        # Single dense store of the whole tile.
        o_ref[0] = out.astype(o_ref.dtype)

    return kernel


def expand_forward(x, gain: int = 2):
    """Expand.forward: (N, C, H, W) -> (N, C//gain^2, gain*H, gain*W)."""
    s = int(gain)
    N, C, H, W = x.shape
    assert C % (s * s) == 0, "C must be divisible by gain**2"
    Co = C // (s * s)

    # Free reshape: split channels into (phase-group, out-channel).
    x_g = x.reshape(N, s * s, Co, H, W)

    itemsize = x.dtype.itemsize
    pair_budget, vmem_limit = _vmem_plan()
    bco, bh = _choose_blocks(N, Co, H, W, s, itemsize, pair_budget)

    grid = (N, Co // bco, H // bh)

    # Pure data movement: read everything once, write everything once.
    cost = pl.CostEstimate(flops=0, transcendentals=0,
                           bytes_accessed=2 * x.size * itemsize)

    out = pl.pallas_call(
        _make_expand_kernel(s),
        out_shape=jax.ShapeDtypeStruct((N, Co, s * H, s * W), x.dtype),
        grid_spec=pltpu.PrefetchScalarGridSpec(
            num_scalar_prefetch=0,
            grid=grid,
            in_specs=[
                pl.BlockSpec((1, s * s, bco, bh, W),
                             lambda n, j, k: (n, 0, j, k, 0)),
            ],
            out_specs=pl.BlockSpec((1, bco, s * bh, s * W),
                                   lambda n, j, k: (n, j, k, 0)),
        ),
        compiler_params=pltpu.CompilerParams(
            dimension_semantics=("parallel", "parallel", "parallel"),
            vmem_limit_bytes=vmem_limit,
        ),
        cost_estimate=cost,
    )(x_g)

    return out


if __name__ == "__main__":
    key = jax.random.PRNGKey(0)
    # Small NCHW input consistent with Expand (C divisible by gain**2).
    x = jax.random.normal(key, (2, 8, 16, 16), dtype=jnp.float32)

    out = expand_forward(x, gain=2)
    out = jax.block_until_ready(out)

    # Reference: exact mirror of the PyTorch Expand.forward.
    b, c, h, w = x.shape
    s = 2
    ref = x.reshape(b, s, s, c // (s * s), h, w)
    ref = jnp.transpose(ref, (0, 3, 4, 1, 5, 2))
    ref = ref.reshape(b, c // (s * s), h * s, w * s)

    assert out.shape == (2, 2, 32, 32), out.shape
    assert bool(jnp.array_equal(out, ref)), "mismatch vs reference Expand"

    print("KERNEL_OK")
</pallas_src>

<mosaic_0001>
module attributes {stable_mosaic.version = 11 : i64} {
  func.func @kernel(%arg0: i32, %arg1: i32, %arg2: i32, %arg3: memref<1x4x2x16x16xf32, #tpu.memory_space<vmem>>, %arg4: memref<1x2x32x32xf32, #tpu.memory_space<vmem>>) attributes {dimension_semantics = [#tpu.dimension_semantics<parallel>, #tpu.dimension_semantics<parallel>, #tpu.dimension_semantics<parallel>], iteration_bounds = array<i64: 2, 1, 1>, scalar_prefetch = 0 : i64, scratch_operands = 0 : i64, tpu.core_type = #tpu.core_type<tc>, window_params = [{transform_indices = @transform_0, window_bounds = array<i64: 1, 4, 2, 16, 16>}, {transform_indices = @transform_1, window_bounds = array<i64: 1, 2, 32, 32>}]} {
    %c0 = arith.constant 0 : index
    %c0_0 = arith.constant 0 : index
    %c0_1 = arith.constant 0 : index
    %c0_2 = arith.constant 0 : index
    %c0_3 = arith.constant 0 : index
    %0 = vector.load %arg3[%c0, %c0_0, %c0_1, %c0_2, %c0_3] : memref<1x4x2x16x16xf32, #tpu.memory_space<vmem>>, vector<1x1x2x16x16xf32>
    %1 = vector.shape_cast %0 : vector<1x1x2x16x16xf32> to vector<2x16x16xf32>
    %c0_4 = arith.constant 0 : index
    %c1 = arith.constant 1 : index
    %c0_5 = arith.constant 0 : index
    %c0_6 = arith.constant 0 : index
    %c0_7 = arith.constant 0 : index
    %2 = vector.load %arg3[%c0_4, %c1, %c0_5, %c0_6, %c0_7] : memref<1x4x2x16x16xf32, #tpu.memory_space<vmem>>, vector<1x1x2x16x16xf32>
    %3 = vector.shape_cast %2 : vector<1x1x2x16x16xf32> to vector<2x16x16xf32>
    %4 = vector.shape_cast %1 : vector<2x16x16xf32> to vector<2x16x16x1xf32>
    %5 = vector.shape_cast %3 : vector<2x16x16xf32> to vector<2x16x16x1xf32>
    %6 = tpu.concatenate %4, %5 in 3 : vector<2x16x16x1xf32>, vector<2x16x16x1xf32> -> vector<2x16x16x2xf32>
    %7 = vector.shape_cast %6 : vector<2x16x16x2xf32> to vector<2x16x32xf32>
    %c0_8 = arith.constant 0 : index
    %c2 = arith.constant 2 : index
    %c0_9 = arith.constant 0 : index
    %c0_10 = arith.constant 0 : index
    %c0_11 = arith.constant 0 : index
    %8 = vector.load %arg3[%c0_8, %c2, %c0_9, %c0_10, %c0_11] : memref<1x4x2x16x16xf32, #tpu.memory_space<vmem>>, vector<1x1x2x16x16xf32>
    %9 = vector.shape_cast %8 : vector<1x1x2x16x16xf32> to vector<2x16x16xf32>
    %c0_12 = arith.constant 0 : index
    %c3 = arith.constant 3 : index
    %c0_13 = arith.constant 0 : index
    %c0_14 = arith.constant 0 : index
    %c0_15 = arith.constant 0 : index
    %10 = vector.load %arg3[%c0_12, %c3, %c0_13, %c0_14, %c0_15] : memref<1x4x2x16x16xf32, #tpu.memory_space<vmem>>, vector<1x1x2x16x16xf32>
    %11 = vector.shape_cast %10 : vector<1x1x2x16x16xf32> to vector<2x16x16xf32>
    %12 = vector.shape_cast %9 : vector<2x16x16xf32> to vector<2x16x16x1xf32>
    %13 = vector.shape_cast %11 : vector<2x16x16xf32> to vector<2x16x16x1xf32>
    %14 = tpu.concatenate %12, %13 in 3 : vector<2x16x16x1xf32>, vector<2x16x16x1xf32> -> vector<2x16x16x2xf32>
    %15 = vector.shape_cast %14 : vector<2x16x16x2xf32> to vector<2x16x32xf32>
    %16 = vector.shape_cast %7 : vector<2x16x32xf32> to vector<2x16x1x32xf32>
    %17 = vector.shape_cast %15 : vector<2x16x32xf32> to vector<2x16x1x32xf32>
    %18 = tpu.concatenate %16, %17 in 2 : vector<2x16x1x32xf32>, vector<2x16x1x32xf32> -> vector<2x16x2x32xf32>
    %19 = vector.shape_cast %18 : vector<2x16x2x32xf32> to vector<2x32x32xf32>
    %c0_16 = arith.constant 0 : index
    %c0_17 = arith.constant 0 : index
    %c0_18 = arith.constant 0 : index
    %c0_19 = arith.constant 0 : index
    %20 = vector.load %arg4[%c0_16, %c0_17, %c0_18, %c0_19] : memref<1x2x32x32xf32, #tpu.memory_space<vmem>>, vector<1x2x32x32xf32>
    %21 = vector.shape_cast %20 : vector<1x2x32x32xf32> to vector<2x32x32xf32>
    %22 = vector.shape_cast %19 : vector<2x32x32xf32> to vector<1x2x32x32xf32>
    tpu.vector_store %arg4[%c0_16, %c0_17, %c0_18, %c0_19], %22 {strides = array<i32>} : memref<1x2x32x32xf32, #tpu.memory_space<vmem>>, vector<1x2x32x32xf32>,
    return
  }
  func.func @transform_0(%arg0: i32, %arg1: i32, %arg2: i32) -> (i32, i32, i32, i32, i32) {
    %c0_i32 = arith.constant 0 : i32
    %c0_i32_0 = arith.constant 0 : i32
    %c0_i32_1 = arith.constant 0 : i32
    return %arg0, %c0_i32, %arg1, %arg2, %c0_i32_0 : i32, i32, i32, i32, i32
  }
  func.func @transform_1(%arg0: i32, %arg1: i32, %arg2: i32) -> (i32, i32, i32, i32) {
    %c0_i32 = arith.constant 0 : i32
    %c0_i32_0 = arith.constant 0 : i32
    return %arg0, %arg1, %arg2, %c0_i32 : i32, i32, i32, i32
  }
}

</mosaic_0001>

<llo_original>
// kernel: tpu_custom_call.1
$region0: #{tpu_custom_call.1}
  #allocation0 [shape = 'u32[]', space=smem, size = 0x4, offset = 0x4, fixed_abs, tag = 'smem constant byte address 0x4 - core index']
  #allocation1 [shape = 'u32[144,128]{1,0:T(1,128)}', space=vmem, size = 0x12000, scoped, tag = 'internal scratch']
  %s0 = inlined_call_operand.hbm [shape: f32[2,4,2,16,16], index: 0, kind: input, shape index: {}]
  %s1 = inlined_call_operand.hbm [shape: f32[2,2,32,32], index: 1, kind: output, shape index: {}]
  %s2 = sld [smem:[#allocation0]]
  $region41: #{tpu_custom_call.1} parent=0
    _
  %s4 = ssub.s32 1, %s2
  %s5 = scalar_select 0, %s4, %s2
  $region1: #{tpu_custom_call.1} parent=0
    #allocation2 [shape = 'u8[131072]{0}', space=vmem, size = 0x20000, scoped, tag = 'input window, operand 0']
    #allocation3 [shape = 's32[2]{0}', space=sflag, size = 0x8, scoped, tag = 'scoped memory for tpu_custom_call.1']
    #allocation4 [shape = 's32[2]{0}', space=sflag, size = 0x8, scoped, tag = 'scoped memory for tpu_custom_call.1']
    #allocation5 [shape = 'u8[65536]{0}', space=vmem, size = 0x10000, scoped, tag = 'output window, operand 0']
    %6 = vsyncpa [#allocation3], 0
    %s7 = scalar_lea.sflag [#allocation3], 1
    %8 = vsyncpa %s7, 0
    %9 = vsyncpa [#allocation4], 0
    %s10 = scalar_lea.sflag [#allocation4], 1
    %11 = vsyncpa %s10, 0
    loop: start=0, step=1, limit=4
    $region2: #{tpu_custom_call.1} parent=1 // loop_pre_header
      _
    $region3: #{tpu_custom_call.1} parent=1 // loop_header
      %s13 = sphi 0, %s17
      %p14 = scmp.ge.s32.totalorder %s13, 4
      %s20 = sphi 0, %s39
      %s21 = sphi 0, %s35
      %s22 = sphi 0, %s31
      %s23 = sphi 0, %s20
      %s24 = sphi 0, %s21
      %s25 = sphi 0, %s22
      %s26 = sphi 0, %s23
      %s27 = sphi 0, %s24
      %s28 = sphi 0, %s25
      %s46 = sphi 0, %s48
      %s49 = sphi 0, %s46
      %s50 = sphi 0, %s49
      %s66 = sphi 0, %s50
      %s76 = sphi 0, %s78
      %s79 = sphi 0, %s76
      %s80 = sphi 0, %s79
      %s96 = sphi 0, %s80
    $region4: #{tpu_custom_call.1} parent=1 // loop_header_branch
      %16 = sbr.rel (%p14) target = $region8
    $region5: #{tpu_custom_call.1} parent=1 // loop_body
      %s18 = ssub.s32 %s13, 1
      %s19 = ssub.s32 %s13, 2
      %s29 = sadd.s32 1, %s22
      %p30 = scmp.ge.s32.totalorder %s29, 1
      %s31 = scalar_select %p30, 0, %s29
      %s32 = sadd.s32 1, %s21
      %s33 = scalar_select %p30, %s32, %s21
      %p34 = scmp.ge.s32.totalorder %s33, 1
      %s35 = scalar_select %p34, 0, %s33
      %s36 = sadd.s32 1, %s20
      %s37 = scalar_select %p34, %s36, %s20
      %p38 = scmp.ge.s32.totalorder %s37, 2
      %s39 = scalar_select %p38, 0, %s37
      %s40 = ssub.s32 %s20, %s39
      %s41 = ssub.s32 %s21, %s35
      %s42 = sor.u32 %s40, %s41
      %s43 = ssub.s32 %s22, %s31
      %s44 = sor.u32 %s42, %s43
      %p45 = scmp.eq.s32.totalorder %s44, 0
      %s47 = sadd.s32 %s46, 1
      %s48 = scalar_select %p45, %s46, %s47
      %p51 = pneg %p45
      %p52 = scmp.eq.s32.totalorder %s13, 1
      %p53 = por %p51, %p52
      %p54 = scmp.ne.s32.totalorder %s46, %s49
      %p55 = scmp.eq.s32.totalorder %s13, 0
      %p56 = por %p54, %p55
      %p57 = scmp.ne.s32.totalorder %s46, %s49
      %p58 = scmp.eq.s32.totalorder %s18, 1
      %p59 = por %p57, %p58
      %p60 = scmp.ne.s32.totalorder %s49, %s50
      %p61 = scmp.eq.s32.totalorder %s18, 0
      %p62 = por %p60, %p61
      %p63 = scmp.ne.s32.totalorder %s49, %s50
      %p64 = scmp.eq.s32.totalorder %s19, 1
      %p65 = por %p63, %p64
      %p67 = scmp.ne.s32.totalorder %s50, %s66
      %p68 = scmp.eq.s32.totalorder %s19, 0
      %p69 = por %p67, %p68
      %s70 = ssub.s32 %s20, %s39
      %s71 = ssub.s32 %s21, %s35
      %s72 = sor.u32 %s70, %s71
      %s73 = ssub.s32 %s22, %s31
      %s74 = sor.u32 %s72, %s73
      %p75 = scmp.eq.s32.totalorder %s74, 0
      %s77 = sadd.s32 %s76, 1
      %s78 = scalar_select %p75, %s76, %s77
      %p81 = pneg %p75
      %p82 = scmp.eq.s32.totalorder %s13, 1
      %p83 = por %p81, %p82
      %p84 = scmp.ne.s32.totalorder %s76, %s79
      %p85 = scmp.eq.s32.totalorder %s13, 0
      %p86 = por %p84, %p85
      %p87 = scmp.ne.s32.totalorder %s76, %s79
      %p88 = scmp.eq.s32.totalorder %s18, 1
      %p89 = por %p87, %p88
      %p90 = scmp.ne.s32.totalorder %s79, %s80
      %p91 = scmp.eq.s32.totalorder %s18, 0
      %p92 = por %p90, %p91
      %p93 = scmp.ne.s32.totalorder %s79, %s80
      %p94 = scmp.eq.s32.totalorder %s19, 1
      %p95 = por %p93, %p94
      %p97 = scmp.ne.s32.totalorder %s80, %s96
      %p98 = scmp.eq.s32.totalorder %s19, 0
      %p99 = por %p97, %p98
      %p100 = scmp.le.s32.totalorder 1, %s13
      %p101 = scmp.lt.s32.totalorder %s13, 3
      %p102 = pnand %p100, %p101
      %p103 = pneg %p102
      // Predicated region
      $region9: #{tpu_custom_call.1} parent=5 // pred_check
        _
      $region10: #{tpu_custom_call.1} parent=5 // pred_check_branch
        %105 = sbr.rel (%p102) target = $region12
      $region11: #{tpu_custom_call.1} parent=5 // pred_region
        %s106 = ssub.s32 %s13, 1
      $region12: #{tpu_custom_call.1} parent=5 // pred_fallthru
        _
      %p107 = scmp.lt.s32.totalorder %s13, 2
      // Predicated region
      $region13: #{tpu_custom_call.1} parent=5 // pred_check
        %p108 = pneg %p107
      $region14: #{tpu_custom_call.1} parent=5 // pred_check_branch
        %110 = sbr.rel (%p108) target = $region16
      $region15: #{tpu_custom_call.1} parent=5 // pred_region
        // Predicated region
        $region17: #{tpu_custom_call.1} parent=15 // pred_check
          %p111 = pneg %p56
        $region18: #{tpu_custom_call.1} parent=15 // pred_check_branch
          %113 = sbr.rel (%p111) target = $region20
        $region19: #{tpu_custom_call.1} parent=15 // pred_region
          %s114 = sand.u32 %s46, 1
          %s115 = scalar_lea.sflag [#allocation3], %s114
          %s116 = sand.u32 %s46, 1
          %s117 = smul.addr %s116, 128
          %s118 = scalar_lea.vmem [#allocation2], %s117
          %s119 = smul.u32 2, %s21
          %s120 = smul.u32 2, %s22
          %s122 = ssub.s32 2048, 2048
          %123 = vsyncadd %s115, %s122
          %s124 = smul.addr %s119, 2
          %s125 = sadd.s32 %s120, %s124
          %s126 = smul.addr %s20, 16
          %s127 = sadd.s32 %s125, %s126
          %s128 = smul.addr %s127, 128
          %s129 = scalar_lea.hbm %s0, %s128
          %s130 = sshll.u32 %s118, 4
          %s131 = int_to_ptr.vmem [resolvable:$true] %s130
          %136 = dma.hbm_to_vmem [thread:$0]  %s129, 2048, %s131, %s115, 128, 128, 8
        $region20: #{tpu_custom_call.1} parent=15 // pred_fallthru
          _
      $region16: #{tpu_custom_call.1} parent=5 // pred_fallthru
        _
      %p137 = scmp.le.s32.totalorder 1, %s13
      %p138 = scmp.lt.s32.totalorder %s13, 3
      %p139 = pnand %p137, %p138
      %p140 = pneg %p139
      // Predicated region
      $region21: #{tpu_custom_call.1} parent=5 // pred_check
        _
      $region22: #{tpu_custom_call.1} parent=5 // pred_check_branch
        %142 = sbr.rel (%p139) target = $region24
      $region23: #{tpu_custom_call.1} parent=5 // pred_region
        %s143 = ssub.s32 %s13, 1
        %s144 = sand.u32 %s49, 1
        %s145 = scalar_lea.sflag [#allocation3], %s144
        %s146 = sand.u32 %s49, 1
        %s147 = smul.addr %s146, 128
        %s148 = scalar_lea.vmem [#allocation2], %s147
        // Predicated region
        $region25: #{tpu_custom_call.1} parent=23 // pred_check
          %p149 = pneg %p62
        $region26: #{tpu_custom_call.1} parent=23 // pred_check_branch
          %151 = sbr.rel (%p149) target = $region28
        $region27: #{tpu_custom_call.1} parent=23 // pred_region
          %152 = dma.done %s145, 2048
        $region28: #{tpu_custom_call.1} parent=23 // pred_fallthru
          _
        %s153 = sand.u32 %s49, 1
        %s154 = scalar_lea.sflag [#allocation3], %s153
        %s155 = sand.u32 %s49, 1
        %s156 = smul.addr %s155, 128
        %s157 = scalar_lea.vmem [#allocation2], %s156
        %p158 = pneg %p62
        %p159 = pneg %p59
        %p160 = pneg %p92
        %p161 = pneg %p89
        %s162 = sand.u32 %s79, 1
        %s163 = scalar_lea.sflag [#allocation4], %s162
        %s164 = sand.u32 %s79, 1
        %s165 = smul.addr %s164, 64
        %s166 = scalar_lea.vmem [#allocation5], %s165
        %s167 = smul.u32 2, %s24
        %s168 = smul.u32 2, %s25
        %s169 = smul.u32 2, %s24
        %s170 = smul.u32 4, %s25
        %v171 = vld [vmem:[%s148] sm:$0xff]
        %v172 = vld [vmem:[%s148 + $0x8] sm:$0xff]
        %v173 = vld [vmem:[%s148 + $0x10] sm:$0xff]
        %v174 = vld [vmem:[%s148 + $0x18] sm:$0xff]
        %s175 = scalar_lea.vmem %s148, 32 [#allocation2]
        %v176 = vld [vmem:[%s175] sm:$0xff]
        %v177 = vld [vmem:[%s175 + $0x8] sm:$0xff]
        %v178 = vld [vmem:[%s175 + $0x10] sm:$0xff]
        %v179 = vld [vmem:[%s175 + $0x18] sm:$0xff]
        %v180 = vlaneseq
        %v181 = vshrl.u32 %v180, 7
        %v182 = vsub.s32 0, %v181
        %v183 = vrot.slane %v171, %v182
        %185 = vbcast.lane.b32.xlu0 %v183, 256
        %v186 = vpop.permute.xlu0 %185
        %s188 = sor.u32 256, 8
        %189 = vbcast.lane.b32.xlu0 %v183, %s188
        %v190 = vpop.permute.xlu0 %189
        %v191 = vlaneseq
        %v192 = vshrl.u32 %v191, 7
        %v193 = vsub.s32 1, %v192
        %v194 = vrot.slane %v171, %v193
        %196 = vbcast.lane.b32.xlu0 %v194, 256
        %v197 = vpop.permute.xlu0 %196
        %s199 = sor.u32 256, 8
        %200 = vbcast.lane.b32.xlu0 %v194, %s199
        %v201 = vpop.permute.xlu0 %200
        %v202 = vlaneseq
        %v203 = vshrl.u32 %v202, 7
        %v204 = vsub.s32 2, %v203
        %v205 = vrot.slane %v171, %v204
        %207 = vbcast.lane.b32.xlu0 %v205, 256
        %v208 = vpop.permute.xlu0 %207
        %s210 = sor.u32 256, 8
        %211 = vbcast.lane.b32.xlu0 %v205, %s210
        %v212 = vpop.permute.xlu0 %211
        %v213 = vlaneseq
        %v214 = vshrl.u32 %v213, 7
        %v215 = vsub.s32 3, %v214
        %v216 = vrot.slane %v171, %v215
        %218 = vbcast.lane.b32.xlu0 %v216, 256
        %v219 = vpop.permute.xlu0 %218
        %s221 = sor.u32 256, 8
        %222 = vbcast.lane.b32.xlu0 %v216, %s221
        %v223 = vpop.permute.xlu0 %222
        %v224 = vlaneseq
        %v225 = vshrl.u32 %v224, 7
        %v226 = vsub.s32 4, %v225
        %v227 = vrot.slane %v171, %v226
        %229 = vbcast.lane.b32.xlu0 %v227, 256
        %v230 = vpop.permute.xlu0 %229
        %s232 = sor.u32 256, 8
        %233 = vbcast.lane.b32.xlu0 %v227, %s232
        %v234 = vpop.permute.xlu0 %233
        %v235 = vlaneseq
        %v236 = vshrl.u32 %v235, 7
        %v237 = vsub.s32 5, %v236
        %v238 = vrot.slane %v171, %v237
        %240 = vbcast.lane.b32.xlu0 %v238, 256
        %v241 = vpop.permute.xlu0 %240
        %s243 = sor.u32 256, 8
        %244 = vbcast.lane.b32.xlu0 %v238, %s243
        %v245 = vpop.permute.xlu0 %244
        %v246 = vlaneseq
        %v247 = vshrl.u32 %v246, 7
        %v248 = vsub.s32 6, %v247
        %v249 = vrot.slane %v171, %v248
        %251 = vbcast.lane.b32.xlu0 %v249, 256
        %v252 = vpop.permute.xlu0 %251
        %s254 = sor.u32 256, 8
        %255 = vbcast.lane.b32.xlu0 %v249, %s254
        %v256 = vpop.permute.xlu0 %255
        %v257 = vlaneseq
        %v258 = vshrl.u32 %v257, 7
        %v259 = vsub.s32 7, %v258
        %v260 = vrot.slane %v171, %v259
        %262 = vbcast.lane.b32.xlu0 %v260, 256
        %v263 = vpop.permute.xlu0 %262
        %s265 = sor.u32 256, 8
        %266 = vbcast.lane.b32.xlu0 %v260, %s265
        %v267 = vpop.permute.xlu0 %266
        %v268 = vlaneseq
        %v269 = vshrl.u32 %v268, 7
        %v270 = vsub.s32 0, %v269
        %v271 = vrot.slane %v172, %v270
        %273 = vbcast.lane.b32.xlu0 %v271, 256
        %v274 = vpop.permute.xlu0 %273
        %s276 = sor.u32 256, 8
        %277 = vbcast.lane.b32.xlu0 %v271, %s276
        %v278 = vpop.permute.xlu0 %277
        %v279 = vlaneseq
        %v280 = vshrl.u32 %v279, 7
        %v281 = vsub.s32 1, %v280
        %v282 = vrot.slane %v172, %v281
        %284 = vbcast.lane.b32.xlu0 %v282, 256
        %v285 = vpop.permute.xlu0 %284
        %s287 = sor.u32 256, 8
        %288 = vbcast.lane.b32.xlu0 %v282, %s287
        %v289 = vpop.permute.xlu0 %288
        %v290 = vlaneseq
        %v291 = vshrl.u32 %v290, 7
        %v292 = vsub.s32 2, %v291
        %v293 = vrot.slane %v172, %v292
        %295 = vbcast.lane.b32.xlu0 %v293, 256
        %v296 = vpop.permute.xlu0 %295
        %s298 = sor.u32 256, 8
        %299 = vbcast.lane.b32.xlu0 %v293, %s298
        %v300 = vpop.permute.xlu0 %299
        %v301 = vlaneseq
        %v302 = vshrl.u32 %v301, 7
        %v303 = vsub.s32 3, %v302
        %v304 = vrot.slane %v172, %v303
        %306 = vbcast.lane.b32.xlu0 %v304, 256
        %v307 = vpop.permute.xlu0 %306
        %s309 = sor.u32 256, 8
        %310 = vbcast.lane.b32.xlu0 %v304, %s309
        %v311 = vpop.permute.xlu0 %310
        %v312 = vlaneseq
        %v313 = vshrl.u32 %v312, 7
        %v314 = vsub.s32 4, %v313
        %v315 = vrot.slane %v172, %v314
        %317 = vbcast.lane.b32.xlu0 %v315, 256
        %v318 = vpop.permute.xlu0 %317
        %s320 = sor.u32 256, 8
        %321 = vbcast.lane.b32.xlu0 %v315, %s320
        %v322 = vpop.permute.xlu0 %321
        %v323 = vlaneseq
        %v324 = vshrl.u32 %v323, 7
        %v325 = vsub.s32 5, %v324
        %v326 = vrot.slane %v172, %v325
        %328 = vbcast.lane.b32.xlu0 %v326, 256
        %v329 = vpop.permute.xlu0 %328
        %s331 = sor.u32 256, 8
        %332 = vbcast.lane.b32.xlu0 %v326, %s331
        %v333 = vpop.permute.xlu0 %332
        %v334 = vlaneseq
        %v335 = vshrl.u32 %v334, 7
        %v336 = vsub.s32 6, %v335
        %v337 = vrot.slane %v172, %v336
        %339 = vbcast.lane.b32.xlu0 %v337, 256
        %v340 = vpop.permute.xlu0 %339
        %s342 = sor.u32 256, 8
        %343 = vbcast.lane.b32.xlu0 %v337, %s342
        %v344 = vpop.permute.xlu0 %343
        %v345 = vlaneseq
        %v346 = vshrl.u32 %v345, 7
        %v347 = vsub.s32 7, %v346
        %v348 = vrot.slane %v172, %v347
        %350 = vbcast.lane.b32.xlu0 %v348, 256
        %v351 = vpop.permute.xlu0 %350
        %s353 = sor.u32 256, 8
        %354 = vbcast.lane.b32.xlu0 %v348, %s353
        %v355 = vpop.permute.xlu0 %354
        %v356 = vlaneseq
        %v357 = vshrl.u32 %v356, 7
        %v358 = vsub.s32 0, %v357
        %v359 = vrot.slane %v173, %v358
        %361 = vbcast.lane.b32.xlu0 %v359, 256
        %v362 = vpop.permute.xlu0 %361
        %s364 = sor.u32 256, 8
        %365 = vbcast.lane.b32.xlu0 %v359, %s364
        %v366 = vpop.permute.xlu0 %365
        %v367 = vlaneseq
        %v368 = vshrl.u32 %v367, 7
        %v369 = vsub.s32 1, %v368
        %v370 = vrot.slane %v173, %v369
        %372 = vbcast.lane.b32.xlu0 %v370, 256
        %v373 = vpop.permute.xlu0 %372
        %s375 = sor.u32 256, 8
        %376 = vbcast.lane.b32.xlu0 %v370, %s375
        %v377 = vpop.permute.xlu0 %376
        %v378 = vlaneseq
        %v379 = vshrl.u32 %v378, 7
        %v380 = vsub.s32 2, %v379
        %v381 = vrot.slane %v173, %v380
        %383 = vbcast.lane.b32.xlu0 %v381, 256
        %v384 = vpop.permute.xlu0 %383
        %s386 = sor.u32 256, 8
        %387 = vbcast.lane.b32.xlu0 %v381, %s386
        %v388 = vpop.permute.xlu0 %387
        %v389 = vlaneseq
        %v390 = vshrl.u32 %v389, 7
        %v391 = vsub.s32 3, %v390
        %v392 = vrot.slane %v173, %v391
        %394 = vbcast.lane.b32.xlu0 %v392, 256
        %v395 = vpop.permute.xlu0 %394
        %s397 = sor.u32 256, 8
        %398 = vbcast.lane.b32.xlu0 %v392, %s397
        %v399 = vpop.permute.xlu0 %398
        %v400 = vlaneseq
        %v401 = vshrl.u32 %v400, 7
        %v402 = vsub.s32 4, %v401
        %v403 = vrot.slane %v173, %v402
        %405 = vbcast.lane.b32.xlu0 %v403, 256
        %v406 = vpop.permute.xlu0 %405
        %s408 = sor.u32 256, 8
        %409 = vbcast.lane.b32.xlu0 %v403, %s408
        %v410 = vpop.permute.xlu0 %409
        %v411 = vlaneseq
        %v412 = vshrl.u32 %v411, 7
        %v413 = vsub.s32 5, %v412
        %v414 = vrot.slane %v173, %v413
        %416 = vbcast.lane.b32.xlu0 %v414, 256
        %v417 = vpop.permute.xlu0 %416
        %s419 = sor.u32 256, 8
        %420 = vbcast.lane.b32.xlu0 %v414, %s419
        %v421 = vpop.permute.xlu0 %420
        %v422 = vlaneseq
        %v423 = vshrl.u32 %v422, 7
        %v424 = vsub.s32 6, %v423
        %v425 = vrot.slane %v173, %v424
        %427 = vbcast.lane.b32.xlu0 %v425, 256
        %v428 = vpop.permute.xlu0 %427
        %s430 = sor.u32 256, 8
        %431 = vbcast.lane.b32.xlu0 %v425, %s430
        %v432 = vpop.permute.xlu0 %431
        %v433 = vlaneseq
        %v434 = vshrl.u32 %v433, 7
        %v435 = vsub.s32 7, %v434
        %v436 = vrot.slane %v173, %v435
        %438 = vbcast.lane.b32.xlu0 %v436, 256
        %v439 = vpop.permute.xlu0 %438
        %s441 = sor.u32 256, 8
        %442 = vbcast.lane.b32.xlu0 %v436, %s441
        %v443 = vpop.permute.xlu0 %442
        %v444 = vlaneseq
        %v445 = vshrl.u32 %v444, 7
        %v446 = vsub.s32 0, %v445
        %v447 = vrot.slane %v174, %v446
        %449 = vbcast.lane.b32.xlu0 %v447, 256
        %v450 = vpop.permute.xlu0 %449
        %s452 = sor.u32 256, 8
        %453 = vbcast.lane.b32.xlu0 %v447, %s452
        %v454 = vpop.permute.xlu0 %453
        %v455 = vlaneseq
        %v456 = vshrl.u32 %v455, 7
        %v457 = vsub.s32 1, %v456
        %v458 = vrot.slane %v174, %v457
        %460 = vbcast.lane.b32.xlu0 %v458, 256
        %v461 = vpop.permute.xlu0 %460
        %s463 = sor.u32 256, 8
        %464 = vbcast.lane.b32.xlu0 %v458, %s463
        %v465 = vpop.permute.xlu0 %464
        %v466 = vlaneseq
        %v467 = vshrl.u32 %v466, 7
        %v468 = vsub.s32 2, %v467
        %v469 = vrot.slane %v174, %v468
        %471 = vbcast.lane.b32.xlu0 %v469, 256
        %v472 = vpop.permute.xlu0 %471
        %s474 = sor.u32 256, 8
        %475 = vbcast.lane.b32.xlu0 %v469, %s474
        %v476 = vpop.permute.xlu0 %475
        %v477 = vlaneseq
        %v478 = vshrl.u32 %v477, 7
        %v479 = vsub.s32 3, %v478
        %v480 = vrot.slane %v174, %v479
        %482 = vbcast.lane.b32.xlu0 %v480, 256
        %v483 = vpop.permute.xlu0 %482
        %s485 = sor.u32 256, 8
        %486 = vbcast.lane.b32.xlu0 %v480, %s485
        %v487 = vpop.permute.xlu0 %486
        %v488 = vlaneseq
        %v489 = vshrl.u32 %v488, 7
        %v490 = vsub.s32 4, %v489
        %v491 = vrot.slane %v174, %v490
        %493 = vbcast.lane.b32.xlu0 %v491, 256
        %v494 = vpop.permute.xlu0 %493
        %s496 = sor.u32 256, 8
        %497 = vbcast.lane.b32.xlu0 %v491, %s496
        %v498 = vpop.permute.xlu0 %497
        %v499 = vlaneseq
        %v500 = vshrl.u32 %v499, 7
        %v501 = vsub.s32 5, %v500
        %v502 = vrot.slane %v174, %v501
        %504 = vbcast.lane.b32.xlu0 %v502, 256
        %v505 = vpop.permute.xlu0 %504
        %s507 = sor.u32 256, 8
        %508 = vbcast.lane.b32.xlu0 %v502, %s507
        %v509 = vpop.permute.xlu0 %508
        %v510 = vlaneseq
        %v511 = vshrl.u32 %v510, 7
        %v512 = vsub.s32 6, %v511
        %v513 = vrot.slane %v174, %v512
        %515 = vbcast.lane.b32.xlu0 %v513, 256
        %v516 = vpop.permute.xlu0 %515
        %s518 = sor.u32 256, 8
        %519 = vbcast.lane.b32.xlu0 %v513, %s518
        %v520 = vpop.permute.xlu0 %519
        %v521 = vlaneseq
        %v522 = vshrl.u32 %v521, 7
        %v523 = vsub.s32 7, %v522
        %v524 = vrot.slane %v174, %v523
        %526 = vbcast.lane.b32.xlu0 %v524, 256
        %v527 = vpop.permute.xlu0 %526
        %s529 = sor.u32 256, 8
        %530 = vbcast.lane.b32.xlu0 %v524, %s529
        %v531 = vpop.permute.xlu0 %530
        %v532 = vlaneseq
        %v533 = vshrl.u32 %v532, 7
        %v534 = vsub.s32 0, %v533
        %v535 = vrot.slane %v176, %v534
        %537 = vbcast.lane.b32.xlu0 %v535, 256
        %v538 = vpop.permute.xlu0 %537
        %s540 = sor.u32 256, 8
        %541 = vbcast.lane.b32.xlu0 %v535, %s540
        %v542 = vpop.permute.xlu0 %541
        %v543 = vlaneseq
        %v544 = vshrl.u32 %v543, 7
        %v545 = vsub.s32 1, %v544
        %v546 = vrot.slane %v176, %v545
        %548 = vbcast.lane.b32.xlu0 %v546, 256
        %v549 = vpop.permute.xlu0 %548
        %s551 = sor.u32 256, 8
        %552 = vbcast.lane.b32.xlu0 %v546, %s551
        %v553 = vpop.permute.xlu0 %552
        %v554 = vlaneseq
        %v555 = vshrl.u32 %v554, 7
        %v556 = vsub.s32 2, %v555
        %v557 = vrot.slane %v176, %v556
        %559 = vbcast.lane.b32.xlu0 %v557, 256
        %v560 = vpop.permute.xlu0 %559
        %s562 = sor.u32 256, 8
        %563 = vbcast.lane.b32.xlu0 %v557, %s562
        %v564 = vpop.permute.xlu0 %563
        %v565 = vlaneseq
        %v566 = vshrl.u32 %v565, 7
        %v567 = vsub.s32 3, %v566
        %v568 = vrot.slane %v176, %v567
        %570 = vbcast.lane.b32.xlu0 %v568, 256
        %v571 = vpop.permute.xlu0 %570
        %s573 = sor.u32 256, 8
        %574 = vbcast.lane.b32.xlu0 %v568, %s573
        %v575 = vpop.permute.xlu0 %574
        %v576 = vlaneseq
        %v577 = vshrl.u32 %v576, 7
        %v578 = vsub.s32 4, %v577
        %v579 = vrot.slane %v176, %v578
        %581 = vbcast.lane.b32.xlu0 %v579, 256
        %v582 = vpop.permute.xlu0 %581
        %s584 = sor.u32 256, 8
        %585 = vbcast.lane.b32.xlu0 %v579, %s584
        %v586 = vpop.permute.xlu0 %585
        %v587 = vlaneseq
        %v588 = vshrl.u32 %v587, 7
        %v589 = vsub.s32 5, %v588
        %v590 = vrot.slane %v176, %v589
        %592 = vbcast.lane.b32.xlu0 %v590, 256
        %v593 = vpop.permute.xlu0 %592
        %s595 = sor.u32 256, 8
        %596 = vbcast.lane.b32.xlu0 %v590, %s595
        %v597 = vpop.permute.xlu0 %596
        %v598 = vlaneseq
        %v599 = vshrl.u32 %v598, 7
        %v600 = vsub.s32 6, %v599
        %v601 = vrot.slane %v176, %v600
        %603 = vbcast.lane.b32.xlu0 %v601, 256
        %v604 = vpop.permute.xlu0 %603
        %s606 = sor.u32 256, 8
        %607 = vbcast.lane.b32.xlu0 %v601, %s606
        %v608 = vpop.permute.xlu0 %607
        %v609 = vlaneseq
        %v610 = vshrl.u32 %v609, 7
        %v611 = vsub.s32 7, %v610
        %v612 = vrot.slane %v176, %v611
        %614 = vbcast.lane.b32.xlu0 %v612, 256
        %v615 = vpop.permute.xlu0 %614
        %s617 = sor.u32 256, 8
        %618 = vbcast.lane.b32.xlu0 %v612, %s617
        %v619 = vpop.permute.xlu0 %618
        %v620 = vlaneseq
        %v621 = vshrl.u32 %v620, 7
        %v622 = vsub.s32 0, %v621
        %v623 = vrot.slane %v177, %v622
        %625 = vbcast.lane.b32.xlu0 %v623, 256
        %v626 = vpop.permute.xlu0 %625
        %s628 = sor.u32 256, 8
        %629 = vbcast.lane.b32.xlu0 %v623, %s628
        %v630 = vpop.permute.xlu0 %629
        %v631 = vlaneseq
        %v632 = vshrl.u32 %v631, 7
        %v633 = vsub.s32 1, %v632
        %v634 = vrot.slane %v177, %v633
        %636 = vbcast.lane.b32.xlu0 %v634, 256
        %v637 = vpop.permute.xlu0 %636
        %s639 = sor.u32 256, 8
        %640 = vbcast.lane.b32.xlu0 %v634, %s639
        %v641 = vpop.permute.xlu0 %640
        %v642 = vlaneseq
        %v643 = vshrl.u32 %v642, 7
        %v644 = vsub.s32 2, %v643
        %v645 = vrot.slane %v177, %v644
        %647 = vbcast.lane.b32.xlu0 %v645, 256
        %v648 = vpop.permute.xlu0 %647
        %s650 = sor.u32 256, 8
        %651 = vbcast.lane.b32.xlu0 %v645, %s650
        %v652 = vpop.permute.xlu0 %651
        %v653 = vlaneseq
        %v654 = vshrl.u32 %v653, 7
        %v655 = vsub.s32 3, %v654
        %v656 = vrot.slane %v177, %v655
        %658 = vbcast.lane.b32.xlu0 %v656, 256
        %v659 = vpop.permute.xlu0 %658
        %s661 = sor.u32 256, 8
        %662 = vbcast.lane.b32.xlu0 %v656, %s661
        %v663 = vpop.permute.xlu0 %662
        %v664 = vlaneseq
        %v665 = vshrl.u32 %v664, 7
        %v666 = vsub.s32 4, %v665
        %v667 = vrot.slane %v177, %v666
        %669 = vbcast.lane.b32.xlu0 %v667, 256
        %v670 = vpop.permute.xlu0 %669
        %s672 = sor.u32 256, 8
        %673 = vbcast.lane.b32.xlu0 %v667, %s672
        %v674 = vpop.permute.xlu0 %673
        %v675 = vlaneseq
        %v676 = vshrl.u32 %v675, 7
        %v677 = vsub.s32 5, %v676
        %v678 = vrot.slane %v177, %v677
        %680 = vbcast.lane.b32.xlu0 %v678, 256
        %v681 = vpop.permute.xlu0 %680
        %s683 = sor.u32 256, 8
        %684 = vbcast.lane.b32.xlu0 %v678, %s683
        %v685 = vpop.permute.xlu0 %684
        %v686 = vlaneseq
        %v687 = vshrl.u32 %v686, 7
        %v688 = vsub.s32 6, %v687
        %v689 = vrot.slane %v177, %v688
        %691 = vbcast.lane.b32.xlu0 %v689, 256
        %v692 = vpop.permute.xlu0 %691
        %s694 = sor.u32 256, 8
        %695 = vbcast.lane.b32.xlu0 %v689, %s694
        %v696 = vpop.permute.xlu0 %695
        %v697 = vlaneseq
        %v698 = vshrl.u32 %v697, 7
        %v699 = vsub.s32 7, %v698
        %v700 = vrot.slane %v177, %v699
        %702 = vbcast.lane.b32.xlu0 %v700, 256
        %v703 = vpop.permute.xlu0 %702
        %s705 = sor.u32 256, 8
        %706 = vbcast.lane.b32.xlu0 %v700, %s705
        %v707 = vpop.permute.xlu0 %706
        %v708 = vlaneseq
        %v709 = vshrl.u32 %v708, 7
        %v710 = vsub.s32 0, %v709
        %v711 = vrot.slane %v178, %v710
        %713 = vbcast.lane.b32.xlu0 %v711, 256
        %v714 = vpop.permute.xlu0 %713
        %s716 = sor.u32 256, 8
        %717 = vbcast.lane.b32.xlu0 %v711, %s716
        %v718 = vpop.permute.xlu0 %717
        %v719 = vlaneseq
        %v720 = vshrl.u32 %v719, 7
        %v721 = vsub.s32 1, %v720
        %v722 = vrot.slane %v178, %v721
        %724 = vbcast.lane.b32.xlu0 %v722, 256
        %v725 = vpop.permute.xlu0 %724
        %s727 = sor.u32 256, 8
        %728 = vbcast.lane.b32.xlu0 %v722, %s727
        %v729 = vpop.permute.xlu0 %728
        %v730 = vlaneseq
        %v731 = vshrl.u32 %v730, 7
        %v732 = vsub.s32 2, %v731
        %v733 = vrot.slane %v178, %v732
        %735 = vbcast.lane.b32.xlu0 %v733, 256
        %v736 = vpop.permute.xlu0 %735
        %s738 = sor.u32 256, 8
        %739 = vbcast.lane.b32.xlu0 %v733, %s738
        %v740 = vpop.permute.xlu0 %739
        %v741 = vlaneseq
        %v742 = vshrl.u32 %v741, 7
        %v743 = vsub.s32 3, %v742
        %v744 = vrot.slane %v178, %v743
        %746 = vbcast.lane.b32.xlu0 %v744, 256
        %v747 = vpop.permute.xlu0 %746
        %s749 = sor.u32 256, 8
        %750 = vbcast.lane.b32.xlu0 %v744, %s749
        %v751 = vpop.permute.xlu0 %750
        %v752 = vlaneseq
        %v753 = vshrl.u32 %v752, 7
        %v754 = vsub.s32 4, %v753
        %v755 = vrot.slane %v178, %v754
        %757 = vbcast.lane.b32.xlu0 %v755, 256
        %v758 = vpop.permute.xlu0 %757
        %s760 = sor.u32 256, 8
        %761 = vbcast.lane.b32.xlu0 %v755, %s760
        %v762 = vpop.permute.xlu0 %761
        %v763 = vlaneseq
        %v764 = vshrl.u32 %v763, 7
        %v765 = vsub.s32 5, %v764
        %v766 = vrot.slane %v178, %v765
        %768 = vbcast.lane.b32.xlu0 %v766, 256
        %v769 = vpop.permute.xlu0 %768
        %s771 = sor.u32 256, 8
        %772 = vbcast.lane.b32.xlu0 %v766, %s771
        %v773 = vpop.permute.xlu0 %772
        %v774 = vlaneseq
        %v775 = vshrl.u32 %v774, 7
        %v776 = vsub.s32 6, %v775
        %v777 = vrot.slane %v178, %v776
        %779 = vbcast.lane.b32.xlu0 %v777, 256
        %v780 = vpop.permute.xlu0 %779
        %s782 = sor.u32 256, 8
        %783 = vbcast.lane.b32.xlu0 %v777, %s782
        %v784 = vpop.permute.xlu0 %783
        %v785 = vlaneseq
        %v786 = vshrl.u32 %v785, 7
        %v787 = vsub.s32 7, %v786
        %v788 = vrot.slane %v178, %v787
        %790 = vbcast.lane.b32.xlu0 %v788, 256
        %v791 = vpop.permute.xlu0 %790
        %s793 = sor.u32 256, 8
        %794 = vbcast.lane.b32.xlu0 %v788, %s793
        %v795 = vpop.permute.xlu0 %794
        %v796 = vlaneseq
        %v797 = vshrl.u32 %v796, 7
        %v798 = vsub.s32 0, %v797
        %v799 = vrot.slane %v179, %v798
        %801 = vbcast.lane.b32.xlu0 %v799, 256
        %v802 = vpop.permute.xlu0 %801
        %s804 = sor.u32 256, 8
        %805 = vbcast.lane.b32.xlu0 %v799, %s804
        %v806 = vpop.permute.xlu0 %805
        %v807 = vlaneseq
        %v808 = vshrl.u32 %v807, 7
        %v809 = vsub.s32 1, %v808
        %v810 = vrot.slane %v179, %v809
        %812 = vbcast.lane.b32.xlu0 %v810, 256
        %v813 = vpop.permute.xlu0 %812
        %s815 = sor.u32 256, 8
        %816 = vbcast.lane.b32.xlu0 %v810, %s815
        %v817 = vpop.permute.xlu0 %816
        %v818 = vlaneseq
        %v819 = vshrl.u32 %v818, 7
        %v820 = vsub.s32 2, %v819
        %v821 = vrot.slane %v179, %v820
        %823 = vbcast.lane.b32.xlu0 %v821, 256
        %v824 = vpop.permute.xlu0 %823
        %s826 = sor.u32 256, 8
        %827 = vbcast.lane.b32.xlu0 %v821, %s826
        %v828 = vpop.permute.xlu0 %827
        %v829 = vlaneseq
        %v830 = vshrl.u32 %v829, 7
        %v831 = vsub.s32 3, %v830
        %v832 = vrot.slane %v179, %v831
        %834 = vbcast.lane.b32.xlu0 %v832, 256
        %v835 = vpop.permute.xlu0 %834
        %s837 = sor.u32 256, 8
        %838 = vbcast.lane.b32.xlu0 %v832, %s837
        %v839 = vpop.permute.xlu0 %838
        %v840 = vlaneseq
        %v841 = vshrl.u32 %v840, 7
        %v842 = vsub.s32 4, %v841
        %v843 = vrot.slane %v179, %v842
        %845 = vbcast.lane.b32.xlu0 %v843, 256
        %v846 = vpop.permute.xlu0 %845
        %s848 = sor.u32 256, 8
        %849 = vbcast.lane.b32.xlu0 %v843, %s848
        %v850 = vpop.permute.xlu0 %849
        %v851 = vlaneseq
        %v852 = vshrl.u32 %v851, 7
        %v853 = vsub.s32 5, %v852
        %v854 = vrot.slane %v179, %v853
        %856 = vbcast.lane.b32.xlu0 %v854, 256
        %v857 = vpop.permute.xlu0 %856
        %s859 = sor.u32 256, 8
        %860 = vbcast.lane.b32.xlu0 %v854, %s859
        %v861 = vpop.permute.xlu0 %860
        %v862 = vlaneseq
        %v863 = vshrl.u32 %v862, 7
        %v864 = vsub.s32 6, %v863
        %v865 = vrot.slane %v179, %v864
        %867 = vbcast.lane.b32.xlu0 %v865, 256
        %v868 = vpop.permute.xlu0 %867
        %s870 = sor.u32 256, 8
        %871 = vbcast.lane.b32.xlu0 %v865, %s870
        %v872 = vpop.permute.xlu0 %871
        %v873 = vlaneseq
        %v874 = vshrl.u32 %v873, 7
        %v875 = vsub.s32 7, %v874
        %v876 = vrot.slane %v179, %v875
        %878 = vbcast.lane.b32.xlu0 %v876, 256
        %v879 = vpop.permute.xlu0 %878
        %s881 = sor.u32 256, 8
        %882 = vbcast.lane.b32.xlu0 %v876, %s881
        %v883 = vpop.permute.xlu0 %882
        %vm884 = vcmask 7168
        %v885 = vsel %vm884, %v186, %v538
        %v886 = vsel %vm884, %v190, %v542
        %v887 = vsel %vm884, %v197, %v549
        %v888 = vsel %vm884, %v201, %v553
        %v889 = vsel %vm884, %v208, %v560
        %v890 = vsel %vm884, %v212, %v564
        %v891 = vsel %vm884, %v219, %v571
        %v892 = vsel %vm884, %v223, %v575
        %v893 = vsel %vm884, %v230, %v582
        %v894 = vsel %vm884, %v234, %v586
        %v895 = vsel %vm884, %v241, %v593
        %v896 = vsel %vm884, %v245, %v597
        %v897 = vsel %vm884, %v252, %v604
        %v898 = vsel %vm884, %v256, %v608
        %v899 = vsel %vm884, %v263, %v615
        %v900 = vsel %vm884, %v267, %v619
        %v901 = vsel %vm884, %v274, %v626
        %v902 = vsel %vm884, %v278, %v630
        %v903 = vsel %vm884, %v285, %v637
        %v904 = vsel %vm884, %v289, %v641
        %v905 = vsel %vm884, %v296, %v648
        %v906 = vsel %vm884, %v300, %v652
        %v907 = vsel %vm884, %v307, %v659
        %v908 = vsel %vm884, %v311, %v663
        %v909 = vsel %vm884, %v318, %v670
        %v910 = vsel %vm884, %v322, %v674
        %v911 = vsel %vm884, %v329, %v681
        %v912 = vsel %vm884, %v333, %v685
        %v913 = vsel %vm884, %v340, %v692
        %v914 = vsel %vm884, %v344, %v696
        %v915 = vsel %vm884, %v351, %v703
        %v916 = vsel %vm884, %v355, %v707
        %v917 = vsel %vm884, %v362, %v714
        %v918 = vsel %vm884, %v366, %v718
        %v919 = vsel %vm884, %v373, %v725
        %v920 = vsel %vm884, %v377, %v729
        %v921 = vsel %vm884, %v384, %v736
        %v922 = vsel %vm884, %v388, %v740
        %v923 = vsel %vm884, %v395, %v747
        %v924 = vsel %vm884, %v399, %v751
        %v925 = vsel %vm884, %v406, %v758
        %v926 = vsel %vm884, %v410, %v762
        %v927 = vsel %vm884, %v417, %v769
        %v928 = vsel %vm884, %v421, %v773
        %v929 = vsel %vm884, %v428, %v780
        %v930 = vsel %vm884, %v432, %v784
        %v931 = vsel %vm884, %v439, %v791
        %v932 = vsel %vm884, %v443, %v795
        %v933 = vsel %vm884, %v450, %v802
        %v934 = vsel %vm884, %v454, %v806
        %v935 = vsel %vm884, %v461, %v813
        %v936 = vsel %vm884, %v465, %v817
        %v937 = vsel %vm884, %v472, %v824
        %v938 = vsel %vm884, %v476, %v828
        %v939 = vsel %vm884, %v483, %v835
        %v940 = vsel %vm884, %v487, %v839
        %v941 = vsel %vm884, %v494, %v846
        %v942 = vsel %vm884, %v498, %v850
        %v943 = vsel %vm884, %v505, %v857
        %v944 = vsel %vm884, %v509, %v861
        %v945 = vsel %vm884, %v516, %v868
        %v946 = vsel %vm884, %v520, %v872
        %v947 = vsel %vm884, %v527, %v879
        %v948 = vsel %vm884, %v531, %v883
        %s949 = scalar_lea.vmem %s148, 64 [#allocation2]
        %v950 = vld [vmem:[%s949] sm:$0xff]
        %v951 = vld [vmem:[%s949 + $0x8] sm:$0xff]
        %v952 = vld [vmem:[%s949 + $0x10] sm:$0xff]
        %v953 = vld [vmem:[%s949 + $0x18] sm:$0xff]
        %s954 = scalar_lea.vmem %s148, 96 [#allocation2]
        %v955 = vld [vmem:[%s954] sm:$0xff]
        %v956 = vld [vmem:[%s954 + $0x8] sm:$0xff]
        %v957 = vld [vmem:[%s954 + $0x10] sm:$0xff]
        %v958 = vld [vmem:[%s954 + $0x18] sm:$0xff]
        %v959 = vlaneseq
        %v960 = vshrl.u32 %v959, 7
        %v961 = vsub.s32 0, %v960
        %v962 = vrot.slane %v950, %v961
        %964 = vbcast.lane.b32.xlu0 %v962, 256
        %v965 = vpop.permute.xlu0 %964
        %s967 = sor.u32 256, 8
        %968 = vbcast.lane.b32.xlu0 %v962, %s967
        %v969 = vpop.permute.xlu0 %968
        %v970 = vlaneseq
        %v971 = vshrl.u32 %v970, 7
        %v972 = vsub.s32 1, %v971
        %v973 = vrot.slane %v950, %v972
        %975 = vbcast.lane.b32.xlu0 %v973, 256
        %v976 = vpop.permute.xlu0 %975
        %s978 = sor.u32 256, 8
        %979 = vbcast.lane.b32.xlu0 %v973, %s978
        %v980 = vpop.permute.xlu0 %979
        %v981 = vlaneseq
        %v982 = vshrl.u32 %v981, 7
        %v983 = vsub.s32 2, %v982
        %v984 = vrot.slane %v950, %v983
        %986 = vbcast.lane.b32.xlu0 %v984, 256
        %v987 = vpop.permute.xlu0 %986
        %s989 = sor.u32 256, 8
        %990 = vbcast.lane.b32.xlu0 %v984, %s989
        %v991 = vpop.permute.xlu0 %990
        %v992 = vlaneseq
        %v993 = vshrl.u32 %v992, 7
        %v994 = vsub.s32 3, %v993
        %v995 = vrot.slane %v950, %v994
        %997 = vbcast.lane.b32.xlu0 %v995, 256
        %v998 = vpop.permute.xlu0 %997
        %s1000 = sor.u32 256, 8
        %1001 = vbcast.lane.b32.xlu0 %v995, %s1000
        %v1002 = vpop.permute.xlu0 %1001
        %v1003 = vlaneseq
        %v1004 = vshrl.u32 %v1003, 7
        %v1005 = vsub.s32 4, %v1004
        %v1006 = vrot.slane %v950, %v1005
        %1008 = vbcast.lane.b32.xlu0 %v1006, 256
        %v1009 = vpop.permute.xlu0 %1008
        %s1011 = sor.u32 256, 8
        %1012 = vbcast.lane.b32.xlu0 %v1006, %s1011
        %v1013 = vpop.permute.xlu0 %1012
        %v1014 = vlaneseq
        %v1015 = vshrl.u32 %v1014, 7
        %v1016 = vsub.s32 5, %v1015
        %v1017 = vrot.slane %v950, %v1016
        %1019 = vbcast.lane.b32.xlu0 %v1017, 256
        %v1020 = vpop.permute.xlu0 %1019
        %s1022 = sor.u32 256, 8
        %1023 = vbcast.lane.b32.xlu0 %v1017, %s1022
        %v1024 = vpop.permute.xlu0 %1023
        %v1025 = vlaneseq
        %v1026 = vshrl.u32 %v1025, 7
        %v1027 = vsub.s32 6, %v1026
        %v1028 = vrot.slane %v950, %v1027
        %1030 = vbcast.lane.b32.xlu0 %v1028, 256
        %v1031 = vpop.permute.xlu0 %1030
        %s1033 = sor.u32 256, 8
        %1034 = vbcast.lane.b32.xlu0 %v1028, %s1033
        %v1035 = vpop.permute.xlu0 %1034
        %v1036 = vlaneseq
        %v1037 = vshrl.u32 %v1036, 7
        %v1038 = vsub.s32 7, %v1037
        %v1039 = vrot.slane %v950, %v1038
        %1041 = vbcast.lane.b32.xlu0 %v1039, 256
        %v1042 = vpop.permute.xlu0 %1041
        %s1044 = sor.u32 256, 8
        %1045 = vbcast.lane.b32.xlu0 %v1039, %s1044
        %v1046 = vpop.permute.xlu0 %1045
        %v1047 = vlaneseq
        %v1048 = vshrl.u32 %v1047, 7
        %v1049 = vsub.s32 0, %v1048
        %v1050 = vrot.slane %v951, %v1049
        %1052 = vbcast.lane.b32.xlu0 %v1050, 256
        %v1053 = vpop.permute.xlu0 %1052
        %s1055 = sor.u32 256, 8
        %1056 = vbcast.lane.b32.xlu0 %v1050, %s1055
        %v1057 = vpop.permute.xlu0 %1056
        %v1058 = vlaneseq
        %v1059 = vshrl.u32 %v1058, 7
        %v1060 = vsub.s32 1, %v1059
        %v1061 = vrot.slane %v951, %v1060
        %1063 = vbcast.lane.b32.xlu0 %v1061, 256
        %v1064 = vpop.permute.xlu0 %1063
        %s1066 = sor.u32 256, 8
        %1067 = vbcast.lane.b32.xlu0 %v1061, %s1066
        %v1068 = vpop.permute.xlu0 %1067
        %v1069 = vlaneseq
        %v1070 = vshrl.u32 %v1069, 7
        %v1071 = vsub.s32 2, %v1070
        %v1072 = vrot.slane %v951, %v1071
        %1074 = vbcast.lane.b32.xlu0 %v1072, 256
        %v1075 = vpop.permute.xlu0 %1074
        %s1077 = sor.u32 256, 8
        %1078 = vbcast.lane.b32.xlu0 %v1072, %s1077
        %v1079 = vpop.permute.xlu0 %1078
        %v1080 = vlaneseq
        %v1081 = vshrl.u32 %v1080, 7
        %v1082 = vsub.s32 3, %v1081
        %v1083 = vrot.slane %v951, %v1082
        %1085 = vbcast.lane.b32.xlu0 %v1083, 256
        %v1086 = vpop.permute.xlu0 %1085
        %s1088 = sor.u32 256, 8
        %1089 = vbcast.lane.b32.xlu0 %v1083, %s1088
        %v1090 = vpop.permute.xlu0 %1089
        %v1091 = vlaneseq
        %v1092 = vshrl.u32 %v1091, 7
        %v1093 = vsub.s32 4, %v1092
        %v1094 = vrot.slane %v951, %v1093
        %1096 = vbcast.lane.b32.xlu0 %v1094, 256
        %v1097 = vpop.permute.xlu0 %1096
        %s1099 = sor.u32 256, 8
        %1100 = vbcast.lane.b32.xlu0 %v1094, %s1099
        %v1101 = vpop.permute.xlu0 %1100
        %v1102 = vlaneseq
        %v1103 = vshrl.u32 %v1102, 7
        %v1104 = vsub.s32 5, %v1103
        %v1105 = vrot.slane %v951, %v1104
        %1107 = vbcast.lane.b32.xlu0 %v1105, 256
        %v1108 = vpop.permute.xlu0 %1107
        %s1110 = sor.u32 256, 8
        %1111 = vbcast.lane.b32.xlu0 %v1105, %s1110
        %v1112 = vpop.permute.xlu0 %1111
        %v1113 = vlaneseq
        %v1114 = vshrl.u32 %v1113, 7
        %v1115 = vsub.s32 6, %v1114
        %v1116 = vrot.slane %v951, %v1115
        %1118 = vbcast.lane.b32.xlu0 %v1116, 256
        %v1119 = vpop.permute.xlu0 %1118
        %s1121 = sor.u32 256, 8
        %1122 = vbcast.lane.b32.xlu0 %v1116, %s1121
        %v1123 = vpop.permute.xlu0 %1122
        %v1124 = vlaneseq
        %v1125 = vshrl.u32 %v1124, 7
        %v1126 = vsub.s32 7, %v1125
        %v1127 = vrot.slane %v951, %v1126
        %1129 = vbcast.lane.b32.xlu0 %v1127, 256
        %v1130 = vpop.permute.xlu0 %1129
        %s1132 = sor.u32 256, 8
        %1133 = vbcast.lane.b32.xlu0 %v1127, %s1132
        %v1134 = vpop.permute.xlu0 %1133
        %v1135 = vlaneseq
        %v1136 = vshrl.u32 %v1135, 7
        %v1137 = vsub.s32 0, %v1136
        %v1138 = vrot.slane %v952, %v1137
        %1140 = vbcast.lane.b32.xlu0 %v1138, 256
        %v1141 = vpop.permute.xlu0 %1140
        %s1143 = sor.u32 256, 8
        %1144 = vbcast.lane.b32.xlu0 %v1138, %s1143
        %v1145 = vpop.permute.xlu0 %1144
        %v1146 = vlaneseq
        %v1147 = vshrl.u32 %v1146, 7
        %v1148 = vsub.s32 1, %v1147
        %v1149 = vrot.slane %v952, %v1148
        %1151 = vbcast.lane.b32.xlu0 %v1149, 256
        %v1152 = vpop.permute.xlu0 %1151
        %s1154 = sor.u32 256, 8
        %1155 = vbcast.lane.b32.xlu0 %v1149, %s1154
        %v1156 = vpop.permute.xlu0 %1155
        %v1157 = vlaneseq
        %v1158 = vshrl.u32 %v1157, 7
        %v1159 = vsub.s32 2, %v1158
        %v1160 = vrot.slane %v952, %v1159
        %1162 = vbcast.lane.b32.xlu0 %v1160, 256
        %v1163 = vpop.permute.xlu0 %1162
        %s1165 = sor.u32 256, 8
        %1166 = vbcast.lane.b32.xlu0 %v1160, %s1165
        %v1167 = vpop.permute.xlu0 %1166
        %v1168 = vlaneseq
        %v1169 = vshrl.u32 %v1168, 7
        %v1170 = vsub.s32 3, %v1169
        %v1171 = vrot.slane %v952, %v1170
        %1173 = vbcast.lane.b32.xlu0 %v1171, 256
        %v1174 = vpop.permute.xlu0 %1173
        %s1176 = sor.u32 256, 8
        %1177 = vbcast.lane.b32.xlu0 %v1171, %s1176
        %v1178 = vpop.permute.xlu0 %1177
        %v1179 = vlaneseq
        %v1180 = vshrl.u32 %v1179, 7
        %v1181 = vsub.s32 4, %v1180
        %v1182 = vrot.slane %v952, %v1181
        %1184 = vbcast.lane.b32.xlu0 %v1182, 256
        %v1185 = vpop.permute.xlu0 %1184
        %s1187 = sor.u32 256, 8
        %1188 = vbcast.lane.b32.xlu0 %v1182, %s1187
        %v1189 = vpop.permute.xlu0 %1188
        %v1190 = vlaneseq
        %v1191 = vshrl.u32 %v1190, 7
        %v1192 = vsub.s32 5, %v1191
        %v1193 = vrot.slane %v952, %v1192
        %1195 = vbcast.lane.b32.xlu0 %v1193, 256
        %v1196 = vpop.permute.xlu0 %1195
        %s1198 = sor.u32 256, 8
        %1199 = vbcast.lane.b32.xlu0 %v1193, %s1198
        %v1200 = vpop.permute.xlu0 %1199
        %v1201 = vlaneseq
        %v1202 = vshrl.u32 %v1201, 7
        %v1203 = vsub.s32 6, %v1202
        %v1204 = vrot.slane %v952, %v1203
        %1206 = vbcast.lane.b32.xlu0 %v1204, 256
        %v1207 = vpop.permute.xlu0 %1206
        %s1209 = sor.u32 256, 8
        %1210 = vbcast.lane.b32.xlu0 %v1204, %s1209
        %v1211 = vpop.permute.xlu0 %1210
        %v1212 = vlaneseq
        %v1213 = vshrl.u32 %v1212, 7
        %v1214 = vsub.s32 7, %v1213
        %v1215 = vrot.slane %v952, %v1214
        %1217 = vbcast.lane.b32.xlu0 %v1215, 256
        %v1218 = vpop.permute.xlu0 %1217
        %s1220 = sor.u32 256, 8
        %1221 = vbcast.lane.b32.xlu0 %v1215, %s1220
        %v1222 = vpop.permute.xlu0 %1221
        %v1223 = vlaneseq
        %v1224 = vshrl.u32 %v1223, 7
        %v1225 = vsub.s32 0, %v1224
        %v1226 = vrot.slane %v953, %v1225
        %1228 = vbcast.lane.b32.xlu0 %v1226, 256
        %v1229 = vpop.permute.xlu0 %1228
        %s1231 = sor.u32 256, 8
        %1232 = vbcast.lane.b32.xlu0 %v1226, %s1231
        %v1233 = vpop.permute.xlu0 %1232
        %v1234 = vlaneseq
        %v1235 = vshrl.u32 %v1234, 7
        %v1236 = vsub.s32 1, %v1235
        %v1237 = vrot.slane %v953, %v1236
        %1239 = vbcast.lane.b32.xlu0 %v1237, 256
        %v1240 = vpop.permute.xlu0 %1239
        %s1242 = sor.u32 256, 8
        %1243 = vbcast.lane.b32.xlu0 %v1237, %s1242
        %v1244 = vpop.permute.xlu0 %1243
        %v1245 = vlaneseq
        %v1246 = vshrl.u32 %v1245, 7
        %v1247 = vsub.s32 2, %v1246
        %v1248 = vrot.slane %v953, %v1247
        %1250 = vbcast.lane.b32.xlu0 %v1248, 256
        %v1251 = vpop.permute.xlu0 %1250
        %s1253 = sor.u32 256, 8
        %1254 = vbcast.lane.b32.xlu0 %v1248, %s1253
        %v1255 = vpop.permute.xlu0 %1254
        %v1256 = vlaneseq
        %v1257 = vshrl.u32 %v1256, 7
        %v1258 = vsub.s32 3, %v1257
        %v1259 = vrot.slane %v953, %v1258
        %1261 = vbcast.lane.b32.xlu0 %v1259, 256
        %v1262 = vpop.permute.xlu0 %1261
        %s1264 = sor.u32 256, 8
        %1265 = vbcast.lane.b32.xlu0 %v1259, %s1264
        %v1266 = vpop.permute.xlu0 %1265
        %v1267 = vlaneseq
        %v1268 = vshrl.u32 %v1267, 7
        %v1269 = vsub.s32 4, %v1268
        %v1270 = vrot.slane %v953, %v1269
        %1272 = vbcast.lane.b32.xlu0 %v1270, 256
        %v1273 = vpop.permute.xlu0 %1272
        %s1275 = sor.u32 256, 8
        %1276 = vbcast.lane.b32.xlu0 %v1270, %s1275
        %v1277 = vpop.permute.xlu0 %1276
        %v1278 = vlaneseq
        %v1279 = vshrl.u32 %v1278, 7
        %v1280 = vsub.s32 5, %v1279
        %v1281 = vrot.slane %v953, %v1280
        %1283 = vbcast.lane.b32.xlu0 %v1281, 256
        %v1284 = vpop.permute.xlu0 %1283
        %s1286 = sor.u32 256, 8
        %1287 = vbcast.lane.b32.xlu0 %v1281, %s1286
        %v1288 = vpop.permute.xlu0 %1287
        %v1289 = vlaneseq
        %v1290 = vshrl.u32 %v1289, 7
        %v1291 = vsub.s32 6, %v1290
        %v1292 = vrot.slane %v953, %v1291
        %1294 = vbcast.lane.b32.xlu0 %v1292, 256
        %v1295 = vpop.permute.xlu0 %1294
        %s1297 = sor.u32 256, 8
        %1298 = vbcast.lane.b32.xlu0 %v1292, %s1297
        %v1299 = vpop.permute.xlu0 %1298
        %v1300 = vlaneseq
        %v1301 = vshrl.u32 %v1300, 7
        %v1302 = vsub.s32 7, %v1301
        %v1303 = vrot.slane %v953, %v1302
        %1305 = vbcast.lane.b32.xlu0 %v1303, 256
        %v1306 = vpop.permute.xlu0 %1305
        %s1308 = sor.u32 256, 8
        %1309 = vbcast.lane.b32.xlu0 %v1303, %s1308
        %v1310 = vpop.permute.xlu0 %1309
        %v1311 = vlaneseq
        %v1312 = vshrl.u32 %v1311, 7
        %v1313 = vsub.s32 0, %v1312
        %v1314 = vrot.slane %v955, %v1313
        %1316 = vbcast.lane.b32.xlu0 %v1314, 256
        %v1317 = vpop.permute.xlu0 %1316
        %s1319 = sor.u32 256, 8
        %1320 = vbcast.lane.b32.xlu0 %v1314, %s1319
        %v1321 = vpop.permute.xlu0 %1320
        %v1322 = vlaneseq
        %v1323 = vshrl.u32 %v1322, 7
        %v1324 = vsub.s32 1, %v1323
        %v1325 = vrot.slane %v955, %v1324
        %1327 = vbcast.lane.b32.xlu0 %v1325, 256
        %v1328 = vpop.permute.xlu0 %1327
        %s1330 = sor.u32 256, 8
        %1331 = vbcast.lane.b32.xlu0 %v1325, %s1330
        %v1332 = vpop.permute.xlu0 %1331
        %v1333 = vlaneseq
        %v1334 = vshrl.u32 %v1333, 7
        %v1335 = vsub.s32 2, %v1334
        %v1336 = vrot.slane %v955, %v1335
        %1338 = vbcast.lane.b32.xlu0 %v1336, 256
        %v1339 = vpop.permute.xlu0 %1338
        %s1341 = sor.u32 256, 8
        %1342 = vbcast.lane.b32.xlu0 %v1336, %s1341
        %v1343 = vpop.permute.xlu0 %1342
        %v1344 = vlaneseq
        %v1345 = vshrl.u32 %v1344, 7
        %v1346 = vsub.s32 3, %v1345
        %v1347 = vrot.slane %v955, %v1346
        %1349 = vbcast.lane.b32.xlu0 %v1347, 256
        %v1350 = vpop.permute.xlu0 %1349
        %s1352 = sor.u32 256, 8
        %1353 = vbcast.lane.b32.xlu0 %v1347, %s1352
        %v1354 = vpop.permute.xlu0 %1353
        %v1355 = vlaneseq
        %v1356 = vshrl.u32 %v1355, 7
        %v1357 = vsub.s32 4, %v1356
        %v1358 = vrot.slane %v955, %v1357
        %1360 = vbcast.lane.b32.xlu0 %v1358, 256
        %v1361 = vpop.permute.xlu0 %1360
        %s1363 = sor.u32 256, 8
        %1364 = vbcast.lane.b32.xlu0 %v1358, %s1363
        %v1365 = vpop.permute.xlu0 %1364
        %v1366 = vlaneseq
        %v1367 = vshrl.u32 %v1366, 7
        %v1368 = vsub.s32 5, %v1367
        %v1369 = vrot.slane %v955, %v1368
        %1371 = vbcast.lane.b32.xlu0 %v1369, 256
        %v1372 = vpop.permute.xlu0 %1371
        %s1374 = sor.u32 256, 8
        %1375 = vbcast.lane.b32.xlu0 %v1369, %s1374
        %v1376 = vpop.permute.xlu0 %1375
        %v1377 = vlaneseq
        %v1378 = vshrl.u32 %v1377, 7
        %v1379 = vsub.s32 6, %v1378
        %v1380 = vrot.slane %v955, %v1379
        %1382 = vbcast.lane.b32.xlu0 %v1380, 256
        %v1383 = vpop.permute.xlu0 %1382
        %s1385 = sor.u32 256, 8
        %1386 = vbcast.lane.b32.xlu0 %v1380, %s1385
        %v1387 = vpop.permute.xlu0 %1386
        %v1388 = vlaneseq
        %v1389 = vshrl.u32 %v1388, 7
        %v1390 = vsub.s32 7, %v1389
        %v1391 = vrot.slane %v955, %v1390
        %1393 = vbcast.lane.b32.xlu0 %v1391, 256
        %v1394 = vpop.permute.xlu0 %1393
        %s1396 = sor.u32 256, 8
        %1397 = vbcast.lane.b32.xlu0 %v1391, %s1396
        %v1398 = vpop.permute.xlu0 %1397
        %v1399 = vlaneseq
        %v1400 = vshrl.u32 %v1399, 7
        %v1401 = vsub.s32 0, %v1400
        %v1402 = vrot.slane %v956, %v1401
        %1404 = vbcast.lane.b32.xlu0 %v1402, 256
        %v1405 = vpop.permute.xlu0 %1404
        %s1407 = sor.u32 256, 8
        %1408 = vbcast.lane.b32.xlu0 %v1402, %s1407
        %v1409 = vpop.permute.xlu0 %1408
        %v1410 = vlaneseq
        %v1411 = vshrl.u32 %v1410, 7
        %v1412 = vsub.s32 1, %v1411
        %v1413 = vrot.slane %v956, %v1412
        %1415 = vbcast.lane.b32.xlu0 %v1413, 256
        %v1416 = vpop.permute.xlu0 %1415
        %s1418 = sor.u32 256, 8
        %1419 = vbcast.lane.b32.xlu0 %v1413, %s1418
        %v1420 = vpop.permute.xlu0 %1419
        %v1421 = vlaneseq
        %v1422 = vshrl.u32 %v1421, 7
        %v1423 = vsub.s32 2, %v1422
        %v1424 = vrot.slane %v956, %v1423
        %1426 = vbcast.lane.b32.xlu0 %v1424, 256
        %v1427 = vpop.permute.xlu0 %1426
        %s1429 = sor.u32 256, 8
        %1430 = vbcast.lane.b32.xlu0 %v1424, %s1429
        %v1431 = vpop.permute.xlu0 %1430
        %v1432 = vlaneseq
        %v1433 = vshrl.u32 %v1432, 7
        %v1434 = vsub.s32 3, %v1433
        %v1435 = vrot.slane %v956, %v1434
        %1437 = vbcast.lane.b32.xlu0 %v1435, 256
        %v1438 = vpop.permute.xlu0 %1437
        %s1440 = sor.u32 256, 8
        %1441 = vbcast.lane.b32.xlu0 %v1435, %s1440
        %v1442 = vpop.permute.xlu0 %1441
        %v1443 = vlaneseq
        %v1444 = vshrl.u32 %v1443, 7
        %v1445 = vsub.s32 4, %v1444
        %v1446 = vrot.slane %v956, %v1445
        %1448 = vbcast.lane.b32.xlu0 %v1446, 256
        %v1449 = vpop.permute.xlu0 %1448
        %s1451 = sor.u32 256, 8
        %1452 = vbcast.lane.b32.xlu0 %v1446, %s1451
        %v1453 = vpop.permute.xlu0 %1452
        %v1454 = vlaneseq
        %v1455 = vshrl.u32 %v1454, 7
        %v1456 = vsub.s32 5, %v1455
        %v1457 = vrot.slane %v956, %v1456
        %1459 = vbcast.lane.b32.xlu0 %v1457, 256
        %v1460 = vpop.permute.xlu0 %1459
        %s1462 = sor.u32 256, 8
        %1463 = vbcast.lane.b32.xlu0 %v1457, %s1462
        %v1464 = vpop.permute.xlu0 %1463
        %v1465 = vlaneseq
        %v1466 = vshrl.u32 %v1465, 7
        %v1467 = vsub.s32 6, %v1466
        %v1468 = vrot.slane %v956, %v1467
        %1470 = vbcast.lane.b32.xlu0 %v1468, 256
        %v1471 = vpop.permute.xlu0 %1470
        %s1473 = sor.u32 256, 8
        %1474 = vbcast.lane.b32.xlu0 %v1468, %s1473
        %v1475 = vpop.permute.xlu0 %1474
        %v1476 = vlaneseq
        %v1477 = vshrl.u32 %v1476, 7
        %v1478 = vsub.s32 7, %v1477
        %v1479 = vrot.slane %v956, %v1478
        %1481 = vbcast.lane.b32.xlu0 %v1479, 256
        %v1482 = vpop.permute.xlu0 %1481
        %s1484 = sor.u32 256, 8
        %1485 = vbcast.lane.b32.xlu0 %v1479, %s1484
        %v1486 = vpop.permute.xlu0 %1485
        %v1487 = vlaneseq
        %v1488 = vshrl.u32 %v1487, 7
        %v1489 = vsub.s32 0, %v1488
        %v1490 = vrot.slane %v957, %v1489
        %1492 = vbcast.lane.b32.xlu0 %v1490, 256
        %v1493 = vpop.permute.xlu0 %1492
        %s1495 = sor.u32 256, 8
        %1496 = vbcast.lane.b32.xlu0 %v1490, %s1495
        %v1497 = vpop.permute.xlu0 %1496
        %v1498 = vlaneseq
        %v1499 = vshrl.u32 %v1498, 7
        %v1500 = vsub.s32 1, %v1499
        %v1501 = vrot.slane %v957, %v1500
        %1503 = vbcast.lane.b32.xlu0 %v1501, 256
        %v1504 = vpop.permute.xlu0 %1503
        %s1506 = sor.u32 256, 8
        %1507 = vbcast.lane.b32.xlu0 %v1501, %s1506
        %v1508 = vpop.permute.xlu0 %1507
        %v1509 = vlaneseq
        %v1510 = vshrl.u32 %v1509, 7
        %v1511 = vsub.s32 2, %v1510
        %v1512 = vrot.slane %v957, %v1511
        %1514 = vbcast.lane.b32.xlu0 %v1512, 256
        %v1515 = vpop.permute.xlu0 %1514
        %s1517 = sor.u32 256, 8
        %1518 = vbcast.lane.b32.xlu0 %v1512, %s1517
        %v1519 = vpop.permute.xlu0 %1518
        %v1520 = vlaneseq
        %v1521 = vshrl.u32 %v1520, 7
        %v1522 = vsub.s32 3, %v1521
        %v1523 = vrot.slane %v957, %v1522
        %1525 = vbcast.lane.b32.xlu0 %v1523, 256
        %v1526 = vpop.permute.xlu0 %1525
        %s1528 = sor.u32 256, 8
        %1529 = vbcast.lane.b32.xlu0 %v1523, %s1528
        %v1530 = vpop.permute.xlu0 %1529
        %v1531 = vlaneseq
        %v1532 = vshrl.u32 %v1531, 7
        %v1533 = vsub.s32 4, %v1532
        %v1534 = vrot.slane %v957, %v1533
        %1536 = vbcast.lane.b32.xlu0 %v1534, 256
        %v1537 = vpop.permute.xlu0 %1536
        %s1539 = sor.u32 256, 8
        %1540 = vbcast.lane.b32.xlu0 %v1534, %s1539
        %v1541 = vpop.permute.xlu0 %1540
        %v1542 = vlaneseq
        %v1543 = vshrl.u32 %v1542, 7
        %v1544 = vsub.s32 5, %v1543
        %v1545 = vrot.slane %v957, %v1544
        %1547 = vbcast.lane.b32.xlu0 %v1545, 256
        %v1548 = vpop.permute.xlu0 %1547
        %s1550 = sor.u32 256, 8
        %1551 = vbcast.lane.b32.xlu0 %v1545, %s1550
        %v1552 = vpop.permute.xlu0 %1551
        %v1553 = vlaneseq
        %v1554 = vshrl.u32 %v1553, 7
        %v1555 = vsub.s32 6, %v1554
        %v1556 = vrot.slane %v957, %v1555
        %1558 = vbcast.lane.b32.xlu0 %v1556, 256
        %v1559 = vpop.permute.xlu0 %1558
        %s1561 = sor.u32 256, 8
        %1562 = vbcast.lane.b32.xlu0 %v1556, %s1561
        %v1563 = vpop.permute.xlu0 %1562
        %v1564 = vlaneseq
        %v1565 = vshrl.u32 %v1564, 7
        %v1566 = vsub.s32 7, %v1565
        %v1567 = vrot.slane %v957, %v1566
        %1569 = vbcast.lane.b32.xlu0 %v1567, 256
        %v1570 = vpop.permute.xlu0 %1569
        %s1572 = sor.u32 256, 8
        %1573 = vbcast.lane.b32.xlu0 %v1567, %s1572
        %v1574 = vpop.permute.xlu0 %1573
        %v1575 = vlaneseq
        %v1576 = vshrl.u32 %v1575, 7
        %v1577 = vsub.s32 0, %v1576
        %v1578 = vrot.slane %v958, %v1577
        %1580 = vbcast.lane.b32.xlu0 %v1578, 256
        %v1581 = vpop.permute.xlu0 %1580
        %s1583 = sor.u32 256, 8
        %1584 = vbcast.lane.b32.xlu0 %v1578, %s1583
        %v1585 = vpop.permute.xlu0 %1584
        %v1586 = vlaneseq
        %v1587 = vshrl.u32 %v1586, 7
        %v1588 = vsub.s32 1, %v1587
        %v1589 = vrot.slane %v958, %v1588
        %1591 = vbcast.lane.b32.xlu0 %v1589, 256
        %v1592 = vpop.permute.xlu0 %1591
        %s1594 = sor.u32 256, 8
        %1595 = vbcast.lane.b32.xlu0 %v1589, %s1594
        %v1596 = vpop.permute.xlu0 %1595
        %v1597 = vlaneseq
        %v1598 = vshrl.u32 %v1597, 7
        %v1599 = vsub.s32 2, %v1598
        %v1600 = vrot.slane %v958, %v1599
        %1602 = vbcast.lane.b32.xlu0 %v1600, 256
        %v1603 = vpop.permute.xlu0 %1602
        %s1605 = sor.u32 256, 8
        %1606 = vbcast.lane.b32.xlu0 %v1600, %s1605
        %v1607 = vpop.permute.xlu0 %1606
        %v1608 = vlaneseq
        %v1609 = vshrl.u32 %v1608, 7
        %v1610 = vsub.s32 3, %v1609
        %v1611 = vrot.slane %v958, %v1610
        %1613 = vbcast.lane.b32.xlu0 %v1611, 256
        %v1614 = vpop.permute.xlu0 %1613
        %s1616 = sor.u32 256, 8
        %1617 = vbcast.lane.b32.xlu0 %v1611, %s1616
        %v1618 = vpop.permute.xlu0 %1617
        %v1619 = vlaneseq
        %v1620 = vshrl.u32 %v1619, 7
        %v1621 = vsub.s32 4, %v1620
        %v1622 = vrot.slane %v958, %v1621
        %1624 = vbcast.lane.b32.xlu0 %v1622, 256
        %v1625 = vpop.permute.xlu0 %1624
        %s1627 = sor.u32 256, 8
        %1628 = vbcast.lane.b32.xlu0 %v1622, %s1627
        %v1629 = vpop.permute.xlu0 %1628
        %v1630 = vlaneseq
        %v1631 = vshrl.u32 %v1630, 7
        %v1632 = vsub.s32 5, %v1631
        %v1633 = vrot.slane %v958, %v1632
        %1635 = vbcast.lane.b32.xlu0 %v1633, 256
        %v1636 = vpop.permute.xlu0 %1635
        %s1638 = sor.u32 256, 8
        %1639 = vbcast.lane.b32.xlu0 %v1633, %s1638
        %v1640 = vpop.permute.xlu0 %1639
        %v1641 = vlaneseq
        %v1642 = vshrl.u32 %v1641, 7
        %v1643 = vsub.s32 6, %v1642
        %v1644 = vrot.slane %v958, %v1643
        %1646 = vbcast.lane.b32.xlu0 %v1644, 256
        %v1647 = vpop.permute.xlu0 %1646
        %s1649 = sor.u32 256, 8
        %1650 = vbcast.lane.b32.xlu0 %v1644, %s1649
        %v1651 = vpop.permute.xlu0 %1650
        %v1652 = vlaneseq
        %v1653 = vshrl.u32 %v1652, 7
        %v1654 = vsub.s32 7, %v1653
        %v1655 = vrot.slane %v958, %v1654
        %1657 = vbcast.lane.b32.xlu0 %v1655, 256
        %v1658 = vpop.permute.xlu0 %1657
        %s1660 = sor.u32 256, 8
        %1661 = vbcast.lane.b32.xlu0 %v1655, %s1660
        %v1662 = vpop.permute.xlu0 %1661
        %v1663 = vsel %vm884, %v965, %v1317
        %v1664 = vsel %vm884, %v969, %v1321
        %v1665 = vsel %vm884, %v976, %v1328
        %v1666 = vsel %vm884, %v980, %v1332
        %v1667 = vsel %vm884, %v987, %v1339
        %v1668 = vsel %vm884, %v991, %v1343
        %v1669 = vsel %vm884, %v998, %v1350
        %v1670 = vsel %vm884, %v1002, %v1354
        %v1671 = vsel %vm884, %v1009, %v1361
        %v1672 = vsel %vm884, %v1013, %v1365
        %v1673 = vsel %vm884, %v1020, %v1372
        %v1674 = vsel %vm884, %v1024, %v1376
        %v1675 = vsel %vm884, %v1031, %v1383
        %v1676 = vsel %vm884, %v1035, %v1387
        %v1677 = vsel %vm884, %v1042, %v1394
        %v1678 = vsel %vm884, %v1046, %v1398
        %v1679 = vsel %vm884, %v1053, %v1405
        %v1680 = vsel %vm884, %v1057, %v1409
        %v1681 = vsel %vm884, %v1064, %v1416
        %v1682 = vsel %vm884, %v1068, %v1420
        %v1683 = vsel %vm884, %v1075, %v1427
        %v1684 = vsel %vm884, %v1079, %v1431
        %v1685 = vsel %vm884, %v1086, %v1438
        %v1686 = vsel %vm884, %v1090, %v1442
        %v1687 = vsel %vm884, %v1097, %v1449
        %v1688 = vsel %vm884, %v1101, %v1453
        %v1689 = vsel %vm884, %v1108, %v1460
        %v1690 = vsel %vm884, %v1112, %v1464
        %v1691 = vsel %vm884, %v1119, %v1471
        %v1692 = vsel %vm884, %v1123, %v1475
        %v1693 = vsel %vm884, %v1130, %v1482
        %v1694 = vsel %vm884, %v1134, %v1486
        %v1695 = vsel %vm884, %v1141, %v1493
        %v1696 = vsel %vm884, %v1145, %v1497
        %v1697 = vsel %vm884, %v1152, %v1504
        %v1698 = vsel %vm884, %v1156, %v1508
        %v1699 = vsel %vm884, %v1163, %v1515
        %v1700 = vsel %vm884, %v1167, %v1519
        %v1701 = vsel %vm884, %v1174, %v1526
        %v1702 = vsel %vm884, %v1178, %v1530
        %v1703 = vsel %vm884, %v1185, %v1537
        %v1704 = vsel %vm884, %v1189, %v1541
        %v1705 = vsel %vm884, %v1196, %v1548
        %v1706 = vsel %vm884, %v1200, %v1552
        %v1707 = vsel %vm884, %v1207, %v1559
        %v1708 = vsel %vm884, %v1211, %v1563
        %v1709 = vsel %vm884, %v1218, %v1570
        %v1710 = vsel %vm884, %v1222, %v1574
        %v1711 = vsel %vm884, %v1229, %v1581
        %v1712 = vsel %vm884, %v1233, %v1585
        %v1713 = vsel %vm884, %v1240, %v1592
        %v1714 = vsel %vm884, %v1244, %v1596
        %v1715 = vsel %vm884, %v1251, %v1603
        %v1716 = vsel %vm884, %v1255, %v1607
        %v1717 = vsel %vm884, %v1262, %v1614
        %v1718 = vsel %vm884, %v1266, %v1618
        %v1719 = vsel %vm884, %v1273, %v1625
        %v1720 = vsel %vm884, %v1277, %v1629
        %v1721 = vsel %vm884, %v1284, %v1636
        %v1722 = vsel %vm884, %v1288, %v1640
        %v1723 = vsel %vm884, %v1295, %v1647
        %v1724 = vsel %vm884, %v1299, %v1651
        %v1725 = vsel %vm884, %v1306, %v1658
        %v1726 = vsel %vm884, %v1310, %v1662
        %v1727 = vcombine.high %v885, 0.0
        %v1729 = vunpack.c.l.s4 1983009808
        %v1730 = vunpack.c.0.s8 %v1729
        %v1731 = vlaneseq
        %v1732 = vshrl.u32 %v1731, 7
        %v1733 = vsub.s32 %v1730, %v1732
        %v1734 = vrot.slane %v885, %v1733
        %v1736 = vunpack.c.l.s4 1983009808
        %v1737 = vunpack.c.0.s8 %v1736
        %v1738 = vlaneseq
        %v1739 = vshrl.u32 %v1738, 7
        %v1740 = vsub.s32 %v1737, %v1739
        %v1741 = vrot.slane %v1727, %v1740
        %v1742 = vcombine.high %v1734, 0.0
        %v1744 = vunpack.c.l.s4 1934713408
        %v1745 = vunpack.c.0.s8 %v1744
        %v1746 = vlaneseq
        %v1747 = vshrl.u32 %v1746, 7
        %v1748 = vsub.s32 %v1745, %v1747
        %v1749 = vrot.slane %v1734, %v1748
        %v1751 = vunpack.c.l.s4 1934713408
        %v1752 = vunpack.c.0.s8 %v1751
        %v1753 = vlaneseq
        %v1754 = vshrl.u32 %v1753, 7
        %v1755 = vsub.s32 %v1752, %v1754
        %v1756 = vrot.slane %v1742, %v1755
        %v1757 = vcombine.high %v1741, 0.0
        %v1759 = vunpack.c.l.s4 1934713408
        %v1760 = vunpack.c.0.s8 %v1759
        %v1761 = vlaneseq
        %v1762 = vshrl.u32 %v1761, 7
        %v1763 = vsub.s32 %v1760, %v1762
        %v1764 = vrot.slane %v1741, %v1763
        %v1766 = vunpack.c.l.s4 1934713408
        %v1767 = vunpack.c.0.s8 %v1766
        %v1768 = vlaneseq
        %v1769 = vshrl.u32 %v1768, 7
        %v1770 = vsub.s32 %v1767, %v1769
        %v1771 = vrot.slane %v1757, %v1770
        %v1772 = vcombine.high %v1749, 0.0
        %v1773 = vcombine.high %v1756, 0.0
        %v1774 = vcombine.high %v1764, 0.0
        %v1775 = vcombine.high %v1771, 0.0
        %v1776 = vcombine.high %v886, 0.0
        %v1778 = vunpack.c.l.s4 1983009808
        %v1779 = vunpack.c.0.s8 %v1778
        %v1780 = vlaneseq
        %v1781 = vshrl.u32 %v1780, 7
        %v1782 = vsub.s32 %v1779, %v1781
        %v1783 = vrot.slane %v886, %v1782
        %v1785 = vunpack.c.l.s4 1983009808
        %v1786 = vunpack.c.0.s8 %v1785
        %v1787 = vlaneseq
        %v1788 = vshrl.u32 %v1787, 7
        %v1789 = vsub.s32 %v1786, %v1788
        %v1790 = vrot.slane %v1776, %v1789
        %v1791 = vcombine.high %v1783, 0.0
        %v1793 = vunpack.c.l.s4 1934713408
        %v1794 = vunpack.c.0.s8 %v1793
        %v1795 = vlaneseq
        %v1796 = vshrl.u32 %v1795, 7
        %v1797 = vsub.s32 %v1794, %v1796
        %v1798 = vrot.slane %v1783, %v1797
        %v1800 = vunpack.c.l.s4 1934713408
        %v1801 = vunpack.c.0.s8 %v1800
        %v1802 = vlaneseq
        %v1803 = vshrl.u32 %v1802, 7
        %v1804 = vsub.s32 %v1801, %v1803
        %v1805 = vrot.slane %v1791, %v1804
        %v1806 = vcombine.high %v1790, 0.0
        %v1808 = vunpack.c.l.s4 1934713408
        %v1809 = vunpack.c.0.s8 %v1808
        %v1810 = vlaneseq
        %v1811 = vshrl.u32 %v1810, 7
        %v1812 = vsub.s32 %v1809, %v1811
        %v1813 = vrot.slane %v1790, %v1812
        %v1815 = vunpack.c.l.s4 1934713408
        %v1816 = vunpack.c.0.s8 %v1815
        %v1817 = vlaneseq
        %v1818 = vshrl.u32 %v1817, 7
        %v1819 = vsub.s32 %v1816, %v1818
        %v1820 = vrot.slane %v1806, %v1819
        %v1821 = vcombine.high %v1798, 0.0
        %v1822 = vcombine.high %v1805, 0.0
        %v1823 = vcombine.high %v1813, 0.0
        %v1824 = vcombine.high %v1820, 0.0
        %v1825 = vcombine.high %v887, 0.0
        %v1827 = vunpack.c.l.s4 1983009808
        %v1828 = vunpack.c.0.s8 %v1827
        %v1829 = vlaneseq
        %v1830 = vshrl.u32 %v1829, 7
        %v1831 = vsub.s32 %v1828, %v1830
        %v1832 = vrot.slane %v887, %v1831
        %v1834 = vunpack.c.l.s4 1983009808
        %v1835 = vunpack.c.0.s8 %v1834
        %v1836 = vlaneseq
        %v1837 = vshrl.u32 %v1836, 7
        %v1838 = vsub.s32 %v1835, %v1837
        %v1839 = vrot.slane %v1825, %v1838
        %v1840 = vcombine.high %v1832, 0.0
        %v1842 = vunpack.c.l.s4 1934713408
        %v1843 = vunpack.c.0.s8 %v1842
        %v1844 = vlaneseq
        %v1845 = vshrl.u32 %v1844, 7
        %v1846 = vsub.s32 %v1843, %v1845
        %v1847 = vrot.slane %v1832, %v1846
        %v1849 = vunpack.c.l.s4 1934713408
        %v1850 = vunpack.c.0.s8 %v1849
        %v1851 = vlaneseq
        %v1852 = vshrl.u32 %v1851, 7
        %v1853 = vsub.s32 %v1850, %v1852
        %v1854 = vrot.slane %v1840, %v1853
        %v1855 = vcombine.high %v1839, 0.0
        %v1857 = vunpack.c.l.s4 1934713408
        %v1858 = vunpack.c.0.s8 %v1857
        %v1859 = vlaneseq
        %v1860 = vshrl.u32 %v1859, 7
        %v1861 = vsub.s32 %v1858, %v1860
        %v1862 = vrot.slane %v1839, %v1861
        %v1864 = vunpack.c.l.s4 1934713408
        %v1865 = vunpack.c.0.s8 %v1864
        %v1866 = vlaneseq
        %v1867 = vshrl.u32 %v1866, 7
        %v1868 = vsub.s32 %v1865, %v1867
        %v1869 = vrot.slane %v1855, %v1868
        %v1870 = vcombine.high %v1847, 0.0
        %v1871 = vcombine.high %v1854, 0.0
        %v1872 = vcombine.high %v1862, 0.0
        %v1873 = vcombine.high %v1869, 0.0
        %v1874 = vcombine.high %v888, 0.0
        %v1876 = vunpack.c.l.s4 1983009808
        %v1877 = vunpack.c.0.s8 %v1876
        %v1878 = vlaneseq
        %v1879 = vshrl.u32 %v1878, 7
        %v1880 = vsub.s32 %v1877, %v1879
        %v1881 = vrot.slane %v888, %v1880
        %v1883 = vunpack.c.l.s4 1983009808
        %v1884 = vunpack.c.0.s8 %v1883
        %v1885 = vlaneseq
        %v1886 = vshrl.u32 %v1885, 7
        %v1887 = vsub.s32 %v1884, %v1886
        %v1888 = vrot.slane %v1874, %v1887
        %v1889 = vcombine.high %v1881, 0.0
        %v1891 = vunpack.c.l.s4 1934713408
        %v1892 = vunpack.c.0.s8 %v1891
        %v1893 = vlaneseq
        %v1894 = vshrl.u32 %v1893, 7
        %v1895 = vsub.s32 %v1892, %v1894
        %v1896 = vrot.slane %v1881, %v1895
        %v1898 = vunpack.c.l.s4 1934713408
        %v1899 = vunpack.c.0.s8 %v1898
        %v1900 = vlaneseq
        %v1901 = vshrl.u32 %v1900, 7
        %v1902 = vsub.s32 %v1899, %v1901
        %v1903 = vrot.slane %v1889, %v1902
        %v1904 = vcombine.high %v1888, 0.0
        %v1906 = vunpack.c.l.s4 1934713408
        %v1907 = vunpack.c.0.s8 %v1906
        %v1908 = vlaneseq
        %v1909 = vshrl.u32 %v1908, 7
        %v1910 = vsub.s32 %v1907, %v1909
        %v1911 = vrot.slane %v1888, %v1910
        %v1913 = vunpack.c.l.s4 1934713408
        %v1914 = vunpack.c.0.s8 %v1913
        %v1915 = vlaneseq
        %v1916 = vshrl.u32 %v1915, 7
        %v1917 = vsub.s32 %v1914, %v1916
        %v1918 = vrot.slane %v1904, %v1917
        %v1919 = vcombine.high %v1896, 0.0
        %v1920 = vcombine.high %v1903, 0.0
        %v1921 = vcombine.high %v1911, 0.0
        %v1922 = vcombine.high %v1918, 0.0
        %v1923 = vcombine.high %v889, 0.0
        %v1925 = vunpack.c.l.s4 1983009808
        %v1926 = vunpack.c.0.s8 %v1925
        %v1927 = vlaneseq
        %v1928 = vshrl.u32 %v1927, 7
        %v1929 = vsub.s32 %v1926, %v1928
        %v1930 = vrot.slane %v889, %v1929
        %v1932 = vunpack.c.l.s4 1983009808
        %v1933 = vunpack.c.0.s8 %v1932
        %v1934 = vlaneseq
        %v1935 = vshrl.u32 %v1934, 7
        %v1936 = vsub.s32 %v1933, %v1935
        %v1937 = vrot.slane %v1923, %v1936
        %v1938 = vcombine.high %v1930, 0.0
        %v1940 = vunpack.c.l.s4 1934713408
        %v1941 = vunpack.c.0.s8 %v1940
        %v1942 = vlaneseq
        %v1943 = vshrl.u32 %v1942, 7
        %v1944 = vsub.s32 %v1941, %v1943
        %v1945 = vrot.slane %v1930, %v1944
        %v1947 = vunpack.c.l.s4 1934713408
        %v1948 = vunpack.c.0.s8 %v1947
        %v1949 = vlaneseq
        %v1950 = vshrl.u32 %v1949, 7
        %v1951 = vsub.s32 %v1948, %v1950
        %v1952 = vrot.slane %v1938, %v1951
        %v1953 = vcombine.high %v1937, 0.0
        %v1955 = vunpack.c.l.s4 1934713408
        %v1956 = vunpack.c.0.s8 %v1955
        %v1957 = vlaneseq
        %v1958 = vshrl.u32 %v1957, 7
        %v1959 = vsub.s32 %v1956, %v1958
        %v1960 = vrot.slane %v1937, %v1959
        %v1962 = vunpack.c.l.s4 1934713408
        %v1963 = vunpack.c.0.s8 %v1962
        %v1964 = vlaneseq
        %v1965 = vshrl.u32 %v1964, 7
        %v1966 = vsub.s32 %v1963, %v1965
        %v1967 = vrot.slane %v1953, %v1966
        %v1968 = vcombine.high %v1945, 0.0
        %v1969 = vcombine.high %v1952, 0.0
        %v1970 = vcombine.high %v1960, 0.0
        %v1971 = vcombine.high %v1967, 0.0
        %v1972 = vcombine.high %v890, 0.0
        %v1974 = vunpack.c.l.s4 1983009808
        %v1975 = vunpack.c.0.s8 %v1974
        %v1976 = vlaneseq
        %v1977 = vshrl.u32 %v1976, 7
        %v1978 = vsub.s32 %v1975, %v1977
        %v1979 = vrot.slane %v890, %v1978
        %v1981 = vunpack.c.l.s4 1983009808
        %v1982 = vunpack.c.0.s8 %v1981
        %v1983 = vlaneseq
        %v1984 = vshrl.u32 %v1983, 7
        %v1985 = vsub.s32 %v1982, %v1984
        %v1986 = vrot.slane %v1972, %v1985
        %v1987 = vcombine.high %v1979, 0.0
        %v1989 = vunpack.c.l.s4 1934713408
        %v1990 = vunpack.c.0.s8 %v1989
        %v1991 = vlaneseq
        %v1992 = vshrl.u32 %v1991, 7
        %v1993 = vsub.s32 %v1990, %v1992
        %v1994 = vrot.slane %v1979, %v1993
        %v1996 = vunpack.c.l.s4 1934713408
        %v1997 = vunpack.c.0.s8 %v1996
        %v1998 = vlaneseq
        %v1999 = vshrl.u32 %v1998, 7
        %v2000 = vsub.s32 %v1997, %v1999
        %v2001 = vrot.slane %v1987, %v2000
        %v2002 = vcombine.high %v1986, 0.0
        %v2004 = vunpack.c.l.s4 1934713408
        %v2005 = vunpack.c.0.s8 %v2004
        %v2006 = vlaneseq
        %v2007 = vshrl.u32 %v2006, 7
        %v2008 = vsub.s32 %v2005, %v2007
        %v2009 = vrot.slane %v1986, %v2008
        %v2011 = vunpack.c.l.s4 1934713408
        %v2012 = vunpack.c.0.s8 %v2011
        %v2013 = vlaneseq
        %v2014 = vshrl.u32 %v2013, 7
        %v2015 = vsub.s32 %v2012, %v2014
        %v2016 = vrot.slane %v2002, %v2015
        %v2017 = vcombine.high %v1994, 0.0
        %v2018 = vcombine.high %v2001, 0.0
        %v2019 = vcombine.high %v2009, 0.0
        %v2020 = vcombine.high %v2016, 0.0
        %v2021 = vcombine.high %v891, 0.0
        %v2023 = vunpack.c.l.s4 1983009808
        %v2024 = vunpack.c.0.s8 %v2023
        %v2025 = vlaneseq
        %v2026 = vshrl.u32 %v2025, 7
        %v2027 = vsub.s32 %v2024, %v2026
        %v2028 = vrot.slane %v891, %v2027
        %v2030 = vunpack.c.l.s4 1983009808
        %v2031 = vunpack.c.0.s8 %v2030
        %v2032 = vlaneseq
        %v2033 = vshrl.u32 %v2032, 7
        %v2034 = vsub.s32 %v2031, %v2033
        %v2035 = vrot.slane %v2021, %v2034
        %v2036 = vcombine.high %v2028, 0.0
        %v2038 = vunpack.c.l.s4 1934713408
        %v2039 = vunpack.c.0.s8 %v2038
        %v2040 = vlaneseq
        %v2041 = vshrl.u32 %v2040, 7
        %v2042 = vsub.s32 %v2039, %v2041
        %v2043 = vrot.slane %v2028, %v2042
        %v2045 = vunpack.c.l.s4 1934713408
        %v2046 = vunpack.c.0.s8 %v2045
        %v2047 = vlaneseq
        %v2048 = vshrl.u32 %v2047, 7
        %v2049 = vsub.s32 %v2046, %v2048
        %v2050 = vrot.slane %v2036, %v2049
        %v2051 = vcombine.high %v2035, 0.0
        %v2053 = vunpack.c.l.s4 1934713408
        %v2054 = vunpack.c.0.s8 %v2053
        %v2055 = vlaneseq
        %v2056 = vshrl.u32 %v2055, 7
        %v2057 = vsub.s32 %v2054, %v2056
        %v2058 = vrot.slane %v2035, %v2057
        %v2060 = vunpack.c.l.s4 1934713408
        %v2061 = vunpack.c.0.s8 %v2060
        %v2062 = vlaneseq
        %v2063 = vshrl.u32 %v2062, 7
        %v2064 = vsub.s32 %v2061, %v2063
        %v2065 = vrot.slane %v2051, %v2064
        %v2066 = vcombine.high %v2043, 0.0
        %v2067 = vcombine.high %v2050, 0.0
        %v2068 = vcombine.high %v2058, 0.0
        %v2069 = vcombine.high %v2065, 0.0
        %v2070 = vcombine.high %v892, 0.0
        %v2072 = vunpack.c.l.s4 1983009808
        %v2073 = vunpack.c.0.s8 %v2072
        %v2074 = vlaneseq
        %v2075 = vshrl.u32 %v2074, 7
        %v2076 = vsub.s32 %v2073, %v2075
        %v2077 = vrot.slane %v892, %v2076
        %v2079 = vunpack.c.l.s4 1983009808
        %v2080 = vunpack.c.0.s8 %v2079
        %v2081 = vlaneseq
        %v2082 = vshrl.u32 %v2081, 7
        %v2083 = vsub.s32 %v2080, %v2082
        %v2084 = vrot.slane %v2070, %v2083
        %v2085 = vcombine.high %v2077, 0.0
        %v2087 = vunpack.c.l.s4 1934713408
        %v2088 = vunpack.c.0.s8 %v2087
        %v2089 = vlaneseq
        %v2090 = vshrl.u32 %v2089, 7
        %v2091 = vsub.s32 %v2088, %v2090
        %v2092 = vrot.slane %v2077, %v2091
        %v2094 = vunpack.c.l.s4 1934713408
        %v2095 = vunpack.c.0.s8 %v2094
        %v2096 = vlaneseq
        %v2097 = vshrl.u32 %v2096, 7
        %v2098 = vsub.s32 %v2095, %v2097
        %v2099 = vrot.slane %v2085, %v2098
        %v2100 = vcombine.high %v2084, 0.0
        %v2102 = vunpack.c.l.s4 1934713408
        %v2103 = vunpack.c.0.s8 %v2102
        %v2104 = vlaneseq
        %v2105 = vshrl.u32 %v2104, 7
        %v2106 = vsub.s32 %v2103, %v2105
        %v2107 = vrot.slane %v2084, %v2106
        %v2109 = vunpack.c.l.s4 1934713408
        %v2110 = vunpack.c.0.s8 %v2109
        %v2111 = vlaneseq
        %v2112 = vshrl.u32 %v2111, 7
        %v2113 = vsub.s32 %v2110, %v2112
        %v2114 = vrot.slane %v2100, %v2113
        %v2115 = vcombine.high %v2092, 0.0
        %v2116 = vcombine.high %v2099, 0.0
        %v2117 = vcombine.high %v2107, 0.0
        %v2118 = vcombine.high %v2114, 0.0
        %v2119 = vcombine.high %v893, 0.0
        %v2121 = vunpack.c.l.s4 1983009808
        %v2122 = vunpack.c.0.s8 %v2121
        %v2123 = vlaneseq
        %v2124 = vshrl.u32 %v2123, 7
        %v2125 = vsub.s32 %v2122, %v2124
        %v2126 = vrot.slane %v893, %v2125
        %v2128 = vunpack.c.l.s4 1983009808
        %v2129 = vunpack.c.0.s8 %v2128
        %v2130 = vlaneseq
        %v2131 = vshrl.u32 %v2130, 7
        %v2132 = vsub.s32 %v2129, %v2131
        %v2133 = vrot.slane %v2119, %v2132
        %v2134 = vcombine.high %v2126, 0.0
        %v2136 = vunpack.c.l.s4 1934713408
        %v2137 = vunpack.c.0.s8 %v2136
        %v2138 = vlaneseq
        %v2139 = vshrl.u32 %v2138, 7
        %v2140 = vsub.s32 %v2137, %v2139
        %v2141 = vrot.slane %v2126, %v2140
        %v2143 = vunpack.c.l.s4 1934713408
        %v2144 = vunpack.c.0.s8 %v2143
        %v2145 = vlaneseq
        %v2146 = vshrl.u32 %v2145, 7
        %v2147 = vsub.s32 %v2144, %v2146
        %v2148 = vrot.slane %v2134, %v2147
        %v2149 = vcombine.high %v2133, 0.0
        %v2151 = vunpack.c.l.s4 1934713408
        %v2152 = vunpack.c.0.s8 %v2151
        %v2153 = vlaneseq
        %v2154 = vshrl.u32 %v2153, 7
        %v2155 = vsub.s32 %v2152, %v2154
        %v2156 = vrot.slane %v2133, %v2155
        %v2158 = vunpack.c.l.s4 1934713408
        %v2159 = vunpack.c.0.s8 %v2158
        %v2160 = vlaneseq
        %v2161 = vshrl.u32 %v2160, 7
        %v2162 = vsub.s32 %v2159, %v2161
        %v2163 = vrot.slane %v2149, %v2162
        %v2164 = vcombine.high %v2141, 0.0
        %v2165 = vcombine.high %v2148, 0.0
        %v2166 = vcombine.high %v2156, 0.0
        %v2167 = vcombine.high %v2163, 0.0
        %v2168 = vcombine.high %v894, 0.0
        %v2170 = vunpack.c.l.s4 1983009808
        %v2171 = vunpack.c.0.s8 %v2170
        %v2172 = vlaneseq
        %v2173 = vshrl.u32 %v2172, 7
        %v2174 = vsub.s32 %v2171, %v2173
        %v2175 = vrot.slane %v894, %v2174
        %v2177 = vunpack.c.l.s4 1983009808
        %v2178 = vunpack.c.0.s8 %v2177
        %v2179 = vlaneseq
        %v2180 = vshrl.u32 %v2179, 7
        %v2181 = vsub.s32 %v2178, %v2180
        %v2182 = vrot.slane %v2168, %v2181
        %v2183 = vcombine.high %v2175, 0.0
        %v2185 = vunpack.c.l.s4 1934713408
        %v2186 = vunpack.c.0.s8 %v2185
        %v2187 = vlaneseq
        %v2188 = vshrl.u32 %v2187, 7
        %v2189 = vsub.s32 %v2186, %v2188
        %v2190 = vrot.slane %v2175, %v2189
        %v2192 = vunpack.c.l.s4 1934713408
        %v2193 = vunpack.c.0.s8 %v2192
        %v2194 = vlaneseq
        %v2195 = vshrl.u32 %v2194, 7
        %v2196 = vsub.s32 %v2193, %v2195
        %v2197 = vrot.slane %v2183, %v2196
        %v2198 = vcombine.high %v2182, 0.0
        %v2200 = vunpack.c.l.s4 1934713408
        %v2201 = vunpack.c.0.s8 %v2200
        %v2202 = vlaneseq
        %v2203 = vshrl.u32 %v2202, 7
        %v2204 = vsub.s32 %v2201, %v2203
        %v2205 = vrot.slane %v2182, %v2204
        %v2207 = vunpack.c.l.s4 1934713408
        %v2208 = vunpack.c.0.s8 %v2207
        %v2209 = vlaneseq
        %v2210 = vshrl.u32 %v2209, 7
        %v2211 = vsub.s32 %v2208, %v2210
        %v2212 = vrot.slane %v2198, %v2211
        %v2213 = vcombine.high %v2190, 0.0
        %v2214 = vcombine.high %v2197, 0.0
        %v2215 = vcombine.high %v2205, 0.0
        %v2216 = vcombine.high %v2212, 0.0
        %v2217 = vcombine.high %v895, 0.0
        %v2219 = vunpack.c.l.s4 1983009808
        %v2220 = vunpack.c.0.s8 %v2219
        %v2221 = vlaneseq
        %v2222 = vshrl.u32 %v2221, 7
        %v2223 = vsub.s32 %v2220, %v2222
        %v2224 = vrot.slane %v895, %v2223
        %v2226 = vunpack.c.l.s4 1983009808
        %v2227 = vunpack.c.0.s8 %v2226
        %v2228 = vlaneseq
        %v2229 = vshrl.u32 %v2228, 7
        %v2230 = vsub.s32 %v2227, %v2229
        %v2231 = vrot.slane %v2217, %v2230
        %v2232 = vcombine.high %v2224, 0.0
        %v2234 = vunpack.c.l.s4 1934713408
        %v2235 = vunpack.c.0.s8 %v2234
        %v2236 = vlaneseq
        %v2237 = vshrl.u32 %v2236, 7
        %v2238 = vsub.s32 %v2235, %v2237
        %v2239 = vrot.slane %v2224, %v2238
        %v2241 = vunpack.c.l.s4 1934713408
        %v2242 = vunpack.c.0.s8 %v2241
        %v2243 = vlaneseq
        %v2244 = vshrl.u32 %v2243, 7
        %v2245 = vsub.s32 %v2242, %v2244
        %v2246 = vrot.slane %v2232, %v2245
        %v2247 = vcombine.high %v2231, 0.0
        %v2249 = vunpack.c.l.s4 1934713408
        %v2250 = vunpack.c.0.s8 %v2249
        %v2251 = vlaneseq
        %v2252 = vshrl.u32 %v2251, 7
        %v2253 = vsub.s32 %v2250, %v2252
        %v2254 = vrot.slane %v2231, %v2253
        %v2256 = vunpack.c.l.s4 1934713408
        %v2257 = vunpack.c.0.s8 %v2256
        %v2258 = vlaneseq
        %v2259 = vshrl.u32 %v2258, 7
        %v2260 = vsub.s32 %v2257, %v2259
        %v2261 = vrot.slane %v2247, %v2260
        %v2262 = vcombine.high %v2239, 0.0
        %v2263 = vcombine.high %v2246, 0.0
        %v2264 = vcombine.high %v2254, 0.0
        %v2265 = vcombine.high %v2261, 0.0
        %v2266 = vcombine.high %v896, 0.0
        %v2268 = vunpack.c.l.s4 1983009808
        %v2269 = vunpack.c.0.s8 %v2268
        %v2270 = vlaneseq
        %v2271 = vshrl.u32 %v2270, 7
        %v2272 = vsub.s32 %v2269, %v2271
        %v2273 = vrot.slane %v896, %v2272
        %v2275 = vunpack.c.l.s4 1983009808
        %v2276 = vunpack.c.0.s8 %v2275
        %v2277 = vlaneseq
        %v2278 = vshrl.u32 %v2277, 7
        %v2279 = vsub.s32 %v2276, %v2278
        %v2280 = vrot.slane %v2266, %v2279
        %v2281 = vcombine.high %v2273, 0.0
        %v2283 = vunpack.c.l.s4 1934713408
        %v2284 = vunpack.c.0.s8 %v2283
        %v2285 = vlaneseq
        %v2286 = vshrl.u32 %v2285, 7
        %v2287 = vsub.s32 %v2284, %v2286
        %v2288 = vrot.slane %v2273, %v2287
        %v2290 = vunpack.c.l.s4 1934713408
        %v2291 = vunpack.c.0.s8 %v2290
        %v2292 = vlaneseq
        %v2293 = vshrl.u32 %v2292, 7
        %v2294 = vsub.s32 %v2291, %v2293
        %v2295 = vrot.slane %v2281, %v2294
        %v2296 = vcombine.high %v2280, 0.0
        %v2298 = vunpack.c.l.s4 1934713408
        %v2299 = vunpack.c.0.s8 %v2298
        %v2300 = vlaneseq
        %v2301 = vshrl.u32 %v2300, 7
        %v2302 = vsub.s32 %v2299, %v2301
        %v2303 = vrot.slane %v2280, %v2302
        %v2305 = vunpack.c.l.s4 1934713408
        %v2306 = vunpack.c.0.s8 %v2305
        %v2307 = vlaneseq
        %v2308 = vshrl.u32 %v2307, 7
        %v2309 = vsub.s32 %v2306, %v2308
        %v2310 = vrot.slane %v2296, %v2309
        %v2311 = vcombine.high %v2288, 0.0
        %v2312 = vcombine.high %v2295, 0.0
        %v2313 = vcombine.high %v2303, 0.0
        %v2314 = vcombine.high %v2310, 0.0
        %v2315 = vcombine.high %v897, 0.0
        %v2317 = vunpack.c.l.s4 1983009808
        %v2318 = vunpack.c.0.s8 %v2317
        %v2319 = vlaneseq
        %v2320 = vshrl.u32 %v2319, 7
        %v2321 = vsub.s32 %v2318, %v2320
        %v2322 = vrot.slane %v897, %v2321
        %v2324 = vunpack.c.l.s4 1983009808
        %v2325 = vunpack.c.0.s8 %v2324
        %v2326 = vlaneseq
        %v2327 = vshrl.u32 %v2326, 7
        %v2328 = vsub.s32 %v2325, %v2327
        %v2329 = vrot.slane %v2315, %v2328
        %v2330 = vcombine.high %v2322, 0.0
        %v2332 = vunpack.c.l.s4 1934713408
        %v2333 = vunpack.c.0.s8 %v2332
        %v2334 = vlaneseq
        %v2335 = vshrl.u32 %v2334, 7
        %v2336 = vsub.s32 %v2333, %v2335
        %v2337 = vrot.slane %v2322, %v2336
        %v2339 = vunpack.c.l.s4 1934713408
        %v2340 = vunpack.c.0.s8 %v2339
        %v2341 = vlaneseq
        %v2342 = vshrl.u32 %v2341, 7
        %v2343 = vsub.s32 %v2340, %v2342
        %v2344 = vrot.slane %v2330, %v2343
        %v2345 = vcombine.high %v2329, 0.0
        %v2347 = vunpack.c.l.s4 1934713408
        %v2348 = vunpack.c.0.s8 %v2347
        %v2349 = vlaneseq
        %v2350 = vshrl.u32 %v2349, 7
        %v2351 = vsub.s32 %v2348, %v2350
        %v2352 = vrot.slane %v2329, %v2351
        %v2354 = vunpack.c.l.s4 1934713408
        %v2355 = vunpack.c.0.s8 %v2354
        %v2356 = vlaneseq
        %v2357 = vshrl.u32 %v2356, 7
        %v2358 = vsub.s32 %v2355, %v2357
        %v2359 = vrot.slane %v2345, %v2358
        %v2360 = vcombine.high %v2337, 0.0
        %v2361 = vcombine.high %v2344, 0.0
        %v2362 = vcombine.high %v2352, 0.0
        %v2363 = vcombine.high %v2359, 0.0
        %v2364 = vcombine.high %v898, 0.0
        %v2366 = vunpack.c.l.s4 1983009808
        %v2367 = vunpack.c.0.s8 %v2366
        %v2368 = vlaneseq
        %v2369 = vshrl.u32 %v2368, 7
        %v2370 = vsub.s32 %v2367, %v2369
        %v2371 = vrot.slane %v898, %v2370
        %v2373 = vunpack.c.l.s4 1983009808
        %v2374 = vunpack.c.0.s8 %v2373
        %v2375 = vlaneseq
        %v2376 = vshrl.u32 %v2375, 7
        %v2377 = vsub.s32 %v2374, %v2376
        %v2378 = vrot.slane %v2364, %v2377
        %v2379 = vcombine.high %v2371, 0.0
        %v2381 = vunpack.c.l.s4 1934713408
        %v2382 = vunpack.c.0.s8 %v2381
        %v2383 = vlaneseq
        %v2384 = vshrl.u32 %v2383, 7
        %v2385 = vsub.s32 %v2382, %v2384
        %v2386 = vrot.slane %v2371, %v2385
        %v2388 = vunpack.c.l.s4 1934713408
        %v2389 = vunpack.c.0.s8 %v2388
        %v2390 = vlaneseq
        %v2391 = vshrl.u32 %v2390, 7
        %v2392 = vsub.s32 %v2389, %v2391
        %v2393 = vrot.slane %v2379, %v2392
        %v2394 = vcombine.high %v2378, 0.0
        %v2396 = vunpack.c.l.s4 1934713408
        %v2397 = vunpack.c.0.s8 %v2396
        %v2398 = vlaneseq
        %v2399 = vshrl.u32 %v2398, 7
        %v2400 = vsub.s32 %v2397, %v2399
        %v2401 = vrot.slane %v2378, %v2400
        %v2403 = vunpack.c.l.s4 1934713408
        %v2404 = vunpack.c.0.s8 %v2403
        %v2405 = vlaneseq
        %v2406 = vshrl.u32 %v2405, 7
        %v2407 = vsub.s32 %v2404, %v2406
        %v2408 = vrot.slane %v2394, %v2407
        %v2409 = vcombine.high %v2386, 0.0
        %v2410 = vcombine.high %v2393, 0.0
        %v2411 = vcombine.high %v2401, 0.0
        %v2412 = vcombine.high %v2408, 0.0
        %v2413 = vcombine.high %v899, 0.0
        %v2415 = vunpack.c.l.s4 1983009808
        %v2416 = vunpack.c.0.s8 %v2415
        %v2417 = vlaneseq
        %v2418 = vshrl.u32 %v2417, 7
        %v2419 = vsub.s32 %v2416, %v2418
        %v2420 = vrot.slane %v899, %v2419
        %v2422 = vunpack.c.l.s4 1983009808
        %v2423 = vunpack.c.0.s8 %v2422
        %v2424 = vlaneseq
        %v2425 = vshrl.u32 %v2424, 7
        %v2426 = vsub.s32 %v2423, %v2425
        %v2427 = vrot.slane %v2413, %v2426
        %v2428 = vcombine.high %v2420, 0.0
        %v2430 = vunpack.c.l.s4 1934713408
        %v2431 = vunpack.c.0.s8 %v2430
        %v2432 = vlaneseq
        %v2433 = vshrl.u32 %v2432, 7
        %v2434 = vsub.s32 %v2431, %v2433
        %v2435 = vrot.slane %v2420, %v2434
        %v2437 = vunpack.c.l.s4 1934713408
        %v2438 = vunpack.c.0.s8 %v2437
        %v2439 = vlaneseq
        %v2440 = vshrl.u32 %v2439, 7
        %v2441 = vsub.s32 %v2438, %v2440
        %v2442 = vrot.slane %v2428, %v2441
        %v2443 = vcombine.high %v2427, 0.0
        %v2445 = vunpack.c.l.s4 1934713408
        %v2446 = vunpack.c.0.s8 %v2445
        %v2447 = vlaneseq
        %v2448 = vshrl.u32 %v2447, 7
        %v2449 = vsub.s32 %v2446, %v2448
        %v2450 = vrot.slane %v2427, %v2449
        %v2452 = vunpack.c.l.s4 1934713408
        %v2453 = vunpack.c.0.s8 %v2452
        %v2454 = vlaneseq
        %v2455 = vshrl.u32 %v2454, 7
        %v2456 = vsub.s32 %v2453, %v2455
        %v2457 = vrot.slane %v2443, %v2456
        %v2458 = vcombine.high %v2435, 0.0
        %v2459 = vcombine.high %v2442, 0.0
        %v2460 = vcombine.high %v2450, 0.0
        %v2461 = vcombine.high %v2457, 0.0
        %v2462 = vcombine.high %v900, 0.0
        %v2464 = vunpack.c.l.s4 1983009808
        %v2465 = vunpack.c.0.s8 %v2464
        %v2466 = vlaneseq
        %v2467 = vshrl.u32 %v2466, 7
        %v2468 = vsub.s32 %v2465, %v2467
        %v2469 = vrot.slane %v900, %v2468
        %v2471 = vunpack.c.l.s4 1983009808
        %v2472 = vunpack.c.0.s8 %v2471
        %v2473 = vlaneseq
        %v2474 = vshrl.u32 %v2473, 7
        %v2475 = vsub.s32 %v2472, %v2474
        %v2476 = vrot.slane %v2462, %v2475
        %v2477 = vcombine.high %v2469, 0.0
        %v2479 = vunpack.c.l.s4 1934713408
        %v2480 = vunpack.c.0.s8 %v2479
        %v2481 = vlaneseq
        %v2482 = vshrl.u32 %v2481, 7
        %v2483 = vsub.s32 %v2480, %v2482
        %v2484 = vrot.slane %v2469, %v2483
        %v2486 = vunpack.c.l.s4 1934713408
        %v2487 = vunpack.c.0.s8 %v2486
        %v2488 = vlaneseq
        %v2489 = vshrl.u32 %v2488, 7
        %v2490 = vsub.s32 %v2487, %v2489
        %v2491 = vrot.slane %v2477, %v2490
        %v2492 = vcombine.high %v2476, 0.0
        %v2494 = vunpack.c.l.s4 1934713408
        %v2495 = vunpack.c.0.s8 %v2494
        %v2496 = vlaneseq
        %v2497 = vshrl.u32 %v2496, 7
        %v2498 = vsub.s32 %v2495, %v2497
        %v2499 = vrot.slane %v2476, %v2498
        %v2501 = vunpack.c.l.s4 1934713408
        %v2502 = vunpack.c.0.s8 %v2501
        %v2503 = vlaneseq
        %v2504 = vshrl.u32 %v2503, 7
        %v2505 = vsub.s32 %v2502, %v2504
        %v2506 = vrot.slane %v2492, %v2505
        %v2507 = vcombine.high %v2484, 0.0
        %v2508 = vcombine.high %v2491, 0.0
        %v2509 = vcombine.high %v2499, 0.0
        %v2510 = vcombine.high %v2506, 0.0
        %v2511 = vcombine.high %v901, 0.0
        %v2513 = vunpack.c.l.s4 1983009808
        %v2514 = vunpack.c.0.s8 %v2513
        %v2515 = vlaneseq
        %v2516 = vshrl.u32 %v2515, 7
        %v2517 = vsub.s32 %v2514, %v2516
        %v2518 = vrot.slane %v901, %v2517
        %v2520 = vunpack.c.l.s4 1983009808
        %v2521 = vunpack.c.0.s8 %v2520
        %v2522 = vlaneseq
        %v2523 = vshrl.u32 %v2522, 7
        %v2524 = vsub.s32 %v2521, %v2523
        %v2525 = vrot.slane %v2511, %v2524
        %v2526 = vcombine.high %v2518, 0.0
        %v2528 = vunpack.c.l.s4 1934713408
        %v2529 = vunpack.c.0.s8 %v2528
        %v2530 = vlaneseq
        %v2531 = vshrl.u32 %v2530, 7
        %v2532 = vsub.s32 %v2529, %v2531
        %v2533 = vrot.slane %v2518, %v2532
        %v2535 = vunpack.c.l.s4 1934713408
        %v2536 = vunpack.c.0.s8 %v2535
        %v2537 = vlaneseq
        %v2538 = vshrl.u32 %v2537, 7
        %v2539 = vsub.s32 %v2536, %v2538
        %v2540 = vrot.slane %v2526, %v2539
        %v2541 = vcombine.high %v2525, 0.0
        %v2543 = vunpack.c.l.s4 1934713408
        %v2544 = vunpack.c.0.s8 %v2543
        %v2545 = vlaneseq
        %v2546 = vshrl.u32 %v2545, 7
        %v2547 = vsub.s32 %v2544, %v2546
        %v2548 = vrot.slane %v2525, %v2547
        %v2550 = vunpack.c.l.s4 1934713408
        %v2551 = vunpack.c.0.s8 %v2550
        %v2552 = vlaneseq
        %v2553 = vshrl.u32 %v2552, 7
        %v2554 = vsub.s32 %v2551, %v2553
        %v2555 = vrot.slane %v2541, %v2554
        %v2556 = vcombine.high %v2533, 0.0
        %v2557 = vcombine.high %v2540, 0.0
        %v2558 = vcombine.high %v2548, 0.0
        %v2559 = vcombine.high %v2555, 0.0
        %v2560 = vcombine.high %v902, 0.0
        %v2562 = vunpack.c.l.s4 1983009808
        %v2563 = vunpack.c.0.s8 %v2562
        %v2564 = vlaneseq
        %v2565 = vshrl.u32 %v2564, 7
        %v2566 = vsub.s32 %v2563, %v2565
        %v2567 = vrot.slane %v902, %v2566
        %v2569 = vunpack.c.l.s4 1983009808
        %v2570 = vunpack.c.0.s8 %v2569
        %v2571 = vlaneseq
        %v2572 = vshrl.u32 %v2571, 7
        %v2573 = vsub.s32 %v2570, %v2572
        %v2574 = vrot.slane %v2560, %v2573
        %v2575 = vcombine.high %v2567, 0.0
        %v2577 = vunpack.c.l.s4 1934713408
        %v2578 = vunpack.c.0.s8 %v2577
        %v2579 = vlaneseq
        %v2580 = vshrl.u32 %v2579, 7
        %v2581 = vsub.s32 %v2578, %v2580
        %v2582 = vrot.slane %v2567, %v2581
        %v2584 = vunpack.c.l.s4 1934713408
        %v2585 = vunpack.c.0.s8 %v2584
        %v2586 = vlaneseq
        %v2587 = vshrl.u32 %v2586, 7
        %v2588 = vsub.s32 %v2585, %v2587
        %v2589 = vrot.slane %v2575, %v2588
        %v2590 = vcombine.high %v2574, 0.0
        %v2592 = vunpack.c.l.s4 1934713408
        %v2593 = vunpack.c.0.s8 %v2592
        %v2594 = vlaneseq
        %v2595 = vshrl.u32 %v2594, 7
        %v2596 = vsub.s32 %v2593, %v2595
        %v2597 = vrot.slane %v2574, %v2596
        %v2599 = vunpack.c.l.s4 1934713408
        %v2600 = vunpack.c.0.s8 %v2599
        %v2601 = vlaneseq
        %v2602 = vshrl.u32 %v2601, 7
        %v2603 = vsub.s32 %v2600, %v2602
        %v2604 = vrot.slane %v2590, %v2603
        %v2605 = vcombine.high %v2582, 0.0
        %v2606 = vcombine.high %v2589, 0.0
        %v2607 = vcombine.high %v2597, 0.0
        %v2608 = vcombine.high %v2604, 0.0
        %v2609 = vcombine.high %v903, 0.0
        %v2611 = vunpack.c.l.s4 1983009808
        %v2612 = vunpack.c.0.s8 %v2611
        %v2613 = vlaneseq
        %v2614 = vshrl.u32 %v2613, 7
        %v2615 = vsub.s32 %v2612, %v2614
        %v2616 = vrot.slane %v903, %v2615
        %v2618 = vunpack.c.l.s4 1983009808
        %v2619 = vunpack.c.0.s8 %v2618
        %v2620 = vlaneseq
        %v2621 = vshrl.u32 %v2620, 7
        %v2622 = vsub.s32 %v2619, %v2621
        %v2623 = vrot.slane %v2609, %v2622
        %v2624 = vcombine.high %v2616, 0.0
        %v2626 = vunpack.c.l.s4 1934713408
        %v2627 = vunpack.c.0.s8 %v2626
        %v2628 = vlaneseq
        %v2629 = vshrl.u32 %v2628, 7
        %v2630 = vsub.s32 %v2627, %v2629
        %v2631 = vrot.slane %v2616, %v2630
        %v2633 = vunpack.c.l.s4 1934713408
        %v2634 = vunpack.c.0.s8 %v2633
        %v2635 = vlaneseq
        %v2636 = vshrl.u32 %v2635, 7
        %v2637 = vsub.s32 %v2634, %v2636
        %v2638 = vrot.slane %v2624, %v2637
        %v2639 = vcombine.high %v2623, 0.0
        %v2641 = vunpack.c.l.s4 1934713408
        %v2642 = vunpack.c.0.s8 %v2641
        %v2643 = vlaneseq
        %v2644 = vshrl.u32 %v2643, 7
        %v2645 = vsub.s32 %v2642, %v2644
        %v2646 = vrot.slane %v2623, %v2645
        %v2648 = vunpack.c.l.s4 1934713408
        %v2649 = vunpack.c.0.s8 %v2648
        %v2650 = vlaneseq
        %v2651 = vshrl.u32 %v2650, 7
        %v2652 = vsub.s32 %v2649, %v2651
        %v2653 = vrot.slane %v2639, %v2652
        %v2654 = vcombine.high %v2631, 0.0
        %v2655 = vcombine.high %v2638, 0.0
        %v2656 = vcombine.high %v2646, 0.0
        %v2657 = vcombine.high %v2653, 0.0
        %v2658 = vcombine.high %v904, 0.0
        %v2660 = vunpack.c.l.s4 1983009808
        %v2661 = vunpack.c.0.s8 %v2660
        %v2662 = vlaneseq
        %v2663 = vshrl.u32 %v2662, 7
        %v2664 = vsub.s32 %v2661, %v2663
        %v2665 = vrot.slane %v904, %v2664
        %v2667 = vunpack.c.l.s4 1983009808
        %v2668 = vunpack.c.0.s8 %v2667
        %v2669 = vlaneseq
        %v2670 = vshrl.u32 %v2669, 7
        %v2671 = vsub.s32 %v2668, %v2670
        %v2672 = vrot.slane %v2658, %v2671
        %v2673 = vcombine.high %v2665, 0.0
        %v2675 = vunpack.c.l.s4 1934713408
        %v2676 = vunpack.c.0.s8 %v2675
        %v2677 = vlaneseq
        %v2678 = vshrl.u32 %v2677, 7
        %v2679 = vsub.s32 %v2676, %v2678
        %v2680 = vrot.slane %v2665, %v2679
        %v2682 = vunpack.c.l.s4 1934713408
        %v2683 = vunpack.c.0.s8 %v2682
        %v2684 = vlaneseq
        %v2685 = vshrl.u32 %v2684, 7
        %v2686 = vsub.s32 %v2683, %v2685
        %v2687 = vrot.slane %v2673, %v2686
        %v2688 = vcombine.high %v2672, 0.0
        %v2690 = vunpack.c.l.s4 1934713408
        %v2691 = vunpack.c.0.s8 %v2690
        %v2692 = vlaneseq
        %v2693 = vshrl.u32 %v2692, 7
        %v2694 = vsub.s32 %v2691, %v2693
        %v2695 = vrot.slane %v2672, %v2694
        %v2697 = vunpack.c.l.s4 1934713408
        %v2698 = vunpack.c.0.s8 %v2697
        %v2699 = vlaneseq
        %v2700 = vshrl.u32 %v2699, 7
        %v2701 = vsub.s32 %v2698, %v2700
        %v2702 = vrot.slane %v2688, %v2701
        %v2703 = vcombine.high %v2680, 0.0
        %v2704 = vcombine.high %v2687, 0.0
        %v2705 = vcombine.high %v2695, 0.0
        %v2706 = vcombine.high %v2702, 0.0
        %v2707 = vcombine.high %v905, 0.0
        %v2709 = vunpack.c.l.s4 1983009808
        %v2710 = vunpack.c.0.s8 %v2709
        %v2711 = vlaneseq
        %v2712 = vshrl.u32 %v2711, 7
        %v2713 = vsub.s32 %v2710, %v2712
        %v2714 = vrot.slane %v905, %v2713
        %v2716 = vunpack.c.l.s4 1983009808
        %v2717 = vunpack.c.0.s8 %v2716
        %v2718 = vlaneseq
        %v2719 = vshrl.u32 %v2718, 7
        %v2720 = vsub.s32 %v2717, %v2719
        %v2721 = vrot.slane %v2707, %v2720
        %v2722 = vcombine.high %v2714, 0.0
        %v2724 = vunpack.c.l.s4 1934713408
        %v2725 = vunpack.c.0.s8 %v2724
        %v2726 = vlaneseq
        %v2727 = vshrl.u32 %v2726, 7
        %v2728 = vsub.s32 %v2725, %v2727
        %v2729 = vrot.slane %v2714, %v2728
        %v2731 = vunpack.c.l.s4 1934713408
        %v2732 = vunpack.c.0.s8 %v2731
        %v2733 = vlaneseq
        %v2734 = vshrl.u32 %v2733, 7
        %v2735 = vsub.s32 %v2732, %v2734
        %v2736 = vrot.slane %v2722, %v2735
        %v2737 = vcombine.high %v2721, 0.0
        %v2739 = vunpack.c.l.s4 1934713408
        %v2740 = vunpack.c.0.s8 %v2739
        %v2741 = vlaneseq
        %v2742 = vshrl.u32 %v2741, 7
        %v2743 = vsub.s32 %v2740, %v2742
        %v2744 = vrot.slane %v2721, %v2743
        %v2746 = vunpack.c.l.s4 1934713408
        %v2747 = vunpack.c.0.s8 %v2746
        %v2748 = vlaneseq
        %v2749 = vshrl.u32 %v2748, 7
        %v2750 = vsub.s32 %v2747, %v2749
        %v2751 = vrot.slane %v2737, %v2750
        %v2752 = vcombine.high %v2729, 0.0
        %v2753 = vcombine.high %v2736, 0.0
        %v2754 = vcombine.high %v2744, 0.0
        %v2755 = vcombine.high %v2751, 0.0
        %v2756 = vcombine.high %v906, 0.0
        %v2758 = vunpack.c.l.s4 1983009808
        %v2759 = vunpack.c.0.s8 %v2758
        %v2760 = vlaneseq
        %v2761 = vshrl.u32 %v2760, 7
        %v2762 = vsub.s32 %v2759, %v2761
        %v2763 = vrot.slane %v906, %v2762
        %v2765 = vunpack.c.l.s4 1983009808
        %v2766 = vunpack.c.0.s8 %v2765
        %v2767 = vlaneseq
        %v2768 = vshrl.u32 %v2767, 7
        %v2769 = vsub.s32 %v2766, %v2768
        %v2770 = vrot.slane %v2756, %v2769
        %v2771 = vcombine.high %v2763, 0.0
        %v2773 = vunpack.c.l.s4 1934713408
        %v2774 = vunpack.c.0.s8 %v2773
        %v2775 = vlaneseq
        %v2776 = vshrl.u32 %v2775, 7
        %v2777 = vsub.s32 %v2774, %v2776
        %v2778 = vrot.slane %v2763, %v2777
        %v2780 = vunpack.c.l.s4 1934713408
        %v2781 = vunpack.c.0.s8 %v2780
        %v2782 = vlaneseq
        %v2783 = vshrl.u32 %v2782, 7
        %v2784 = vsub.s32 %v2781, %v2783
        %v2785 = vrot.slane %v2771, %v2784
        %v2786 = vcombine.high %v2770, 0.0
        %v2788 = vunpack.c.l.s4 1934713408
        %v2789 = vunpack.c.0.s8 %v2788
        %v2790 = vlaneseq
        %v2791 = vshrl.u32 %v2790, 7
        %v2792 = vsub.s32 %v2789, %v2791
        %v2793 = vrot.slane %v2770, %v2792
        %v2795 = vunpack.c.l.s4 1934713408
        %v2796 = vunpack.c.0.s8 %v2795
        %v2797 = vlaneseq
        %v2798 = vshrl.u32 %v2797, 7
        %v2799 = vsub.s32 %v2796, %v2798
        %v2800 = vrot.slane %v2786, %v2799
        %v2801 = vcombine.high %v2778, 0.0
        %v2802 = vcombine.high %v2785, 0.0
        %v2803 = vcombine.high %v2793, 0.0
        %v2804 = vcombine.high %v2800, 0.0
        %v2805 = vcombine.high %v907, 0.0
        %v2807 = vunpack.c.l.s4 1983009808
        %v2808 = vunpack.c.0.s8 %v2807
        %v2809 = vlaneseq
        %v2810 = vshrl.u32 %v2809, 7
        %v2811 = vsub.s32 %v2808, %v2810
        %v2812 = vrot.slane %v907, %v2811
        %v2814 = vunpack.c.l.s4 1983009808
        %v2815 = vunpack.c.0.s8 %v2814
        %v2816 = vlaneseq
        %v2817 = vshrl.u32 %v2816, 7
        %v2818 = vsub.s32 %v2815, %v2817
        %v2819 = vrot.slane %v2805, %v2818
        %v2820 = vcombine.high %v2812, 0.0
        %v2822 = vunpack.c.l.s4 1934713408
        %v2823 = vunpack.c.0.s8 %v2822
        %v2824 = vlaneseq
        %v2825 = vshrl.u32 %v2824, 7
        %v2826 = vsub.s32 %v2823, %v2825
        %v2827 = vrot.slane %v2812, %v2826
        %v2829 = vunpack.c.l.s4 1934713408
        %v2830 = vunpack.c.0.s8 %v2829
        %v2831 = vlaneseq
        %v2832 = vshrl.u32 %v2831, 7
        %v2833 = vsub.s32 %v2830, %v2832
        %v2834 = vrot.slane %v2820, %v2833
        %v2835 = vcombine.high %v2819, 0.0
        %v2837 = vunpack.c.l.s4 1934713408
        %v2838 = vunpack.c.0.s8 %v2837
        %v2839 = vlaneseq
        %v2840 = vshrl.u32 %v2839, 7
        %v2841 = vsub.s32 %v2838, %v2840
        %v2842 = vrot.slane %v2819, %v2841
        %v2844 = vunpack.c.l.s4 1934713408
        %v2845 = vunpack.c.0.s8 %v2844
        %v2846 = vlaneseq
        %v2847 = vshrl.u32 %v2846, 7
        %v2848 = vsub.s32 %v2845, %v2847
        %v2849 = vrot.slane %v2835, %v2848
        %v2850 = vcombine.high %v2827, 0.0
        %v2851 = vcombine.high %v2834, 0.0
        %v2852 = vcombine.high %v2842, 0.0
        %v2853 = vcombine.high %v2849, 0.0
        %v2854 = vcombine.high %v908, 0.0
        %v2856 = vunpack.c.l.s4 1983009808
        %v2857 = vunpack.c.0.s8 %v2856
        %v2858 = vlaneseq
        %v2859 = vshrl.u32 %v2858, 7
        %v2860 = vsub.s32 %v2857, %v2859
        %v2861 = vrot.slane %v908, %v2860
        %v2863 = vunpack.c.l.s4 1983009808
        %v2864 = vunpack.c.0.s8 %v2863
        %v2865 = vlaneseq
        %v2866 = vshrl.u32 %v2865, 7
        %v2867 = vsub.s32 %v2864, %v2866
        %v2868 = vrot.slane %v2854, %v2867
        %v2869 = vcombine.high %v2861, 0.0
        %v2871 = vunpack.c.l.s4 1934713408
        %v2872 = vunpack.c.0.s8 %v2871
        %v2873 = vlaneseq
        %v2874 = vshrl.u32 %v2873, 7
        %v2875 = vsub.s32 %v2872, %v2874
        %v2876 = vrot.slane %v2861, %v2875
        %v2878 = vunpack.c.l.s4 1934713408
        %v2879 = vunpack.c.0.s8 %v2878
        %v2880 = vlaneseq
        %v2881 = vshrl.u32 %v2880, 7
        %v2882 = vsub.s32 %v2879, %v2881
        %v2883 = vrot.slane %v2869, %v2882
        %v2884 = vcombine.high %v2868, 0.0
        %v2886 = vunpack.c.l.s4 1934713408
        %v2887 = vunpack.c.0.s8 %v2886
        %v2888 = vlaneseq
        %v2889 = vshrl.u32 %v2888, 7
        %v2890 = vsub.s32 %v2887, %v2889
        %v2891 = vrot.slane %v2868, %v2890
        %v2893 = vunpack.c.l.s4 1934713408
        %v2894 = vunpack.c.0.s8 %v2893
        %v2895 = vlaneseq
        %v2896 = vshrl.u32 %v2895, 7
        %v2897 = vsub.s32 %v2894, %v2896
        %v2898 = vrot.slane %v2884, %v2897
        %v2899 = vcombine.high %v2876, 0.0
        %v2900 = vcombine.high %v2883, 0.0
        %v2901 = vcombine.high %v2891, 0.0
        %v2902 = vcombine.high %v2898, 0.0
        %v2903 = vcombine.high %v909, 0.0
        %v2905 = vunpack.c.l.s4 1983009808
        %v2906 = vunpack.c.0.s8 %v2905
        %v2907 = vlaneseq
        %v2908 = vshrl.u32 %v2907, 7
        %v2909 = vsub.s32 %v2906, %v2908
        %v2910 = vrot.slane %v909, %v2909
        %v2912 = vunpack.c.l.s4 1983009808
        %v2913 = vunpack.c.0.s8 %v2912
        %v2914 = vlaneseq
        %v2915 = vshrl.u32 %v2914, 7
        %v2916 = vsub.s32 %v2913, %v2915
        %v2917 = vrot.slane %v2903, %v2916
        %v2918 = vcombine.high %v2910, 0.0
        %v2920 = vunpack.c.l.s4 1934713408
        %v2921 = vunpack.c.0.s8 %v2920
        %v2922 = vlaneseq
        %v2923 = vshrl.u32 %v2922, 7
        %v2924 = vsub.s32 %v2921, %v2923
        %v2925 = vrot.slane %v2910, %v2924
        %v2927 = vunpack.c.l.s4 1934713408
        %v2928 = vunpack.c.0.s8 %v2927
        %v2929 = vlaneseq
        %v2930 = vshrl.u32 %v2929, 7
        %v2931 = vsub.s32 %v2928, %v2930
        %v2932 = vrot.slane %v2918, %v2931
        %v2933 = vcombine.high %v2917, 0.0
        %v2935 = vunpack.c.l.s4 1934713408
        %v2936 = vunpack.c.0.s8 %v2935
        %v2937 = vlaneseq
        %v2938 = vshrl.u32 %v2937, 7
        %v2939 = vsub.s32 %v2936, %v2938
        %v2940 = vrot.slane %v2917, %v2939
        %v2942 = vunpack.c.l.s4 1934713408
        %v2943 = vunpack.c.0.s8 %v2942
        %v2944 = vlaneseq
        %v2945 = vshrl.u32 %v2944, 7
        %v2946 = vsub.s32 %v2943, %v2945
        %v2947 = vrot.slane %v2933, %v2946
        %v2948 = vcombine.high %v2925, 0.0
        %v2949 = vcombine.high %v2932, 0.0
        %v2950 = vcombine.high %v2940, 0.0
        %v2951 = vcombine.high %v2947, 0.0
        %v2952 = vcombine.high %v910, 0.0
        %v2954 = vunpack.c.l.s4 1983009808
        %v2955 = vunpack.c.0.s8 %v2954
        %v2956 = vlaneseq
        %v2957 = vshrl.u32 %v2956, 7
        %v2958 = vsub.s32 %v2955, %v2957
        %v2959 = vrot.slane %v910, %v2958
        %v2961 = vunpack.c.l.s4 1983009808
        %v2962 = vunpack.c.0.s8 %v2961
        %v2963 = vlaneseq
        %v2964 = vshrl.u32 %v2963, 7
        %v2965 = vsub.s32 %v2962, %v2964
        %v2966 = vrot.slane %v2952, %v2965
        %v2967 = vcombine.high %v2959, 0.0
        %v2969 = vunpack.c.l.s4 1934713408
        %v2970 = vunpack.c.0.s8 %v2969
        %v2971 = vlaneseq
        %v2972 = vshrl.u32 %v2971, 7
        %v2973 = vsub.s32 %v2970, %v2972
        %v2974 = vrot.slane %v2959, %v2973
        %v2976 = vunpack.c.l.s4 1934713408
        %v2977 = vunpack.c.0.s8 %v2976
        %v2978 = vlaneseq
        %v2979 = vshrl.u32 %v2978, 7
        %v2980 = vsub.s32 %v2977, %v2979
        %v2981 = vrot.slane %v2967, %v2980
        %v2982 = vcombine.high %v2966, 0.0
        %v2984 = vunpack.c.l.s4 1934713408
        %v2985 = vunpack.c.0.s8 %v2984
        %v2986 = vlaneseq
        %v2987 = vshrl.u32 %v2986, 7
        %v2988 = vsub.s32 %v2985, %v2987
        %v2989 = vrot.slane %v2966, %v2988
        %v2991 = vunpack.c.l.s4 1934713408
        %v2992 = vunpack.c.0.s8 %v2991
        %v2993 = vlaneseq
        %v2994 = vshrl.u32 %v2993, 7
        %v2995 = vsub.s32 %v2992, %v2994
        %v2996 = vrot.slane %v2982, %v2995
        %v2997 = vcombine.high %v2974, 0.0
        %v2998 = vcombine.high %v2981, 0.0
        %v2999 = vcombine.high %v2989, 0.0
        %v3000 = vcombine.high %v2996, 0.0
        %v3001 = vcombine.high %v911, 0.0
        %v3003 = vunpack.c.l.s4 1983009808
        %v3004 = vunpack.c.0.s8 %v3003
        %v3005 = vlaneseq
        %v3006 = vshrl.u32 %v3005, 7
        %v3007 = vsub.s32 %v3004, %v3006
        %v3008 = vrot.slane %v911, %v3007
        %v3010 = vunpack.c.l.s4 1983009808
        %v3011 = vunpack.c.0.s8 %v3010
        %v3012 = vlaneseq
        %v3013 = vshrl.u32 %v3012, 7
        %v3014 = vsub.s32 %v3011, %v3013
        %v3015 = vrot.slane %v3001, %v3014
        %v3016 = vcombine.high %v3008, 0.0
        %v3018 = vunpack.c.l.s4 1934713408
        %v3019 = vunpack.c.0.s8 %v3018
        %v3020 = vlaneseq
        %v3021 = vshrl.u32 %v3020, 7
        %v3022 = vsub.s32 %v3019, %v3021
        %v3023 = vrot.slane %v3008, %v3022
        %v3025 = vunpack.c.l.s4 1934713408
        %v3026 = vunpack.c.0.s8 %v3025
        %v3027 = vlaneseq
        %v3028 = vshrl.u32 %v3027, 7
        %v3029 = vsub.s32 %v3026, %v3028
        %v3030 = vrot.slane %v3016, %v3029
        %v3031 = vcombine.high %v3015, 0.0
        %v3033 = vunpack.c.l.s4 1934713408
        %v3034 = vunpack.c.0.s8 %v3033
        %v3035 = vlaneseq
        %v3036 = vshrl.u32 %v3035, 7
        %v3037 = vsub.s32 %v3034, %v3036
        %v3038 = vrot.slane %v3015, %v3037
        %v3040 = vunpack.c.l.s4 1934713408
        %v3041 = vunpack.c.0.s8 %v3040
        %v3042 = vlaneseq
        %v3043 = vshrl.u32 %v3042, 7
        %v3044 = vsub.s32 %v3041, %v3043
        %v3045 = vrot.slane %v3031, %v3044
        %v3046 = vcombine.high %v3023, 0.0
        %v3047 = vcombine.high %v3030, 0.0
        %v3048 = vcombine.high %v3038, 0.0
        %v3049 = vcombine.high %v3045, 0.0
        %v3050 = vcombine.high %v912, 0.0
        %v3052 = vunpack.c.l.s4 1983009808
        %v3053 = vunpack.c.0.s8 %v3052
        %v3054 = vlaneseq
        %v3055 = vshrl.u32 %v3054, 7
        %v3056 = vsub.s32 %v3053, %v3055
        %v3057 = vrot.slane %v912, %v3056
        %v3059 = vunpack.c.l.s4 1983009808
        %v3060 = vunpack.c.0.s8 %v3059
        %v3061 = vlaneseq
        %v3062 = vshrl.u32 %v3061, 7
        %v3063 = vsub.s32 %v3060, %v3062
        %v3064 = vrot.slane %v3050, %v3063
        %v3065 = vcombine.high %v3057, 0.0
        %v3067 = vunpack.c.l.s4 1934713408
        %v3068 = vunpack.c.0.s8 %v3067
        %v3069 = vlaneseq
        %v3070 = vshrl.u32 %v3069, 7
        %v3071 = vsub.s32 %v3068, %v3070
        %v3072 = vrot.slane %v3057, %v3071
        %v3074 = vunpack.c.l.s4 1934713408
        %v3075 = vunpack.c.0.s8 %v3074
        %v3076 = vlaneseq
        %v3077 = vshrl.u32 %v3076, 7
        %v3078 = vsub.s32 %v3075, %v3077
        %v3079 = vrot.slane %v3065, %v3078
        %v3080 = vcombine.high %v3064, 0.0
        %v3082 = vunpack.c.l.s4 1934713408
        %v3083 = vunpack.c.0.s8 %v3082
        %v3084 = vlaneseq
        %v3085 = vshrl.u32 %v3084, 7
        %v3086 = vsub.s32 %v3083, %v3085
        %v3087 = vrot.slane %v3064, %v3086
        %v3089 = vunpack.c.l.s4 1934713408
        %v3090 = vunpack.c.0.s8 %v3089
        %v3091 = vlaneseq
        %v3092 = vshrl.u32 %v3091, 7
        %v3093 = vsub.s32 %v3090, %v3092
        %v3094 = vrot.slane %v3080, %v3093
        %v3095 = vcombine.high %v3072, 0.0
        %v3096 = vcombine.high %v3079, 0.0
        %v3097 = vcombine.high %v3087, 0.0
        %v3098 = vcombine.high %v3094, 0.0
        %v3099 = vcombine.high %v913, 0.0
        %v3101 = vunpack.c.l.s4 1983009808
        %v3102 = vunpack.c.0.s8 %v3101
        %v3103 = vlaneseq
        %v3104 = vshrl.u32 %v3103, 7
        %v3105 = vsub.s32 %v3102, %v3104
        %v3106 = vrot.slane %v913, %v3105
        %v3108 = vunpack.c.l.s4 1983009808
        %v3109 = vunpack.c.0.s8 %v3108
        %v3110 = vlaneseq
        %v3111 = vshrl.u32 %v3110, 7
        %v3112 = vsub.s32 %v3109, %v3111
        %v3113 = vrot.slane %v3099, %v3112
        %v3114 = vcombine.high %v3106, 0.0
        %v3116 = vunpack.c.l.s4 1934713408
        %v3117 = vunpack.c.0.s8 %v3116
        %v3118 = vlaneseq
        %v3119 = vshrl.u32 %v3118, 7
        %v3120 = vsub.s32 %v3117, %v3119
        %v3121 = vrot.slane %v3106, %v3120
        %v3123 = vunpack.c.l.s4 1934713408
        %v3124 = vunpack.c.0.s8 %v3123
        %v3125 = vlaneseq
        %v3126 = vshrl.u32 %v3125, 7
        %v3127 = vsub.s32 %v3124, %v3126
        %v3128 = vrot.slane %v3114, %v3127
        %v3129 = vcombine.high %v3113, 0.0
        %v3131 = vunpack.c.l.s4 1934713408
        %v3132 = vunpack.c.0.s8 %v3131
        %v3133 = vlaneseq
        %v3134 = vshrl.u32 %v3133, 7
        %v3135 = vsub.s32 %v3132, %v3134
        %v3136 = vrot.slane %v3113, %v3135
        %v3138 = vunpack.c.l.s4 1934713408
        %v3139 = vunpack.c.0.s8 %v3138
        %v3140 = vlaneseq
        %v3141 = vshrl.u32 %v3140, 7
        %v3142 = vsub.s32 %v3139, %v3141
        %v3143 = vrot.slane %v3129, %v3142
        %v3144 = vcombine.high %v3121, 0.0
        %v3145 = vcombine.high %v3128, 0.0
        %v3146 = vcombine.high %v3136, 0.0
        %v3147 = vcombine.high %v3143, 0.0
        %v3148 = vcombine.high %v914, 0.0
        %v3150 = vunpack.c.l.s4 1983009808
        %v3151 = vunpack.c.0.s8 %v3150
        %v3152 = vlaneseq
        %v3153 = vshrl.u32 %v3152, 7
        %v3154 = vsub.s32 %v3151, %v3153
        %v3155 = vrot.slane %v914, %v3154
        %v3157 = vunpack.c.l.s4 1983009808
        %v3158 = vunpack.c.0.s8 %v3157
        %v3159 = vlaneseq
        %v3160 = vshrl.u32 %v3159, 7
        %v3161 = vsub.s32 %v3158, %v3160
        %v3162 = vrot.slane %v3148, %v3161
        %v3163 = vcombine.high %v3155, 0.0
        %v3165 = vunpack.c.l.s4 1934713408
        %v3166 = vunpack.c.0.s8 %v3165
        %v3167 = vlaneseq
        %v3168 = vshrl.u32 %v3167, 7
        %v3169 = vsub.s32 %v3166, %v3168
        %v3170 = vrot.slane %v3155, %v3169
        %v3172 = vunpack.c.l.s4 1934713408
        %v3173 = vunpack.c.0.s8 %v3172
        %v3174 = vlaneseq
        %v3175 = vshrl.u32 %v3174, 7
        %v3176 = vsub.s32 %v3173, %v3175
        %v3177 = vrot.slane %v3163, %v3176
        %v3178 = vcombine.high %v3162, 0.0
        %v3180 = vunpack.c.l.s4 1934713408
        %v3181 = vunpack.c.0.s8 %v3180
        %v3182 = vlaneseq
        %v3183 = vshrl.u32 %v3182, 7
        %v3184 = vsub.s32 %v3181, %v3183
        %v3185 = vrot.slane %v3162, %v3184
        %v3187 = vunpack.c.l.s4 1934713408
        %v3188 = vunpack.c.0.s8 %v3187
        %v3189 = vlaneseq
        %v3190 = vshrl.u32 %v3189, 7
        %v3191 = vsub.s32 %v3188, %v3190
        %v3192 = vrot.slane %v3178, %v3191
        %v3193 = vcombine.high %v3170, 0.0
        %v3194 = vcombine.high %v3177, 0.0
        %v3195 = vcombine.high %v3185, 0.0
        %v3196 = vcombine.high %v3192, 0.0
        %v3197 = vcombine.high %v915, 0.0
        %v3199 = vunpack.c.l.s4 1983009808
        %v3200 = vunpack.c.0.s8 %v3199
        %v3201 = vlaneseq
        %v3202 = vshrl.u32 %v3201, 7
        %v3203 = vsub.s32 %v3200, %v3202
        %v3204 = vrot.slane %v915, %v3203
        %v3206 = vunpack.c.l.s4 1983009808
        %v3207 = vunpack.c.0.s8 %v3206
        %v3208 = vlaneseq
        %v3209 = vshrl.u32 %v3208, 7
        %v3210 = vsub.s32 %v3207, %v3209
        %v3211 = vrot.slane %v3197, %v3210
        %v3212 = vcombine.high %v3204, 0.0
        %v3214 = vunpack.c.l.s4 1934713408
        %v3215 = vunpack.c.0.s8 %v3214
        %v3216 = vlaneseq
        %v3217 = vshrl.u32 %v3216, 7
        %v3218 = vsub.s32 %v3215, %v3217
        %v3219 = vrot.slane %v3204, %v3218
        %v3221 = vunpack.c.l.s4 1934713408
        %v3222 = vunpack.c.0.s8 %v3221
        %v3223 = vlaneseq
        %v3224 = vshrl.u32 %v3223, 7
        %v3225 = vsub.s32 %v3222, %v3224
        %v3226 = vrot.slane %v3212, %v3225
        %v3227 = vcombine.high %v3211, 0.0
        %v3229 = vunpack.c.l.s4 1934713408
        %v3230 = vunpack.c.0.s8 %v3229
        %v3231 = vlaneseq
        %v3232 = vshrl.u32 %v3231, 7
        %v3233 = vsub.s32 %v3230, %v3232
        %v3234 = vrot.slane %v3211, %v3233
        %v3236 = vunpack.c.l.s4 1934713408
        %v3237 = vunpack.c.0.s8 %v3236
        %v3238 = vlaneseq
        %v3239 = vshrl.u32 %v3238, 7
        %v3240 = vsub.s32 %v3237, %v3239
        %v3241 = vrot.slane %v3227, %v3240
        %v3242 = vcombine.high %v3219, 0.0
        %v3243 = vcombine.high %v3226, 0.0
        %v3244 = vcombine.high %v3234, 0.0
        %v3245 = vcombine.high %v3241, 0.0
        %v3246 = vcombine.high %v916, 0.0
        %v3248 = vunpack.c.l.s4 1983009808
        %v3249 = vunpack.c.0.s8 %v3248
        %v3250 = vlaneseq
        %v3251 = vshrl.u32 %v3250, 7
        %v3252 = vsub.s32 %v3249, %v3251
        %v3253 = vrot.slane %v916, %v3252
        %v3255 = vunpack.c.l.s4 1983009808
        %v3256 = vunpack.c.0.s8 %v3255
        %v3257 = vlaneseq
        %v3258 = vshrl.u32 %v3257, 7
        %v3259 = vsub.s32 %v3256, %v3258
        %v3260 = vrot.slane %v3246, %v3259
        %v3261 = vcombine.high %v3253, 0.0
        %v3263 = vunpack.c.l.s4 1934713408
        %v3264 = vunpack.c.0.s8 %v3263
        %v3265 = vlaneseq
        %v3266 = vshrl.u32 %v3265, 7
        %v3267 = vsub.s32 %v3264, %v3266
        %v3268 = vrot.slane %v3253, %v3267
        %v3270 = vunpack.c.l.s4 1934713408
        %v3271 = vunpack.c.0.s8 %v3270
        %v3272 = vlaneseq
        %v3273 = vshrl.u32 %v3272, 7
        %v3274 = vsub.s32 %v3271, %v3273
        %v3275 = vrot.slane %v3261, %v3274
        %v3276 = vcombine.high %v3260, 0.0
        %v3278 = vunpack.c.l.s4 1934713408
        %v3279 = vunpack.c.0.s8 %v3278
        %v3280 = vlaneseq
        %v3281 = vshrl.u32 %v3280, 7
        %v3282 = vsub.s32 %v3279, %v3281
        %v3283 = vrot.slane %v3260, %v3282
        %v3285 = vunpack.c.l.s4 1934713408
        %v3286 = vunpack.c.0.s8 %v3285
        %v3287 = vlaneseq
        %v3288 = vshrl.u32 %v3287, 7
        %v3289 = vsub.s32 %v3286, %v3288
        %v3290 = vrot.slane %v3276, %v3289
        %v3291 = vcombine.high %v3268, 0.0
        %v3292 = vcombine.high %v3275, 0.0
        %v3293 = vcombine.high %v3283, 0.0
        %v3294 = vcombine.high %v3290, 0.0
        %v3295 = vcombine.high %v917, 0.0
        %v3297 = vunpack.c.l.s4 1983009808
        %v3298 = vunpack.c.0.s8 %v3297
        %v3299 = vlaneseq
        %v3300 = vshrl.u32 %v3299, 7
        %v3301 = vsub.s32 %v3298, %v3300
        %v3302 = vrot.slane %v917, %v3301
        %v3304 = vunpack.c.l.s4 1983009808
        %v3305 = vunpack.c.0.s8 %v3304
        %v3306 = vlaneseq
        %v3307 = vshrl.u32 %v3306, 7
        %v3308 = vsub.s32 %v3305, %v3307
        %v3309 = vrot.slane %v3295, %v3308
        %v3310 = vcombine.high %v3302, 0.0
        %v3312 = vunpack.c.l.s4 1934713408
        %v3313 = vunpack.c.0.s8 %v3312
        %v3314 = vlaneseq
        %v3315 = vshrl.u32 %v3314, 7
        %v3316 = vsub.s32 %v3313, %v3315
        %v3317 = vrot.slane %v3302, %v3316
        %v3319 = vunpack.c.l.s4 1934713408
        %v3320 = vunpack.c.0.s8 %v3319
        %v3321 = vlaneseq
        %v3322 = vshrl.u32 %v3321, 7
        %v3323 = vsub.s32 %v3320, %v3322
        %v3324 = vrot.slane %v3310, %v3323
        %v3325 = vcombine.high %v3309, 0.0
        %v3327 = vunpack.c.l.s4 1934713408
        %v3328 = vunpack.c.0.s8 %v3327
        %v3329 = vlaneseq
        %v3330 = vshrl.u32 %v3329, 7
        %v3331 = vsub.s32 %v3328, %v3330
        %v3332 = vrot.slane %v3309, %v3331
        %v3334 = vunpack.c.l.s4 1934713408
        %v3335 = vunpack.c.0.s8 %v3334
        %v3336 = vlaneseq
        %v3337 = vshrl.u32 %v3336, 7
        %v3338 = vsub.s32 %v3335, %v3337
        %v3339 = vrot.slane %v3325, %v3338
        %v3340 = vcombine.high %v3317, 0.0
        %v3341 = vcombine.high %v3324, 0.0
        %v3342 = vcombine.high %v3332, 0.0
        %v3343 = vcombine.high %v3339, 0.0
        %v3344 = vcombine.high %v918, 0.0
        %v3346 = vunpack.c.l.s4 1983009808
        %v3347 = vunpack.c.0.s8 %v3346
        %v3348 = vlaneseq
        %v3349 = vshrl.u32 %v3348, 7
        %v3350 = vsub.s32 %v3347, %v3349
        %v3351 = vrot.slane %v918, %v3350
        %v3353 = vunpack.c.l.s4 1983009808
        %v3354 = vunpack.c.0.s8 %v3353
        %v3355 = vlaneseq
        %v3356 = vshrl.u32 %v3355, 7
        %v3357 = vsub.s32 %v3354, %v3356
        %v3358 = vrot.slane %v3344, %v3357
        %v3359 = vcombine.high %v3351, 0.0
        %v3361 = vunpack.c.l.s4 1934713408
        %v3362 = vunpack.c.0.s8 %v3361
        %v3363 = vlaneseq
        %v3364 = vshrl.u32 %v3363, 7
        %v3365 = vsub.s32 %v3362, %v3364
        %v3366 = vrot.slane %v3351, %v3365
        %v3368 = vunpack.c.l.s4 1934713408
        %v3369 = vunpack.c.0.s8 %v3368
        %v3370 = vlaneseq
        %v3371 = vshrl.u32 %v3370, 7
        %v3372 = vsub.s32 %v3369, %v3371
        %v3373 = vrot.slane %v3359, %v3372
        %v3374 = vcombine.high %v3358, 0.0
        %v3376 = vunpack.c.l.s4 1934713408
        %v3377 = vunpack.c.0.s8 %v3376
        %v3378 = vlaneseq
        %v3379 = vshrl.u32 %v3378, 7
        %v3380 = vsub.s32 %v3377, %v3379
        %v3381 = vrot.slane %v3358, %v3380
        %v3383 = vunpack.c.l.s4 1934713408
        %v3384 = vunpack.c.0.s8 %v3383
        %v3385 = vlaneseq
        %v3386 = vshrl.u32 %v3385, 7
        %v3387 = vsub.s32 %v3384, %v3386
        %v3388 = vrot.slane %v3374, %v3387
        %v3389 = vcombine.high %v3366, 0.0
        %v3390 = vcombine.high %v3373, 0.0
        %v3391 = vcombine.high %v3381, 0.0
        %v3392 = vcombine.high %v3388, 0.0
        %v3393 = vcombine.high %v919, 0.0
        %v3395 = vunpack.c.l.s4 1983009808
        %v3396 = vunpack.c.0.s8 %v3395
        %v3397 = vlaneseq
        %v3398 = vshrl.u32 %v3397, 7
        %v3399 = vsub.s32 %v3396, %v3398
        %v3400 = vrot.slane %v919, %v3399
        %v3402 = vunpack.c.l.s4 1983009808
        %v3403 = vunpack.c.0.s8 %v3402
        %v3404 = vlaneseq
        %v3405 = vshrl.u32 %v3404, 7
        %v3406 = vsub.s32 %v3403, %v3405
        %v3407 = vrot.slane %v3393, %v3406
        %v3408 = vcombine.high %v3400, 0.0
        %v3410 = vunpack.c.l.s4 1934713408
        %v3411 = vunpack.c.0.s8 %v3410
        %v3412 = vlaneseq
        %v3413 = vshrl.u32 %v3412, 7
        %v3414 = vsub.s32 %v3411, %v3413
        %v3415 = vrot.slane %v3400, %v3414
        %v3417 = vunpack.c.l.s4 1934713408
        %v3418 = vunpack.c.0.s8 %v3417
        %v3419 = vlaneseq
        %v3420 = vshrl.u32 %v3419, 7
        %v3421 = vsub.s32 %v3418, %v3420
        %v3422 = vrot.slane %v3408, %v3421
        %v3423 = vcombine.high %v3407, 0.0
        %v3425 = vunpack.c.l.s4 1934713408
        %v3426 = vunpack.c.0.s8 %v3425
        %v3427 = vlaneseq
        %v3428 = vshrl.u32 %v3427, 7
        %v3429 = vsub.s32 %v3426, %v3428
        %v3430 = vrot.slane %v3407, %v3429
        %v3432 = vunpack.c.l.s4 1934713408
        %v3433 = vunpack.c.0.s8 %v3432
        %v3434 = vlaneseq
        %v3435 = vshrl.u32 %v3434, 7
        %v3436 = vsub.s32 %v3433, %v3435
        %v3437 = vrot.slane %v3423, %v3436
        %v3438 = vcombine.high %v3415, 0.0
        %v3439 = vcombine.high %v3422, 0.0
        %v3440 = vcombine.high %v3430, 0.0
        %v3441 = vcombine.high %v3437, 0.0
        %v3442 = vcombine.high %v920, 0.0
        %v3444 = vunpack.c.l.s4 1983009808
        %v3445 = vunpack.c.0.s8 %v3444
        %v3446 = vlaneseq
        %v3447 = vshrl.u32 %v3446, 7
        %v3448 = vsub.s32 %v3445, %v3447
        %v3449 = vrot.slane %v920, %v3448
        %v3451 = vunpack.c.l.s4 1983009808
        %v3452 = vunpack.c.0.s8 %v3451
        %v3453 = vlaneseq
        %v3454 = vshrl.u32 %v3453, 7
        %v3455 = vsub.s32 %v3452, %v3454
        %v3456 = vrot.slane %v3442, %v3455
        %v3457 = vcombine.high %v3449, 0.0
        %v3459 = vunpack.c.l.s4 1934713408
        %v3460 = vunpack.c.0.s8 %v3459
        %v3461 = vlaneseq
        %v3462 = vshrl.u32 %v3461, 7
        %v3463 = vsub.s32 %v3460, %v3462
        %v3464 = vrot.slane %v3449, %v3463
        %v3466 = vunpack.c.l.s4 1934713408
        %v3467 = vunpack.c.0.s8 %v3466
        %v3468 = vlaneseq
        %v3469 = vshrl.u32 %v3468, 7
        %v3470 = vsub.s32 %v3467, %v3469
        %v3471 = vrot.slane %v3457, %v3470
        %v3472 = vcombine.high %v3456, 0.0
        %v3474 = vunpack.c.l.s4 1934713408
        %v3475 = vunpack.c.0.s8 %v3474
        %v3476 = vlaneseq
        %v3477 = vshrl.u32 %v3476, 7
        %v3478 = vsub.s32 %v3475, %v3477
        %v3479 = vrot.slane %v3456, %v3478
        %v3481 = vunpack.c.l.s4 1934713408
        %v3482 = vunpack.c.0.s8 %v3481
        %v3483 = vlaneseq
        %v3484 = vshrl.u32 %v3483, 7
        %v3485 = vsub.s32 %v3482, %v3484
        %v3486 = vrot.slane %v3472, %v3485
        %v3487 = vcombine.high %v3464, 0.0
        %v3488 = vcombine.high %v3471, 0.0
        %v3489 = vcombine.high %v3479, 0.0
        %v3490 = vcombine.high %v3486, 0.0
        %v3491 = vcombine.high %v921, 0.0
        %v3493 = vunpack.c.l.s4 1983009808
        %v3494 = vunpack.c.0.s8 %v3493
        %v3495 = vlaneseq
        %v3496 = vshrl.u32 %v3495, 7
        %v3497 = vsub.s32 %v3494, %v3496
        %v3498 = vrot.slane %v921, %v3497
        %v3500 = vunpack.c.l.s4 1983009808
        %v3501 = vunpack.c.0.s8 %v3500
        %v3502 = vlaneseq
        %v3503 = vshrl.u32 %v3502, 7
        %v3504 = vsub.s32 %v3501, %v3503
        %v3505 = vrot.slane %v3491, %v3504
        %v3506 = vcombine.high %v3498, 0.0
        %v3508 = vunpack.c.l.s4 1934713408
        %v3509 = vunpack.c.0.s8 %v3508
        %v3510 = vlaneseq
        %v3511 = vshrl.u32 %v3510, 7
        %v3512 = vsub.s32 %v3509, %v3511
        %v3513 = vrot.slane %v3498, %v3512
        %v3515 = vunpack.c.l.s4 1934713408
        %v3516 = vunpack.c.0.s8 %v3515
        %v3517 = vlaneseq
        %v3518 = vshrl.u32 %v3517, 7
        %v3519 = vsub.s32 %v3516, %v3518
        %v3520 = vrot.slane %v3506, %v3519
        %v3521 = vcombine.high %v3505, 0.0
        %v3523 = vunpack.c.l.s4 1934713408
        %v3524 = vunpack.c.0.s8 %v3523
        %v3525 = vlaneseq
        %v3526 = vshrl.u32 %v3525, 7
        %v3527 = vsub.s32 %v3524, %v3526
        %v3528 = vrot.slane %v3505, %v3527
        %v3530 = vunpack.c.l.s4 1934713408
        %v3531 = vunpack.c.0.s8 %v3530
        %v3532 = vlaneseq
        %v3533 = vshrl.u32 %v3532, 7
        %v3534 = vsub.s32 %v3531, %v3533
        %v3535 = vrot.slane %v3521, %v3534
        %v3536 = vcombine.high %v3513, 0.0
        %v3537 = vcombine.high %v3520, 0.0
        %v3538 = vcombine.high %v3528, 0.0
        %v3539 = vcombine.high %v3535, 0.0
        %v3540 = vcombine.high %v922, 0.0
        %v3542 = vunpack.c.l.s4 1983009808
        %v3543 = vunpack.c.0.s8 %v3542
        %v3544 = vlaneseq
        %v3545 = vshrl.u32 %v3544, 7
        %v3546 = vsub.s32 %v3543, %v3545
        %v3547 = vrot.slane %v922, %v3546
        %v3549 = vunpack.c.l.s4 1983009808
        %v3550 = vunpack.c.0.s8 %v3549
        %v3551 = vlaneseq
        %v3552 = vshrl.u32 %v3551, 7
        %v3553 = vsub.s32 %v3550, %v3552
        %v3554 = vrot.slane %v3540, %v3553
        %v3555 = vcombine.high %v3547, 0.0
        %v3557 = vunpack.c.l.s4 1934713408
        %v3558 = vunpack.c.0.s8 %v3557
        %v3559 = vlaneseq
        %v3560 = vshrl.u32 %v3559, 7
        %v3561 = vsub.s32 %v3558, %v3560
        %v3562 = vrot.slane %v3547, %v3561
        %v3564 = vunpack.c.l.s4 1934713408
        %v3565 = vunpack.c.0.s8 %v3564
        %v3566 = vlaneseq
        %v3567 = vshrl.u32 %v3566, 7
        %v3568 = vsub.s32 %v3565, %v3567
        %v3569 = vrot.slane %v3555, %v3568
        %v3570 = vcombine.high %v3554, 0.0
        %v3572 = vunpack.c.l.s4 1934713408
        %v3573 = vunpack.c.0.s8 %v3572
        %v3574 = vlaneseq
        %v3575 = vshrl.u32 %v3574, 7
        %v3576 = vsub.s32 %v3573, %v3575
        %v3577 = vrot.slane %v3554, %v3576
        %v3579 = vunpack.c.l.s4 1934713408
        %v3580 = vunpack.c.0.s8 %v3579
        %v3581 = vlaneseq
        %v3582 = vshrl.u32 %v3581, 7
        %v3583 = vsub.s32 %v3580, %v3582
        %v3584 = vrot.slane %v3570, %v3583
        %v3585 = vcombine.high %v3562, 0.0
        %v3586 = vcombine.high %v3569, 0.0
        %v3587 = vcombine.high %v3577, 0.0
        %v3588 = vcombine.high %v3584, 0.0
        %v3589 = vcombine.high %v923, 0.0
        %v3591 = vunpack.c.l.s4 1983009808
        %v3592 = vunpack.c.0.s8 %v3591
        %v3593 = vlaneseq
        %v3594 = vshrl.u32 %v3593, 7
        %v3595 = vsub.s32 %v3592, %v3594
        %v3596 = vrot.slane %v923, %v3595
        %v3598 = vunpack.c.l.s4 1983009808
        %v3599 = vunpack.c.0.s8 %v3598
        %v3600 = vlaneseq
        %v3601 = vshrl.u32 %v3600, 7
        %v3602 = vsub.s32 %v3599, %v3601
        %v3603 = vrot.slane %v3589, %v3602
        %v3604 = vcombine.high %v3596, 0.0
        %v3606 = vunpack.c.l.s4 1934713408
        %v3607 = vunpack.c.0.s8 %v3606
        %v3608 = vlaneseq
        %v3609 = vshrl.u32 %v3608, 7
        %v3610 = vsub.s32 %v3607, %v3609
        %v3611 = vrot.slane %v3596, %v3610
        %v3613 = vunpack.c.l.s4 1934713408
        %v3614 = vunpack.c.0.s8 %v3613
        %v3615 = vlaneseq
        %v3616 = vshrl.u32 %v3615, 7
        %v3617 = vsub.s32 %v3614, %v3616
        %v3618 = vrot.slane %v3604, %v3617
        %v3619 = vcombine.high %v3603, 0.0
        %v3621 = vunpack.c.l.s4 1934713408
        %v3622 = vunpack.c.0.s8 %v3621
        %v3623 = vlaneseq
        %v3624 = vshrl.u32 %v3623, 7
        %v3625 = vsub.s32 %v3622, %v3624
        %v3626 = vrot.slane %v3603, %v3625
        %v3628 = vunpack.c.l.s4 1934713408
        %v3629 = vunpack.c.0.s8 %v3628
        %v3630 = vlaneseq
        %v3631 = vshrl.u32 %v3630, 7
        %v3632 = vsub.s32 %v3629, %v3631
        %v3633 = vrot.slane %v3619, %v3632
        %v3634 = vcombine.high %v3611, 0.0
        %v3635 = vcombine.high %v3618, 0.0
        %v3636 = vcombine.high %v3626, 0.0
        %v3637 = vcombine.high %v3633, 0.0
        %v3638 = vcombine.high %v924, 0.0
        %v3640 = vunpack.c.l.s4 1983009808
        %v3641 = vunpack.c.0.s8 %v3640
        %v3642 = vlaneseq
        %v3643 = vshrl.u32 %v3642, 7
        %v3644 = vsub.s32 %v3641, %v3643
        %v3645 = vrot.slane %v924, %v3644
        %v3647 = vunpack.c.l.s4 1983009808
        %v3648 = vunpack.c.0.s8 %v3647
        %v3649 = vlaneseq
        %v3650 = vshrl.u32 %v3649, 7
        %v3651 = vsub.s32 %v3648, %v3650
        %v3652 = vrot.slane %v3638, %v3651
        %v3653 = vcombine.high %v3645, 0.0
        %v3655 = vunpack.c.l.s4 1934713408
        %v3656 = vunpack.c.0.s8 %v3655
        %v3657 = vlaneseq
        %v3658 = vshrl.u32 %v3657, 7
        %v3659 = vsub.s32 %v3656, %v3658
        %v3660 = vrot.slane %v3645, %v3659
        %v3662 = vunpack.c.l.s4 1934713408
        %v3663 = vunpack.c.0.s8 %v3662
        %v3664 = vlaneseq
        %v3665 = vshrl.u32 %v3664, 7
        %v3666 = vsub.s32 %v3663, %v3665
        %v3667 = vrot.slane %v3653, %v3666
        %v3668 = vcombine.high %v3652, 0.0
        %v3670 = vunpack.c.l.s4 1934713408
        %v3671 = vunpack.c.0.s8 %v3670
        %v3672 = vlaneseq
        %v3673 = vshrl.u32 %v3672, 7
        %v3674 = vsub.s32 %v3671, %v3673
        %v3675 = vrot.slane %v3652, %v3674
        %v3677 = vunpack.c.l.s4 1934713408
        %v3678 = vunpack.c.0.s8 %v3677
        %v3679 = vlaneseq
        %v3680 = vshrl.u32 %v3679, 7
        %v3681 = vsub.s32 %v3678, %v3680
        %v3682 = vrot.slane %v3668, %v3681
        %v3683 = vcombine.high %v3660, 0.0
        %v3684 = vcombine.high %v3667, 0.0
        %v3685 = vcombine.high %v3675, 0.0
        %v3686 = vcombine.high %v3682, 0.0
        %v3687 = vcombine.high %v925, 0.0
        %v3689 = vunpack.c.l.s4 1983009808
        %v3690 = vunpack.c.0.s8 %v3689
        %v3691 = vlaneseq
        %v3692 = vshrl.u32 %v3691, 7
        %v3693 = vsub.s32 %v3690, %v3692
        %v3694 = vrot.slane %v925, %v3693
        %v3696 = vunpack.c.l.s4 1983009808
        %v3697 = vunpack.c.0.s8 %v3696
        %v3698 = vlaneseq
        %v3699 = vshrl.u32 %v3698, 7
        %v3700 = vsub.s32 %v3697, %v3699
        %v3701 = vrot.slane %v3687, %v3700
        %v3702 = vcombine.high %v3694, 0.0
        %v3704 = vunpack.c.l.s4 1934713408
        %v3705 = vunpack.c.0.s8 %v3704
        %v3706 = vlaneseq
        %v3707 = vshrl.u32 %v3706, 7
        %v3708 = vsub.s32 %v3705, %v3707
        %v3709 = vrot.slane %v3694, %v3708
        %v3711 = vunpack.c.l.s4 1934713408
        %v3712 = vunpack.c.0.s8 %v3711
        %v3713 = vlaneseq
        %v3714 = vshrl.u32 %v3713, 7
        %v3715 = vsub.s32 %v3712, %v3714
        %v3716 = vrot.slane %v3702, %v3715
        %v3717 = vcombine.high %v3701, 0.0
        %v3719 = vunpack.c.l.s4 1934713408
        %v3720 = vunpack.c.0.s8 %v3719
        %v3721 = vlaneseq
        %v3722 = vshrl.u32 %v3721, 7
        %v3723 = vsub.s32 %v3720, %v3722
        %v3724 = vrot.slane %v3701, %v3723
        %v3726 = vunpack.c.l.s4 1934713408
        %v3727 = vunpack.c.0.s8 %v3726
        %v3728 = vlaneseq
        %v3729 = vshrl.u32 %v3728, 7
        %v3730 = vsub.s32 %v3727, %v3729
        %v3731 = vrot.slane %v3717, %v3730
        %v3732 = vcombine.high %v3709, 0.0
        %v3733 = vcombine.high %v3716, 0.0
        %v3734 = vcombine.high %v3724, 0.0
        %v3735 = vcombine.high %v3731, 0.0
        %v3736 = vcombine.high %v926, 0.0
        %v3738 = vunpack.c.l.s4 1983009808
        %v3739 = vunpack.c.0.s8 %v3738
        %v3740 = vlaneseq
        %v3741 = vshrl.u32 %v3740, 7
        %v3742 = vsub.s32 %v3739, %v3741
        %v3743 = vrot.slane %v926, %v3742
        %v3745 = vunpack.c.l.s4 1983009808
        %v3746 = vunpack.c.0.s8 %v3745
        %v3747 = vlaneseq
        %v3748 = vshrl.u32 %v3747, 7
        %v3749 = vsub.s32 %v3746, %v3748
        %v3750 = vrot.slane %v3736, %v3749
        %v3751 = vcombine.high %v3743, 0.0
        %v3753 = vunpack.c.l.s4 1934713408
        %v3754 = vunpack.c.0.s8 %v3753
        %v3755 = vlaneseq
        %v3756 = vshrl.u32 %v3755, 7
        %v3757 = vsub.s32 %v3754, %v3756
        %v3758 = vrot.slane %v3743, %v3757
        %v3760 = vunpack.c.l.s4 1934713408
        %v3761 = vunpack.c.0.s8 %v3760
        %v3762 = vlaneseq
        %v3763 = vshrl.u32 %v3762, 7
        %v3764 = vsub.s32 %v3761, %v3763
        %v3765 = vrot.slane %v3751, %v3764
        %v3766 = vcombine.high %v3750, 0.0
        %v3768 = vunpack.c.l.s4 1934713408
        %v3769 = vunpack.c.0.s8 %v3768
        %v3770 = vlaneseq
        %v3771 = vshrl.u32 %v3770, 7
        %v3772 = vsub.s32 %v3769, %v3771
        %v3773 = vrot.slane %v3750, %v3772
        %v3775 = vunpack.c.l.s4 1934713408
        %v3776 = vunpack.c.0.s8 %v3775
        %v3777 = vlaneseq
        %v3778 = vshrl.u32 %v3777, 7
        %v3779 = vsub.s32 %v3776, %v3778
        %v3780 = vrot.slane %v3766, %v3779
        %v3781 = vcombine.high %v3758, 0.0
        %v3782 = vcombine.high %v3765, 0.0
        %v3783 = vcombine.high %v3773, 0.0
        %v3784 = vcombine.high %v3780, 0.0
        %v3785 = vcombine.high %v927, 0.0
        %v3787 = vunpack.c.l.s4 1983009808
        %v3788 = vunpack.c.0.s8 %v3787
        %v3789 = vlaneseq
        %v3790 = vshrl.u32 %v3789, 7
        %v3791 = vsub.s32 %v3788, %v3790
        %v3792 = vrot.slane %v927, %v3791
        %v3794 = vunpack.c.l.s4 1983009808
        %v3795 = vunpack.c.0.s8 %v3794
        %v3796 = vlaneseq
        %v3797 = vshrl.u32 %v3796, 7
        %v3798 = vsub.s32 %v3795, %v3797
        %v3799 = vrot.slane %v3785, %v3798
        %v3800 = vcombine.high %v3792, 0.0
        %v3802 = vunpack.c.l.s4 1934713408
        %v3803 = vunpack.c.0.s8 %v3802
        %v3804 = vlaneseq
        %v3805 = vshrl.u32 %v3804, 7
        %v3806 = vsub.s32 %v3803, %v3805
        %v3807 = vrot.slane %v3792, %v3806
        %v3809 = vunpack.c.l.s4 1934713408
        %v3810 = vunpack.c.0.s8 %v3809
        %v3811 = vlaneseq
        %v3812 = vshrl.u32 %v3811, 7
        %v3813 = vsub.s32 %v3810, %v3812
        %v3814 = vrot.slane %v3800, %v3813
        %v3815 = vcombine.high %v3799, 0.0
        %v3817 = vunpack.c.l.s4 1934713408
        %v3818 = vunpack.c.0.s8 %v3817
        %v3819 = vlaneseq
        %v3820 = vshrl.u32 %v3819, 7
        %v3821 = vsub.s32 %v3818, %v3820
        %v3822 = vrot.slane %v3799, %v3821
        %v3824 = vunpack.c.l.s4 1934713408
        %v3825 = vunpack.c.0.s8 %v3824
        %v3826 = vlaneseq
        %v3827 = vshrl.u32 %v3826, 7
        %v3828 = vsub.s32 %v3825, %v3827
        %v3829 = vrot.slane %v3815, %v3828
        %v3830 = vcombine.high %v3807, 0.0
        %v3831 = vcombine.high %v3814, 0.0
        %v3832 = vcombine.high %v3822, 0.0
        %v3833 = vcombine.high %v3829, 0.0
        %v3834 = vcombine.high %v928, 0.0
        %v3836 = vunpack.c.l.s4 1983009808
        %v3837 = vunpack.c.0.s8 %v3836
        %v3838 = vlaneseq
        %v3839 = vshrl.u32 %v3838, 7
        %v3840 = vsub.s32 %v3837, %v3839
        %v3841 = vrot.slane %v928, %v3840
        %v3843 = vunpack.c.l.s4 1983009808
        %v3844 = vunpack.c.0.s8 %v3843
        %v3845 = vlaneseq
        %v3846 = vshrl.u32 %v3845, 7
        %v3847 = vsub.s32 %v3844, %v3846
        %v3848 = vrot.slane %v3834, %v3847
        %v3849 = vcombine.high %v3841, 0.0
        %v3851 = vunpack.c.l.s4 1934713408
        %v3852 = vunpack.c.0.s8 %v3851
        %v3853 = vlaneseq
        %v3854 = vshrl.u32 %v3853, 7
        %v3855 = vsub.s32 %v3852, %v3854
        %v3856 = vrot.slane %v3841, %v3855
        %v3858 = vunpack.c.l.s4 1934713408
        %v3859 = vunpack.c.0.s8 %v3858
        %v3860 = vlaneseq
        %v3861 = vshrl.u32 %v3860, 7
        %v3862 = vsub.s32 %v3859, %v3861
        %v3863 = vrot.slane %v3849, %v3862
        %v3864 = vcombine.high %v3848, 0.0
        %v3866 = vunpack.c.l.s4 1934713408
        %v3867 = vunpack.c.0.s8 %v3866
        %v3868 = vlaneseq
        %v3869 = vshrl.u32 %v3868, 7
        %v3870 = vsub.s32 %v3867, %v3869
        %v3871 = vrot.slane %v3848, %v3870
        %v3873 = vunpack.c.l.s4 1934713408
        %v3874 = vunpack.c.0.s8 %v3873
        %v3875 = vlaneseq
        %v3876 = vshrl.u32 %v3875, 7
        %v3877 = vsub.s32 %v3874, %v3876
        %v3878 = vrot.slane %v3864, %v3877
        %v3879 = vcombine.high %v3856, 0.0
        %v3880 = vcombine.high %v3863, 0.0
        %v3881 = vcombine.high %v3871, 0.0
        %v3882 = vcombine.high %v3878, 0.0
        %v3883 = vcombine.high %v929, 0.0
        %v3885 = vunpack.c.l.s4 1983009808
        %v3886 = vunpack.c.0.s8 %v3885
        %v3887 = vlaneseq
        %v3888 = vshrl.u32 %v3887, 7
        %v3889 = vsub.s32 %v3886, %v3888
        %v3890 = vrot.slane %v929, %v3889
        %v3892 = vunpack.c.l.s4 1983009808
        %v3893 = vunpack.c.0.s8 %v3892
        %v3894 = vlaneseq
        %v3895 = vshrl.u32 %v3894, 7
        %v3896 = vsub.s32 %v3893, %v3895
        %v3897 = vrot.slane %v3883, %v3896
        %v3898 = vcombine.high %v3890, 0.0
        %v3900 = vunpack.c.l.s4 1934713408
        %v3901 = vunpack.c.0.s8 %v3900
        %v3902 = vlaneseq
        %v3903 = vshrl.u32 %v3902, 7
        %v3904 = vsub.s32 %v3901, %v3903
        %v3905 = vrot.slane %v3890, %v3904
        %v3907 = vunpack.c.l.s4 1934713408
        %v3908 = vunpack.c.0.s8 %v3907
        %v3909 = vlaneseq
        %v3910 = vshrl.u32 %v3909, 7
        %v3911 = vsub.s32 %v3908, %v3910
        %v3912 = vrot.slane %v3898, %v3911
        %v3913 = vcombine.high %v3897, 0.0
        %v3915 = vunpack.c.l.s4 1934713408
        %v3916 = vunpack.c.0.s8 %v3915
        %v3917 = vlaneseq
        %v3918 = vshrl.u32 %v3917, 7
        %v3919 = vsub.s32 %v3916, %v3918
        %v3920 = vrot.slane %v3897, %v3919
        %v3922 = vunpack.c.l.s4 1934713408
        %v3923 = vunpack.c.0.s8 %v3922
        %v3924 = vlaneseq
        %v3925 = vshrl.u32 %v3924, 7
        %v3926 = vsub.s32 %v3923, %v3925
        %v3927 = vrot.slane %v3913, %v3926
        %v3928 = vcombine.high %v3905, 0.0
        %v3929 = vcombine.high %v3912, 0.0
        %v3930 = vcombine.high %v3920, 0.0
        %v3931 = vcombine.high %v3927, 0.0
        %v3932 = vcombine.high %v930, 0.0
        %v3934 = vunpack.c.l.s4 1983009808
        %v3935 = vunpack.c.0.s8 %v3934
        %v3936 = vlaneseq
        %v3937 = vshrl.u32 %v3936, 7
        %v3938 = vsub.s32 %v3935, %v3937
        %v3939 = vrot.slane %v930, %v3938
        %v3941 = vunpack.c.l.s4 1983009808
        %v3942 = vunpack.c.0.s8 %v3941
        %v3943 = vlaneseq
        %v3944 = vshrl.u32 %v3943, 7
        %v3945 = vsub.s32 %v3942, %v3944
        %v3946 = vrot.slane %v3932, %v3945
        %v3947 = vcombine.high %v3939, 0.0
        %v3949 = vunpack.c.l.s4 1934713408
        %v3950 = vunpack.c.0.s8 %v3949
        %v3951 = vlaneseq
        %v3952 = vshrl.u32 %v3951, 7
        %v3953 = vsub.s32 %v3950, %v3952
        %v3954 = vrot.slane %v3939, %v3953
        %v3956 = vunpack.c.l.s4 1934713408
        %v3957 = vunpack.c.0.s8 %v3956
        %v3958 = vlaneseq
        %v3959 = vshrl.u32 %v3958, 7
        %v3960 = vsub.s32 %v3957, %v3959
        %v3961 = vrot.slane %v3947, %v3960
        %v3962 = vcombine.high %v3946, 0.0
        %v3964 = vunpack.c.l.s4 1934713408
        %v3965 = vunpack.c.0.s8 %v3964
        %v3966 = vlaneseq
        %v3967 = vshrl.u32 %v3966, 7
        %v3968 = vsub.s32 %v3965, %v3967
        %v3969 = vrot.slane %v3946, %v3968
        %v3971 = vunpack.c.l.s4 1934713408
        %v3972 = vunpack.c.0.s8 %v3971
        %v3973 = vlaneseq
        %v3974 = vshrl.u32 %v3973, 7
        %v3975 = vsub.s32 %v3972, %v3974
        %v3976 = vrot.slane %v3962, %v3975
        %v3977 = vcombine.high %v3954, 0.0
        %v3978 = vcombine.high %v3961, 0.0
        %v3979 = vcombine.high %v3969, 0.0
        %v3980 = vcombine.high %v3976, 0.0
        %v3981 = vcombine.high %v931, 0.0
        %v3983 = vunpack.c.l.s4 1983009808
        %v3984 = vunpack.c.0.s8 %v3983
        %v3985 = vlaneseq
        %v3986 = vshrl.u32 %v3985, 7
        %v3987 = vsub.s32 %v3984, %v3986
        %v3988 = vrot.slane %v931, %v3987
        %v3990 = vunpack.c.l.s4 1983009808
        %v3991 = vunpack.c.0.s8 %v3990
        %v3992 = vlaneseq
        %v3993 = vshrl.u32 %v3992, 7
        %v3994 = vsub.s32 %v3991, %v3993
        %v3995 = vrot.slane %v3981, %v3994
        %v3996 = vcombine.high %v3988, 0.0
        %v3998 = vunpack.c.l.s4 1934713408
        %v3999 = vunpack.c.0.s8 %v3998
        %v4000 = vlaneseq
        %v4001 = vshrl.u32 %v4000, 7
        %v4002 = vsub.s32 %v3999, %v4001
        %v4003 = vrot.slane %v3988, %v4002
        %v4005 = vunpack.c.l.s4 1934713408
        %v4006 = vunpack.c.0.s8 %v4005
        %v4007 = vlaneseq
        %v4008 = vshrl.u32 %v4007, 7
        %v4009 = vsub.s32 %v4006, %v4008
        %v4010 = vrot.slane %v3996, %v4009
        %v4011 = vcombine.high %v3995, 0.0
        %v4013 = vunpack.c.l.s4 1934713408
        %v4014 = vunpack.c.0.s8 %v4013
        %v4015 = vlaneseq
        %v4016 = vshrl.u32 %v4015, 7
        %v4017 = vsub.s32 %v4014, %v4016
        %v4018 = vrot.slane %v3995, %v4017
        %v4020 = vunpack.c.l.s4 1934713408
        %v4021 = vunpack.c.0.s8 %v4020
        %v4022 = vlaneseq
        %v4023 = vshrl.u32 %v4022, 7
        %v4024 = vsub.s32 %v4021, %v4023
        %v4025 = vrot.slane %v4011, %v4024
        %v4026 = vcombine.high %v4003, 0.0
        %v4027 = vcombine.high %v4010, 0.0
        %v4028 = vcombine.high %v4018, 0.0
        %v4029 = vcombine.high %v4025, 0.0
        %v4030 = vcombine.high %v932, 0.0
        %v4032 = vunpack.c.l.s4 1983009808
        %v4033 = vunpack.c.0.s8 %v4032
        %v4034 = vlaneseq
        %v4035 = vshrl.u32 %v4034, 7
        %v4036 = vsub.s32 %v4033, %v4035
        %v4037 = vrot.slane %v932, %v4036
        %v4039 = vunpack.c.l.s4 1983009808
        %v4040 = vunpack.c.0.s8 %v4039
        %v4041 = vlaneseq
        %v4042 = vshrl.u32 %v4041, 7
        %v4043 = vsub.s32 %v4040, %v4042
        %v4044 = vrot.slane %v4030, %v4043
        %v4045 = vcombine.high %v4037, 0.0
        %v4047 = vunpack.c.l.s4 1934713408
        %v4048 = vunpack.c.0.s8 %v4047
        %v4049 = vlaneseq
        %v4050 = vshrl.u32 %v4049, 7
        %v4051 = vsub.s32 %v4048, %v4050
        %v4052 = vrot.slane %v4037, %v4051
        %v4054 = vunpack.c.l.s4 1934713408
        %v4055 = vunpack.c.0.s8 %v4054
        %v4056 = vlaneseq
        %v4057 = vshrl.u32 %v4056, 7
        %v4058 = vsub.s32 %v4055, %v4057
        %v4059 = vrot.slane %v4045, %v4058
        %v4060 = vcombine.high %v4044, 0.0
        %v4062 = vunpack.c.l.s4 1934713408
        %v4063 = vunpack.c.0.s8 %v4062
        %v4064 = vlaneseq
        %v4065 = vshrl.u32 %v4064, 7
        %v4066 = vsub.s32 %v4063, %v4065
        %v4067 = vrot.slane %v4044, %v4066
        %v4069 = vunpack.c.l.s4 1934713408
        %v4070 = vunpack.c.0.s8 %v4069
        %v4071 = vlaneseq
        %v4072 = vshrl.u32 %v4071, 7
        %v4073 = vsub.s32 %v4070, %v4072
        %v4074 = vrot.slane %v4060, %v4073
        %v4075 = vcombine.high %v4052, 0.0
        %v4076 = vcombine.high %v4059, 0.0
        %v4077 = vcombine.high %v4067, 0.0
        %v4078 = vcombine.high %v4074, 0.0
        %v4079 = vcombine.high %v933, 0.0
        %v4081 = vunpack.c.l.s4 1983009808
        %v4082 = vunpack.c.0.s8 %v4081
        %v4083 = vlaneseq
        %v4084 = vshrl.u32 %v4083, 7
        %v4085 = vsub.s32 %v4082, %v4084
        %v4086 = vrot.slane %v933, %v4085
        %v4088 = vunpack.c.l.s4 1983009808
        %v4089 = vunpack.c.0.s8 %v4088
        %v4090 = vlaneseq
        %v4091 = vshrl.u32 %v4090, 7
        %v4092 = vsub.s32 %v4089, %v4091
        %v4093 = vrot.slane %v4079, %v4092
        %v4094 = vcombine.high %v4086, 0.0
        %v4096 = vunpack.c.l.s4 1934713408
        %v4097 = vunpack.c.0.s8 %v4096
        %v4098 = vlaneseq
        %v4099 = vshrl.u32 %v4098, 7
        %v4100 = vsub.s32 %v4097, %v4099
        %v4101 = vrot.slane %v4086, %v4100
        %v4103 = vunpack.c.l.s4 1934713408
        %v4104 = vunpack.c.0.s8 %v4103
        %v4105 = vlaneseq
        %v4106 = vshrl.u32 %v4105, 7
        %v4107 = vsub.s32 %v4104, %v4106
        %v4108 = vrot.slane %v4094, %v4107
        %v4109 = vcombine.high %v4093, 0.0
        %v4111 = vunpack.c.l.s4 1934713408
        %v4112 = vunpack.c.0.s8 %v4111
        %v4113 = vlaneseq
        %v4114 = vshrl.u32 %v4113, 7
        %v4115 = vsub.s32 %v4112, %v4114
        %v4116 = vrot.slane %v4093, %v4115
        %v4118 = vunpack.c.l.s4 1934713408
        %v4119 = vunpack.c.0.s8 %v4118
        %v4120 = vlaneseq
        %v4121 = vshrl.u32 %v4120, 7
        %v4122 = vsub.s32 %v4119, %v4121
        %v4123 = vrot.slane %v4109, %v4122
        %v4124 = vcombine.high %v4101, 0.0
        %v4125 = vcombine.high %v4108, 0.0
        %v4126 = vcombine.high %v4116, 0.0
        %v4127 = vcombine.high %v4123, 0.0
        %v4128 = vcombine.high %v934, 0.0
        %v4130 = vunpack.c.l.s4 1983009808
        %v4131 = vunpack.c.0.s8 %v4130
        %v4132 = vlaneseq
        %v4133 = vshrl.u32 %v4132, 7
        %v4134 = vsub.s32 %v4131, %v4133
        %v4135 = vrot.slane %v934, %v4134
        %v4137 = vunpack.c.l.s4 1983009808
        %v4138 = vunpack.c.0.s8 %v4137
        %v4139 = vlaneseq
        %v4140 = vshrl.u32 %v4139, 7
        %v4141 = vsub.s32 %v4138, %v4140
        %v4142 = vrot.slane %v4128, %v4141
        %v4143 = vcombine.high %v4135, 0.0
        %v4145 = vunpack.c.l.s4 1934713408
        %v4146 = vunpack.c.0.s8 %v4145
        %v4147 = vlaneseq
        %v4148 = vshrl.u32 %v4147, 7
        %v4149 = vsub.s32 %v4146, %v4148
        %v4150 = vrot.slane %v4135, %v4149
        %v4152 = vunpack.c.l.s4 1934713408
        %v4153 = vunpack.c.0.s8 %v4152
        %v4154 = vlaneseq
        %v4155 = vshrl.u32 %v4154, 7
        %v4156 = vsub.s32 %v4153, %v4155
        %v4157 = vrot.slane %v4143, %v4156
        %v4158 = vcombine.high %v4142, 0.0
        %v4160 = vunpack.c.l.s4 1934713408
        %v4161 = vunpack.c.0.s8 %v4160
        %v4162 = vlaneseq
        %v4163 = vshrl.u32 %v4162, 7
        %v4164 = vsub.s32 %v4161, %v4163
        %v4165 = vrot.slane %v4142, %v4164
        %v4167 = vunpack.c.l.s4 1934713408
        %v4168 = vunpack.c.0.s8 %v4167
        %v4169 = vlaneseq
        %v4170 = vshrl.u32 %v4169, 7
        %v4171 = vsub.s32 %v4168, %v4170
        %v4172 = vrot.slane %v4158, %v4171
        %v4173 = vcombine.high %v4150, 0.0
        %v4174 = vcombine.high %v4157, 0.0
        %v4175 = vcombine.high %v4165, 0.0
        %v4176 = vcombine.high %v4172, 0.0
        %v4177 = vcombine.high %v935, 0.0
        %v4179 = vunpack.c.l.s4 1983009808
        %v4180 = vunpack.c.0.s8 %v4179
        %v4181 = vlaneseq
        %v4182 = vshrl.u32 %v4181, 7
        %v4183 = vsub.s32 %v4180, %v4182
        %v4184 = vrot.slane %v935, %v4183
        %v4186 = vunpack.c.l.s4 1983009808
        %v4187 = vunpack.c.0.s8 %v4186
        %v4188 = vlaneseq
        %v4189 = vshrl.u32 %v4188, 7
        %v4190 = vsub.s32 %v4187, %v4189
        %v4191 = vrot.slane %v4177, %v4190
        %v4192 = vcombine.high %v4184, 0.0
        %v4194 = vunpack.c.l.s4 1934713408
        %v4195 = vunpack.c.0.s8 %v4194
        %v4196 = vlaneseq
        %v4197 = vshrl.u32 %v4196, 7
        %v4198 = vsub.s32 %v4195, %v4197
        %v4199 = vrot.slane %v4184, %v4198
        %v4201 = vunpack.c.l.s4 1934713408
        %v4202 = vunpack.c.0.s8 %v4201
        %v4203 = vlaneseq
        %v4204 = vshrl.u32 %v4203, 7
        %v4205 = vsub.s32 %v4202, %v4204
        %v4206 = vrot.slane %v4192, %v4205
        %v4207 = vcombine.high %v4191, 0.0
        %v4209 = vunpack.c.l.s4 1934713408
        %v4210 = vunpack.c.0.s8 %v4209
        %v4211 = vlaneseq
        %v4212 = vshrl.u32 %v4211, 7
        %v4213 = vsub.s32 %v4210, %v4212
        %v4214 = vrot.slane %v4191, %v4213
        %v4216 = vunpack.c.l.s4 1934713408
        %v4217 = vunpack.c.0.s8 %v4216
        %v4218 = vlaneseq
        %v4219 = vshrl.u32 %v4218, 7
        %v4220 = vsub.s32 %v4217, %v4219
        %v4221 = vrot.slane %v4207, %v4220
        %v4222 = vcombine.high %v4199, 0.0
        %v4223 = vcombine.high %v4206, 0.0
        %v4224 = vcombine.high %v4214, 0.0
        %v4225 = vcombine.high %v4221, 0.0
        %v4226 = vcombine.high %v936, 0.0
        %v4228 = vunpack.c.l.s4 1983009808
        %v4229 = vunpack.c.0.s8 %v4228
        %v4230 = vlaneseq
        %v4231 = vshrl.u32 %v4230, 7
        %v4232 = vsub.s32 %v4229, %v4231
        %v4233 = vrot.slane %v936, %v4232
        %v4235 = vunpack.c.l.s4 1983009808
        %v4236 = vunpack.c.0.s8 %v4235
        %v4237 = vlaneseq
        %v4238 = vshrl.u32 %v4237, 7
        %v4239 = vsub.s32 %v4236, %v4238
        %v4240 = vrot.slane %v4226, %v4239
        %v4241 = vcombine.high %v4233, 0.0
        %v4243 = vunpack.c.l.s4 1934713408
        %v4244 = vunpack.c.0.s8 %v4243
        %v4245 = vlaneseq
        %v4246 = vshrl.u32 %v4245, 7
        %v4247 = vsub.s32 %v4244, %v4246
        %v4248 = vrot.slane %v4233, %v4247
        %v4250 = vunpack.c.l.s4 1934713408
        %v4251 = vunpack.c.0.s8 %v4250
        %v4252 = vlaneseq
        %v4253 = vshrl.u32 %v4252, 7
        %v4254 = vsub.s32 %v4251, %v4253
        %v4255 = vrot.slane %v4241, %v4254
        %v4256 = vcombine.high %v4240, 0.0
        %v4258 = vunpack.c.l.s4 1934713408
        %v4259 = vunpack.c.0.s8 %v4258
        %v4260 = vlaneseq
        %v4261 = vshrl.u32 %v4260, 7
        %v4262 = vsub.s32 %v4259, %v4261
        %v4263 = vrot.slane %v4240, %v4262
        %v4265 = vunpack.c.l.s4 1934713408
        %v4266 = vunpack.c.0.s8 %v4265
        %v4267 = vlaneseq
        %v4268 = vshrl.u32 %v4267, 7
        %v4269 = vsub.s32 %v4266, %v4268
        %v4270 = vrot.slane %v4256, %v4269
        %v4271 = vcombine.high %v4248, 0.0
        %v4272 = vcombine.high %v4255, 0.0
        %v4273 = vcombine.high %v4263, 0.0
        %v4274 = vcombine.high %v4270, 0.0
        %v4275 = vcombine.high %v937, 0.0
        %v4277 = vunpack.c.l.s4 1983009808
        %v4278 = vunpack.c.0.s8 %v4277
        %v4279 = vlaneseq
        %v4280 = vshrl.u32 %v4279, 7
        %v4281 = vsub.s32 %v4278, %v4280
        %v4282 = vrot.slane %v937, %v4281
        %v4284 = vunpack.c.l.s4 1983009808
        %v4285 = vunpack.c.0.s8 %v4284
        %v4286 = vlaneseq
        %v4287 = vshrl.u32 %v4286, 7
        %v4288 = vsub.s32 %v4285, %v4287
        %v4289 = vrot.slane %v4275, %v4288
        %v4290 = vcombine.high %v4282, 0.0
        %v4292 = vunpack.c.l.s4 1934713408
        %v4293 = vunpack.c.0.s8 %v4292
        %v4294 = vlaneseq
        %v4295 = vshrl.u32 %v4294, 7
        %v4296 = vsub.s32 %v4293, %v4295
        %v4297 = vrot.slane %v4282, %v4296
        %v4299 = vunpack.c.l.s4 1934713408
        %v4300 = vunpack.c.0.s8 %v4299
        %v4301 = vlaneseq
        %v4302 = vshrl.u32 %v4301, 7
        %v4303 = vsub.s32 %v4300, %v4302
        %v4304 = vrot.slane %v4290, %v4303
        %v4305 = vcombine.high %v4289, 0.0
        %v4307 = vunpack.c.l.s4 1934713408
        %v4308 = vunpack.c.0.s8 %v4307
        %v4309 = vlaneseq
        %v4310 = vshrl.u32 %v4309, 7
        %v4311 = vsub.s32 %v4308, %v4310
        %v4312 = vrot.slane %v4289, %v4311
        %v4314 = vunpack.c.l.s4 1934713408
        %v4315 = vunpack.c.0.s8 %v4314
        %v4316 = vlaneseq
        %v4317 = vshrl.u32 %v4316, 7
        %v4318 = vsub.s32 %v4315, %v4317
        %v4319 = vrot.slane %v4305, %v4318
        %v4320 = vcombine.high %v4297, 0.0
        %v4321 = vcombine.high %v4304, 0.0
        %v4322 = vcombine.high %v4312, 0.0
        %v4323 = vcombine.high %v4319, 0.0
        %v4324 = vcombine.high %v938, 0.0
        %v4326 = vunpack.c.l.s4 1983009808
        %v4327 = vunpack.c.0.s8 %v4326
        %v4328 = vlaneseq
        %v4329 = vshrl.u32 %v4328, 7
        %v4330 = vsub.s32 %v4327, %v4329
        %v4331 = vrot.slane %v938, %v4330
        %v4333 = vunpack.c.l.s4 1983009808
        %v4334 = vunpack.c.0.s8 %v4333
        %v4335 = vlaneseq
        %v4336 = vshrl.u32 %v4335, 7
        %v4337 = vsub.s32 %v4334, %v4336
        %v4338 = vrot.slane %v4324, %v4337
        %v4339 = vcombine.high %v4331, 0.0
        %v4341 = vunpack.c.l.s4 1934713408
        %v4342 = vunpack.c.0.s8 %v4341
        %v4343 = vlaneseq
        %v4344 = vshrl.u32 %v4343, 7
        %v4345 = vsub.s32 %v4342, %v4344
        %v4346 = vrot.slane %v4331, %v4345
        %v4348 = vunpack.c.l.s4 1934713408
        %v4349 = vunpack.c.0.s8 %v4348
        %v4350 = vlaneseq
        %v4351 = vshrl.u32 %v4350, 7
        %v4352 = vsub.s32 %v4349, %v4351
        %v4353 = vrot.slane %v4339, %v4352
        %v4354 = vcombine.high %v4338, 0.0
        %v4356 = vunpack.c.l.s4 1934713408
        %v4357 = vunpack.c.0.s8 %v4356
        %v4358 = vlaneseq
        %v4359 = vshrl.u32 %v4358, 7
        %v4360 = vsub.s32 %v4357, %v4359
        %v4361 = vrot.slane %v4338, %v4360
        %v4363 = vunpack.c.l.s4 1934713408
        %v4364 = vunpack.c.0.s8 %v4363
        %v4365 = vlaneseq
        %v4366 = vshrl.u32 %v4365, 7
        %v4367 = vsub.s32 %v4364, %v4366
        %v4368 = vrot.slane %v4354, %v4367
        %v4369 = vcombine.high %v4346, 0.0
        %v4370 = vcombine.high %v4353, 0.0
        %v4371 = vcombine.high %v4361, 0.0
        %v4372 = vcombine.high %v4368, 0.0
        %v4373 = vcombine.high %v939, 0.0
        %v4375 = vunpack.c.l.s4 1983009808
        %v4376 = vunpack.c.0.s8 %v4375
        %v4377 = vlaneseq
        %v4378 = vshrl.u32 %v4377, 7
        %v4379 = vsub.s32 %v4376, %v4378
        %v4380 = vrot.slane %v939, %v4379
        %v4382 = vunpack.c.l.s4 1983009808
        %v4383 = vunpack.c.0.s8 %v4382
        %v4384 = vlaneseq
        %v4385 = vshrl.u32 %v4384, 7
        %v4386 = vsub.s32 %v4383, %v4385
        %v4387 = vrot.slane %v4373, %v4386
        %v4388 = vcombine.high %v4380, 0.0
        %v4390 = vunpack.c.l.s4 1934713408
        %v4391 = vunpack.c.0.s8 %v4390
        %v4392 = vlaneseq
        %v4393 = vshrl.u32 %v4392, 7
        %v4394 = vsub.s32 %v4391, %v4393
        %v4395 = vrot.slane %v4380, %v4394
        %v4397 = vunpack.c.l.s4 1934713408
        %v4398 = vunpack.c.0.s8 %v4397
        %v4399 = vlaneseq
        %v4400 = vshrl.u32 %v4399, 7
        %v4401 = vsub.s32 %v4398, %v4400
        %v4402 = vrot.slane %v4388, %v4401
        %v4403 = vcombine.high %v4387, 0.0
        %v4405 = vunpack.c.l.s4 1934713408
        %v4406 = vunpack.c.0.s8 %v4405
        %v4407 = vlaneseq
        %v4408 = vshrl.u32 %v4407, 7
        %v4409 = vsub.s32 %v4406, %v4408
        %v4410 = vrot.slane %v4387, %v4409
        %v4412 = vunpack.c.l.s4 1934713408
        %v4413 = vunpack.c.0.s8 %v4412
        %v4414 = vlaneseq
        %v4415 = vshrl.u32 %v4414, 7
        %v4416 = vsub.s32 %v4413, %v4415
        %v4417 = vrot.slane %v4403, %v4416
        %v4418 = vcombine.high %v4395, 0.0
        %v4419 = vcombine.high %v4402, 0.0
        %v4420 = vcombine.high %v4410, 0.0
        %v4421 = vcombine.high %v4417, 0.0
        %v4422 = vcombine.high %v940, 0.0
        %v4424 = vunpack.c.l.s4 1983009808
        %v4425 = vunpack.c.0.s8 %v4424
        %v4426 = vlaneseq
        %v4427 = vshrl.u32 %v4426, 7
        %v4428 = vsub.s32 %v4425, %v4427
        %v4429 = vrot.slane %v940, %v4428
        %v4431 = vunpack.c.l.s4 1983009808
        %v4432 = vunpack.c.0.s8 %v4431
        %v4433 = vlaneseq
        %v4434 = vshrl.u32 %v4433, 7
        %v4435 = vsub.s32 %v4432, %v4434
        %v4436 = vrot.slane %v4422, %v4435
        %v4437 = vcombine.high %v4429, 0.0
        %v4439 = vunpack.c.l.s4 1934713408
        %v4440 = vunpack.c.0.s8 %v4439
        %v4441 = vlaneseq
        %v4442 = vshrl.u32 %v4441, 7
        %v4443 = vsub.s32 %v4440, %v4442
        %v4444 = vrot.slane %v4429, %v4443
        %v4446 = vunpack.c.l.s4 1934713408
        %v4447 = vunpack.c.0.s8 %v4446
        %v4448 = vlaneseq
        %v4449 = vshrl.u32 %v4448, 7
        %v4450 = vsub.s32 %v4447, %v4449
        %v4451 = vrot.slane %v4437, %v4450
        %v4452 = vcombine.high %v4436, 0.0
        %v4454 = vunpack.c.l.s4 1934713408
        %v4455 = vunpack.c.0.s8 %v4454
        %v4456 = vlaneseq
        %v4457 = vshrl.u32 %v4456, 7
        %v4458 = vsub.s32 %v4455, %v4457
        %v4459 = vrot.slane %v4436, %v4458
        %v4461 = vunpack.c.l.s4 1934713408
        %v4462 = vunpack.c.0.s8 %v4461
        %v4463 = vlaneseq
        %v4464 = vshrl.u32 %v4463, 7
        %v4465 = vsub.s32 %v4462, %v4464
        %v4466 = vrot.slane %v4452, %v4465
        %v4467 = vcombine.high %v4444, 0.0
        %v4468 = vcombine.high %v4451, 0.0
        %v4469 = vcombine.high %v4459, 0.0
        %v4470 = vcombine.high %v4466, 0.0
        %v4471 = vcombine.high %v941, 0.0
        %v4473 = vunpack.c.l.s4 1983009808
        %v4474 = vunpack.c.0.s8 %v4473
        %v4475 = vlaneseq
        %v4476 = vshrl.u32 %v4475, 7
        %v4477 = vsub.s32 %v4474, %v4476
        %v4478 = vrot.slane %v941, %v4477
        %v4480 = vunpack.c.l.s4 1983009808
        %v4481 = vunpack.c.0.s8 %v4480
        %v4482 = vlaneseq
        %v4483 = vshrl.u32 %v4482, 7
        %v4484 = vsub.s32 %v4481, %v4483
        %v4485 = vrot.slane %v4471, %v4484
        %v4486 = vcombine.high %v4478, 0.0
        %v4488 = vunpack.c.l.s4 1934713408
        %v4489 = vunpack.c.0.s8 %v4488
        %v4490 = vlaneseq
        %v4491 = vshrl.u32 %v4490, 7
        %v4492 = vsub.s32 %v4489, %v4491
        %v4493 = vrot.slane %v4478, %v4492
        %v4495 = vunpack.c.l.s4 1934713408
        %v4496 = vunpack.c.0.s8 %v4495
        %v4497 = vlaneseq
        %v4498 = vshrl.u32 %v4497, 7
        %v4499 = vsub.s32 %v4496, %v4498
        %v4500 = vrot.slane %v4486, %v4499
        %v4501 = vcombine.high %v4485, 0.0
        %v4503 = vunpack.c.l.s4 1934713408
        %v4504 = vunpack.c.0.s8 %v4503
        %v4505 = vlaneseq
        %v4506 = vshrl.u32 %v4505, 7
        %v4507 = vsub.s32 %v4504, %v4506
        %v4508 = vrot.slane %v4485, %v4507
        %v4510 = vunpack.c.l.s4 1934713408
        %v4511 = vunpack.c.0.s8 %v4510
        %v4512 = vlaneseq
        %v4513 = vshrl.u32 %v4512, 7
        %v4514 = vsub.s32 %v4511, %v4513
        %v4515 = vrot.slane %v4501, %v4514
        %v4516 = vcombine.high %v4493, 0.0
        %v4517 = vcombine.high %v4500, 0.0
        %v4518 = vcombine.high %v4508, 0.0
        %v4519 = vcombine.high %v4515, 0.0
        %v4520 = vcombine.high %v942, 0.0
        %v4522 = vunpack.c.l.s4 1983009808
        %v4523 = vunpack.c.0.s8 %v4522
        %v4524 = vlaneseq
        %v4525 = vshrl.u32 %v4524, 7
        %v4526 = vsub.s32 %v4523, %v4525
        %v4527 = vrot.slane %v942, %v4526
        %v4529 = vunpack.c.l.s4 1983009808
        %v4530 = vunpack.c.0.s8 %v4529
        %v4531 = vlaneseq
        %v4532 = vshrl.u32 %v4531, 7
        %v4533 = vsub.s32 %v4530, %v4532
        %v4534 = vrot.slane %v4520, %v4533
        %v4535 = vcombine.high %v4527, 0.0
        %v4537 = vunpack.c.l.s4 1934713408
        %v4538 = vunpack.c.0.s8 %v4537
        %v4539 = vlaneseq
        %v4540 = vshrl.u32 %v4539, 7
        %v4541 = vsub.s32 %v4538, %v4540
        %v4542 = vrot.slane %v4527, %v4541
        %v4544 = vunpack.c.l.s4 1934713408
        %v4545 = vunpack.c.0.s8 %v4544
        %v4546 = vlaneseq
        %v4547 = vshrl.u32 %v4546, 7
        %v4548 = vsub.s32 %v4545, %v4547
        %v4549 = vrot.slane %v4535, %v4548
        %v4550 = vcombine.high %v4534, 0.0
        %v4552 = vunpack.c.l.s4 1934713408
        %v4553 = vunpack.c.0.s8 %v4552
        %v4554 = vlaneseq
        %v4555 = vshrl.u32 %v4554, 7
        %v4556 = vsub.s32 %v4553, %v4555
        %v4557 = vrot.slane %v4534, %v4556
        %v4559 = vunpack.c.l.s4 1934713408
        %v4560 = vunpack.c.0.s8 %v4559
        %v4561 = vlaneseq
        %v4562 = vshrl.u32 %v4561, 7
        %v4563 = vsub.s32 %v4560, %v4562
        %v4564 = vrot.slane %v4550, %v4563
        %v4565 = vcombine.high %v4542, 0.0
        %v4566 = vcombine.high %v4549, 0.0
        %v4567 = vcombine.high %v4557, 0.0
        %v4568 = vcombine.high %v4564, 0.0
        %v4569 = vcombine.high %v943, 0.0
        %v4571 = vunpack.c.l.s4 1983009808
        %v4572 = vunpack.c.0.s8 %v4571
        %v4573 = vlaneseq
        %v4574 = vshrl.u32 %v4573, 7
        %v4575 = vsub.s32 %v4572, %v4574
        %v4576 = vrot.slane %v943, %v4575
        %v4578 = vunpack.c.l.s4 1983009808
        %v4579 = vunpack.c.0.s8 %v4578
        %v4580 = vlaneseq
        %v4581 = vshrl.u32 %v4580, 7
        %v4582 = vsub.s32 %v4579, %v4581
        %v4583 = vrot.slane %v4569, %v4582
        %v4584 = vcombine.high %v4576, 0.0
        %v4586 = vunpack.c.l.s4 1934713408
        %v4587 = vunpack.c.0.s8 %v4586
        %v4588 = vlaneseq
        %v4589 = vshrl.u32 %v4588, 7
        %v4590 = vsub.s32 %v4587, %v4589
        %v4591 = vrot.slane %v4576, %v4590
        %v4593 = vunpack.c.l.s4 1934713408
        %v4594 = vunpack.c.0.s8 %v4593
        %v4595 = vlaneseq
        %v4596 = vshrl.u32 %v4595, 7
        %v4597 = vsub.s32 %v4594, %v4596
        %v4598 = vrot.slane %v4584, %v4597
        %v4599 = vcombine.high %v4583, 0.0
        %v4601 = vunpack.c.l.s4 1934713408
        %v4602 = vunpack.c.0.s8 %v4601
        %v4603 = vlaneseq
        %v4604 = vshrl.u32 %v4603, 7
        %v4605 = vsub.s32 %v4602, %v4604
        %v4606 = vrot.slane %v4583, %v4605
        %v4608 = vunpack.c.l.s4 1934713408
        %v4609 = vunpack.c.0.s8 %v4608
        %v4610 = vlaneseq
        %v4611 = vshrl.u32 %v4610, 7
        %v4612 = vsub.s32 %v4609, %v4611
        %v4613 = vrot.slane %v4599, %v4612
        %v4614 = vcombine.high %v4591, 0.0
        %v4615 = vcombine.high %v4598, 0.0
        %v4616 = vcombine.high %v4606, 0.0
        %v4617 = vcombine.high %v4613, 0.0
        %v4618 = vcombine.high %v944, 0.0
        %v4620 = vunpack.c.l.s4 1983009808
        %v4621 = vunpack.c.0.s8 %v4620
        %v4622 = vlaneseq
        %v4623 = vshrl.u32 %v4622, 7
        %v4624 = vsub.s32 %v4621, %v4623
        %v4625 = vrot.slane %v944, %v4624
        %v4627 = vunpack.c.l.s4 1983009808
        %v4628 = vunpack.c.0.s8 %v4627
        %v4629 = vlaneseq
        %v4630 = vshrl.u32 %v4629, 7
        %v4631 = vsub.s32 %v4628, %v4630
        %v4632 = vrot.slane %v4618, %v4631
        %v4633 = vcombine.high %v4625, 0.0
        %v4635 = vunpack.c.l.s4 1934713408
        %v4636 = vunpack.c.0.s8 %v4635
        %v4637 = vlaneseq
        %v4638 = vshrl.u32 %v4637, 7
        %v4639 = vsub.s32 %v4636, %v4638
        %v4640 = vrot.slane %v4625, %v4639
        %v4642 = vunpack.c.l.s4 1934713408
        %v4643 = vunpack.c.0.s8 %v4642
        %v4644 = vlaneseq
        %v4645 = vshrl.u32 %v4644, 7
        %v4646 = vsub.s32 %v4643, %v4645
        %v4647 = vrot.slane %v4633, %v4646
        %v4648 = vcombine.high %v4632, 0.0
        %v4650 = vunpack.c.l.s4 1934713408
        %v4651 = vunpack.c.0.s8 %v4650
        %v4652 = vlaneseq
        %v4653 = vshrl.u32 %v4652, 7
        %v4654 = vsub.s32 %v4651, %v4653
        %v4655 = vrot.slane %v4632, %v4654
        %v4657 = vunpack.c.l.s4 1934713408
        %v4658 = vunpack.c.0.s8 %v4657
        %v4659 = vlaneseq
        %v4660 = vshrl.u32 %v4659, 7
        %v4661 = vsub.s32 %v4658, %v4660
        %v4662 = vrot.slane %v4648, %v4661
        %v4663 = vcombine.high %v4640, 0.0
        %v4664 = vcombine.high %v4647, 0.0
        %v4665 = vcombine.high %v4655, 0.0
        %v4666 = vcombine.high %v4662, 0.0
        %v4667 = vcombine.high %v945, 0.0
        %v4669 = vunpack.c.l.s4 1983009808
        %v4670 = vunpack.c.0.s8 %v4669
        %v4671 = vlaneseq
        %v4672 = vshrl.u32 %v4671, 7
        %v4673 = vsub.s32 %v4670, %v4672
        %v4674 = vrot.slane %v945, %v4673
        %v4676 = vunpack.c.l.s4 1983009808
        %v4677 = vunpack.c.0.s8 %v4676
        %v4678 = vlaneseq
        %v4679 = vshrl.u32 %v4678, 7
        %v4680 = vsub.s32 %v4677, %v4679
        %v4681 = vrot.slane %v4667, %v4680
        %v4682 = vcombine.high %v4674, 0.0
        %v4684 = vunpack.c.l.s4 1934713408
        %v4685 = vunpack.c.0.s8 %v4684
        %v4686 = vlaneseq
        %v4687 = vshrl.u32 %v4686, 7
        %v4688 = vsub.s32 %v4685, %v4687
        %v4689 = vrot.slane %v4674, %v4688
        %v4691 = vunpack.c.l.s4 1934713408
        %v4692 = vunpack.c.0.s8 %v4691
        %v4693 = vlaneseq
        %v4694 = vshrl.u32 %v4693, 7
        %v4695 = vsub.s32 %v4692, %v4694
        %v4696 = vrot.slane %v4682, %v4695
        %v4697 = vcombine.high %v4681, 0.0
        %v4699 = vunpack.c.l.s4 1934713408
        %v4700 = vunpack.c.0.s8 %v4699
        %v4701 = vlaneseq
        %v4702 = vshrl.u32 %v4701, 7
        %v4703 = vsub.s32 %v4700, %v4702
        %v4704 = vrot.slane %v4681, %v4703
        %v4706 = vunpack.c.l.s4 1934713408
        %v4707 = vunpack.c.0.s8 %v4706
        %v4708 = vlaneseq
        %v4709 = vshrl.u32 %v4708, 7
        %v4710 = vsub.s32 %v4707, %v4709
        %v4711 = vrot.slane %v4697, %v4710
        %v4712 = vcombine.high %v4689, 0.0
        %v4713 = vcombine.high %v4696, 0.0
        %v4714 = vcombine.high %v4704, 0.0
        %v4715 = vcombine.high %v4711, 0.0
        %v4716 = vcombine.high %v946, 0.0
        %v4718 = vunpack.c.l.s4 1983009808
        %v4719 = vunpack.c.0.s8 %v4718
        %v4720 = vlaneseq
        %v4721 = vshrl.u32 %v4720, 7
        %v4722 = vsub.s32 %v4719, %v4721
        %v4723 = vrot.slane %v946, %v4722
        %v4725 = vunpack.c.l.s4 1983009808
        %v4726 = vunpack.c.0.s8 %v4725
        %v4727 = vlaneseq
        %v4728 = vshrl.u32 %v4727, 7
        %v4729 = vsub.s32 %v4726, %v4728
        %v4730 = vrot.slane %v4716, %v4729
        %v4731 = vcombine.high %v4723, 0.0
        %v4733 = vunpack.c.l.s4 1934713408
        %v4734 = vunpack.c.0.s8 %v4733
        %v4735 = vlaneseq
        %v4736 = vshrl.u32 %v4735, 7
        %v4737 = vsub.s32 %v4734, %v4736
        %v4738 = vrot.slane %v4723, %v4737
        %v4740 = vunpack.c.l.s4 1934713408
        %v4741 = vunpack.c.0.s8 %v4740
        %v4742 = vlaneseq
        %v4743 = vshrl.u32 %v4742, 7
        %v4744 = vsub.s32 %v4741, %v4743
        %v4745 = vrot.slane %v4731, %v4744
        %v4746 = vcombine.high %v4730, 0.0
        %v4748 = vunpack.c.l.s4 1934713408
        %v4749 = vunpack.c.0.s8 %v4748
        %v4750 = vlaneseq
        %v4751 = vshrl.u32 %v4750, 7
        %v4752 = vsub.s32 %v4749, %v4751
        %v4753 = vrot.slane %v4730, %v4752
        %v4755 = vunpack.c.l.s4 1934713408
        %v4756 = vunpack.c.0.s8 %v4755
        %v4757 = vlaneseq
        %v4758 = vshrl.u32 %v4757, 7
        %v4759 = vsub.s32 %v4756, %v4758
        %v4760 = vrot.slane %v4746, %v4759
        %v4761 = vcombine.high %v4738, 0.0
        %v4762 = vcombine.high %v4745, 0.0
        %v4763 = vcombine.high %v4753, 0.0
        %v4764 = vcombine.high %v4760, 0.0
        %v4765 = vcombine.high %v947, 0.0
        %v4767 = vunpack.c.l.s4 1983009808
        %v4768 = vunpack.c.0.s8 %v4767
        %v4769 = vlaneseq
        %v4770 = vshrl.u32 %v4769, 7
        %v4771 = vsub.s32 %v4768, %v4770
        %v4772 = vrot.slane %v947, %v4771
        %v4774 = vunpack.c.l.s4 1983009808
        %v4775 = vunpack.c.0.s8 %v4774
        %v4776 = vlaneseq
        %v4777 = vshrl.u32 %v4776, 7
        %v4778 = vsub.s32 %v4775, %v4777
        %v4779 = vrot.slane %v4765, %v4778
        %v4780 = vcombine.high %v4772, 0.0
        %v4782 = vunpack.c.l.s4 1934713408
        %v4783 = vunpack.c.0.s8 %v4782
        %v4784 = vlaneseq
        %v4785 = vshrl.u32 %v4784, 7
        %v4786 = vsub.s32 %v4783, %v4785
        %v4787 = vrot.slane %v4772, %v4786
        %v4789 = vunpack.c.l.s4 1934713408
        %v4790 = vunpack.c.0.s8 %v4789
        %v4791 = vlaneseq
        %v4792 = vshrl.u32 %v4791, 7
        %v4793 = vsub.s32 %v4790, %v4792
        %v4794 = vrot.slane %v4780, %v4793
        %v4795 = vcombine.high %v4779, 0.0
        %v4797 = vunpack.c.l.s4 1934713408
        %v4798 = vunpack.c.0.s8 %v4797
        %v4799 = vlaneseq
        %v4800 = vshrl.u32 %v4799, 7
        %v4801 = vsub.s32 %v4798, %v4800
        %v4802 = vrot.slane %v4779, %v4801
        %v4804 = vunpack.c.l.s4 1934713408
        %v4805 = vunpack.c.0.s8 %v4804
        %v4806 = vlaneseq
        %v4807 = vshrl.u32 %v4806, 7
        %v4808 = vsub.s32 %v4805, %v4807
        %v4809 = vrot.slane %v4795, %v4808
        %v4810 = vcombine.high %v4787, 0.0
        %v4811 = vcombine.high %v4794, 0.0
        %v4812 = vcombine.high %v4802, 0.0
        %v4813 = vcombine.high %v4809, 0.0
        %v4814 = vcombine.high %v948, 0.0
        %v4816 = vunpack.c.l.s4 1983009808
        %v4817 = vunpack.c.0.s8 %v4816
        %v4818 = vlaneseq
        %v4819 = vshrl.u32 %v4818, 7
        %v4820 = vsub.s32 %v4817, %v4819
        %v4821 = vrot.slane %v948, %v4820
        %v4823 = vunpack.c.l.s4 1983009808
        %v4824 = vunpack.c.0.s8 %v4823
        %v4825 = vlaneseq
        %v4826 = vshrl.u32 %v4825, 7
        %v4827 = vsub.s32 %v4824, %v4826
        %v4828 = vrot.slane %v4814, %v4827
        %v4829 = vcombine.high %v4821, 0.0
        %v4831 = vunpack.c.l.s4 1934713408
        %v4832 = vunpack.c.0.s8 %v4831
        %v4833 = vlaneseq
        %v4834 = vshrl.u32 %v4833, 7
        %v4835 = vsub.s32 %v4832, %v4834
        %v4836 = vrot.slane %v4821, %v4835
        %v4838 = vunpack.c.l.s4 1934713408
        %v4839 = vunpack.c.0.s8 %v4838
        %v4840 = vlaneseq
        %v4841 = vshrl.u32 %v4840, 7
        %v4842 = vsub.s32 %v4839, %v4841
        %v4843 = vrot.slane %v4829, %v4842
        %v4844 = vcombine.high %v4828, 0.0
        %v4846 = vunpack.c.l.s4 1934713408
        %v4847 = vunpack.c.0.s8 %v4846
        %v4848 = vlaneseq
        %v4849 = vshrl.u32 %v4848, 7
        %v4850 = vsub.s32 %v4847, %v4849
        %v4851 = vrot.slane %v4828, %v4850
        %v4853 = vunpack.c.l.s4 1934713408
        %v4854 = vunpack.c.0.s8 %v4853
        %v4855 = vlaneseq
        %v4856 = vshrl.u32 %v4855, 7
        %v4857 = vsub.s32 %v4854, %v4856
        %v4858 = vrot.slane %v4844, %v4857
        %v4859 = vcombine.high %v4836, 0.0
        %v4860 = vcombine.high %v4843, 0.0
        %v4861 = vcombine.high %v4851, 0.0
        %v4862 = vcombine.high %v4858, 0.0
        %4895 = vrot.lane.b32.xlu0 %v1772, 2
        %v4896 = vpop.permute.xlu0 %4895
        %4897 = vrot.lane.b32.xlu0 %v1870, 2
        %v4898 = vpop.permute.xlu0 %4897
        %4899 = vrot.lane.b32.xlu0 %v1968, 2
        %v4900 = vpop.permute.xlu0 %4899
        %4901 = vrot.lane.b32.xlu0 %v2066, 2
        %v4902 = vpop.permute.xlu0 %4901
        %4903 = vrot.lane.b32.xlu0 %v2164, 2
        %v4904 = vpop.permute.xlu0 %4903
        %4905 = vrot.lane.b32.xlu0 %v2262, 2
        %v4906 = vpop.permute.xlu0 %4905
        %4907 = vrot.lane.b32.xlu0 %v2360, 2
        %v4908 = vpop.permute.xlu0 %4907
        %4909 = vrot.lane.b32.xlu0 %v2458, 2
        %v4910 = vpop.permute.xlu0 %4909
        %4911 = vrot.lane.b32.xlu0 %v2556, 2
        %v4912 = vpop.permute.xlu0 %4911
        %4913 = vrot.lane.b32.xlu0 %v2654, 2
        %v4914 = vpop.permute.xlu0 %4913
        %4915 = vrot.lane.b32.xlu0 %v2752, 2
        %v4916 = vpop.permute.xlu0 %4915
        %4917 = vrot.lane.b32.xlu0 %v2850, 2
        %v4918 = vpop.permute.xlu0 %4917
        %4919 = vrot.lane.b32.xlu0 %v2948, 2
        %v4920 = vpop.permute.xlu0 %4919
        %4921 = vrot.lane.b32.xlu0 %v3046, 2
        %v4922 = vpop.permute.xlu0 %4921
        %4923 = vrot.lane.b32.xlu0 %v3144, 2
        %v4924 = vpop.permute.xlu0 %4923
        %4925 = vrot.lane.b32.xlu0 %v3242, 2
        %v4926 = vpop.permute.xlu0 %4925
        %4927 = vrot.lane.b32.xlu0 %v3340, 2
        %v4928 = vpop.permute.xlu0 %4927
        %4929 = vrot.lane.b32.xlu0 %v3438, 2
        %v4930 = vpop.permute.xlu0 %4929
        %4931 = vrot.lane.b32.xlu0 %v3536, 2
        %v4932 = vpop.permute.xlu0 %4931
        %4933 = vrot.lane.b32.xlu0 %v3634, 2
        %v4934 = vpop.permute.xlu0 %4933
        %4935 = vrot.lane.b32.xlu0 %v3732, 2
        %v4936 = vpop.permute.xlu0 %4935
        %4937 = vrot.lane.b32.xlu0 %v3830, 2
        %v4938 = vpop.permute.xlu0 %4937
        %4939 = vrot.lane.b32.xlu0 %v3928, 2
        %v4940 = vpop.permute.xlu0 %4939
        %4941 = vrot.lane.b32.xlu0 %v4026, 2
        %v4942 = vpop.permute.xlu0 %4941
        %4943 = vrot.lane.b32.xlu0 %v4124, 2
        %v4944 = vpop.permute.xlu0 %4943
        %4945 = vrot.lane.b32.xlu0 %v4222, 2
        %v4946 = vpop.permute.xlu0 %4945
        %4947 = vrot.lane.b32.xlu0 %v4320, 2
        %v4948 = vpop.permute.xlu0 %4947
        %4949 = vrot.lane.b32.xlu0 %v4418, 2
        %v4950 = vpop.permute.xlu0 %4949
        %4951 = vrot.lane.b32.xlu0 %v4516, 2
        %v4952 = vpop.permute.xlu0 %4951
        %4953 = vrot.lane.b32.xlu0 %v4614, 2
        %v4954 = vpop.permute.xlu0 %4953
        %4955 = vrot.lane.b32.xlu0 %v4712, 2
        %v4956 = vpop.permute.xlu0 %4955
        %4957 = vrot.lane.b32.xlu0 %v4810, 2
        %v4958 = vpop.permute.xlu0 %4957
        %5023 = vrot.lane.b32.xlu0 %v1756, 4
        %v5024 = vpop.permute.xlu0 %5023
        %5025 = vrot.lane.b32.xlu0 %v1854, 4
        %v5026 = vpop.permute.xlu0 %5025
        %5027 = vrot.lane.b32.xlu0 %v1952, 4
        %v5028 = vpop.permute.xlu0 %5027
        %5029 = vrot.lane.b32.xlu0 %v2050, 4
        %v5030 = vpop.permute.xlu0 %5029
        %5031 = vrot.lane.b32.xlu0 %v2148, 4
        %v5032 = vpop.permute.xlu0 %5031
        %5033 = vrot.lane.b32.xlu0 %v2246, 4
        %v5034 = vpop.permute.xlu0 %5033
        %5035 = vrot.lane.b32.xlu0 %v2344, 4
        %v5036 = vpop.permute.xlu0 %5035
        %5037 = vrot.lane.b32.xlu0 %v2442, 4
        %v5038 = vpop.permute.xlu0 %5037
        %5039 = vrot.lane.b32.xlu0 %v2540, 4
        %v5040 = vpop.permute.xlu0 %5039
        %5041 = vrot.lane.b32.xlu0 %v2638, 4
        %v5042 = vpop.permute.xlu0 %5041
        %5043 = vrot.lane.b32.xlu0 %v2736, 4
        %v5044 = vpop.permute.xlu0 %5043
        %5045 = vrot.lane.b32.xlu0 %v2834, 4
        %v5046 = vpop.permute.xlu0 %5045
        %5047 = vrot.lane.b32.xlu0 %v2932, 4
        %v5048 = vpop.permute.xlu0 %5047
        %5049 = vrot.lane.b32.xlu0 %v3030, 4
        %v5050 = vpop.permute.xlu0 %5049
        %5051 = vrot.lane.b32.xlu0 %v3128, 4
        %v5052 = vpop.permute.xlu0 %5051
        %5053 = vrot.lane.b32.xlu0 %v3226, 4
        %v5054 = vpop.permute.xlu0 %5053
        %5055 = vrot.lane.b32.xlu0 %v3324, 4
        %v5056 = vpop.permute.xlu0 %5055
        %5057 = vrot.lane.b32.xlu0 %v3422, 4
        %v5058 = vpop.permute.xlu0 %5057
        %5059 = vrot.lane.b32.xlu0 %v3520, 4
        %v5060 = vpop.permute.xlu0 %5059
        %5061 = vrot.lane.b32.xlu0 %v3618, 4
        %v5062 = vpop.permute.xlu0 %5061
        %5063 = vrot.lane.b32.xlu0 %v3716, 4
        %v5064 = vpop.permute.xlu0 %5063
        %5065 = vrot.lane.b32.xlu0 %v3814, 4
        %v5066 = vpop.permute.xlu0 %5065
        %5067 = vrot.lane.b32.xlu0 %v3912, 4
        %v5068 = vpop.permute.xlu0 %5067
        %5069 = vrot.lane.b32.xlu0 %v4010, 4
        %v5070 = vpop.permute.xlu0 %5069
        %5071 = vrot.lane.b32.xlu0 %v4108, 4
        %v5072 = vpop.permute.xlu0 %5071
        %5073 = vrot.lane.b32.xlu0 %v4206, 4
        %v5074 = vpop.permute.xlu0 %5073
        %5075 = vrot.lane.b32.xlu0 %v4304, 4
        %v5076 = vpop.permute.xlu0 %5075
        %5077 = vrot.lane.b32.xlu0 %v4402, 4
        %v5078 = vpop.permute.xlu0 %5077
        %5079 = vrot.lane.b32.xlu0 %v4500, 4
        %v5080 = vpop.permute.xlu0 %5079
        %5081 = vrot.lane.b32.xlu0 %v4598, 4
        %v5082 = vpop.permute.xlu0 %5081
        %5083 = vrot.lane.b32.xlu0 %v4696, 4
        %v5084 = vpop.permute.xlu0 %5083
        %5085 = vrot.lane.b32.xlu0 %v4794, 4
        %v5086 = vpop.permute.xlu0 %5085
        %5151 = vrot.lane.b32.xlu0 %v1773, 6
        %v5152 = vpop.permute.xlu0 %5151
        %5153 = vrot.lane.b32.xlu0 %v1871, 6
        %v5154 = vpop.permute.xlu0 %5153
        %5155 = vrot.lane.b32.xlu0 %v1969, 6
        %v5156 = vpop.permute.xlu0 %5155
        %5157 = vrot.lane.b32.xlu0 %v2067, 6
        %v5158 = vpop.permute.xlu0 %5157
        %5159 = vrot.lane.b32.xlu0 %v2165, 6
        %v5160 = vpop.permute.xlu0 %5159
        %5161 = vrot.lane.b32.xlu0 %v2263, 6
        %v5162 = vpop.permute.xlu0 %5161
        %5163 = vrot.lane.b32.xlu0 %v2361, 6
        %v5164 = vpop.permute.xlu0 %5163
        %5165 = vrot.lane.b32.xlu0 %v2459, 6
        %v5166 = vpop.permute.xlu0 %5165
        %5167 = vrot.lane.b32.xlu0 %v2557, 6
        %v5168 = vpop.permute.xlu0 %5167
        %5169 = vrot.lane.b32.xlu0 %v2655, 6
        %v5170 = vpop.permute.xlu0 %5169
        %5171 = vrot.lane.b32.xlu0 %v2753, 6
        %v5172 = vpop.permute.xlu0 %5171
        %5173 = vrot.lane.b32.xlu0 %v2851, 6
        %v5174 = vpop.permute.xlu0 %5173
        %5175 = vrot.lane.b32.xlu0 %v2949, 6
        %v5176 = vpop.permute.xlu0 %5175
        %5177 = vrot.lane.b32.xlu0 %v3047, 6
        %v5178 = vpop.permute.xlu0 %5177
        %5179 = vrot.lane.b32.xlu0 %v3145, 6
        %v5180 = vpop.permute.xlu0 %5179
        %5181 = vrot.lane.b32.xlu0 %v3243, 6
        %v5182 = vpop.permute.xlu0 %5181
        %5183 = vrot.lane.b32.xlu0 %v3341, 6
        %v5184 = vpop.permute.xlu0 %5183
        %5185 = vrot.lane.b32.xlu0 %v3439, 6
        %v5186 = vpop.permute.xlu0 %5185
        %5187 = vrot.lane.b32.xlu0 %v3537, 6
        %v5188 = vpop.permute.xlu0 %5187
        %5189 = vrot.lane.b32.xlu0 %v3635, 6
        %v5190 = vpop.permute.xlu0 %5189
        %5191 = vrot.lane.b32.xlu0 %v3733, 6
        %v5192 = vpop.permute.xlu0 %5191
        %5193 = vrot.lane.b32.xlu0 %v3831, 6
        %v5194 = vpop.permute.xlu0 %5193
        %5195 = vrot.lane.b32.xlu0 %v3929, 6
        %v5196 = vpop.permute.xlu0 %5195
        %5197 = vrot.lane.b32.xlu0 %v4027, 6
        %v5198 = vpop.permute.xlu0 %5197
        %5199 = vrot.lane.b32.xlu0 %v4125, 6
        %v5200 = vpop.permute.xlu0 %5199
        %5201 = vrot.lane.b32.xlu0 %v4223, 6
        %v5202 = vpop.permute.xlu0 %5201
        %5203 = vrot.lane.b32.xlu0 %v4321, 6
        %v5204 = vpop.permute.xlu0 %5203
        %5205 = vrot.lane.b32.xlu0 %v4419, 6
        %v5206 = vpop.permute.xlu0 %5205
        %5207 = vrot.lane.b32.xlu0 %v4517, 6
        %v5208 = vpop.permute.xlu0 %5207
        %5209 = vrot.lane.b32.xlu0 %v4615, 6
        %v5210 = vpop.permute.xlu0 %5209
        %5211 = vrot.lane.b32.xlu0 %v4713, 6
        %v5212 = vpop.permute.xlu0 %5211
        %5213 = vrot.lane.b32.xlu0 %v4811, 6
        %v5214 = vpop.permute.xlu0 %5213
        %5279 = vrot.lane.b32.xlu0 %v1764, 8
        %v5280 = vpop.permute.xlu0 %5279
        %5281 = vrot.lane.b32.xlu0 %v1862, 8
        %v5282 = vpop.permute.xlu0 %5281
        %5283 = vrot.lane.b32.xlu0 %v1960, 8
        %v5284 = vpop.permute.xlu0 %5283
        %5285 = vrot.lane.b32.xlu0 %v2058, 8
        %v5286 = vpop.permute.xlu0 %5285
        %5287 = vrot.lane.b32.xlu0 %v2156, 8
        %v5288 = vpop.permute.xlu0 %5287
        %5289 = vrot.lane.b32.xlu0 %v2254, 8
        %v5290 = vpop.permute.xlu0 %5289
        %5291 = vrot.lane.b32.xlu0 %v2352, 8
        %v5292 = vpop.permute.xlu0 %5291
        %5293 = vrot.lane.b32.xlu0 %v2450, 8
        %v5294 = vpop.permute.xlu0 %5293
        %5295 = vrot.lane.b32.xlu0 %v2548, 8
        %v5296 = vpop.permute.xlu0 %5295
        %5297 = vrot.lane.b32.xlu0 %v2646, 8
        %v5298 = vpop.permute.xlu0 %5297
        %5299 = vrot.lane.b32.xlu0 %v2744, 8
        %v5300 = vpop.permute.xlu0 %5299
        %5301 = vrot.lane.b32.xlu0 %v2842, 8
        %v5302 = vpop.permute.xlu0 %5301
        %5303 = vrot.lane.b32.xlu0 %v2940, 8
        %v5304 = vpop.permute.xlu0 %5303
        %5305 = vrot.lane.b32.xlu0 %v3038, 8
        %v5306 = vpop.permute.xlu0 %5305
        %5307 = vrot.lane.b32.xlu0 %v3136, 8
        %v5308 = vpop.permute.xlu0 %5307
        %5309 = vrot.lane.b32.xlu0 %v3234, 8
        %v5310 = vpop.permute.xlu0 %5309
        %5311 = vrot.lane.b32.xlu0 %v3332, 8
        %v5312 = vpop.permute.xlu0 %5311
        %5313 = vrot.lane.b32.xlu0 %v3430, 8
        %v5314 = vpop.permute.xlu0 %5313
        %5315 = vrot.lane.b32.xlu0 %v3528, 8
        %v5316 = vpop.permute.xlu0 %5315
        %5317 = vrot.lane.b32.xlu0 %v3626, 8
        %v5318 = vpop.permute.xlu0 %5317
        %5319 = vrot.lane.b32.xlu0 %v3724, 8
        %v5320 = vpop.permute.xlu0 %5319
        %5321 = vrot.lane.b32.xlu0 %v3822, 8
        %v5322 = vpop.permute.xlu0 %5321
        %5323 = vrot.lane.b32.xlu0 %v3920, 8
        %v5324 = vpop.permute.xlu0 %5323
        %5325 = vrot.lane.b32.xlu0 %v4018, 8
        %v5326 = vpop.permute.xlu0 %5325
        %5327 = vrot.lane.b32.xlu0 %v4116, 8
        %v5328 = vpop.permute.xlu0 %5327
        %5329 = vrot.lane.b32.xlu0 %v4214, 8
        %v5330 = vpop.permute.xlu0 %5329
        %5331 = vrot.lane.b32.xlu0 %v4312, 8
        %v5332 = vpop.permute.xlu0 %5331
        %5333 = vrot.lane.b32.xlu0 %v4410, 8
        %v5334 = vpop.permute.xlu0 %5333
        %5335 = vrot.lane.b32.xlu0 %v4508, 8
        %v5336 = vpop.permute.xlu0 %5335
        %5337 = vrot.lane.b32.xlu0 %v4606, 8
        %v5338 = vpop.permute.xlu0 %5337
        %5339 = vrot.lane.b32.xlu0 %v4704, 8
        %v5340 = vpop.permute.xlu0 %5339
        %5341 = vrot.lane.b32.xlu0 %v4802, 8
        %v5342 = vpop.permute.xlu0 %5341
        %5407 = vrot.lane.b32.xlu0 %v1774, 10
        %v5408 = vpop.permute.xlu0 %5407
        %5409 = vrot.lane.b32.xlu0 %v1872, 10
        %v5410 = vpop.permute.xlu0 %5409
        %5411 = vrot.lane.b32.xlu0 %v1970, 10
        %v5412 = vpop.permute.xlu0 %5411
        %5413 = vrot.lane.b32.xlu0 %v2068, 10
        %v5414 = vpop.permute.xlu0 %5413
        %5415 = vrot.lane.b32.xlu0 %v2166, 10
        %v5416 = vpop.permute.xlu0 %5415
        %5417 = vrot.lane.b32.xlu0 %v2264, 10
        %v5418 = vpop.permute.xlu0 %5417
        %5419 = vrot.lane.b32.xlu0 %v2362, 10
        %v5420 = vpop.permute.xlu0 %5419
        %5421 = vrot.lane.b32.xlu0 %v2460, 10
        %v5422 = vpop.permute.xlu0 %5421
        %5423 = vrot.lane.b32.xlu0 %v2558, 10
        %v5424 = vpop.permute.xlu0 %5423
        %5425 = vrot.lane.b32.xlu0 %v2656, 10
        %v5426 = vpop.permute.xlu0 %5425
        %5427 = vrot.lane.b32.xlu0 %v2754, 10
        %v5428 = vpop.permute.xlu0 %5427
        %5429 = vrot.lane.b32.xlu0 %v2852, 10
        %v5430 = vpop.permute.xlu0 %5429
        %5431 = vrot.lane.b32.xlu0 %v2950, 10
        %v5432 = vpop.permute.xlu0 %5431
        %5433 = vrot.lane.b32.xlu0 %v3048, 10
        %v5434 = vpop.permute.xlu0 %5433
        %5435 = vrot.lane.b32.xlu0 %v3146, 10
        %v5436 = vpop.permute.xlu0 %5435
        %5437 = vrot.lane.b32.xlu0 %v3244, 10
        %v5438 = vpop.permute.xlu0 %5437
        %5439 = vrot.lane.b32.xlu0 %v3342, 10
        %v5440 = vpop.permute.xlu0 %5439
        %5441 = vrot.lane.b32.xlu0 %v3440, 10
        %v5442 = vpop.permute.xlu0 %5441
        %5443 = vrot.lane.b32.xlu0 %v3538, 10
        %v5444 = vpop.permute.xlu0 %5443
        %5445 = vrot.lane.b32.xlu0 %v3636, 10
        %v5446 = vpop.permute.xlu0 %5445
        %5447 = vrot.lane.b32.xlu0 %v3734, 10
        %v5448 = vpop.permute.xlu0 %5447
        %5449 = vrot.lane.b32.xlu0 %v3832, 10
        %v5450 = vpop.permute.xlu0 %5449
        %5451 = vrot.lane.b32.xlu0 %v3930, 10
        %v5452 = vpop.permute.xlu0 %5451
        %5453 = vrot.lane.b32.xlu0 %v4028, 10
        %v5454 = vpop.permute.xlu0 %5453
        %5455 = vrot.lane.b32.xlu0 %v4126, 10
        %v5456 = vpop.permute.xlu0 %5455
        %5457 = vrot.lane.b32.xlu0 %v4224, 10
        %v5458 = vpop.permute.xlu0 %5457
        %5459 = vrot.lane.b32.xlu0 %v4322, 10
        %v5460 = vpop.permute.xlu0 %5459
        %5461 = vrot.lane.b32.xlu0 %v4420, 10
        %v5462 = vpop.permute.xlu0 %5461
        %5463 = vrot.lane.b32.xlu0 %v4518, 10
        %v5464 = vpop.permute.xlu0 %5463
        %5465 = vrot.lane.b32.xlu0 %v4616, 10
        %v5466 = vpop.permute.xlu0 %5465
        %5467 = vrot.lane.b32.xlu0 %v4714, 10
        %v5468 = vpop.permute.xlu0 %5467
        %5469 = vrot.lane.b32.xlu0 %v4812, 10
        %v5470 = vpop.permute.xlu0 %5469
        %5535 = vrot.lane.b32.xlu0 %v1771, 12
        %v5536 = vpop.permute.xlu0 %5535
        %5537 = vrot.lane.b32.xlu0 %v1869, 12
        %v5538 = vpop.permute.xlu0 %5537
        %5539 = vrot.lane.b32.xlu0 %v1967, 12
        %v5540 = vpop.permute.xlu0 %5539
        %5541 = vrot.lane.b32.xlu0 %v2065, 12
        %v5542 = vpop.permute.xlu0 %5541
        %5543 = vrot.lane.b32.xlu0 %v2163, 12
        %v5544 = vpop.permute.xlu0 %5543
        %5545 = vrot.lane.b32.xlu0 %v2261, 12
        %v5546 = vpop.permute.xlu0 %5545
        %5547 = vrot.lane.b32.xlu0 %v2359, 12
        %v5548 = vpop.permute.xlu0 %5547
        %5549 = vrot.lane.b32.xlu0 %v2457, 12
        %v5550 = vpop.permute.xlu0 %5549
        %5551 = vrot.lane.b32.xlu0 %v2555, 12
        %v5552 = vpop.permute.xlu0 %5551
        %5553 = vrot.lane.b32.xlu0 %v2653, 12
        %v5554 = vpop.permute.xlu0 %5553
        %5555 = vrot.lane.b32.xlu0 %v2751, 12
        %v5556 = vpop.permute.xlu0 %5555
        %5557 = vrot.lane.b32.xlu0 %v2849, 12
        %v5558 = vpop.permute.xlu0 %5557
        %5559 = vrot.lane.b32.xlu0 %v2947, 12
        %v5560 = vpop.permute.xlu0 %5559
        %5561 = vrot.lane.b32.xlu0 %v3045, 12
        %v5562 = vpop.permute.xlu0 %5561
        %5563 = vrot.lane.b32.xlu0 %v3143, 12
        %v5564 = vpop.permute.xlu0 %5563
        %5565 = vrot.lane.b32.xlu0 %v3241, 12
        %v5566 = vpop.permute.xlu0 %5565
        %5567 = vrot.lane.b32.xlu0 %v3339, 12
        %v5568 = vpop.permute.xlu0 %5567
        %5569 = vrot.lane.b32.xlu0 %v3437, 12
        %v5570 = vpop.permute.xlu0 %5569
        %5571 = vrot.lane.b32.xlu0 %v3535, 12
        %v5572 = vpop.permute.xlu0 %5571
        %5573 = vrot.lane.b32.xlu0 %v3633, 12
        %v5574 = vpop.permute.xlu0 %5573
        %5575 = vrot.lane.b32.xlu0 %v3731, 12
        %v5576 = vpop.permute.xlu0 %5575
        %5577 = vrot.lane.b32.xlu0 %v3829, 12
        %v5578 = vpop.permute.xlu0 %5577
        %5579 = vrot.lane.b32.xlu0 %v3927, 12
        %v5580 = vpop.permute.xlu0 %5579
        %5581 = vrot.lane.b32.xlu0 %v4025, 12
        %v5582 = vpop.permute.xlu0 %5581
        %5583 = vrot.lane.b32.xlu0 %v4123, 12
        %v5584 = vpop.permute.xlu0 %5583
        %5585 = vrot.lane.b32.xlu0 %v4221, 12
        %v5586 = vpop.permute.xlu0 %5585
        %5587 = vrot.lane.b32.xlu0 %v4319, 12
        %v5588 = vpop.permute.xlu0 %5587
        %5589 = vrot.lane.b32.xlu0 %v4417, 12
        %v5590 = vpop.permute.xlu0 %5589
        %5591 = vrot.lane.b32.xlu0 %v4515, 12
        %v5592 = vpop.permute.xlu0 %5591
        %5593 = vrot.lane.b32.xlu0 %v4613, 12
        %v5594 = vpop.permute.xlu0 %5593
        %5595 = vrot.lane.b32.xlu0 %v4711, 12
        %v5596 = vpop.permute.xlu0 %5595
        %5597 = vrot.lane.b32.xlu0 %v4809, 12
        %v5598 = vpop.permute.xlu0 %5597
        %5663 = vrot.lane.b32.xlu0 %v1775, 14
        %v5664 = vpop.permute.xlu0 %5663
        %5665 = vrot.lane.b32.xlu0 %v1873, 14
        %v5666 = vpop.permute.xlu0 %5665
        %5667 = vrot.lane.b32.xlu0 %v1971, 14
        %v5668 = vpop.permute.xlu0 %5667
        %5669 = vrot.lane.b32.xlu0 %v2069, 14
        %v5670 = vpop.permute.xlu0 %5669
        %5671 = vrot.lane.b32.xlu0 %v2167, 14
        %v5672 = vpop.permute.xlu0 %5671
        %5673 = vrot.lane.b32.xlu0 %v2265, 14
        %v5674 = vpop.permute.xlu0 %5673
        %5675 = vrot.lane.b32.xlu0 %v2363, 14
        %v5676 = vpop.permute.xlu0 %5675
        %5677 = vrot.lane.b32.xlu0 %v2461, 14
        %v5678 = vpop.permute.xlu0 %5677
        %5679 = vrot.lane.b32.xlu0 %v2559, 14
        %v5680 = vpop.permute.xlu0 %5679
        %5681 = vrot.lane.b32.xlu0 %v2657, 14
        %v5682 = vpop.permute.xlu0 %5681
        %5683 = vrot.lane.b32.xlu0 %v2755, 14
        %v5684 = vpop.permute.xlu0 %5683
        %5685 = vrot.lane.b32.xlu0 %v2853, 14
        %v5686 = vpop.permute.xlu0 %5685
        %5687 = vrot.lane.b32.xlu0 %v2951, 14
        %v5688 = vpop.permute.xlu0 %5687
        %5689 = vrot.lane.b32.xlu0 %v3049, 14
        %v5690 = vpop.permute.xlu0 %5689
        %5691 = vrot.lane.b32.xlu0 %v3147, 14
        %v5692 = vpop.permute.xlu0 %5691
        %5693 = vrot.lane.b32.xlu0 %v3245, 14
        %v5694 = vpop.permute.xlu0 %5693
        %5695 = vrot.lane.b32.xlu0 %v3343, 14
        %v5696 = vpop.permute.xlu0 %5695
        %5697 = vrot.lane.b32.xlu0 %v3441, 14
        %v5698 = vpop.permute.xlu0 %5697
        %5699 = vrot.lane.b32.xlu0 %v3539, 14
        %v5700 = vpop.permute.xlu0 %5699
        %5701 = vrot.lane.b32.xlu0 %v3637, 14
        %v5702 = vpop.permute.xlu0 %5701
        %5703 = vrot.lane.b32.xlu0 %v3735, 14
        %v5704 = vpop.permute.xlu0 %5703
        %5705 = vrot.lane.b32.xlu0 %v3833, 14
        %v5706 = vpop.permute.xlu0 %5705
        %5707 = vrot.lane.b32.xlu0 %v3931, 14
        %v5708 = vpop.permute.xlu0 %5707
        %5709 = vrot.lane.b32.xlu0 %v4029, 14
        %v5710 = vpop.permute.xlu0 %5709
        %5711 = vrot.lane.b32.xlu0 %v4127, 14
        %v5712 = vpop.permute.xlu0 %5711
        %5713 = vrot.lane.b32.xlu0 %v4225, 14
        %v5714 = vpop.permute.xlu0 %5713
        %5715 = vrot.lane.b32.xlu0 %v4323, 14
        %v5716 = vpop.permute.xlu0 %5715
        %5717 = vrot.lane.b32.xlu0 %v4421, 14
        %v5718 = vpop.permute.xlu0 %5717
        %5719 = vrot.lane.b32.xlu0 %v4519, 14
        %v5720 = vpop.permute.xlu0 %5719
        %5721 = vrot.lane.b32.xlu0 %v4617, 14
        %v5722 = vpop.permute.xlu0 %5721
        %5723 = vrot.lane.b32.xlu0 %v4715, 14
        %v5724 = vpop.permute.xlu0 %5723
        %5725 = vrot.lane.b32.xlu0 %v4813, 14
        %v5726 = vpop.permute.xlu0 %5725
        %5791 = vrot.lane.b32.xlu0 %v1798, 16
        %v5792 = vpop.permute.xlu0 %5791
        %5793 = vrot.lane.b32.xlu0 %v1896, 16
        %v5794 = vpop.permute.xlu0 %5793
        %5795 = vrot.lane.b32.xlu0 %v1994, 16
        %v5796 = vpop.permute.xlu0 %5795
        %5797 = vrot.lane.b32.xlu0 %v2092, 16
        %v5798 = vpop.permute.xlu0 %5797
        %5799 = vrot.lane.b32.xlu0 %v2190, 16
        %v5800 = vpop.permute.xlu0 %5799
        %5801 = vrot.lane.b32.xlu0 %v2288, 16
        %v5802 = vpop.permute.xlu0 %5801
        %5803 = vrot.lane.b32.xlu0 %v2386, 16
        %v5804 = vpop.permute.xlu0 %5803
        %5805 = vrot.lane.b32.xlu0 %v2484, 16
        %v5806 = vpop.permute.xlu0 %5805
        %5807 = vrot.lane.b32.xlu0 %v2582, 16
        %v5808 = vpop.permute.xlu0 %5807
        %5809 = vrot.lane.b32.xlu0 %v2680, 16
        %v5810 = vpop.permute.xlu0 %5809
        %5811 = vrot.lane.b32.xlu0 %v2778, 16
        %v5812 = vpop.permute.xlu0 %5811
        %5813 = vrot.lane.b32.xlu0 %v2876, 16
        %v5814 = vpop.permute.xlu0 %5813
        %5815 = vrot.lane.b32.xlu0 %v2974, 16
        %v5816 = vpop.permute.xlu0 %5815
        %5817 = vrot.lane.b32.xlu0 %v3072, 16
        %v5818 = vpop.permute.xlu0 %5817
        %5819 = vrot.lane.b32.xlu0 %v3170, 16
        %v5820 = vpop.permute.xlu0 %5819
        %5821 = vrot.lane.b32.xlu0 %v3268, 16
        %v5822 = vpop.permute.xlu0 %5821
        %5823 = vrot.lane.b32.xlu0 %v3366, 16
        %v5824 = vpop.permute.xlu0 %5823
        %5825 = vrot.lane.b32.xlu0 %v3464, 16
        %v5826 = vpop.permute.xlu0 %5825
        %5827 = vrot.lane.b32.xlu0 %v3562, 16
        %v5828 = vpop.permute.xlu0 %5827
        %5829 = vrot.lane.b32.xlu0 %v3660, 16
        %v5830 = vpop.permute.xlu0 %5829
        %5831 = vrot.lane.b32.xlu0 %v3758, 16
        %v5832 = vpop.permute.xlu0 %5831
        %5833 = vrot.lane.b32.xlu0 %v3856, 16
        %v5834 = vpop.permute.xlu0 %5833
        %5835 = vrot.lane.b32.xlu0 %v3954, 16
        %v5836 = vpop.permute.xlu0 %5835
        %5837 = vrot.lane.b32.xlu0 %v4052, 16
        %v5838 = vpop.permute.xlu0 %5837
        %5839 = vrot.lane.b32.xlu0 %v4150, 16
        %v5840 = vpop.permute.xlu0 %5839
        %5841 = vrot.lane.b32.xlu0 %v4248, 16
        %v5842 = vpop.permute.xlu0 %5841
        %5843 = vrot.lane.b32.xlu0 %v4346, 16
        %v5844 = vpop.permute.xlu0 %5843
        %5845 = vrot.lane.b32.xlu0 %v4444, 16
        %v5846 = vpop.permute.xlu0 %5845
        %5847 = vrot.lane.b32.xlu0 %v4542, 16
        %v5848 = vpop.permute.xlu0 %5847
        %5849 = vrot.lane.b32.xlu0 %v4640, 16
        %v5850 = vpop.permute.xlu0 %5849
        %5851 = vrot.lane.b32.xlu0 %v4738, 16
        %v5852 = vpop.permute.xlu0 %5851
        %5853 = vrot.lane.b32.xlu0 %v4836, 16
        %v5854 = vpop.permute.xlu0 %5853
        %5919 = vrot.lane.b32.xlu0 %v1821, 18
        %v5920 = vpop.permute.xlu0 %5919
        %5921 = vrot.lane.b32.xlu0 %v1919, 18
        %v5922 = vpop.permute.xlu0 %5921
        %5923 = vrot.lane.b32.xlu0 %v2017, 18
        %v5924 = vpop.permute.xlu0 %5923
        %5925 = vrot.lane.b32.xlu0 %v2115, 18
        %v5926 = vpop.permute.xlu0 %5925
        %5927 = vrot.lane.b32.xlu0 %v2213, 18
        %v5928 = vpop.permute.xlu0 %5927
        %5929 = vrot.lane.b32.xlu0 %v2311, 18
        %v5930 = vpop.permute.xlu0 %5929
        %5931 = vrot.lane.b32.xlu0 %v2409, 18
        %v5932 = vpop.permute.xlu0 %5931
        %5933 = vrot.lane.b32.xlu0 %v2507, 18
        %v5934 = vpop.permute.xlu0 %5933
        %5935 = vrot.lane.b32.xlu0 %v2605, 18
        %v5936 = vpop.permute.xlu0 %5935
        %5937 = vrot.lane.b32.xlu0 %v2703, 18
        %v5938 = vpop.permute.xlu0 %5937
        %5939 = vrot.lane.b32.xlu0 %v2801, 18
        %v5940 = vpop.permute.xlu0 %5939
        %5941 = vrot.lane.b32.xlu0 %v2899, 18
        %v5942 = vpop.permute.xlu0 %5941
        %5943 = vrot.lane.b32.xlu0 %v2997, 18
        %v5944 = vpop.permute.xlu0 %5943
        %5945 = vrot.lane.b32.xlu0 %v3095, 18
        %v5946 = vpop.permute.xlu0 %5945
        %5947 = vrot.lane.b32.xlu0 %v3193, 18
        %v5948 = vpop.permute.xlu0 %5947
        %5949 = vrot.lane.b32.xlu0 %v3291, 18
        %v5950 = vpop.permute.xlu0 %5949
        %5951 = vrot.lane.b32.xlu0 %v3389, 18
        %v5952 = vpop.permute.xlu0 %5951
        %5953 = vrot.lane.b32.xlu0 %v3487, 18
        %v5954 = vpop.permute.xlu0 %5953
        %5955 = vrot.lane.b32.xlu0 %v3585, 18
        %v5956 = vpop.permute.xlu0 %5955
        %5957 = vrot.lane.b32.xlu0 %v3683, 18
        %v5958 = vpop.permute.xlu0 %5957
        %5959 = vrot.lane.b32.xlu0 %v3781, 18
        %v5960 = vpop.permute.xlu0 %5959
        %5961 = vrot.lane.b32.xlu0 %v3879, 18
        %v5962 = vpop.permute.xlu0 %5961
        %5963 = vrot.lane.b32.xlu0 %v3977, 18
        %v5964 = vpop.permute.xlu0 %5963
        %5965 = vrot.lane.b32.xlu0 %v4075, 18
        %v5966 = vpop.permute.xlu0 %5965
        %5967 = vrot.lane.b32.xlu0 %v4173, 18
        %v5968 = vpop.permute.xlu0 %5967
        %5969 = vrot.lane.b32.xlu0 %v4271, 18
        %v5970 = vpop.permute.xlu0 %5969
        %5971 = vrot.lane.b32.xlu0 %v4369, 18
        %v5972 = vpop.permute.xlu0 %5971
        %5973 = vrot.lane.b32.xlu0 %v4467, 18
        %v5974 = vpop.permute.xlu0 %5973
        %5975 = vrot.lane.b32.xlu0 %v4565, 18
        %v5976 = vpop.permute.xlu0 %5975
        %5977 = vrot.lane.b32.xlu0 %v4663, 18
        %v5978 = vpop.permute.xlu0 %5977
        %5979 = vrot.lane.b32.xlu0 %v4761, 18
        %v5980 = vpop.permute.xlu0 %5979
        %5981 = vrot.lane.b32.xlu0 %v4859, 18
        %v5982 = vpop.permute.xlu0 %5981
        %6047 = vrot.lane.b32.xlu0 %v1805, 20
        %v6048 = vpop.permute.xlu0 %6047
        %6049 = vrot.lane.b32.xlu0 %v1903, 20
        %v6050 = vpop.permute.xlu0 %6049
        %6051 = vrot.lane.b32.xlu0 %v2001, 20
        %v6052 = vpop.permute.xlu0 %6051
        %6053 = vrot.lane.b32.xlu0 %v2099, 20
        %v6054 = vpop.permute.xlu0 %6053
        %6055 = vrot.lane.b32.xlu0 %v2197, 20
        %v6056 = vpop.permute.xlu0 %6055
        %6057 = vrot.lane.b32.xlu0 %v2295, 20
        %v6058 = vpop.permute.xlu0 %6057
        %6059 = vrot.lane.b32.xlu0 %v2393, 20
        %v6060 = vpop.permute.xlu0 %6059
        %6061 = vrot.lane.b32.xlu0 %v2491, 20
        %v6062 = vpop.permute.xlu0 %6061
        %6063 = vrot.lane.b32.xlu0 %v2589, 20
        %v6064 = vpop.permute.xlu0 %6063
        %6065 = vrot.lane.b32.xlu0 %v2687, 20
        %v6066 = vpop.permute.xlu0 %6065
        %6067 = vrot.lane.b32.xlu0 %v2785, 20
        %v6068 = vpop.permute.xlu0 %6067
        %6069 = vrot.lane.b32.xlu0 %v2883, 20
        %v6070 = vpop.permute.xlu0 %6069
        %6071 = vrot.lane.b32.xlu0 %v2981, 20
        %v6072 = vpop.permute.xlu0 %6071
        %6073 = vrot.lane.b32.xlu0 %v3079, 20
        %v6074 = vpop.permute.xlu0 %6073
        %6075 = vrot.lane.b32.xlu0 %v3177, 20
        %v6076 = vpop.permute.xlu0 %6075
        %6077 = vrot.lane.b32.xlu0 %v3275, 20
        %v6078 = vpop.permute.xlu0 %6077
        %6079 = vrot.lane.b32.xlu0 %v3373, 20
        %v6080 = vpop.permute.xlu0 %6079
        %6081 = vrot.lane.b32.xlu0 %v3471, 20
        %v6082 = vpop.permute.xlu0 %6081
        %6083 = vrot.lane.b32.xlu0 %v3569, 20
        %v6084 = vpop.permute.xlu0 %6083
        %6085 = vrot.lane.b32.xlu0 %v3667, 20
        %v6086 = vpop.permute.xlu0 %6085
        %6087 = vrot.lane.b32.xlu0 %v3765, 20
        %v6088 = vpop.permute.xlu0 %6087
        %6089 = vrot.lane.b32.xlu0 %v3863, 20
        %v6090 = vpop.permute.xlu0 %6089
        %6091 = vrot.lane.b32.xlu0 %v3961, 20
        %v6092 = vpop.permute.xlu0 %6091
        %6093 = vrot.lane.b32.xlu0 %v4059, 20
        %v6094 = vpop.permute.xlu0 %6093
        %6095 = vrot.lane.b32.xlu0 %v4157, 20
        %v6096 = vpop.permute.xlu0 %6095
        %6097 = vrot.lane.b32.xlu0 %v4255, 20
        %v6098 = vpop.permute.xlu0 %6097
        %6099 = vrot.lane.b32.xlu0 %v4353, 20
        %v6100 = vpop.permute.xlu0 %6099
        %6101 = vrot.lane.b32.xlu0 %v4451, 20
        %v6102 = vpop.permute.xlu0 %6101
        %6103 = vrot.lane.b32.xlu0 %v4549, 20
        %v6104 = vpop.permute.xlu0 %6103
        %6105 = vrot.lane.b32.xlu0 %v4647, 20
        %v6106 = vpop.permute.xlu0 %6105
        %6107 = vrot.lane.b32.xlu0 %v4745, 20
        %v6108 = vpop.permute.xlu0 %6107
        %6109 = vrot.lane.b32.xlu0 %v4843, 20
        %v6110 = vpop.permute.xlu0 %6109
        %6175 = vrot.lane.b32.xlu0 %v1822, 22
        %v6176 = vpop.permute.xlu0 %6175
        %6177 = vrot.lane.b32.xlu0 %v1920, 22
        %v6178 = vpop.permute.xlu0 %6177
        %6179 = vrot.lane.b32.xlu0 %v2018, 22
        %v6180 = vpop.permute.xlu0 %6179
        %6181 = vrot.lane.b32.xlu0 %v2116, 22
        %v6182 = vpop.permute.xlu0 %6181
        %6183 = vrot.lane.b32.xlu0 %v2214, 22
        %v6184 = vpop.permute.xlu0 %6183
        %6185 = vrot.lane.b32.xlu0 %v2312, 22
        %v6186 = vpop.permute.xlu0 %6185
        %6187 = vrot.lane.b32.xlu0 %v2410, 22
        %v6188 = vpop.permute.xlu0 %6187
        %6189 = vrot.lane.b32.xlu0 %v2508, 22
        %v6190 = vpop.permute.xlu0 %6189
        %6191 = vrot.lane.b32.xlu0 %v2606, 22
        %v6192 = vpop.permute.xlu0 %6191
        %6193 = vrot.lane.b32.xlu0 %v2704, 22
        %v6194 = vpop.permute.xlu0 %6193
        %6195 = vrot.lane.b32.xlu0 %v2802, 22
        %v6196 = vpop.permute.xlu0 %6195
        %6197 = vrot.lane.b32.xlu0 %v2900, 22
        %v6198 = vpop.permute.xlu0 %6197
        %6199 = vrot.lane.b32.xlu0 %v2998, 22
        %v6200 = vpop.permute.xlu0 %6199
        %6201 = vrot.lane.b32.xlu0 %v3096, 22
        %v6202 = vpop.permute.xlu0 %6201
        %6203 = vrot.lane.b32.xlu0 %v3194, 22
        %v6204 = vpop.permute.xlu0 %6203
        %6205 = vrot.lane.b32.xlu0 %v3292, 22
        %v6206 = vpop.permute.xlu0 %6205
        %6207 = vrot.lane.b32.xlu0 %v3390, 22
        %v6208 = vpop.permute.xlu0 %6207
        %6209 = vrot.lane.b32.xlu0 %v3488, 22
        %v6210 = vpop.permute.xlu0 %6209
        %6211 = vrot.lane.b32.xlu0 %v3586, 22
        %v6212 = vpop.permute.xlu0 %6211
        %6213 = vrot.lane.b32.xlu0 %v3684, 22
        %v6214 = vpop.permute.xlu0 %6213
        %6215 = vrot.lane.b32.xlu0 %v3782, 22
        %v6216 = vpop.permute.xlu0 %6215
        %6217 = vrot.lane.b32.xlu0 %v3880, 22
        %v6218 = vpop.permute.xlu0 %6217
        %6219 = vrot.lane.b32.xlu0 %v3978, 22
        %v6220 = vpop.permute.xlu0 %6219
        %6221 = vrot.lane.b32.xlu0 %v4076, 22
        %v6222 = vpop.permute.xlu0 %6221
        %6223 = vrot.lane.b32.xlu0 %v4174, 22
        %v6224 = vpop.permute.xlu0 %6223
        %6225 = vrot.lane.b32.xlu0 %v4272, 22
        %v6226 = vpop.permute.xlu0 %6225
        %6227 = vrot.lane.b32.xlu0 %v4370, 22
        %v6228 = vpop.permute.xlu0 %6227
        %6229 = vrot.lane.b32.xlu0 %v4468, 22
        %v6230 = vpop.permute.xlu0 %6229
        %6231 = vrot.lane.b32.xlu0 %v4566, 22
        %v6232 = vpop.permute.xlu0 %6231
        %6233 = vrot.lane.b32.xlu0 %v4664, 22
        %v6234 = vpop.permute.xlu0 %6233
        %6235 = vrot.lane.b32.xlu0 %v4762, 22
        %v6236 = vpop.permute.xlu0 %6235
        %6237 = vrot.lane.b32.xlu0 %v4860, 22
        %v6238 = vpop.permute.xlu0 %6237
        %6303 = vrot.lane.b32.xlu0 %v1813, 24
        %v6304 = vpop.permute.xlu0 %6303
        %6305 = vrot.lane.b32.xlu0 %v1911, 24
        %v6306 = vpop.permute.xlu0 %6305
        %6307 = vrot.lane.b32.xlu0 %v2009, 24
        %v6308 = vpop.permute.xlu0 %6307
        %6309 = vrot.lane.b32.xlu0 %v2107, 24
        %v6310 = vpop.permute.xlu0 %6309
        %6311 = vrot.lane.b32.xlu0 %v2205, 24
        %v6312 = vpop.permute.xlu0 %6311
        %6313 = vrot.lane.b32.xlu0 %v2303, 24
        %v6314 = vpop.permute.xlu0 %6313
        %6315 = vrot.lane.b32.xlu0 %v2401, 24
        %v6316 = vpop.permute.xlu0 %6315
        %6317 = vrot.lane.b32.xlu0 %v2499, 24
        %v6318 = vpop.permute.xlu0 %6317
        %6319 = vrot.lane.b32.xlu0 %v2597, 24
        %v6320 = vpop.permute.xlu0 %6319
        %6321 = vrot.lane.b32.xlu0 %v2695, 24
        %v6322 = vpop.permute.xlu0 %6321
        %6323 = vrot.lane.b32.xlu0 %v2793, 24
        %v6324 = vpop.permute.xlu0 %6323
        %6325 = vrot.lane.b32.xlu0 %v2891, 24
        %v6326 = vpop.permute.xlu0 %6325
        %6327 = vrot.lane.b32.xlu0 %v2989, 24
        %v6328 = vpop.permute.xlu0 %6327
        %6329 = vrot.lane.b32.xlu0 %v3087, 24
        %v6330 = vpop.permute.xlu0 %6329
        %6331 = vrot.lane.b32.xlu0 %v3185, 24
        %v6332 = vpop.permute.xlu0 %6331
        %6333 = vrot.lane.b32.xlu0 %v3283, 24
        %v6334 = vpop.permute.xlu0 %6333
        %6335 = vrot.lane.b32.xlu0 %v3381, 24
        %v6336 = vpop.permute.xlu0 %6335
        %6337 = vrot.lane.b32.xlu0 %v3479, 24
        %v6338 = vpop.permute.xlu0 %6337
        %6339 = vrot.lane.b32.xlu0 %v3577, 24
        %v6340 = vpop.permute.xlu0 %6339
        %6341 = vrot.lane.b32.xlu0 %v3675, 24
        %v6342 = vpop.permute.xlu0 %6341
        %6343 = vrot.lane.b32.xlu0 %v3773, 24
        %v6344 = vpop.permute.xlu0 %6343
        %6345 = vrot.lane.b32.xlu0 %v3871, 24
        %v6346 = vpop.permute.xlu0 %6345
        %6347 = vrot.lane.b32.xlu0 %v3969, 24
        %v6348 = vpop.permute.xlu0 %6347
        %6349 = vrot.lane.b32.xlu0 %v4067, 24
        %v6350 = vpop.permute.xlu0 %6349
        %6351 = vrot.lane.b32.xlu0 %v4165, 24
        %v6352 = vpop.permute.xlu0 %6351
        %6353 = vrot.lane.b32.xlu0 %v4263, 24
        %v6354 = vpop.permute.xlu0 %6353
        %6355 = vrot.lane.b32.xlu0 %v4361, 24
        %v6356 = vpop.permute.xlu0 %6355
        %6357 = vrot.lane.b32.xlu0 %v4459, 24
        %v6358 = vpop.permute.xlu0 %6357
        %6359 = vrot.lane.b32.xlu0 %v4557, 24
        %v6360 = vpop.permute.xlu0 %6359
        %6361 = vrot.lane.b32.xlu0 %v4655, 24
        %v6362 = vpop.permute.xlu0 %6361
        %6363 = vrot.lane.b32.xlu0 %v4753, 24
        %v6364 = vpop.permute.xlu0 %6363
        %6365 = vrot.lane.b32.xlu0 %v4851, 24
        %v6366 = vpop.permute.xlu0 %6365
        %6431 = vrot.lane.b32.xlu0 %v1823, 26
        %v6432 = vpop.permute.xlu0 %6431
        %6433 = vrot.lane.b32.xlu0 %v1921, 26
        %v6434 = vpop.permute.xlu0 %6433
        %6435 = vrot.lane.b32.xlu0 %v2019, 26
        %v6436 = vpop.permute.xlu0 %6435
        %6437 = vrot.lane.b32.xlu0 %v2117, 26
        %v6438 = vpop.permute.xlu0 %6437
        %6439 = vrot.lane.b32.xlu0 %v2215, 26
        %v6440 = vpop.permute.xlu0 %6439
        %6441 = vrot.lane.b32.xlu0 %v2313, 26
        %v6442 = vpop.permute.xlu0 %6441
        %6443 = vrot.lane.b32.xlu0 %v2411, 26
        %v6444 = vpop.permute.xlu0 %6443
        %6445 = vrot.lane.b32.xlu0 %v2509, 26
        %v6446 = vpop.permute.xlu0 %6445
        %6447 = vrot.lane.b32.xlu0 %v2607, 26
        %v6448 = vpop.permute.xlu0 %6447
        %6449 = vrot.lane.b32.xlu0 %v2705, 26
        %v6450 = vpop.permute.xlu0 %6449
        %6451 = vrot.lane.b32.xlu0 %v2803, 26
        %v6452 = vpop.permute.xlu0 %6451
        %6453 = vrot.lane.b32.xlu0 %v2901, 26
        %v6454 = vpop.permute.xlu0 %6453
        %6455 = vrot.lane.b32.xlu0 %v2999, 26
        %v6456 = vpop.permute.xlu0 %6455
        %6457 = vrot.lane.b32.xlu0 %v3097, 26
        %v6458 = vpop.permute.xlu0 %6457
        %6459 = vrot.lane.b32.xlu0 %v3195, 26
        %v6460 = vpop.permute.xlu0 %6459
        %6461 = vrot.lane.b32.xlu0 %v3293, 26
        %v6462 = vpop.permute.xlu0 %6461
        %6463 = vrot.lane.b32.xlu0 %v3391, 26
        %v6464 = vpop.permute.xlu0 %6463
        %6465 = vrot.lane.b32.xlu0 %v3489, 26
        %v6466 = vpop.permute.xlu0 %6465
        %6467 = vrot.lane.b32.xlu0 %v3587, 26
        %v6468 = vpop.permute.xlu0 %6467
        %6469 = vrot.lane.b32.xlu0 %v3685, 26
        %v6470 = vpop.permute.xlu0 %6469
        %6471 = vrot.lane.b32.xlu0 %v3783, 26
        %v6472 = vpop.permute.xlu0 %6471
        %6473 = vrot.lane.b32.xlu0 %v3881, 26
        %v6474 = vpop.permute.xlu0 %6473
        %6475 = vrot.lane.b32.xlu0 %v3979, 26
        %v6476 = vpop.permute.xlu0 %6475
        %6477 = vrot.lane.b32.xlu0 %v4077, 26
        %v6478 = vpop.permute.xlu0 %6477
        %6479 = vrot.lane.b32.xlu0 %v4175, 26
        %v6480 = vpop.permute.xlu0 %6479
        %6481 = vrot.lane.b32.xlu0 %v4273, 26
        %v6482 = vpop.permute.xlu0 %6481
        %6483 = vrot.lane.b32.xlu0 %v4371, 26
        %v6484 = vpop.permute.xlu0 %6483
        %6485 = vrot.lane.b32.xlu0 %v4469, 26
        %v6486 = vpop.permute.xlu0 %6485
        %6487 = vrot.lane.b32.xlu0 %v4567, 26
        %v6488 = vpop.permute.xlu0 %6487
        %6489 = vrot.lane.b32.xlu0 %v4665, 26
        %v6490 = vpop.permute.xlu0 %6489
        %6491 = vrot.lane.b32.xlu0 %v4763, 26
        %v6492 = vpop.permute.xlu0 %6491
        %6493 = vrot.lane.b32.xlu0 %v4861, 26
        %v6494 = vpop.permute.xlu0 %6493
        %6559 = vrot.lane.b32.xlu0 %v1820, 28
        %v6560 = vpop.permute.xlu0 %6559
        %6561 = vrot.lane.b32.xlu0 %v1918, 28
        %v6562 = vpop.permute.xlu0 %6561
        %6563 = vrot.lane.b32.xlu0 %v2016, 28
        %v6564 = vpop.permute.xlu0 %6563
        %6565 = vrot.lane.b32.xlu0 %v2114, 28
        %v6566 = vpop.permute.xlu0 %6565
        %6567 = vrot.lane.b32.xlu0 %v2212, 28
        %v6568 = vpop.permute.xlu0 %6567
        %6569 = vrot.lane.b32.xlu0 %v2310, 28
        %v6570 = vpop.permute.xlu0 %6569
        %6571 = vrot.lane.b32.xlu0 %v2408, 28
        %v6572 = vpop.permute.xlu0 %6571
        %6573 = vrot.lane.b32.xlu0 %v2506, 28
        %v6574 = vpop.permute.xlu0 %6573
        %6575 = vrot.lane.b32.xlu0 %v2604, 28
        %v6576 = vpop.permute.xlu0 %6575
        %6577 = vrot.lane.b32.xlu0 %v2702, 28
        %v6578 = vpop.permute.xlu0 %6577
        %6579 = vrot.lane.b32.xlu0 %v2800, 28
        %v6580 = vpop.permute.xlu0 %6579
        %6581 = vrot.lane.b32.xlu0 %v2898, 28
        %v6582 = vpop.permute.xlu0 %6581
        %6583 = vrot.lane.b32.xlu0 %v2996, 28
        %v6584 = vpop.permute.xlu0 %6583
        %6585 = vrot.lane.b32.xlu0 %v3094, 28
        %v6586 = vpop.permute.xlu0 %6585
        %6587 = vrot.lane.b32.xlu0 %v3192, 28
        %v6588 = vpop.permute.xlu0 %6587
        %6589 = vrot.lane.b32.xlu0 %v3290, 28
        %v6590 = vpop.permute.xlu0 %6589
        %6591 = vrot.lane.b32.xlu0 %v3388, 28
        %v6592 = vpop.permute.xlu0 %6591
        %6593 = vrot.lane.b32.xlu0 %v3486, 28
        %v6594 = vpop.permute.xlu0 %6593
        %6595 = vrot.lane.b32.xlu0 %v3584, 28
        %v6596 = vpop.permute.xlu0 %6595
        %6597 = vrot.lane.b32.xlu0 %v3682, 28
        %v6598 = vpop.permute.xlu0 %6597
        %6599 = vrot.lane.b32.xlu0 %v3780, 28
        %v6600 = vpop.permute.xlu0 %6599
        %6601 = vrot.lane.b32.xlu0 %v3878, 28
        %v6602 = vpop.permute.xlu0 %6601
        %6603 = vrot.lane.b32.xlu0 %v3976, 28
        %v6604 = vpop.permute.xlu0 %6603
        %6605 = vrot.lane.b32.xlu0 %v4074, 28
        %v6606 = vpop.permute.xlu0 %6605
        %6607 = vrot.lane.b32.xlu0 %v4172, 28
        %v6608 = vpop.permute.xlu0 %6607
        %6609 = vrot.lane.b32.xlu0 %v4270, 28
        %v6610 = vpop.permute.xlu0 %6609
        %6611 = vrot.lane.b32.xlu0 %v4368, 28
        %v6612 = vpop.permute.xlu0 %6611
        %6613 = vrot.lane.b32.xlu0 %v4466, 28
        %v6614 = vpop.permute.xlu0 %6613
        %6615 = vrot.lane.b32.xlu0 %v4564, 28
        %v6616 = vpop.permute.xlu0 %6615
        %6617 = vrot.lane.b32.xlu0 %v4662, 28
        %v6618 = vpop.permute.xlu0 %6617
        %6619 = vrot.lane.b32.xlu0 %v4760, 28
        %v6620 = vpop.permute.xlu0 %6619
        %6621 = vrot.lane.b32.xlu0 %v4858, 28
        %v6622 = vpop.permute.xlu0 %6621
        %6687 = vrot.lane.b32.xlu0 %v1824, 30
        %v6688 = vpop.permute.xlu0 %6687
        %6689 = vrot.lane.b32.xlu0 %v1922, 30
        %v6690 = vpop.permute.xlu0 %6689
        %6691 = vrot.lane.b32.xlu0 %v2020, 30
        %v6692 = vpop.permute.xlu0 %6691
        %6693 = vrot.lane.b32.xlu0 %v2118, 30
        %v6694 = vpop.permute.xlu0 %6693
        %6695 = vrot.lane.b32.xlu0 %v2216, 30
        %v6696 = vpop.permute.xlu0 %6695
        %6697 = vrot.lane.b32.xlu0 %v2314, 30
        %v6698 = vpop.permute.xlu0 %6697
        %6699 = vrot.lane.b32.xlu0 %v2412, 30
        %v6700 = vpop.permute.xlu0 %6699
        %6701 = vrot.lane.b32.xlu0 %v2510, 30
        %v6702 = vpop.permute.xlu0 %6701
        %6703 = vrot.lane.b32.xlu0 %v2608, 30
        %v6704 = vpop.permute.xlu0 %6703
        %6705 = vrot.lane.b32.xlu0 %v2706, 30
        %v6706 = vpop.permute.xlu0 %6705
        %6707 = vrot.lane.b32.xlu0 %v2804, 30
        %v6708 = vpop.permute.xlu0 %6707
        %6709 = vrot.lane.b32.xlu0 %v2902, 30
        %v6710 = vpop.permute.xlu0 %6709
        %6711 = vrot.lane.b32.xlu0 %v3000, 30
        %v6712 = vpop.permute.xlu0 %6711
        %6713 = vrot.lane.b32.xlu0 %v3098, 30
        %v6714 = vpop.permute.xlu0 %6713
        %6715 = vrot.lane.b32.xlu0 %v3196, 30
        %v6716 = vpop.permute.xlu0 %6715
        %6717 = vrot.lane.b32.xlu0 %v3294, 30
        %v6718 = vpop.permute.xlu0 %6717
        %6719 = vrot.lane.b32.xlu0 %v3392, 30
        %v6720 = vpop.permute.xlu0 %6719
        %6721 = vrot.lane.b32.xlu0 %v3490, 30
        %v6722 = vpop.permute.xlu0 %6721
        %6723 = vrot.lane.b32.xlu0 %v3588, 30
        %v6724 = vpop.permute.xlu0 %6723
        %6725 = vrot.lane.b32.xlu0 %v3686, 30
        %v6726 = vpop.permute.xlu0 %6725
        %6727 = vrot.lane.b32.xlu0 %v3784, 30
        %v6728 = vpop.permute.xlu0 %6727
        %6729 = vrot.lane.b32.xlu0 %v3882, 30
        %v6730 = vpop.permute.xlu0 %6729
        %6731 = vrot.lane.b32.xlu0 %v3980, 30
        %v6732 = vpop.permute.xlu0 %6731
        %6733 = vrot.lane.b32.xlu0 %v4078, 30
        %v6734 = vpop.permute.xlu0 %6733
        %6735 = vrot.lane.b32.xlu0 %v4176, 30
        %v6736 = vpop.permute.xlu0 %6735
        %6737 = vrot.lane.b32.xlu0 %v4274, 30
        %v6738 = vpop.permute.xlu0 %6737
        %6739 = vrot.lane.b32.xlu0 %v4372, 30
        %v6740 = vpop.permute.xlu0 %6739
        %6741 = vrot.lane.b32.xlu0 %v4470, 30
        %v6742 = vpop.permute.xlu0 %6741
        %6743 = vrot.lane.b32.xlu0 %v4568, 30
        %v6744 = vpop.permute.xlu0 %6743
        %6745 = vrot.lane.b32.xlu0 %v4666, 30
        %v6746 = vpop.permute.xlu0 %6745
        %6747 = vrot.lane.b32.xlu0 %v4764, 30
        %v6748 = vpop.permute.xlu0 %6747
        %6749 = vrot.lane.b32.xlu0 %v4862, 30
        %v6750 = vpop.permute.xlu0 %6749
        %vm6783 = vcmask 15360
        %v6784 = vsel %vm6783, %v1749, %v4896
        %v6785 = vsel %vm6783, %v1847, %v4898
        %v6786 = vsel %vm6783, %v1945, %v4900
        %v6787 = vsel %vm6783, %v2043, %v4902
        %v6788 = vsel %vm6783, %v2141, %v4904
        %v6789 = vsel %vm6783, %v2239, %v4906
        %v6790 = vsel %vm6783, %v2337, %v4908
        %v6791 = vsel %vm6783, %v2435, %v4910
        %v6792 = vsel %vm6783, %v2533, %v4912
        %v6793 = vsel %vm6783, %v2631, %v4914
        %v6794 = vsel %vm6783, %v2729, %v4916
        %v6795 = vsel %vm6783, %v2827, %v4918
        %v6796 = vsel %vm6783, %v2925, %v4920
        %v6797 = vsel %vm6783, %v3023, %v4922
        %v6798 = vsel %vm6783, %v3121, %v4924
        %v6799 = vsel %vm6783, %v3219, %v4926
        %v6800 = vsel %vm6783, %v3317, %v4928
        %v6801 = vsel %vm6783, %v3415, %v4930
        %v6802 = vsel %vm6783, %v3513, %v4932
        %v6803 = vsel %vm6783, %v3611, %v4934
        %v6804 = vsel %vm6783, %v3709, %v4936
        %v6805 = vsel %vm6783, %v3807, %v4938
        %v6806 = vsel %vm6783, %v3905, %v4940
        %v6807 = vsel %vm6783, %v4003, %v4942
        %v6808 = vsel %vm6783, %v4101, %v4944
        %v6809 = vsel %vm6783, %v4199, %v4946
        %v6810 = vsel %vm6783, %v4297, %v4948
        %v6811 = vsel %vm6783, %v4395, %v4950
        %v6812 = vsel %vm6783, %v4493, %v4952
        %v6813 = vsel %vm6783, %v4591, %v4954
        %v6814 = vsel %vm6783, %v4689, %v4956
        %v6815 = vsel %vm6783, %v4787, %v4958
        %vm6816 = vcmask 31744
        %v6817 = vsel %vm6816, %v6784, %v5024
        %v6818 = vsel %vm6816, %v6785, %v5026
        %v6819 = vsel %vm6816, %v6786, %v5028
        %v6820 = vsel %vm6816, %v6787, %v5030
        %v6821 = vsel %vm6816, %v6788, %v5032
        %v6822 = vsel %vm6816, %v6789, %v5034
        %v6823 = vsel %vm6816, %v6790, %v5036
        %v6824 = vsel %vm6816, %v6791, %v5038
        %v6825 = vsel %vm6816, %v6792, %v5040
        %v6826 = vsel %vm6816, %v6793, %v5042
        %v6827 = vsel %vm6816, %v6794, %v5044
        %v6828 = vsel %vm6816, %v6795, %v5046
        %v6829 = vsel %vm6816, %v6796, %v5048
        %v6830 = vsel %vm6816, %v6797, %v5050
        %v6831 = vsel %vm6816, %v6798, %v5052
        %v6832 = vsel %vm6816, %v6799, %v5054
        %v6833 = vsel %vm6816, %v6800, %v5056
        %v6834 = vsel %vm6816, %v6801, %v5058
        %v6835 = vsel %vm6816, %v6802, %v5060
        %v6836 = vsel %vm6816, %v6803, %v5062
        %v6837 = vsel %vm6816, %v6804, %v5064
        %v6838 = vsel %vm6816, %v6805, %v5066
        %v6839 = vsel %vm6816, %v6806, %v5068
        %v6840 = vsel %vm6816, %v6807, %v5070
        %v6841 = vsel %vm6816, %v6808, %v5072
        %v6842 = vsel %vm6816, %v6809, %v5074
        %v6843 = vsel %vm6816, %v6810, %v5076
        %v6844 = vsel %vm6816, %v6811, %v5078
        %v6845 = vsel %vm6816, %v6812, %v5080
        %v6846 = vsel %vm6816, %v6813, %v5082
        %v6847 = vsel %vm6816, %v6814, %v5084
        %v6848 = vsel %vm6816, %v6815, %v5086
        %vm6849 = vcmask 48128
        %v6850 = vsel %vm6849, %v6817, %v5152
        %v6851 = vsel %vm6849, %v6818, %v5154
        %v6852 = vsel %vm6849, %v6819, %v5156
        %v6853 = vsel %vm6849, %v6820, %v5158
        %v6854 = vsel %vm6849, %v6821, %v5160
        %v6855 = vsel %vm6849, %v6822, %v5162
        %v6856 = vsel %vm6849, %v6823, %v5164
        %v6857 = vsel %vm6849, %v6824, %v5166
        %v6858 = vsel %vm6849, %v6825, %v5168
        %v6859 = vsel %vm6849, %v6826, %v5170
        %v6860 = vsel %vm6849, %v6827, %v5172
        %v6861 = vsel %vm6849, %v6828, %v5174
        %v6862 = vsel %vm6849, %v6829, %v5176
        %v6863 = vsel %vm6849, %v6830, %v5178
        %v6864 = vsel %vm6849, %v6831, %v5180
        %v6865 = vsel %vm6849, %v6832, %v5182
        %v6866 = vsel %vm6849, %v6833, %v5184
        %v6867 = vsel %vm6849, %v6834, %v5186
        %v6868 = vsel %vm6849, %v6835, %v5188
        %v6869 = vsel %vm6849, %v6836, %v5190
        %v6870 = vsel %vm6849, %v6837, %v5192
        %v6871 = vsel %vm6849, %v6838, %v5194
        %v6872 = vsel %vm6849, %v6839, %v5196
        %v6873 = vsel %vm6849, %v6840, %v5198
        %v6874 = vsel %vm6849, %v6841, %v5200
        %v6875 = vsel %vm6849, %v6842, %v5202
        %v6876 = vsel %vm6849, %v6843, %v5204
        %v6877 = vsel %vm6849, %v6844, %v5206
        %v6878 = vsel %vm6849, %v6845, %v5208
        %v6879 = vsel %vm6849, %v6846, %v5210
        %v6880 = vsel %vm6849, %v6847, %v5212
        %v6881 = vsel %vm6849, %v6848, %v5214
        %vm6882 = vcmask 64512
        %v6883 = vsel %vm6882, %v6850, %v5280
        %v6884 = vsel %vm6882, %v6851, %v5282
        %v6885 = vsel %vm6882, %v6852, %v5284
        %v6886 = vsel %vm6882, %v6853, %v5286
        %v6887 = vsel %vm6882, %v6854, %v5288
        %v6888 = vsel %vm6882, %v6855, %v5290
        %v6889 = vsel %vm6882, %v6856, %v5292
        %v6890 = vsel %vm6882, %v6857, %v5294
        %v6891 = vsel %vm6882, %v6858, %v5296
        %v6892 = vsel %vm6882, %v6859, %v5298
        %v6893 = vsel %vm6882, %v6860, %v5300
        %v6894 = vsel %vm6882, %v6861, %v5302
        %v6895 = vsel %vm6882, %v6862, %v5304
        %v6896 = vsel %vm6882, %v6863, %v5306
        %v6897 = vsel %vm6882, %v6864, %v5308
        %v6898 = vsel %vm6882, %v6865, %v5310
        %v6899 = vsel %vm6882, %v6866, %v5312
        %v6900 = vsel %vm6882, %v6867, %v5314
        %v6901 = vsel %vm6882, %v6868, %v5316
        %v6902 = vsel %vm6882, %v6869, %v5318
        %v6903 = vsel %vm6882, %v6870, %v5320
        %v6904 = vsel %vm6882, %v6871, %v5322
        %v6905 = vsel %vm6882, %v6872, %v5324
        %v6906 = vsel %vm6882, %v6873, %v5326
        %v6907 = vsel %vm6882, %v6874, %v5328
        %v6908 = vsel %vm6882, %v6875, %v5330
        %v6909 = vsel %vm6882, %v6876, %v5332
        %v6910 = vsel %vm6882, %v6877, %v5334
        %v6911 = vsel %vm6882, %v6878, %v5336
        %v6912 = vsel %vm6882, %v6879, %v5338
        %v6913 = vsel %vm6882, %v6880, %v5340
        %v6914 = vsel %vm6882, %v6881, %v5342
        %vm6915 = vcmask 80896
        %v6916 = vsel %vm6915, %v6883, %v5408
        %v6917 = vsel %vm6915, %v6884, %v5410
        %v6918 = vsel %vm6915, %v6885, %v5412
        %v6919 = vsel %vm6915, %v6886, %v5414
        %v6920 = vsel %vm6915, %v6887, %v5416
        %v6921 = vsel %vm6915, %v6888, %v5418
        %v6922 = vsel %vm6915, %v6889, %v5420
        %v6923 = vsel %vm6915, %v6890, %v5422
        %v6924 = vsel %vm6915, %v6891, %v5424
        %v6925 = vsel %vm6915, %v6892, %v5426
        %v6926 = vsel %vm6915, %v6893, %v5428
        %v6927 = vsel %vm6915, %v6894, %v5430
        %v6928 = vsel %vm6915, %v6895, %v5432
        %v6929 = vsel %vm6915, %v6896, %v5434
        %v6930 = vsel %vm6915, %v6897, %v5436
        %v6931 = vsel %vm6915, %v6898, %v5438
        %v6932 = vsel %vm6915, %v6899, %v5440
        %v6933 = vsel %vm6915, %v6900, %v5442
        %v6934 = vsel %vm6915, %v6901, %v5444
        %v6935 = vsel %vm6915, %v6902, %v5446
        %v6936 = vsel %vm6915, %v6903, %v5448
        %v6937 = vsel %vm6915, %v6904, %v5450
        %v6938 = vsel %vm6915, %v6905, %v5452
        %v6939 = vsel %vm6915, %v6906, %v5454
        %v6940 = vsel %vm6915, %v6907, %v5456
        %v6941 = vsel %vm6915, %v6908, %v5458
        %v6942 = vsel %vm6915, %v6909, %v5460
        %v6943 = vsel %vm6915, %v6910, %v5462
        %v6944 = vsel %vm6915, %v6911, %v5464
        %v6945 = vsel %vm6915, %v6912, %v5466
        %v6946 = vsel %vm6915, %v6913, %v5468
        %v6947 = vsel %vm6915, %v6914, %v5470
        %vm6948 = vcmask 97280
        %v6949 = vsel %vm6948, %v6916, %v5536
        %v6950 = vsel %vm6948, %v6917, %v5538
        %v6951 = vsel %vm6948, %v6918, %v5540
        %v6952 = vsel %vm6948, %v6919, %v5542
        %v6953 = vsel %vm6948, %v6920, %v5544
        %v6954 = vsel %vm6948, %v6921, %v5546
        %v6955 = vsel %vm6948, %v6922, %v5548
        %v6956 = vsel %vm6948, %v6923, %v5550
        %v6957 = vsel %vm6948, %v6924, %v5552
        %v6958 = vsel %vm6948, %v6925, %v5554
        %v6959 = vsel %vm6948, %v6926, %v5556
        %v6960 = vsel %vm6948, %v6927, %v5558
        %v6961 = vsel %vm6948, %v6928, %v5560
        %v6962 = vsel %vm6948, %v6929, %v5562
        %v6963 = vsel %vm6948, %v6930, %v5564
        %v6964 = vsel %vm6948, %v6931, %v5566
        %v6965 = vsel %vm6948, %v6932, %v5568
        %v6966 = vsel %vm6948, %v6933, %v5570
        %v6967 = vsel %vm6948, %v6934, %v5572
        %v6968 = vsel %vm6948, %v6935, %v5574
        %v6969 = vsel %vm6948, %v6936, %v5576
        %v6970 = vsel %vm6948, %v6937, %v5578
        %v6971 = vsel %vm6948, %v6938, %v5580
        %v6972 = vsel %vm6948, %v6939, %v5582
        %v6973 = vsel %vm6948, %v6940, %v5584
        %v6974 = vsel %vm6948, %v6941, %v5586
        %v6975 = vsel %vm6948, %v6942, %v5588
        %v6976 = vsel %vm6948, %v6943, %v5590
        %v6977 = vsel %vm6948, %v6944, %v5592
        %v6978 = vsel %vm6948, %v6945, %v5594
        %v6979 = vsel %vm6948, %v6946, %v5596
        %v6980 = vsel %vm6948, %v6947, %v5598
        %vm6981 = vcmask 113664
        %v6982 = vsel %vm6981, %v6949, %v5664
        %v6983 = vsel %vm6981, %v6950, %v5666
        %v6984 = vsel %vm6981, %v6951, %v5668
        %v6985 = vsel %vm6981, %v6952, %v5670
        %v6986 = vsel %vm6981, %v6953, %v5672
        %v6987 = vsel %vm6981, %v6954, %v5674
        %v6988 = vsel %vm6981, %v6955, %v5676
        %v6989 = vsel %vm6981, %v6956, %v5678
        %v6990 = vsel %vm6981, %v6957, %v5680
        %v6991 = vsel %vm6981, %v6958, %v5682
        %v6992 = vsel %vm6981, %v6959, %v5684
        %v6993 = vsel %vm6981, %v6960, %v5686
        %v6994 = vsel %vm6981, %v6961, %v5688
        %v6995 = vsel %vm6981, %v6962, %v5690
        %v6996 = vsel %vm6981, %v6963, %v5692
        %v6997 = vsel %vm6981, %v6964, %v5694
        %v6998 = vsel %vm6981, %v6965, %v5696
        %v6999 = vsel %vm6981, %v6966, %v5698
        %v7000 = vsel %vm6981, %v6967, %v5700
        %v7001 = vsel %vm6981, %v6968, %v5702
        %v7002 = vsel %vm6981, %v6969, %v5704
        %v7003 = vsel %vm6981, %v6970, %v5706
        %v7004 = vsel %vm6981, %v6971, %v5708
        %v7005 = vsel %vm6981, %v6972, %v5710
        %v7006 = vsel %vm6981, %v6973, %v5712
        %v7007 = vsel %vm6981, %v6974, %v5714
        %v7008 = vsel %vm6981, %v6975, %v5716
        %v7009 = vsel %vm6981, %v6976, %v5718
        %v7010 = vsel %vm6981, %v6977, %v5720
        %v7011 = vsel %vm6981, %v6978, %v5722
        %v7012 = vsel %vm6981, %v6979, %v5724
        %v7013 = vsel %vm6981, %v6980, %v5726
        %vm7014 = vcmask 130048
        %v7015 = vsel %vm7014, %v6982, %v5792
        %v7016 = vsel %vm7014, %v6983, %v5794
        %v7017 = vsel %vm7014, %v6984, %v5796
        %v7018 = vsel %vm7014, %v6985, %v5798
        %v7019 = vsel %vm7014, %v6986, %v5800
        %v7020 = vsel %vm7014, %v6987, %v5802
        %v7021 = vsel %vm7014, %v6988, %v5804
        %v7022 = vsel %vm7014, %v6989, %v5806
        %v7023 = vsel %vm7014, %v6990, %v5808
        %v7024 = vsel %vm7014, %v6991, %v5810
        %v7025 = vsel %vm7014, %v6992, %v5812
        %v7026 = vsel %vm7014, %v6993, %v5814
        %v7027 = vsel %vm7014, %v6994, %v5816
        %v7028 = vsel %vm7014, %v6995, %v5818
        %v7029 = vsel %vm7014, %v6996, %v5820
        %v7030 = vsel %vm7014, %v6997, %v5822
        %v7031 = vsel %vm7014, %v6998, %v5824
        %v7032 = vsel %vm7014, %v6999, %v5826
        %v7033 = vsel %vm7014, %v7000, %v5828
        %v7034 = vsel %vm7014, %v7001, %v5830
        %v7035 = vsel %vm7014, %v7002, %v5832
        %v7036 = vsel %vm7014, %v7003, %v5834
        %v7037 = vsel %vm7014, %v7004, %v5836
        %v7038 = vsel %vm7014, %v7005, %v5838
        %v7039 = vsel %vm7014, %v7006, %v5840
        %v7040 = vsel %vm7014, %v7007, %v5842
        %v7041 = vsel %vm7014, %v7008, %v5844
        %v7042 = vsel %vm7014, %v7009, %v5846
        %v7043 = vsel %vm7014, %v7010, %v5848
        %v7044 = vsel %vm7014, %v7011, %v5850
        %v7045 = vsel %vm7014, %v7012, %v5852
        %v7046 = vsel %vm7014, %v7013, %v5854
        %vm7047 = vcmask 146432
        %v7048 = vsel %vm7047, %v7015, %v5920
        %v7049 = vsel %vm7047, %v7016, %v5922
        %v7050 = vsel %vm7047, %v7017, %v5924
        %v7051 = vsel %vm7047, %v7018, %v5926
        %v7052 = vsel %vm7047, %v7019, %v5928
        %v7053 = vsel %vm7047, %v7020, %v5930
        %v7054 = vsel %vm7047, %v7021, %v5932
        %v7055 = vsel %vm7047, %v7022, %v5934
        %v7056 = vsel %vm7047, %v7023, %v5936
        %v7057 = vsel %vm7047, %v7024, %v5938
        %v7058 = vsel %vm7047, %v7025, %v5940
        %v7059 = vsel %vm7047, %v7026, %v5942
        %v7060 = vsel %vm7047, %v7027, %v5944
        %v7061 = vsel %vm7047, %v7028, %v5946
        %v7062 = vsel %vm7047, %v7029, %v5948
        %v7063 = vsel %vm7047, %v7030, %v5950
        %v7064 = vsel %vm7047, %v7031, %v5952
        %v7065 = vsel %vm7047, %v7032, %v5954
        %v7066 = vsel %vm7047, %v7033, %v5956
        %v7067 = vsel %vm7047, %v7034, %v5958
        %v7068 = vsel %vm7047, %v7035, %v5960
        %v7069 = vsel %vm7047, %v7036, %v5962
        %v7070 = vsel %vm7047, %v7037, %v5964
        %v7071 = vsel %vm7047, %v7038, %v5966
        %v7072 = vsel %vm7047, %v7039, %v5968
        %v7073 = vsel %vm7047, %v7040, %v5970
        %v7074 = vsel %vm7047, %v7041, %v5972
        %v7075 = vsel %vm7047, %v7042, %v5974
        %v7076 = vsel %vm7047, %v7043, %v5976
        %v7077 = vsel %vm7047, %v7044, %v5978
        %v7078 = vsel %vm7047, %v7045, %v5980
        %v7079 = vsel %vm7047, %v7046, %v5982
        %vm7080 = vcmask 162816
        %v7081 = vsel %vm7080, %v7048, %v6048
        %v7082 = vsel %vm7080, %v7049, %v6050
        %v7083 = vsel %vm7080, %v7050, %v6052
        %v7084 = vsel %vm7080, %v7051, %v6054
        %v7085 = vsel %vm7080, %v7052, %v6056
        %v7086 = vsel %vm7080, %v7053, %v6058
        %v7087 = vsel %vm7080, %v7054, %v6060
        %v7088 = vsel %vm7080, %v7055, %v6062
        %v7089 = vsel %vm7080, %v7056, %v6064
        %v7090 = vsel %vm7080, %v7057, %v6066
        %v7091 = vsel %vm7080, %v7058, %v6068
        %v7092 = vsel %vm7080, %v7059, %v6070
        %v7093 = vsel %vm7080, %v7060, %v6072
        %v7094 = vsel %vm7080, %v7061, %v6074
        %v7095 = vsel %vm7080, %v7062, %v6076
        %v7096 = vsel %vm7080, %v7063, %v6078
        %v7097 = vsel %vm7080, %v7064, %v6080
        %v7098 = vsel %vm7080, %v7065, %v6082
        %v7099 = vsel %vm7080, %v7066, %v6084
        %v7100 = vsel %vm7080, %v7067, %v6086
        %v7101 = vsel %vm7080, %v7068, %v6088
        %v7102 = vsel %vm7080, %v7069, %v6090
        %v7103 = vsel %vm7080, %v7070, %v6092
        %v7104 = vsel %vm7080, %v7071, %v6094
        %v7105 = vsel %vm7080, %v7072, %v6096
        %v7106 = vsel %vm7080, %v7073, %v6098
        %v7107 = vsel %vm7080, %v7074, %v6100
        %v7108 = vsel %vm7080, %v7075, %v6102
        %v7109 = vsel %vm7080, %v7076, %v6104
        %v7110 = vsel %vm7080, %v7077, %v6106
        %v7111 = vsel %vm7080, %v7078, %v6108
        %v7112 = vsel %vm7080, %v7079, %v6110
        %vm7113 = vcmask 179200
        %v7114 = vsel %vm7113, %v7081, %v6176
        %v7115 = vsel %vm7113, %v7082, %v6178
        %v7116 = vsel %vm7113, %v7083, %v6180
        %v7117 = vsel %vm7113, %v7084, %v6182
        %v7118 = vsel %vm7113, %v7085, %v6184
        %v7119 = vsel %vm7113, %v7086, %v6186
        %v7120 = vsel %vm7113, %v7087, %v6188
        %v7121 = vsel %vm7113, %v7088, %v6190
        %v7122 = vsel %vm7113, %v7089, %v6192
        %v7123 = vsel %vm7113, %v7090, %v6194
        %v7124 = vsel %vm7113, %v7091, %v6196
        %v7125 = vsel %vm7113, %v7092, %v6198
        %v7126 = vsel %vm7113, %v7093, %v6200
        %v7127 = vsel %vm7113, %v7094, %v6202
        %v7128 = vsel %vm7113, %v7095, %v6204
        %v7129 = vsel %vm7113, %v7096, %v6206
        %v7130 = vsel %vm7113, %v7097, %v6208
        %v7131 = vsel %vm7113, %v7098, %v6210
        %v7132 = vsel %vm7113, %v7099, %v6212
        %v7133 = vsel %vm7113, %v7100, %v6214
        %v7134 = vsel %vm7113, %v7101, %v6216
        %v7135 = vsel %vm7113, %v7102, %v6218
        %v7136 = vsel %vm7113, %v7103, %v6220
        %v7137 = vsel %vm7113, %v7104, %v6222
        %v7138 = vsel %vm7113, %v7105, %v6224
        %v7139 = vsel %vm7113, %v7106, %v6226
        %v7140 = vsel %vm7113, %v7107, %v6228
        %v7141 = vsel %vm7113, %v7108, %v6230
        %v7142 = vsel %vm7113, %v7109, %v6232
        %v7143 = vsel %vm7113, %v7110, %v6234
        %v7144 = vsel %vm7113, %v7111, %v6236
        %v7145 = vsel %vm7113, %v7112, %v6238
        %vm7146 = vcmask 195584
        %v7147 = vsel %vm7146, %v7114, %v6304
        %v7148 = vsel %vm7146, %v7115, %v6306
        %v7149 = vsel %vm7146, %v7116, %v6308
        %v7150 = vsel %vm7146, %v7117, %v6310
        %v7151 = vsel %vm7146, %v7118, %v6312
        %v7152 = vsel %vm7146, %v7119, %v6314
        %v7153 = vsel %vm7146, %v7120, %v6316
        %v7154 = vsel %vm7146, %v7121, %v6318
        %v7155 = vsel %vm7146, %v7122, %v6320
        %v7156 = vsel %vm7146, %v7123, %v6322
        %v7157 = vsel %vm7146, %v7124, %v6324
        %v7158 = vsel %vm7146, %v7125, %v6326
        %v7159 = vsel %vm7146, %v7126, %v6328
        %v7160 = vsel %vm7146, %v7127, %v6330
        %v7161 = vsel %vm7146, %v7128, %v6332
        %v7162 = vsel %vm7146, %v7129, %v6334
        %v7163 = vsel %vm7146, %v7130, %v6336
        %v7164 = vsel %vm7146, %v7131, %v6338
        %v7165 = vsel %vm7146, %v7132, %v6340
        %v7166 = vsel %vm7146, %v7133, %v6342
        %v7167 = vsel %vm7146, %v7134, %v6344
        %v7168 = vsel %vm7146, %v7135, %v6346
        %v7169 = vsel %vm7146, %v7136, %v6348
        %v7170 = vsel %vm7146, %v7137, %v6350
        %v7171 = vsel %vm7146, %v7138, %v6352
        %v7172 = vsel %vm7146, %v7139, %v6354
        %v7173 = vsel %vm7146, %v7140, %v6356
        %v7174 = vsel %vm7146, %v7141, %v6358
        %v7175 = vsel %vm7146, %v7142, %v6360
        %v7176 = vsel %vm7146, %v7143, %v6362
        %v7177 = vsel %vm7146, %v7144, %v6364
        %v7178 = vsel %vm7146, %v7145, %v6366
        %vm7179 = vcmask 211968
        %v7180 = vsel %vm7179, %v7147, %v6432
        %v7181 = vsel %vm7179, %v7148, %v6434
        %v7182 = vsel %vm7179, %v7149, %v6436
        %v7183 = vsel %vm7179, %v7150, %v6438
        %v7184 = vsel %vm7179, %v7151, %v6440
        %v7185 = vsel %vm7179, %v7152, %v6442
        %v7186 = vsel %vm7179, %v7153, %v6444
        %v7187 = vsel %vm7179, %v7154, %v6446
        %v7188 = vsel %vm7179, %v7155, %v6448
        %v7189 = vsel %vm7179, %v7156, %v6450
        %v7190 = vsel %vm7179, %v7157, %v6452
        %v7191 = vsel %vm7179, %v7158, %v6454
        %v7192 = vsel %vm7179, %v7159, %v6456
        %v7193 = vsel %vm7179, %v7160, %v6458
        %v7194 = vsel %vm7179, %v7161, %v6460
        %v7195 = vsel %vm7179, %v7162, %v6462
        %v7196 = vsel %vm7179, %v7163, %v6464
        %v7197 = vsel %vm7179, %v7164, %v6466
        %v7198 = vsel %vm7179, %v7165, %v6468
        %v7199 = vsel %vm7179, %v7166, %v6470
        %v7200 = vsel %vm7179, %v7167, %v6472
        %v7201 = vsel %vm7179, %v7168, %v6474
        %v7202 = vsel %vm7179, %v7169, %v6476
        %v7203 = vsel %vm7179, %v7170, %v6478
        %v7204 = vsel %vm7179, %v7171, %v6480
        %v7205 = vsel %vm7179, %v7172, %v6482
        %v7206 = vsel %vm7179, %v7173, %v6484
        %v7207 = vsel %vm7179, %v7174, %v6486
        %v7208 = vsel %vm7179, %v7175, %v6488
        %v7209 = vsel %vm7179, %v7176, %v6490
        %v7210 = vsel %vm7179, %v7177, %v6492
        %v7211 = vsel %vm7179, %v7178, %v6494
        %vm7212 = vcmask 228352
        %v7213 = vsel %vm7212, %v7180, %v6560
        %v7214 = vsel %vm7212, %v7181, %v6562
        %v7215 = vsel %vm7212, %v7182, %v6564
        %v7216 = vsel %vm7212, %v7183, %v6566
        %v7217 = vsel %vm7212, %v7184, %v6568
        %v7218 = vsel %vm7212, %v7185, %v6570
        %v7219 = vsel %vm7212, %v7186, %v6572
        %v7220 = vsel %vm7212, %v7187, %v6574
        %v7221 = vsel %vm7212, %v7188, %v6576
        %v7222 = vsel %vm7212, %v7189, %v6578
        %v7223 = vsel %vm7212, %v7190, %v6580
        %v7224 = vsel %vm7212, %v7191, %v6582
        %v7225 = vsel %vm7212, %v7192, %v6584
        %v7226 = vsel %vm7212, %v7193, %v6586
        %v7227 = vsel %vm7212, %v7194, %v6588
        %v7228 = vsel %vm7212, %v7195, %v6590
        %v7229 = vsel %vm7212, %v7196, %v6592
        %v7230 = vsel %vm7212, %v7197, %v6594
        %v7231 = vsel %vm7212, %v7198, %v6596
        %v7232 = vsel %vm7212, %v7199, %v6598
        %v7233 = vsel %vm7212, %v7200, %v6600
        %v7234 = vsel %vm7212, %v7201, %v6602
        %v7235 = vsel %vm7212, %v7202, %v6604
        %v7236 = vsel %vm7212, %v7203, %v6606
        %v7237 = vsel %vm7212, %v7204, %v6608
        %v7238 = vsel %vm7212, %v7205, %v6610
        %v7239 = vsel %vm7212, %v7206, %v6612
        %v7240 = vsel %vm7212, %v7207, %v6614
        %v7241 = vsel %vm7212, %v7208, %v6616
        %v7242 = vsel %vm7212, %v7209, %v6618
        %v7243 = vsel %vm7212, %v7210, %v6620
        %v7244 = vsel %vm7212, %v7211, %v6622
        %vm7245 = vcmask 244736
        %v7246 = vsel %vm7245, %v7213, %v6688
        %v7247 = vsel %vm7245, %v7214, %v6690
        %v7248 = vsel %vm7245, %v7215, %v6692
        %v7249 = vsel %vm7245, %v7216, %v6694
        %v7250 = vsel %vm7245, %v7217, %v6696
        %v7251 = vsel %vm7245, %v7218, %v6698
        %v7252 = vsel %vm7245, %v7219, %v6700
        %v7253 = vsel %vm7245, %v7220, %v6702
        %v7254 = vsel %vm7245, %v7221, %v6704
        %v7255 = vsel %vm7245, %v7222, %v6706
        %v7256 = vsel %vm7245, %v7223, %v6708
        %v7257 = vsel %vm7245, %v7224, %v6710
        %v7258 = vsel %vm7245, %v7225, %v6712
        %v7259 = vsel %vm7245, %v7226, %v6714
        %v7260 = vsel %vm7245, %v7227, %v6716
        %v7261 = vsel %vm7245, %v7228, %v6718
        %v7262 = vsel %vm7245, %v7229, %v6720
        %v7263 = vsel %vm7245, %v7230, %v6722
        %v7264 = vsel %vm7245, %v7231, %v6724
        %v7265 = vsel %vm7245, %v7232, %v6726
        %v7266 = vsel %vm7245, %v7233, %v6728
        %v7267 = vsel %vm7245, %v7234, %v6730
        %v7268 = vsel %vm7245, %v7235, %v6732
        %v7269 = vsel %vm7245, %v7236, %v6734
        %v7270 = vsel %vm7245, %v7237, %v6736
        %v7271 = vsel %vm7245, %v7238, %v6738
        %v7272 = vsel %vm7245, %v7239, %v6740
        %v7273 = vsel %vm7245, %v7240, %v6742
        %v7274 = vsel %vm7245, %v7241, %v6744
        %v7275 = vsel %vm7245, %v7242, %v6746
        %v7276 = vsel %vm7245, %v7243, %v6748
        %v7277 = vsel %vm7245, %v7244, %v6750
        %v7278 = vcombine.high %v1663, 0.0
        %v7280 = vunpack.c.l.s4 1983009808
        %v7281 = vunpack.c.0.s8 %v7280
        %v7282 = vlaneseq
        %v7283 = vshrl.u32 %v7282, 7
        %v7284 = vsub.s32 %v7281, %v7283
        %v7285 = vrot.slane %v1663, %v7284
        %v7287 = vunpack.c.l.s4 1983009808
        %v7288 = vunpack.c.0.s8 %v7287
        %v7289 = vlaneseq
        %v7290 = vshrl.u32 %v7289, 7
        %v7291 = vsub.s32 %v7288, %v7290
        %v7292 = vrot.slane %v7278, %v7291
        %v7293 = vcombine.high %v7285, 0.0
        %v7295 = vunpack.c.l.s4 1934713408
        %v7296 = vunpack.c.0.s8 %v7295
        %v7297 = vlaneseq
        %v7298 = vshrl.u32 %v7297, 7
        %v7299 = vsub.s32 %v7296, %v7298
        %v7300 = vrot.slane %v7285, %v7299
        %v7302 = vunpack.c.l.s4 1934713408
        %v7303 = vunpack.c.0.s8 %v7302
        %v7304 = vlaneseq
        %v7305 = vshrl.u32 %v7304, 7
        %v7306 = vsub.s32 %v7303, %v7305
        %v7307 = vrot.slane %v7293, %v7306
        %v7308 = vcombine.high %v7292, 0.0
        %v7310 = vunpack.c.l.s4 1934713408
        %v7311 = vunpack.c.0.s8 %v7310
        %v7312 = vlaneseq
        %v7313 = vshrl.u32 %v7312, 7
        %v7314 = vsub.s32 %v7311, %v7313
        %v7315 = vrot.slane %v7292, %v7314
        %v7317 = vunpack.c.l.s4 1934713408
        %v7318 = vunpack.c.0.s8 %v7317
        %v7319 = vlaneseq
        %v7320 = vshrl.u32 %v7319, 7
        %v7321 = vsub.s32 %v7318, %v7320
        %v7322 = vrot.slane %v7308, %v7321
        %v7323 = vcombine.high %v7300, 0.0
        %v7324 = vcombine.high %v7307, 0.0
        %v7325 = vcombine.high %v7315, 0.0
        %v7326 = vcombine.high %v7322, 0.0
        %v7327 = vcombine.high %v1664, 0.0
        %v7329 = vunpack.c.l.s4 1983009808
        %v7330 = vunpack.c.0.s8 %v7329
        %v7331 = vlaneseq
        %v7332 = vshrl.u32 %v7331, 7
        %v7333 = vsub.s32 %v7330, %v7332
        %v7334 = vrot.slane %v1664, %v7333
        %v7336 = vunpack.c.l.s4 1983009808
        %v7337 = vunpack.c.0.s8 %v7336
        %v7338 = vlaneseq
        %v7339 = vshrl.u32 %v7338, 7
        %v7340 = vsub.s32 %v7337, %v7339
        %v7341 = vrot.slane %v7327, %v7340
        %v7342 = vcombine.high %v7334, 0.0
        %v7344 = vunpack.c.l.s4 1934713408
        %v7345 = vunpack.c.0.s8 %v7344
        %v7346 = vlaneseq
        %v7347 = vshrl.u32 %v7346, 7
        %v7348 = vsub.s32 %v7345, %v7347
        %v7349 = vrot.slane %v7334, %v7348
        %v7351 = vunpack.c.l.s4 1934713408
        %v7352 = vunpack.c.0.s8 %v7351
        %v7353 = vlaneseq
        %v7354 = vshrl.u32 %v7353, 7
        %v7355 = vsub.s32 %v7352, %v7354
        %v7356 = vrot.slane %v7342, %v7355
        %v7357 = vcombine.high %v7341, 0.0
        %v7359 = vunpack.c.l.s4 1934713408
        %v7360 = vunpack.c.0.s8 %v7359
        %v7361 = vlaneseq
        %v7362 = vshrl.u32 %v7361, 7
        %v7363 = vsub.s32 %v7360, %v7362
        %v7364 = vrot.slane %v7341, %v7363
        %v7366 = vunpack.c.l.s4 1934713408
        %v7367 = vunpack.c.0.s8 %v7366
        %v7368 = vlaneseq
        %v7369 = vshrl.u32 %v7368, 7
        %v7370 = vsub.s32 %v7367, %v7369
        %v7371 = vrot.slane %v7357, %v7370
        %v7372 = vcombine.high %v7349, 0.0
        %v7373 = vcombine.high %v7356, 0.0
        %v7374 = vcombine.high %v7364, 0.0
        %v7375 = vcombine.high %v7371, 0.0
        %v7376 = vcombine.high %v1665, 0.0
        %v7378 = vunpack.c.l.s4 1983009808
        %v7379 = vunpack.c.0.s8 %v7378
        %v7380 = vlaneseq
        %v7381 = vshrl.u32 %v7380, 7
        %v7382 = vsub.s32 %v7379, %v7381
        %v7383 = vrot.slane %v1665, %v7382
        %v7385 = vunpack.c.l.s4 1983009808
        %v7386 = vunpack.c.0.s8 %v7385
        %v7387 = vlaneseq
        %v7388 = vshrl.u32 %v7387, 7
        %v7389 = vsub.s32 %v7386, %v7388
        %v7390 = vrot.slane %v7376, %v7389
        %v7391 = vcombine.high %v7383, 0.0
        %v7393 = vunpack.c.l.s4 1934713408
        %v7394 = vunpack.c.0.s8 %v7393
        %v7395 = vlaneseq
        %v7396 = vshrl.u32 %v7395, 7
        %v7397 = vsub.s32 %v7394, %v7396
        %v7398 = vrot.slane %v7383, %v7397
        %v7400 = vunpack.c.l.s4 1934713408
        %v7401 = vunpack.c.0.s8 %v7400
        %v7402 = vlaneseq
        %v7403 = vshrl.u32 %v7402, 7
        %v7404 = vsub.s32 %v7401, %v7403
        %v7405 = vrot.slane %v7391, %v7404
        %v7406 = vcombine.high %v7390, 0.0
        %v7408 = vunpack.c.l.s4 1934713408
        %v7409 = vunpack.c.0.s8 %v7408
        %v7410 = vlaneseq
        %v7411 = vshrl.u32 %v7410, 7
        %v7412 = vsub.s32 %v7409, %v7411
        %v7413 = vrot.slane %v7390, %v7412
        %v7415 = vunpack.c.l.s4 1934713408
        %v7416 = vunpack.c.0.s8 %v7415
        %v7417 = vlaneseq
        %v7418 = vshrl.u32 %v7417, 7
        %v7419 = vsub.s32 %v7416, %v7418
        %v7420 = vrot.slane %v7406, %v7419
        %v7421 = vcombine.high %v7398, 0.0
        %v7422 = vcombine.high %v7405, 0.0
        %v7423 = vcombine.high %v7413, 0.0
        %v7424 = vcombine.high %v7420, 0.0
        %v7425 = vcombine.high %v1666, 0.0
        %v7427 = vunpack.c.l.s4 1983009808
        %v7428 = vunpack.c.0.s8 %v7427
        %v7429 = vlaneseq
        %v7430 = vshrl.u32 %v7429, 7
        %v7431 = vsub.s32 %v7428, %v7430
        %v7432 = vrot.slane %v1666, %v7431
        %v7434 = vunpack.c.l.s4 1983009808
        %v7435 = vunpack.c.0.s8 %v7434
        %v7436 = vlaneseq
        %v7437 = vshrl.u32 %v7436, 7
        %v7438 = vsub.s32 %v7435, %v7437
        %v7439 = vrot.slane %v7425, %v7438
        %v7440 = vcombine.high %v7432, 0.0
        %v7442 = vunpack.c.l.s4 1934713408
        %v7443 = vunpack.c.0.s8 %v7442
        %v7444 = vlaneseq
        %v7445 = vshrl.u32 %v7444, 7
        %v7446 = vsub.s32 %v7443, %v7445
        %v7447 = vrot.slane %v7432, %v7446
        %v7449 = vunpack.c.l.s4 1934713408
        %v7450 = vunpack.c.0.s8 %v7449
        %v7451 = vlaneseq
        %v7452 = vshrl.u32 %v7451, 7
        %v7453 = vsub.s32 %v7450, %v7452
        %v7454 = vrot.slane %v7440, %v7453
        %v7455 = vcombine.high %v7439, 0.0
        %v7457 = vunpack.c.l.s4 1934713408
        %v7458 = vunpack.c.0.s8 %v7457
        %v7459 = vlaneseq
        %v7460 = vshrl.u32 %v7459, 7
        %v7461 = vsub.s32 %v7458, %v7460
        %v7462 = vrot.slane %v7439, %v7461
        %v7464 = vunpack.c.l.s4 1934713408
        %v7465 = vunpack.c.0.s8 %v7464
        %v7466 = vlaneseq
        %v7467 = vshrl.u32 %v7466, 7
        %v7468 = vsub.s32 %v7465, %v7467
        %v7469 = vrot.slane %v7455, %v7468
        %v7470 = vcombine.high %v7447, 0.0
        %v7471 = vcombine.high %v7454, 0.0
        %v7472 = vcombine.high %v7462, 0.0
        %v7473 = vcombine.high %v7469, 0.0
        %v7474 = vcombine.high %v1667, 0.0
        %v7476 = vunpack.c.l.s4 1983009808
        %v7477 = vunpack.c.0.s8 %v7476
        %v7478 = vlaneseq
        %v7479 = vshrl.u32 %v7478, 7
        %v7480 = vsub.s32 %v7477, %v7479
        %v7481 = vrot.slane %v1667, %v7480
        %v7483 = vunpack.c.l.s4 1983009808
        %v7484 = vunpack.c.0.s8 %v7483
        %v7485 = vlaneseq
        %v7486 = vshrl.u32 %v7485, 7
        %v7487 = vsub.s32 %v7484, %v7486
        %v7488 = vrot.slane %v7474, %v7487
        %v7489 = vcombine.high %v7481, 0.0
        %v7491 = vunpack.c.l.s4 1934713408
        %v7492 = vunpack.c.0.s8 %v7491
        %v7493 = vlaneseq
        %v7494 = vshrl.u32 %v7493, 7
        %v7495 = vsub.s32 %v7492, %v7494
        %v7496 = vrot.slane %v7481, %v7495
        %v7498 = vunpack.c.l.s4 1934713408
        %v7499 = vunpack.c.0.s8 %v7498
        %v7500 = vlaneseq
        %v7501 = vshrl.u32 %v7500, 7
        %v7502 = vsub.s32 %v7499, %v7501
        %v7503 = vrot.slane %v7489, %v7502
        %v7504 = vcombine.high %v7488, 0.0
        %v7506 = vunpack.c.l.s4 1934713408
        %v7507 = vunpack.c.0.s8 %v7506
        %v7508 = vlaneseq
        %v7509 = vshrl.u32 %v7508, 7
        %v7510 = vsub.s32 %v7507, %v7509
        %v7511 = vrot.slane %v7488, %v7510
        %v7513 = vunpack.c.l.s4 1934713408
        %v7514 = vunpack.c.0.s8 %v7513
        %v7515 = vlaneseq
        %v7516 = vshrl.u32 %v7515, 7
        %v7517 = vsub.s32 %v7514, %v7516
        %v7518 = vrot.slane %v7504, %v7517
        %v7519 = vcombine.high %v7496, 0.0
        %v7520 = vcombine.high %v7503, 0.0
        %v7521 = vcombine.high %v7511, 0.0
        %v7522 = vcombine.high %v7518, 0.0
        %v7523 = vcombine.high %v1668, 0.0
        %v7525 = vunpack.c.l.s4 1983009808
        %v7526 = vunpack.c.0.s8 %v7525
        %v7527 = vlaneseq
        %v7528 = vshrl.u32 %v7527, 7
        %v7529 = vsub.s32 %v7526, %v7528
        %v7530 = vrot.slane %v1668, %v7529
        %v7532 = vunpack.c.l.s4 1983009808
        %v7533 = vunpack.c.0.s8 %v7532
        %v7534 = vlaneseq
        %v7535 = vshrl.u32 %v7534, 7
        %v7536 = vsub.s32 %v7533, %v7535
        %v7537 = vrot.slane %v7523, %v7536
        %v7538 = vcombine.high %v7530, 0.0
        %v7540 = vunpack.c.l.s4 1934713408
        %v7541 = vunpack.c.0.s8 %v7540
        %v7542 = vlaneseq
        %v7543 = vshrl.u32 %v7542, 7
        %v7544 = vsub.s32 %v7541, %v7543
        %v7545 = vrot.slane %v7530, %v7544
        %v7547 = vunpack.c.l.s4 1934713408
        %v7548 = vunpack.c.0.s8 %v7547
        %v7549 = vlaneseq
        %v7550 = vshrl.u32 %v7549, 7
        %v7551 = vsub.s32 %v7548, %v7550
        %v7552 = vrot.slane %v7538, %v7551
        %v7553 = vcombine.high %v7537, 0.0
        %v7555 = vunpack.c.l.s4 1934713408
        %v7556 = vunpack.c.0.s8 %v7555
        %v7557 = vlaneseq
        %v7558 = vshrl.u32 %v7557, 7
        %v7559 = vsub.s32 %v7556, %v7558
        %v7560 = vrot.slane %v7537, %v7559
        %v7562 = vunpack.c.l.s4 1934713408
        %v7563 = vunpack.c.0.s8 %v7562
        %v7564 = vlaneseq
        %v7565 = vshrl.u32 %v7564, 7
        %v7566 = vsub.s32 %v7563, %v7565
        %v7567 = vrot.slane %v7553, %v7566
        %v7568 = vcombine.high %v7545, 0.0
        %v7569 = vcombine.high %v7552, 0.0
        %v7570 = vcombine.high %v7560, 0.0
        %v7571 = vcombine.high %v7567, 0.0
        %v7572 = vcombine.high %v1669, 0.0
        %v7574 = vunpack.c.l.s4 1983009808
        %v7575 = vunpack.c.0.s8 %v7574
        %v7576 = vlaneseq
        %v7577 = vshrl.u32 %v7576, 7
        %v7578 = vsub.s32 %v7575, %v7577
        %v7579 = vrot.slane %v1669, %v7578
        %v7581 = vunpack.c.l.s4 1983009808
        %v7582 = vunpack.c.0.s8 %v7581
        %v7583 = vlaneseq
        %v7584 = vshrl.u32 %v7583, 7
        %v7585 = vsub.s32 %v7582, %v7584
        %v7586 = vrot.slane %v7572, %v7585
        %v7587 = vcombine.high %v7579, 0.0
        %v7589 = vunpack.c.l.s4 1934713408
        %v7590 = vunpack.c.0.s8 %v7589
        %v7591 = vlaneseq
        %v7592 = vshrl.u32 %v7591, 7
        %v7593 = vsub.s32 %v7590, %v7592
        %v7594 = vrot.slane %v7579, %v7593
        %v7596 = vunpack.c.l.s4 1934713408
        %v7597 = vunpack.c.0.s8 %v7596
        %v7598 = vlaneseq
        %v7599 = vshrl.u32 %v7598, 7
        %v7600 = vsub.s32 %v7597, %v7599
        %v7601 = vrot.slane %v7587, %v7600
        %v7602 = vcombine.high %v7586, 0.0
        %v7604 = vunpack.c.l.s4 1934713408
        %v7605 = vunpack.c.0.s8 %v7604
        %v7606 = vlaneseq
        %v7607 = vshrl.u32 %v7606, 7
        %v7608 = vsub.s32 %v7605, %v7607
        %v7609 = vrot.slane %v7586, %v7608
        %v7611 = vunpack.c.l.s4 1934713408
        %v7612 = vunpack.c.0.s8 %v7611
        %v7613 = vlaneseq
        %v7614 = vshrl.u32 %v7613, 7
        %v7615 = vsub.s32 %v7612, %v7614
        %v7616 = vrot.slane %v7602, %v7615
        %v7617 = vcombine.high %v7594, 0.0
        %v7618 = vcombine.high %v7601, 0.0
        %v7619 = vcombine.high %v7609, 0.0
        %v7620 = vcombine.high %v7616, 0.0
        %v7621 = vcombine.high %v1670, 0.0
        %v7623 = vunpack.c.l.s4 1983009808
        %v7624 = vunpack.c.0.s8 %v7623
        %v7625 = vlaneseq
        %v7626 = vshrl.u32 %v7625, 7
        %v7627 = vsub.s32 %v7624, %v7626
        %v7628 = vrot.slane %v1670, %v7627
        %v7630 = vunpack.c.l.s4 1983009808
        %v7631 = vunpack.c.0.s8 %v7630
        %v7632 = vlaneseq
        %v7633 = vshrl.u32 %v7632, 7
        %v7634 = vsub.s32 %v7631, %v7633
        %v7635 = vrot.slane %v7621, %v7634
        %v7636 = vcombine.high %v7628, 0.0
        %v7638 = vunpack.c.l.s4 1934713408
        %v7639 = vunpack.c.0.s8 %v7638
        %v7640 = vlaneseq
        %v7641 = vshrl.u32 %v7640, 7
        %v7642 = vsub.s32 %v7639, %v7641
        %v7643 = vrot.slane %v7628, %v7642
        %v7645 = vunpack.c.l.s4 1934713408
        %v7646 = vunpack.c.0.s8 %v7645
        %v7647 = vlaneseq
        %v7648 = vshrl.u32 %v7647, 7
        %v7649 = vsub.s32 %v7646, %v7648
        %v7650 = vrot.slane %v7636, %v7649
        %v7651 = vcombine.high %v7635, 0.0
        %v7653 = vunpack.c.l.s4 1934713408
        %v7654 = vunpack.c.0.s8 %v7653
        %v7655 = vlaneseq
        %v7656 = vshrl.u32 %v7655, 7
        %v7657 = vsub.s32 %v7654, %v7656
        %v7658 = vrot.slane %v7635, %v7657
        %v7660 = vunpack.c.l.s4 1934713408
        %v7661 = vunpack.c.0.s8 %v7660
        %v7662 = vlaneseq
        %v7663 = vshrl.u32 %v7662, 7
        %v7664 = vsub.s32 %v7661, %v7663
        %v7665 = vrot.slane %v7651, %v7664
        %v7666 = vcombine.high %v7643, 0.0
        %v7667 = vcombine.high %v7650, 0.0
        %v7668 = vcombine.high %v7658, 0.0
        %v7669 = vcombine.high %v7665, 0.0
        %v7670 = vcombine.high %v1671, 0.0
        %v7672 = vunpack.c.l.s4 1983009808
        %v7673 = vunpack.c.0.s8 %v7672
        %v7674 = vlaneseq
        %v7675 = vshrl.u32 %v7674, 7
        %v7676 = vsub.s32 %v7673, %v7675
        %v7677 = vrot.slane %v1671, %v7676
        %v7679 = vunpack.c.l.s4 1983009808
        %v7680 = vunpack.c.0.s8 %v7679
        %v7681 = vlaneseq
        %v7682 = vshrl.u32 %v7681, 7
        %v7683 = vsub.s32 %v7680, %v7682
        %v7684 = vrot.slane %v7670, %v7683
        %v7685 = vcombine.high %v7677, 0.0
        %v7687 = vunpack.c.l.s4 1934713408
        %v7688 = vunpack.c.0.s8 %v7687
        %v7689 = vlaneseq
        %v7690 = vshrl.u32 %v7689, 7
        %v7691 = vsub.s32 %v7688, %v7690
        %v7692 = vrot.slane %v7677, %v7691
        %v7694 = vunpack.c.l.s4 1934713408
        %v7695 = vunpack.c.0.s8 %v7694
        %v7696 = vlaneseq
        %v7697 = vshrl.u32 %v7696, 7
        %v7698 = vsub.s32 %v7695, %v7697
        %v7699 = vrot.slane %v7685, %v7698
        %v7700 = vcombine.high %v7684, 0.0
        %v7702 = vunpack.c.l.s4 1934713408
        %v7703 = vunpack.c.0.s8 %v7702
        %v7704 = vlaneseq
        %v7705 = vshrl.u32 %v7704, 7
        %v7706 = vsub.s32 %v7703, %v7705
        %v7707 = vrot.slane %v7684, %v7706
        %v7709 = vunpack.c.l.s4 1934713408
        %v7710 = vunpack.c.0.s8 %v7709
        %v7711 = vlaneseq
        %v7712 = vshrl.u32 %v7711, 7
        %v7713 = vsub.s32 %v7710, %v7712
        %v7714 = vrot.slane %v7700, %v7713
        %v7715 = vcombine.high %v7692, 0.0
        %v7716 = vcombine.high %v7699, 0.0
        %v7717 = vcombine.high %v7707, 0.0
        %v7718 = vcombine.high %v7714, 0.0
        %v7719 = vcombine.high %v1672, 0.0
        %v7721 = vunpack.c.l.s4 1983009808
        %v7722 = vunpack.c.0.s8 %v7721
        %v7723 = vlaneseq
        %v7724 = vshrl.u32 %v7723, 7
        %v7725 = vsub.s32 %v7722, %v7724
        %v7726 = vrot.slane %v1672, %v7725
        %v7728 = vunpack.c.l.s4 1983009808
        %v7729 = vunpack.c.0.s8 %v7728
        %v7730 = vlaneseq
        %v7731 = vshrl.u32 %v7730, 7
        %v7732 = vsub.s32 %v7729, %v7731
        %v7733 = vrot.slane %v7719, %v7732
        %v7734 = vcombine.high %v7726, 0.0
        %v7736 = vunpack.c.l.s4 1934713408
        %v7737 = vunpack.c.0.s8 %v7736
        %v7738 = vlaneseq
        %v7739 = vshrl.u32 %v7738, 7
        %v7740 = vsub.s32 %v7737, %v7739
        %v7741 = vrot.slane %v7726, %v7740
        %v7743 = vunpack.c.l.s4 1934713408
        %v7744 = vunpack.c.0.s8 %v7743
        %v7745 = vlaneseq
        %v7746 = vshrl.u32 %v7745, 7
        %v7747 = vsub.s32 %v7744, %v7746
        %v7748 = vrot.slane %v7734, %v7747
        %v7749 = vcombine.high %v7733, 0.0
        %v7751 = vunpack.c.l.s4 1934713408
        %v7752 = vunpack.c.0.s8 %v7751
        %v7753 = vlaneseq
        %v7754 = vshrl.u32 %v7753, 7
        %v7755 = vsub.s32 %v7752, %v7754
        %v7756 = vrot.slane %v7733, %v7755
        %v7758 = vunpack.c.l.s4 1934713408
        %v7759 = vunpack.c.0.s8 %v7758
        %v7760 = vlaneseq
        %v7761 = vshrl.u32 %v7760, 7
        %v7762 = vsub.s32 %v7759, %v7761
        %v7763 = vrot.slane %v7749, %v7762
        %v7764 = vcombine.high %v7741, 0.0
        %v7765 = vcombine.high %v7748, 0.0
        %v7766 = vcombine.high %v7756, 0.0
        %v7767 = vcombine.high %v7763, 0.0
        %v7768 = vcombine.high %v1673, 0.0
        %v7770 = vunpack.c.l.s4 1983009808
        %v7771 = vunpack.c.0.s8 %v7770
        %v7772 = vlaneseq
        %v7773 = vshrl.u32 %v7772, 7
        %v7774 = vsub.s32 %v7771, %v7773
        %v7775 = vrot.slane %v1673, %v7774
        %v7777 = vunpack.c.l.s4 1983009808
        %v7778 = vunpack.c.0.s8 %v7777
        %v7779 = vlaneseq
        %v7780 = vshrl.u32 %v7779, 7
        %v7781 = vsub.s32 %v7778, %v7780
        %v7782 = vrot.slane %v7768, %v7781
        %v7783 = vcombine.high %v7775, 0.0
        %v7785 = vunpack.c.l.s4 1934713408
        %v7786 = vunpack.c.0.s8 %v7785
        %v7787 = vlaneseq
        %v7788 = vshrl.u32 %v7787, 7
        %v7789 = vsub.s32 %v7786, %v7788
        %v7790 = vrot.slane %v7775, %v7789
        %v7792 = vunpack.c.l.s4 1934713408
        %v7793 = vunpack.c.0.s8 %v7792
        %v7794 = vlaneseq
        %v7795 = vshrl.u32 %v7794, 7
        %v7796 = vsub.s32 %v7793, %v7795
        %v7797 = vrot.slane %v7783, %v7796
        %v7798 = vcombine.high %v7782, 0.0
        %v7800 = vunpack.c.l.s4 1934713408
        %v7801 = vunpack.c.0.s8 %v7800
        %v7802 = vlaneseq
        %v7803 = vshrl.u32 %v7802, 7
        %v7804 = vsub.s32 %v7801, %v7803
        %v7805 = vrot.slane %v7782, %v7804
        %v7807 = vunpack.c.l.s4 1934713408
        %v7808 = vunpack.c.0.s8 %v7807
        %v7809 = vlaneseq
        %v7810 = vshrl.u32 %v7809, 7
        %v7811 = vsub.s32 %v7808, %v7810
        %v7812 = vrot.slane %v7798, %v7811
        %v7813 = vcombine.high %v7790, 0.0
        %v7814 = vcombine.high %v7797, 0.0
        %v7815 = vcombine.high %v7805, 0.0
        %v7816 = vcombine.high %v7812, 0.0
        %v7817 = vcombine.high %v1674, 0.0
        %v7819 = vunpack.c.l.s4 1983009808
        %v7820 = vunpack.c.0.s8 %v7819
        %v7821 = vlaneseq
        %v7822 = vshrl.u32 %v7821, 7
        %v7823 = vsub.s32 %v7820, %v7822
        %v7824 = vrot.slane %v1674, %v7823
        %v7826 = vunpack.c.l.s4 1983009808
        %v7827 = vunpack.c.0.s8 %v7826
        %v7828 = vlaneseq
        %v7829 = vshrl.u32 %v7828, 7
        %v7830 = vsub.s32 %v7827, %v7829
        %v7831 = vrot.slane %v7817, %v7830
        %v7832 = vcombine.high %v7824, 0.0
        %v7834 = vunpack.c.l.s4 1934713408
        %v7835 = vunpack.c.0.s8 %v7834
        %v7836 = vlaneseq
        %v7837 = vshrl.u32 %v7836, 7
        %v7838 = vsub.s32 %v7835, %v7837
        %v7839 = vrot.slane %v7824, %v7838
        %v7841 = vunpack.c.l.s4 1934713408
        %v7842 = vunpack.c.0.s8 %v7841
        %v7843 = vlaneseq
        %v7844 = vshrl.u32 %v7843, 7
        %v7845 = vsub.s32 %v7842, %v7844
        %v7846 = vrot.slane %v7832, %v7845
        %v7847 = vcombine.high %v7831, 0.0
        %v7849 = vunpack.c.l.s4 1934713408
        %v7850 = vunpack.c.0.s8 %v7849
        %v7851 = vlaneseq
        %v7852 = vshrl.u32 %v7851, 7
        %v7853 = vsub.s32 %v7850, %v7852
        %v7854 = vrot.slane %v7831, %v7853
        %v7856 = vunpack.c.l.s4 1934713408
        %v7857 = vunpack.c.0.s8 %v7856
        %v7858 = vlaneseq
        %v7859 = vshrl.u32 %v7858, 7
        %v7860 = vsub.s32 %v7857, %v7859
        %v7861 = vrot.slane %v7847, %v7860
        %v7862 = vcombine.high %v7839, 0.0
        %v7863 = vcombine.high %v7846, 0.0
        %v7864 = vcombine.high %v7854, 0.0
        %v7865 = vcombine.high %v7861, 0.0
        %v7866 = vcombine.high %v1675, 0.0
        %v7868 = vunpack.c.l.s4 1983009808
        %v7869 = vunpack.c.0.s8 %v7868
        %v7870 = vlaneseq
        %v7871 = vshrl.u32 %v7870, 7
        %v7872 = vsub.s32 %v7869, %v7871
        %v7873 = vrot.slane %v1675, %v7872
        %v7875 = vunpack.c.l.s4 1983009808
        %v7876 = vunpack.c.0.s8 %v7875
        %v7877 = vlaneseq
        %v7878 = vshrl.u32 %v7877, 7
        %v7879 = vsub.s32 %v7876, %v7878
        %v7880 = vrot.slane %v7866, %v7879
        %v7881 = vcombine.high %v7873, 0.0
        %v7883 = vunpack.c.l.s4 1934713408
        %v7884 = vunpack.c.0.s8 %v7883
        %v7885 = vlaneseq
        %v7886 = vshrl.u32 %v7885, 7
        %v7887 = vsub.s32 %v7884, %v7886
        %v7888 = vrot.slane %v7873, %v7887
        %v7890 = vunpack.c.l.s4 1934713408
        %v7891 = vunpack.c.0.s8 %v7890
        %v7892 = vlaneseq
        %v7893 = vshrl.u32 %v7892, 7
        %v7894 = vsub.s32 %v7891, %v7893
        %v7895 = vrot.slane %v7881, %v7894
        %v7896 = vcombine.high %v7880, 0.0
        %v7898 = vunpack.c.l.s4 1934713408
        %v7899 = vunpack.c.0.s8 %v7898
        %v7900 = vlaneseq
        %v7901 = vshrl.u32 %v7900, 7
        %v7902 = vsub.s32 %v7899, %v7901
        %v7903 = vrot.slane %v7880, %v7902
        %v7905 = vunpack.c.l.s4 1934713408
        %v7906 = vunpack.c.0.s8 %v7905
        %v7907 = vlaneseq
        %v7908 = vshrl.u32 %v7907, 7
        %v7909 = vsub.s32 %v7906, %v7908
        %v7910 = vrot.slane %v7896, %v7909
        %v7911 = vcombine.high %v7888, 0.0
        %v7912 = vcombine.high %v7895, 0.0
        %v7913 = vcombine.high %v7903, 0.0
        %v7914 = vcombine.high %v7910, 0.0
        %v7915 = vcombine.high %v1676, 0.0
        %v7917 = vunpack.c.l.s4 1983009808
        %v7918 = vunpack.c.0.s8 %v7917
        %v7919 = vlaneseq
        %v7920 = vshrl.u32 %v7919, 7
        %v7921 = vsub.s32 %v7918, %v7920
        %v7922 = vrot.slane %v1676, %v7921
        %v7924 = vunpack.c.l.s4 1983009808
        %v7925 = vunpack.c.0.s8 %v7924
        %v7926 = vlaneseq
        %v7927 = vshrl.u32 %v7926, 7
        %v7928 = vsub.s32 %v7925, %v7927
        %v7929 = vrot.slane %v7915, %v7928
        %v7930 = vcombine.high %v7922, 0.0
        %v7932 = vunpack.c.l.s4 1934713408
        %v7933 = vunpack.c.0.s8 %v7932
        %v7934 = vlaneseq
        %v7935 = vshrl.u32 %v7934, 7
        %v7936 = vsub.s32 %v7933, %v7935
        %v7937 = vrot.slane %v7922, %v7936
        %v7939 = vunpack.c.l.s4 1934713408
        %v7940 = vunpack.c.0.s8 %v7939
        %v7941 = vlaneseq
        %v7942 = vshrl.u32 %v7941, 7
        %v7943 = vsub.s32 %v7940, %v7942
        %v7944 = vrot.slane %v7930, %v7943
        %v7945 = vcombine.high %v7929, 0.0
        %v7947 = vunpack.c.l.s4 1934713408
        %v7948 = vunpack.c.0.s8 %v7947
        %v7949 = vlaneseq
        %v7950 = vshrl.u32 %v7949, 7
        %v7951 = vsub.s32 %v7948, %v7950
        %v7952 = vrot.slane %v7929, %v7951
        %v7954 = vunpack.c.l.s4 1934713408
        %v7955 = vunpack.c.0.s8 %v7954
        %v7956 = vlaneseq
        %v7957 = vshrl.u32 %v7956, 7
        %v7958 = vsub.s32 %v7955, %v7957
        %v7959 = vrot.slane %v7945, %v7958
        %v7960 = vcombine.high %v7937, 0.0
        %v7961 = vcombine.high %v7944, 0.0
        %v7962 = vcombine.high %v7952, 0.0
        %v7963 = vcombine.high %v7959, 0.0
        %v7964 = vcombine.high %v1677, 0.0
        %v7966 = vunpack.c.l.s4 1983009808
        %v7967 = vunpack.c.0.s8 %v7966
        %v7968 = vlaneseq
        %v7969 = vshrl.u32 %v7968, 7
        %v7970 = vsub.s32 %v7967, %v7969
        %v7971 = vrot.slane %v1677, %v7970
        %v7973 = vunpack.c.l.s4 1983009808
        %v7974 = vunpack.c.0.s8 %v7973
        %v7975 = vlaneseq
        %v7976 = vshrl.u32 %v7975, 7
        %v7977 = vsub.s32 %v7974, %v7976
        %v7978 = vrot.slane %v7964, %v7977
        %v7979 = vcombine.high %v7971, 0.0
        %v7981 = vunpack.c.l.s4 1934713408
        %v7982 = vunpack.c.0.s8 %v7981
        %v7983 = vlaneseq
        %v7984 = vshrl.u32 %v7983, 7
        %v7985 = vsub.s32 %v7982, %v7984
        %v7986 = vrot.slane %v7971, %v7985
        %v7988 = vunpack.c.l.s4 1934713408
        %v7989 = vunpack.c.0.s8 %v7988
        %v7990 = vlaneseq
        %v7991 = vshrl.u32 %v7990, 7
        %v7992 = vsub.s32 %v7989, %v7991
        %v7993 = vrot.slane %v7979, %v7992
        %v7994 = vcombine.high %v7978, 0.0
        %v7996 = vunpack.c.l.s4 1934713408
        %v7997 = vunpack.c.0.s8 %v7996
        %v7998 = vlaneseq
        %v7999 = vshrl.u32 %v7998, 7
        %v8000 = vsub.s32 %v7997, %v7999
        %v8001 = vrot.slane %v7978, %v8000
        %v8003 = vunpack.c.l.s4 1934713408
        %v8004 = vunpack.c.0.s8 %v8003
        %v8005 = vlaneseq
        %v8006 = vshrl.u32 %v8005, 7
        %v8007 = vsub.s32 %v8004, %v8006
        %v8008 = vrot.slane %v7994, %v8007
        %v8009 = vcombine.high %v7986, 0.0
        %v8010 = vcombine.high %v7993, 0.0
        %v8011 = vcombine.high %v8001, 0.0
        %v8012 = vcombine.high %v8008, 0.0
        %v8013 = vcombine.high %v1678, 0.0
        %v8015 = vunpack.c.l.s4 1983009808
        %v8016 = vunpack.c.0.s8 %v8015
        %v8017 = vlaneseq
        %v8018 = vshrl.u32 %v8017, 7
        %v8019 = vsub.s32 %v8016, %v8018
        %v8020 = vrot.slane %v1678, %v8019
        %v8022 = vunpack.c.l.s4 1983009808
        %v8023 = vunpack.c.0.s8 %v8022
        %v8024 = vlaneseq
        %v8025 = vshrl.u32 %v8024, 7
        %v8026 = vsub.s32 %v8023, %v8025
        %v8027 = vrot.slane %v8013, %v8026
        %v8028 = vcombine.high %v8020, 0.0
        %v8030 = vunpack.c.l.s4 1934713408
        %v8031 = vunpack.c.0.s8 %v8030
        %v8032 = vlaneseq
        %v8033 = vshrl.u32 %v8032, 7
        %v8034 = vsub.s32 %v8031, %v8033
        %v8035 = vrot.slane %v8020, %v8034
        %v8037 = vunpack.c.l.s4 1934713408
        %v8038 = vunpack.c.0.s8 %v8037
        %v8039 = vlaneseq
        %v8040 = vshrl.u32 %v8039, 7
        %v8041 = vsub.s32 %v8038, %v8040
        %v8042 = vrot.slane %v8028, %v8041
        %v8043 = vcombine.high %v8027, 0.0
        %v8045 = vunpack.c.l.s4 1934713408
        %v8046 = vunpack.c.0.s8 %v8045
        %v8047 = vlaneseq
        %v8048 = vshrl.u32 %v8047, 7
        %v8049 = vsub.s32 %v8046, %v8048
        %v8050 = vrot.slane %v8027, %v8049
        %v8052 = vunpack.c.l.s4 1934713408
        %v8053 = vunpack.c.0.s8 %v8052
        %v8054 = vlaneseq
        %v8055 = vshrl.u32 %v8054, 7
        %v8056 = vsub.s32 %v8053, %v8055
        %v8057 = vrot.slane %v8043, %v8056
        %v8058 = vcombine.high %v8035, 0.0
        %v8059 = vcombine.high %v8042, 0.0
        %v8060 = vcombine.high %v8050, 0.0
        %v8061 = vcombine.high %v8057, 0.0
        %v8062 = vcombine.high %v1679, 0.0
        %v8064 = vunpack.c.l.s4 1983009808
        %v8065 = vunpack.c.0.s8 %v8064
        %v8066 = vlaneseq
        %v8067 = vshrl.u32 %v8066, 7
        %v8068 = vsub.s32 %v8065, %v8067
        %v8069 = vrot.slane %v1679, %v8068
        %v8071 = vunpack.c.l.s4 1983009808
        %v8072 = vunpack.c.0.s8 %v8071
        %v8073 = vlaneseq
        %v8074 = vshrl.u32 %v8073, 7
        %v8075 = vsub.s32 %v8072, %v8074
        %v8076 = vrot.slane %v8062, %v8075
        %v8077 = vcombine.high %v8069, 0.0
        %v8079 = vunpack.c.l.s4 1934713408
        %v8080 = vunpack.c.0.s8 %v8079
        %v8081 = vlaneseq
        %v8082 = vshrl.u32 %v8081, 7
        %v8083 = vsub.s32 %v8080, %v8082
        %v8084 = vrot.slane %v8069, %v8083
        %v8086 = vunpack.c.l.s4 1934713408
        %v8087 = vunpack.c.0.s8 %v8086
        %v8088 = vlaneseq
        %v8089 = vshrl.u32 %v8088, 7
        %v8090 = vsub.s32 %v8087, %v8089
        %v8091 = vrot.slane %v8077, %v8090
        %v8092 = vcombine.high %v8076, 0.0
        %v8094 = vunpack.c.l.s4 1934713408
        %v8095 = vunpack.c.0.s8 %v8094
        %v8096 = vlaneseq
        %v8097 = vshrl.u32 %v8096, 7
        %v8098 = vsub.s32 %v8095, %v8097
        %v8099 = vrot.slane %v8076, %v8098
        %v8101 = vunpack.c.l.s4 1934713408
        %v8102 = vunpack.c.0.s8 %v8101
        %v8103 = vlaneseq
        %v8104 = vshrl.u32 %v8103, 7
        %v8105 = vsub.s32 %v8102, %v8104
        %v8106 = vrot.slane %v8092, %v8105
        %v8107 = vcombine.high %v8084, 0.0
        %v8108 = vcombine.high %v8091, 0.0
        %v8109 = vcombine.high %v8099, 0.0
        %v8110 = vcombine.high %v8106, 0.0
        %v8111 = vcombine.high %v1680, 0.0
        %v8113 = vunpack.c.l.s4 1983009808
        %v8114 = vunpack.c.0.s8 %v8113
        %v8115 = vlaneseq
        %v8116 = vshrl.u32 %v8115, 7
        %v8117 = vsub.s32 %v8114, %v8116
        %v8118 = vrot.slane %v1680, %v8117
        %v8120 = vunpack.c.l.s4 1983009808
        %v8121 = vunpack.c.0.s8 %v8120
        %v8122 = vlaneseq
        %v8123 = vshrl.u32 %v8122, 7
        %v8124 = vsub.s32 %v8121, %v8123
        %v8125 = vrot.slane %v8111, %v8124
        %v8126 = vcombine.high %v8118, 0.0
        %v8128 = vunpack.c.l.s4 1934713408
        %v8129 = vunpack.c.0.s8 %v8128
        %v8130 = vlaneseq
        %v8131 = vshrl.u32 %v8130, 7
        %v8132 = vsub.s32 %v8129, %v8131
        %v8133 = vrot.slane %v8118, %v8132
        %v8135 = vunpack.c.l.s4 1934713408
        %v8136 = vunpack.c.0.s8 %v8135
        %v8137 = vlaneseq
        %v8138 = vshrl.u32 %v8137, 7
        %v8139 = vsub.s32 %v8136, %v8138
        %v8140 = vrot.slane %v8126, %v8139
        %v8141 = vcombine.high %v8125, 0.0
        %v8143 = vunpack.c.l.s4 1934713408
        %v8144 = vunpack.c.0.s8 %v8143
        %v8145 = vlaneseq
        %v8146 = vshrl.u32 %v8145, 7
        %v8147 = vsub.s32 %v8144, %v8146
        %v8148 = vrot.slane %v8125, %v8147
        %v8150 = vunpack.c.l.s4 1934713408
        %v8151 = vunpack.c.0.s8 %v8150
        %v8152 = vlaneseq
        %v8153 = vshrl.u32 %v8152, 7
        %v8154 = vsub.s32 %v8151, %v8153
        %v8155 = vrot.slane %v8141, %v8154
        %v8156 = vcombine.high %v8133, 0.0
        %v8157 = vcombine.high %v8140, 0.0
        %v8158 = vcombine.high %v8148, 0.0
        %v8159 = vcombine.high %v8155, 0.0
        %v8160 = vcombine.high %v1681, 0.0
        %v8162 = vunpack.c.l.s4 1983009808
        %v8163 = vunpack.c.0.s8 %v8162
        %v8164 = vlaneseq
        %v8165 = vshrl.u32 %v8164, 7
        %v8166 = vsub.s32 %v8163, %v8165
        %v8167 = vrot.slane %v1681, %v8166
        %v8169 = vunpack.c.l.s4 1983009808
        %v8170 = vunpack.c.0.s8 %v8169
        %v8171 = vlaneseq
        %v8172 = vshrl.u32 %v8171, 7
        %v8173 = vsub.s32 %v8170, %v8172
        %v8174 = vrot.slane %v8160, %v8173
        %v8175 = vcombine.high %v8167, 0.0
        %v8177 = vunpack.c.l.s4 1934713408
        %v8178 = vunpack.c.0.s8 %v8177
        %v8179 = vlaneseq
        %v8180 = vshrl.u32 %v8179, 7
        %v8181 = vsub.s32 %v8178, %v8180
        %v8182 = vrot.slane %v8167, %v8181
        %v8184 = vunpack.c.l.s4 1934713408
        %v8185 = vunpack.c.0.s8 %v8184
        %v8186 = vlaneseq
        %v8187 = vshrl.u32 %v8186, 7
        %v8188 = vsub.s32 %v8185, %v8187
        %v8189 = vrot.slane %v8175, %v8188
        %v8190 = vcombine.high %v8174, 0.0
        %v8192 = vunpack.c.l.s4 1934713408
        %v8193 = vunpack.c.0.s8 %v8192
        %v8194 = vlaneseq
        %v8195 = vshrl.u32 %v8194, 7
        %v8196 = vsub.s32 %v8193, %v8195
        %v8197 = vrot.slane %v8174, %v8196
        %v8199 = vunpack.c.l.s4 1934713408
        %v8200 = vunpack.c.0.s8 %v8199
        %v8201 = vlaneseq
        %v8202 = vshrl.u32 %v8201, 7
        %v8203 = vsub.s32 %v8200, %v8202
        %v8204 = vrot.slane %v8190, %v8203
        %v8205 = vcombine.high %v8182, 0.0
        %v8206 = vcombine.high %v8189, 0.0
        %v8207 = vcombine.high %v8197, 0.0
        %v8208 = vcombine.high %v8204, 0.0
        %v8209 = vcombine.high %v1682, 0.0
        %v8211 = vunpack.c.l.s4 1983009808
        %v8212 = vunpack.c.0.s8 %v8211
        %v8213 = vlaneseq
        %v8214 = vshrl.u32 %v8213, 7
        %v8215 = vsub.s32 %v8212, %v8214
        %v8216 = vrot.slane %v1682, %v8215
        %v8218 = vunpack.c.l.s4 1983009808
        %v8219 = vunpack.c.0.s8 %v8218
        %v8220 = vlaneseq
        %v8221 = vshrl.u32 %v8220, 7
        %v8222 = vsub.s32 %v8219, %v8221
        %v8223 = vrot.slane %v8209, %v8222
        %v8224 = vcombine.high %v8216, 0.0
        %v8226 = vunpack.c.l.s4 1934713408
        %v8227 = vunpack.c.0.s8 %v8226
        %v8228 = vlaneseq
        %v8229 = vshrl.u32 %v8228, 7
        %v8230 = vsub.s32 %v8227, %v8229
        %v8231 = vrot.slane %v8216, %v8230
        %v8233 = vunpack.c.l.s4 1934713408
        %v8234 = vunpack.c.0.s8 %v8233
        %v8235 = vlaneseq
        %v8236 = vshrl.u32 %v8235, 7
        %v8237 = vsub.s32 %v8234, %v8236
        %v8238 = vrot.slane %v8224, %v8237
        %v8239 = vcombine.high %v8223, 0.0
        %v8241 = vunpack.c.l.s4 1934713408
        %v8242 = vunpack.c.0.s8 %v8241
        %v8243 = vlaneseq
        %v8244 = vshrl.u32 %v8243, 7
        %v8245 = vsub.s32 %v8242, %v8244
        %v8246 = vrot.slane %v8223, %v8245
        %v8248 = vunpack.c.l.s4 1934713408
        %v8249 = vunpack.c.0.s8 %v8248
        %v8250 = vlaneseq
        %v8251 = vshrl.u32 %v8250, 7
        %v8252 = vsub.s32 %v8249, %v8251
        %v8253 = vrot.slane %v8239, %v8252
        %v8254 = vcombine.high %v8231, 0.0
        %v8255 = vcombine.high %v8238, 0.0
        %v8256 = vcombine.high %v8246, 0.0
        %v8257 = vcombine.high %v8253, 0.0
        %v8258 = vcombine.high %v1683, 0.0
        %v8260 = vunpack.c.l.s4 1983009808
        %v8261 = vunpack.c.0.s8 %v8260
        %v8262 = vlaneseq
        %v8263 = vshrl.u32 %v8262, 7
        %v8264 = vsub.s32 %v8261, %v8263
        %v8265 = vrot.slane %v1683, %v8264
        %v8267 = vunpack.c.l.s4 1983009808
        %v8268 = vunpack.c.0.s8 %v8267
        %v8269 = vlaneseq
        %v8270 = vshrl.u32 %v8269, 7
        %v8271 = vsub.s32 %v8268, %v8270
        %v8272 = vrot.slane %v8258, %v8271
        %v8273 = vcombine.high %v8265, 0.0
        %v8275 = vunpack.c.l.s4 1934713408
        %v8276 = vunpack.c.0.s8 %v8275
        %v8277 = vlaneseq
        %v8278 = vshrl.u32 %v8277, 7
        %v8279 = vsub.s32 %v8276, %v8278
        %v8280 = vrot.slane %v8265, %v8279
        %v8282 = vunpack.c.l.s4 1934713408
        %v8283 = vunpack.c.0.s8 %v8282
        %v8284 = vlaneseq
        %v8285 = vshrl.u32 %v8284, 7
        %v8286 = vsub.s32 %v8283, %v8285
        %v8287 = vrot.slane %v8273, %v8286
        %v8288 = vcombine.high %v8272, 0.0
        %v8290 = vunpack.c.l.s4 1934713408
        %v8291 = vunpack.c.0.s8 %v8290
        %v8292 = vlaneseq
        %v8293 = vshrl.u32 %v8292, 7
        %v8294 = vsub.s32 %v8291, %v8293
        %v8295 = vrot.slane %v8272, %v8294
        %v8297 = vunpack.c.l.s4 1934713408
        %v8298 = vunpack.c.0.s8 %v8297
        %v8299 = vlaneseq
        %v8300 = vshrl.u32 %v8299, 7
        %v8301 = vsub.s32 %v8298, %v8300
        %v8302 = vrot.slane %v8288, %v8301
        %v8303 = vcombine.high %v8280, 0.0
        %v8304 = vcombine.high %v8287, 0.0
        %v8305 = vcombine.high %v8295, 0.0
        %v8306 = vcombine.high %v8302, 0.0
        %v8307 = vcombine.high %v1684, 0.0
        %v8309 = vunpack.c.l.s4 1983009808
        %v8310 = vunpack.c.0.s8 %v8309
        %v8311 = vlaneseq
        %v8312 = vshrl.u32 %v8311, 7
        %v8313 = vsub.s32 %v8310, %v8312
        %v8314 = vrot.slane %v1684, %v8313
        %v8316 = vunpack.c.l.s4 1983009808
        %v8317 = vunpack.c.0.s8 %v8316
        %v8318 = vlaneseq
        %v8319 = vshrl.u32 %v8318, 7
        %v8320 = vsub.s32 %v8317, %v8319
        %v8321 = vrot.slane %v8307, %v8320
        %v8322 = vcombine.high %v8314, 0.0
        %v8324 = vunpack.c.l.s4 1934713408
        %v8325 = vunpack.c.0.s8 %v8324
        %v8326 = vlaneseq
        %v8327 = vshrl.u32 %v8326, 7
        %v8328 = vsub.s32 %v8325, %v8327
        %v8329 = vrot.slane %v8314, %v8328
        %v8331 = vunpack.c.l.s4 1934713408
        %v8332 = vunpack.c.0.s8 %v8331
        %v8333 = vlaneseq
        %v8334 = vshrl.u32 %v8333, 7
        %v8335 = vsub.s32 %v8332, %v8334
        %v8336 = vrot.slane %v8322, %v8335
        %v8337 = vcombine.high %v8321, 0.0
        %v8339 = vunpack.c.l.s4 1934713408
        %v8340 = vunpack.c.0.s8 %v8339
        %v8341 = vlaneseq
        %v8342 = vshrl.u32 %v8341, 7
        %v8343 = vsub.s32 %v8340, %v8342
        %v8344 = vrot.slane %v8321, %v8343
        %v8346 = vunpack.c.l.s4 1934713408
        %v8347 = vunpack.c.0.s8 %v8346
        %v8348 = vlaneseq
        %v8349 = vshrl.u32 %v8348, 7
        %v8350 = vsub.s32 %v8347, %v8349
        %v8351 = vrot.slane %v8337, %v8350
        %v8352 = vcombine.high %v8329, 0.0
        %v8353 = vcombine.high %v8336, 0.0
        %v8354 = vcombine.high %v8344, 0.0
        %v8355 = vcombine.high %v8351, 0.0
        %v8356 = vcombine.high %v1685, 0.0
        %v8358 = vunpack.c.l.s4 1983009808
        %v8359 = vunpack.c.0.s8 %v8358
        %v8360 = vlaneseq
        %v8361 = vshrl.u32 %v8360, 7
        %v8362 = vsub.s32 %v8359, %v8361
        %v8363 = vrot.slane %v1685, %v8362
        %v8365 = vunpack.c.l.s4 1983009808
        %v8366 = vunpack.c.0.s8 %v8365
        %v8367 = vlaneseq
        %v8368 = vshrl.u32 %v8367, 7
        %v8369 = vsub.s32 %v8366, %v8368
        %v8370 = vrot.slane %v8356, %v8369
        %v8371 = vcombine.high %v8363, 0.0
        %v8373 = vunpack.c.l.s4 1934713408
        %v8374 = vunpack.c.0.s8 %v8373
        %v8375 = vlaneseq
        %v8376 = vshrl.u32 %v8375, 7
        %v8377 = vsub.s32 %v8374, %v8376
        %v8378 = vrot.slane %v8363, %v8377
        %v8380 = vunpack.c.l.s4 1934713408
        %v8381 = vunpack.c.0.s8 %v8380
        %v8382 = vlaneseq
        %v8383 = vshrl.u32 %v8382, 7
        %v8384 = vsub.s32 %v8381, %v8383
        %v8385 = vrot.slane %v8371, %v8384
        %v8386 = vcombine.high %v8370, 0.0
        %v8388 = vunpack.c.l.s4 1934713408
        %v8389 = vunpack.c.0.s8 %v8388
        %v8390 = vlaneseq
        %v8391 = vshrl.u32 %v8390, 7
        %v8392 = vsub.s32 %v8389, %v8391
        %v8393 = vrot.slane %v8370, %v8392
        %v8395 = vunpack.c.l.s4 1934713408
        %v8396 = vunpack.c.0.s8 %v8395
        %v8397 = vlaneseq
        %v8398 = vshrl.u32 %v8397, 7
        %v8399 = vsub.s32 %v8396, %v8398
        %v8400 = vrot.slane %v8386, %v8399
        %v8401 = vcombine.high %v8378, 0.0
        %v8402 = vcombine.high %v8385, 0.0
        %v8403 = vcombine.high %v8393, 0.0
        %v8404 = vcombine.high %v8400, 0.0
        %v8405 = vcombine.high %v1686, 0.0
        %v8407 = vunpack.c.l.s4 1983009808
        %v8408 = vunpack.c.0.s8 %v8407
        %v8409 = vlaneseq
        %v8410 = vshrl.u32 %v8409, 7
        %v8411 = vsub.s32 %v8408, %v8410
        %v8412 = vrot.slane %v1686, %v8411
        %v8414 = vunpack.c.l.s4 1983009808
        %v8415 = vunpack.c.0.s8 %v8414
        %v8416 = vlaneseq
        %v8417 = vshrl.u32 %v8416, 7
        %v8418 = vsub.s32 %v8415, %v8417
        %v8419 = vrot.slane %v8405, %v8418
        %v8420 = vcombine.high %v8412, 0.0
        %v8422 = vunpack.c.l.s4 1934713408
        %v8423 = vunpack.c.0.s8 %v8422
        %v8424 = vlaneseq
        %v8425 = vshrl.u32 %v8424, 7
        %v8426 = vsub.s32 %v8423, %v8425
        %v8427 = vrot.slane %v8412, %v8426
        %v8429 = vunpack.c.l.s4 1934713408
        %v8430 = vunpack.c.0.s8 %v8429
        %v8431 = vlaneseq
        %v8432 = vshrl.u32 %v8431, 7
        %v8433 = vsub.s32 %v8430, %v8432
        %v8434 = vrot.slane %v8420, %v8433
        %v8435 = vcombine.high %v8419, 0.0
        %v8437 = vunpack.c.l.s4 1934713408
        %v8438 = vunpack.c.0.s8 %v8437
        %v8439 = vlaneseq
        %v8440 = vshrl.u32 %v8439, 7
        %v8441 = vsub.s32 %v8438, %v8440
        %v8442 = vrot.slane %v8419, %v8441
        %v8444 = vunpack.c.l.s4 1934713408
        %v8445 = vunpack.c.0.s8 %v8444
        %v8446 = vlaneseq
        %v8447 = vshrl.u32 %v8446, 7
        %v8448 = vsub.s32 %v8445, %v8447
        %v8449 = vrot.slane %v8435, %v8448
        %v8450 = vcombine.high %v8427, 0.0
        %v8451 = vcombine.high %v8434, 0.0
        %v8452 = vcombine.high %v8442, 0.0
        %v8453 = vcombine.high %v8449, 0.0
        %v8454 = vcombine.high %v1687, 0.0
        %v8456 = vunpack.c.l.s4 1983009808
        %v8457 = vunpack.c.0.s8 %v8456
        %v8458 = vlaneseq
        %v8459 = vshrl.u32 %v8458, 7
        %v8460 = vsub.s32 %v8457, %v8459
        %v8461 = vrot.slane %v1687, %v8460
        %v8463 = vunpack.c.l.s4 1983009808
        %v8464 = vunpack.c.0.s8 %v8463
        %v8465 = vlaneseq
        %v8466 = vshrl.u32 %v8465, 7
        %v8467 = vsub.s32 %v8464, %v8466
        %v8468 = vrot.slane %v8454, %v8467
        %v8469 = vcombine.high %v8461, 0.0
        %v8471 = vunpack.c.l.s4 1934713408
        %v8472 = vunpack.c.0.s8 %v8471
        %v8473 = vlaneseq
        %v8474 = vshrl.u32 %v8473, 7
        %v8475 = vsub.s32 %v8472, %v8474
        %v8476 = vrot.slane %v8461, %v8475
        %v8478 = vunpack.c.l.s4 1934713408
        %v8479 = vunpack.c.0.s8 %v8478
        %v8480 = vlaneseq
        %v8481 = vshrl.u32 %v8480, 7
        %v8482 = vsub.s32 %v8479, %v8481
        %v8483 = vrot.slane %v8469, %v8482
        %v8484 = vcombine.high %v8468, 0.0
        %v8486 = vunpack.c.l.s4 1934713408
        %v8487 = vunpack.c.0.s8 %v8486
        %v8488 = vlaneseq
        %v8489 = vshrl.u32 %v8488, 7
        %v8490 = vsub.s32 %v8487, %v8489
        %v8491 = vrot.slane %v8468, %v8490
        %v8493 = vunpack.c.l.s4 1934713408
        %v8494 = vunpack.c.0.s8 %v8493
        %v8495 = vlaneseq
        %v8496 = vshrl.u32 %v8495, 7
        %v8497 = vsub.s32 %v8494, %v8496
        %v8498 = vrot.slane %v8484, %v8497
        %v8499 = vcombine.high %v8476, 0.0
        %v8500 = vcombine.high %v8483, 0.0
        %v8501 = vcombine.high %v8491, 0.0
        %v8502 = vcombine.high %v8498, 0.0
        %v8503 = vcombine.high %v1688, 0.0
        %v8505 = vunpack.c.l.s4 1983009808
        %v8506 = vunpack.c.0.s8 %v8505
        %v8507 = vlaneseq
        %v8508 = vshrl.u32 %v8507, 7
        %v8509 = vsub.s32 %v8506, %v8508
        %v8510 = vrot.slane %v1688, %v8509
        %v8512 = vunpack.c.l.s4 1983009808
        %v8513 = vunpack.c.0.s8 %v8512
        %v8514 = vlaneseq
        %v8515 = vshrl.u32 %v8514, 7
        %v8516 = vsub.s32 %v8513, %v8515
        %v8517 = vrot.slane %v8503, %v8516
        %v8518 = vcombine.high %v8510, 0.0
        %v8520 = vunpack.c.l.s4 1934713408
        %v8521 = vunpack.c.0.s8 %v8520
        %v8522 = vlaneseq
        %v8523 = vshrl.u32 %v8522, 7
        %v8524 = vsub.s32 %v8521, %v8523
        %v8525 = vrot.slane %v8510, %v8524
        %v8527 = vunpack.c.l.s4 1934713408
        %v8528 = vunpack.c.0.s8 %v8527
        %v8529 = vlaneseq
        %v8530 = vshrl.u32 %v8529, 7
        %v8531 = vsub.s32 %v8528, %v8530
        %v8532 = vrot.slane %v8518, %v8531
        %v8533 = vcombine.high %v8517, 0.0
        %v8535 = vunpack.c.l.s4 1934713408
        %v8536 = vunpack.c.0.s8 %v8535
        %v8537 = vlaneseq
        %v8538 = vshrl.u32 %v8537, 7
        %v8539 = vsub.s32 %v8536, %v8538
        %v8540 = vrot.slane %v8517, %v8539
        %v8542 = vunpack.c.l.s4 1934713408
        %v8543 = vunpack.c.0.s8 %v8542
        %v8544 = vlaneseq
        %v8545 = vshrl.u32 %v8544, 7
        %v8546 = vsub.s32 %v8543, %v8545
        %v8547 = vrot.slane %v8533, %v8546
        %v8548 = vcombine.high %v8525, 0.0
        %v8549 = vcombine.high %v8532, 0.0
        %v8550 = vcombine.high %v8540, 0.0
        %v8551 = vcombine.high %v8547, 0.0
        %v8552 = vcombine.high %v1689, 0.0
        %v8554 = vunpack.c.l.s4 1983009808
        %v8555 = vunpack.c.0.s8 %v8554
        %v8556 = vlaneseq
        %v8557 = vshrl.u32 %v8556, 7
        %v8558 = vsub.s32 %v8555, %v8557
        %v8559 = vrot.slane %v1689, %v8558
        %v8561 = vunpack.c.l.s4 1983009808
        %v8562 = vunpack.c.0.s8 %v8561
        %v8563 = vlaneseq
        %v8564 = vshrl.u32 %v8563, 7
        %v8565 = vsub.s32 %v8562, %v8564
        %v8566 = vrot.slane %v8552, %v8565
        %v8567 = vcombine.high %v8559, 0.0
        %v8569 = vunpack.c.l.s4 1934713408
        %v8570 = vunpack.c.0.s8 %v8569
        %v8571 = vlaneseq
        %v8572 = vshrl.u32 %v8571, 7
        %v8573 = vsub.s32 %v8570, %v8572
        %v8574 = vrot.slane %v8559, %v8573
        %v8576 = vunpack.c.l.s4 1934713408
        %v8577 = vunpack.c.0.s8 %v8576
        %v8578 = vlaneseq
        %v8579 = vshrl.u32 %v8578, 7
        %v8580 = vsub.s32 %v8577, %v8579
        %v8581 = vrot.slane %v8567, %v8580
        %v8582 = vcombine.high %v8566, 0.0
        %v8584 = vunpack.c.l.s4 1934713408
        %v8585 = vunpack.c.0.s8 %v8584
        %v8586 = vlaneseq
        %v8587 = vshrl.u32 %v8586, 7
        %v8588 = vsub.s32 %v8585, %v8587
        %v8589 = vrot.slane %v8566, %v8588
        %v8591 = vunpack.c.l.s4 1934713408
        %v8592 = vunpack.c.0.s8 %v8591
        %v8593 = vlaneseq
        %v8594 = vshrl.u32 %v8593, 7
        %v8595 = vsub.s32 %v8592, %v8594
        %v8596 = vrot.slane %v8582, %v8595
        %v8597 = vcombine.high %v8574, 0.0
        %v8598 = vcombine.high %v8581, 0.0
        %v8599 = vcombine.high %v8589, 0.0
        %v8600 = vcombine.high %v8596, 0.0
        %v8601 = vcombine.high %v1690, 0.0
        %v8603 = vunpack.c.l.s4 1983009808
        %v8604 = vunpack.c.0.s8 %v8603
        %v8605 = vlaneseq
        %v8606 = vshrl.u32 %v8605, 7
        %v8607 = vsub.s32 %v8604, %v8606
        %v8608 = vrot.slane %v1690, %v8607
        %v8610 = vunpack.c.l.s4 1983009808
        %v8611 = vunpack.c.0.s8 %v8610
        %v8612 = vlaneseq
        %v8613 = vshrl.u32 %v8612, 7
        %v8614 = vsub.s32 %v8611, %v8613
        %v8615 = vrot.slane %v8601, %v8614
        %v8616 = vcombine.high %v8608, 0.0
        %v8618 = vunpack.c.l.s4 1934713408
        %v8619 = vunpack.c.0.s8 %v8618
        %v8620 = vlaneseq
        %v8621 = vshrl.u32 %v8620, 7
        %v8622 = vsub.s32 %v8619, %v8621
        %v8623 = vrot.slane %v8608, %v8622
        %v8625 = vunpack.c.l.s4 1934713408
        %v8626 = vunpack.c.0.s8 %v8625
        %v8627 = vlaneseq
        %v8628 = vshrl.u32 %v8627, 7
        %v8629 = vsub.s32 %v8626, %v8628
        %v8630 = vrot.slane %v8616, %v8629
        %v8631 = vcombine.high %v8615, 0.0
        %v8633 = vunpack.c.l.s4 1934713408
        %v8634 = vunpack.c.0.s8 %v8633
        %v8635 = vlaneseq
        %v8636 = vshrl.u32 %v8635, 7
        %v8637 = vsub.s32 %v8634, %v8636
        %v8638 = vrot.slane %v8615, %v8637
        %v8640 = vunpack.c.l.s4 1934713408
        %v8641 = vunpack.c.0.s8 %v8640
        %v8642 = vlaneseq
        %v8643 = vshrl.u32 %v8642, 7
        %v8644 = vsub.s32 %v8641, %v8643
        %v8645 = vrot.slane %v8631, %v8644
        %v8646 = vcombine.high %v8623, 0.0
        %v8647 = vcombine.high %v8630, 0.0
        %v8648 = vcombine.high %v8638, 0.0
        %v8649 = vcombine.high %v8645, 0.0
        %v8650 = vcombine.high %v1691, 0.0
        %v8652 = vunpack.c.l.s4 1983009808
        %v8653 = vunpack.c.0.s8 %v8652
        %v8654 = vlaneseq
        %v8655 = vshrl.u32 %v8654, 7
        %v8656 = vsub.s32 %v8653, %v8655
        %v8657 = vrot.slane %v1691, %v8656
        %v8659 = vunpack.c.l.s4 1983009808
        %v8660 = vunpack.c.0.s8 %v8659
        %v8661 = vlaneseq
        %v8662 = vshrl.u32 %v8661, 7
        %v8663 = vsub.s32 %v8660, %v8662
        %v8664 = vrot.slane %v8650, %v8663
        %v8665 = vcombine.high %v8657, 0.0
        %v8667 = vunpack.c.l.s4 1934713408
        %v8668 = vunpack.c.0.s8 %v8667
        %v8669 = vlaneseq
        %v8670 = vshrl.u32 %v8669, 7
        %v8671 = vsub.s32 %v8668, %v8670
        %v8672 = vrot.slane %v8657, %v8671
        %v8674 = vunpack.c.l.s4 1934713408
        %v8675 = vunpack.c.0.s8 %v8674
        %v8676 = vlaneseq
        %v8677 = vshrl.u32 %v8676, 7
        %v8678 = vsub.s32 %v8675, %v8677
        %v8679 = vrot.slane %v8665, %v8678
        %v8680 = vcombine.high %v8664, 0.0
        %v8682 = vunpack.c.l.s4 1934713408
        %v8683 = vunpack.c.0.s8 %v8682
        %v8684 = vlaneseq
        %v8685 = vshrl.u32 %v8684, 7
        %v8686 = vsub.s32 %v8683, %v8685
        %v8687 = vrot.slane %v8664, %v8686
        %v8689 = vunpack.c.l.s4 1934713408
        %v8690 = vunpack.c.0.s8 %v8689
        %v8691 = vlaneseq
        %v8692 = vshrl.u32 %v8691, 7
        %v8693 = vsub.s32 %v8690, %v8692
        %v8694 = vrot.slane %v8680, %v8693
        %v8695 = vcombine.high %v8672, 0.0
        %v8696 = vcombine.high %v8679, 0.0
        %v8697 = vcombine.high %v8687, 0.0
        %v8698 = vcombine.high %v8694, 0.0
        %v8699 = vcombine.high %v1692, 0.0
        %v8701 = vunpack.c.l.s4 1983009808
        %v8702 = vunpack.c.0.s8 %v8701
        %v8703 = vlaneseq
        %v8704 = vshrl.u32 %v8703, 7
        %v8705 = vsub.s32 %v8702, %v8704
        %v8706 = vrot.slane %v1692, %v8705
        %v8708 = vunpack.c.l.s4 1983009808
        %v8709 = vunpack.c.0.s8 %v8708
        %v8710 = vlaneseq
        %v8711 = vshrl.u32 %v8710, 7
        %v8712 = vsub.s32 %v8709, %v8711
        %v8713 = vrot.slane %v8699, %v8712
        %v8714 = vcombine.high %v8706, 0.0
        %v8716 = vunpack.c.l.s4 1934713408
        %v8717 = vunpack.c.0.s8 %v8716
        %v8718 = vlaneseq
        %v8719 = vshrl.u32 %v8718, 7
        %v8720 = vsub.s32 %v8717, %v8719
        %v8721 = vrot.slane %v8706, %v8720
        %v8723 = vunpack.c.l.s4 1934713408
        %v8724 = vunpack.c.0.s8 %v8723
        %v8725 = vlaneseq
        %v8726 = vshrl.u32 %v8725, 7
        %v8727 = vsub.s32 %v8724, %v8726
        %v8728 = vrot.slane %v8714, %v8727
        %v8729 = vcombine.high %v8713, 0.0
        %v8731 = vunpack.c.l.s4 1934713408
        %v8732 = vunpack.c.0.s8 %v8731
        %v8733 = vlaneseq
        %v8734 = vshrl.u32 %v8733, 7
        %v8735 = vsub.s32 %v8732, %v8734
        %v8736 = vrot.slane %v8713, %v8735
        %v8738 = vunpack.c.l.s4 1934713408
        %v8739 = vunpack.c.0.s8 %v8738
        %v8740 = vlaneseq
        %v8741 = vshrl.u32 %v8740, 7
        %v8742 = vsub.s32 %v8739, %v8741
        %v8743 = vrot.slane %v8729, %v8742
        %v8744 = vcombine.high %v8721, 0.0
        %v8745 = vcombine.high %v8728, 0.0
        %v8746 = vcombine.high %v8736, 0.0
        %v8747 = vcombine.high %v8743, 0.0
        %v8748 = vcombine.high %v1693, 0.0
        %v8750 = vunpack.c.l.s4 1983009808
        %v8751 = vunpack.c.0.s8 %v8750
        %v8752 = vlaneseq
        %v8753 = vshrl.u32 %v8752, 7
        %v8754 = vsub.s32 %v8751, %v8753
        %v8755 = vrot.slane %v1693, %v8754
        %v8757 = vunpack.c.l.s4 1983009808
        %v8758 = vunpack.c.0.s8 %v8757
        %v8759 = vlaneseq
        %v8760 = vshrl.u32 %v8759, 7
        %v8761 = vsub.s32 %v8758, %v8760
        %v8762 = vrot.slane %v8748, %v8761
        %v8763 = vcombine.high %v8755, 0.0
        %v8765 = vunpack.c.l.s4 1934713408
        %v8766 = vunpack.c.0.s8 %v8765
        %v8767 = vlaneseq
        %v8768 = vshrl.u32 %v8767, 7
        %v8769 = vsub.s32 %v8766, %v8768
        %v8770 = vrot.slane %v8755, %v8769
        %v8772 = vunpack.c.l.s4 1934713408
        %v8773 = vunpack.c.0.s8 %v8772
        %v8774 = vlaneseq
        %v8775 = vshrl.u32 %v8774, 7
        %v8776 = vsub.s32 %v8773, %v8775
        %v8777 = vrot.slane %v8763, %v8776
        %v8778 = vcombine.high %v8762, 0.0
        %v8780 = vunpack.c.l.s4 1934713408
        %v8781 = vunpack.c.0.s8 %v8780
        %v8782 = vlaneseq
        %v8783 = vshrl.u32 %v8782, 7
        %v8784 = vsub.s32 %v8781, %v8783
        %v8785 = vrot.slane %v8762, %v8784
        %v8787 = vunpack.c.l.s4 1934713408
        %v8788 = vunpack.c.0.s8 %v8787
        %v8789 = vlaneseq
        %v8790 = vshrl.u32 %v8789, 7
        %v8791 = vsub.s32 %v8788, %v8790
        %v8792 = vrot.slane %v8778, %v8791
        %v8793 = vcombine.high %v8770, 0.0
        %v8794 = vcombine.high %v8777, 0.0
        %v8795 = vcombine.high %v8785, 0.0
        %v8796 = vcombine.high %v8792, 0.0
        %v8797 = vcombine.high %v1694, 0.0
        %v8799 = vunpack.c.l.s4 1983009808
        %v8800 = vunpack.c.0.s8 %v8799
        %v8801 = vlaneseq
        %v8802 = vshrl.u32 %v8801, 7
        %v8803 = vsub.s32 %v8800, %v8802
        %v8804 = vrot.slane %v1694, %v8803
        %v8806 = vunpack.c.l.s4 1983009808
        %v8807 = vunpack.c.0.s8 %v8806
        %v8808 = vlaneseq
        %v8809 = vshrl.u32 %v8808, 7
        %v8810 = vsub.s32 %v8807, %v8809
        %v8811 = vrot.slane %v8797, %v8810
        %v8812 = vcombine.high %v8804, 0.0
        %v8814 = vunpack.c.l.s4 1934713408
        %v8815 = vunpack.c.0.s8 %v8814
        %v8816 = vlaneseq
        %v8817 = vshrl.u32 %v8816, 7
        %v8818 = vsub.s32 %v8815, %v8817
        %v8819 = vrot.slane %v8804, %v8818
        %v8821 = vunpack.c.l.s4 1934713408
        %v8822 = vunpack.c.0.s8 %v8821
        %v8823 = vlaneseq
        %v8824 = vshrl.u32 %v8823, 7
        %v8825 = vsub.s32 %v8822, %v8824
        %v8826 = vrot.slane %v8812, %v8825
        %v8827 = vcombine.high %v8811, 0.0
        %v8829 = vunpack.c.l.s4 1934713408
        %v8830 = vunpack.c.0.s8 %v8829
        %v8831 = vlaneseq
        %v8832 = vshrl.u32 %v8831, 7
        %v8833 = vsub.s32 %v8830, %v8832
        %v8834 = vrot.slane %v8811, %v8833
        %v8836 = vunpack.c.l.s4 1934713408
        %v8837 = vunpack.c.0.s8 %v8836
        %v8838 = vlaneseq
        %v8839 = vshrl.u32 %v8838, 7
        %v8840 = vsub.s32 %v8837, %v8839
        %v8841 = vrot.slane %v8827, %v8840
        %v8842 = vcombine.high %v8819, 0.0
        %v8843 = vcombine.high %v8826, 0.0
        %v8844 = vcombine.high %v8834, 0.0
        %v8845 = vcombine.high %v8841, 0.0
        %v8846 = vcombine.high %v1695, 0.0
        %v8848 = vunpack.c.l.s4 1983009808
        %v8849 = vunpack.c.0.s8 %v8848
        %v8850 = vlaneseq
        %v8851 = vshrl.u32 %v8850, 7
        %v8852 = vsub.s32 %v8849, %v8851
        %v8853 = vrot.slane %v1695, %v8852
        %v8855 = vunpack.c.l.s4 1983009808
        %v8856 = vunpack.c.0.s8 %v8855
        %v8857 = vlaneseq
        %v8858 = vshrl.u32 %v8857, 7
        %v8859 = vsub.s32 %v8856, %v8858
        %v8860 = vrot.slane %v8846, %v8859
        %v8861 = vcombine.high %v8853, 0.0
        %v8863 = vunpack.c.l.s4 1934713408
        %v8864 = vunpack.c.0.s8 %v8863
        %v8865 = vlaneseq
        %v8866 = vshrl.u32 %v8865, 7
        %v8867 = vsub.s32 %v8864, %v8866
        %v8868 = vrot.slane %v8853, %v8867
        %v8870 = vunpack.c.l.s4 1934713408
        %v8871 = vunpack.c.0.s8 %v8870
        %v8872 = vlaneseq
        %v8873 = vshrl.u32 %v8872, 7
        %v8874 = vsub.s32 %v8871, %v8873
        %v8875 = vrot.slane %v8861, %v8874
        %v8876 = vcombine.high %v8860, 0.0
        %v8878 = vunpack.c.l.s4 1934713408
        %v8879 = vunpack.c.0.s8 %v8878
        %v8880 = vlaneseq
        %v8881 = vshrl.u32 %v8880, 7
        %v8882 = vsub.s32 %v8879, %v8881
        %v8883 = vrot.slane %v8860, %v8882
        %v8885 = vunpack.c.l.s4 1934713408
        %v8886 = vunpack.c.0.s8 %v8885
        %v8887 = vlaneseq
        %v8888 = vshrl.u32 %v8887, 7
        %v8889 = vsub.s32 %v8886, %v8888
        %v8890 = vrot.slane %v8876, %v8889
        %v8891 = vcombine.high %v8868, 0.0
        %v8892 = vcombine.high %v8875, 0.0
        %v8893 = vcombine.high %v8883, 0.0
        %v8894 = vcombine.high %v8890, 0.0
        %v8895 = vcombine.high %v1696, 0.0
        %v8897 = vunpack.c.l.s4 1983009808
        %v8898 = vunpack.c.0.s8 %v8897
        %v8899 = vlaneseq
        %v8900 = vshrl.u32 %v8899, 7
        %v8901 = vsub.s32 %v8898, %v8900
        %v8902 = vrot.slane %v1696, %v8901
        %v8904 = vunpack.c.l.s4 1983009808
        %v8905 = vunpack.c.0.s8 %v8904
        %v8906 = vlaneseq
        %v8907 = vshrl.u32 %v8906, 7
        %v8908 = vsub.s32 %v8905, %v8907
        %v8909 = vrot.slane %v8895, %v8908
        %v8910 = vcombine.high %v8902, 0.0
        %v8912 = vunpack.c.l.s4 1934713408
        %v8913 = vunpack.c.0.s8 %v8912
        %v8914 = vlaneseq
        %v8915 = vshrl.u32 %v8914, 7
        %v8916 = vsub.s32 %v8913, %v8915
        %v8917 = vrot.slane %v8902, %v8916
        %v8919 = vunpack.c.l.s4 1934713408
        %v8920 = vunpack.c.0.s8 %v8919
        %v8921 = vlaneseq
        %v8922 = vshrl.u32 %v8921, 7
        %v8923 = vsub.s32 %v8920, %v8922
        %v8924 = vrot.slane %v8910, %v8923
        %v8925 = vcombine.high %v8909, 0.0
        %v8927 = vunpack.c.l.s4 1934713408
        %v8928 = vunpack.c.0.s8 %v8927
        %v8929 = vlaneseq
        %v8930 = vshrl.u32 %v8929, 7
        %v8931 = vsub.s32 %v8928, %v8930
        %v8932 = vrot.slane %v8909, %v8931
        %v8934 = vunpack.c.l.s4 1934713408
        %v8935 = vunpack.c.0.s8 %v8934
        %v8936 = vlaneseq
        %v8937 = vshrl.u32 %v8936, 7
        %v8938 = vsub.s32 %v8935, %v8937
        %v8939 = vrot.slane %v8925, %v8938
        %v8940 = vcombine.high %v8917, 0.0
        %v8941 = vcombine.high %v8924, 0.0
        %v8942 = vcombine.high %v8932, 0.0
        %v8943 = vcombine.high %v8939, 0.0
        %v8944 = vcombine.high %v1697, 0.0
        %v8946 = vunpack.c.l.s4 1983009808
        %v8947 = vunpack.c.0.s8 %v8946
        %v8948 = vlaneseq
        %v8949 = vshrl.u32 %v8948, 7
        %v8950 = vsub.s32 %v8947, %v8949
        %v8951 = vrot.slane %v1697, %v8950
        %v8953 = vunpack.c.l.s4 1983009808
        %v8954 = vunpack.c.0.s8 %v8953
        %v8955 = vlaneseq
        %v8956 = vshrl.u32 %v8955, 7
        %v8957 = vsub.s32 %v8954, %v8956
        %v8958 = vrot.slane %v8944, %v8957
        %v8959 = vcombine.high %v8951, 0.0
        %v8961 = vunpack.c.l.s4 1934713408
        %v8962 = vunpack.c.0.s8 %v8961
        %v8963 = vlaneseq
        %v8964 = vshrl.u32 %v8963, 7
        %v8965 = vsub.s32 %v8962, %v8964
        %v8966 = vrot.slane %v8951, %v8965
        %v8968 = vunpack.c.l.s4 1934713408
        %v8969 = vunpack.c.0.s8 %v8968
        %v8970 = vlaneseq
        %v8971 = vshrl.u32 %v8970, 7
        %v8972 = vsub.s32 %v8969, %v8971
        %v8973 = vrot.slane %v8959, %v8972
        %v8974 = vcombine.high %v8958, 0.0
        %v8976 = vunpack.c.l.s4 1934713408
        %v8977 = vunpack.c.0.s8 %v8976
        %v8978 = vlaneseq
        %v8979 = vshrl.u32 %v8978, 7
        %v8980 = vsub.s32 %v8977, %v8979
        %v8981 = vrot.slane %v8958, %v8980
        %v8983 = vunpack.c.l.s4 1934713408
        %v8984 = vunpack.c.0.s8 %v8983
        %v8985 = vlaneseq
        %v8986 = vshrl.u32 %v8985, 7
        %v8987 = vsub.s32 %v8984, %v8986
        %v8988 = vrot.slane %v8974, %v8987
        %v8989 = vcombine.high %v8966, 0.0
        %v8990 = vcombine.high %v8973, 0.0
        %v8991 = vcombine.high %v8981, 0.0
        %v8992 = vcombine.high %v8988, 0.0
        %v8993 = vcombine.high %v1698, 0.0
        %v8995 = vunpack.c.l.s4 1983009808
        %v8996 = vunpack.c.0.s8 %v8995
        %v8997 = vlaneseq
        %v8998 = vshrl.u32 %v8997, 7
        %v8999 = vsub.s32 %v8996, %v8998
        %v9000 = vrot.slane %v1698, %v8999
        %v9002 = vunpack.c.l.s4 1983009808
        %v9003 = vunpack.c.0.s8 %v9002
        %v9004 = vlaneseq
        %v9005 = vshrl.u32 %v9004, 7
        %v9006 = vsub.s32 %v9003, %v9005
        %v9007 = vrot.slane %v8993, %v9006
        %v9008 = vcombine.high %v9000, 0.0
        %v9010 = vunpack.c.l.s4 1934713408
        %v9011 = vunpack.c.0.s8 %v9010
        %v9012 = vlaneseq
        %v9013 = vshrl.u32 %v9012, 7
        %v9014 = vsub.s32 %v9011, %v9013
        %v9015 = vrot.slane %v9000, %v9014
        %v9017 = vunpack.c.l.s4 1934713408
        %v9018 = vunpack.c.0.s8 %v9017
        %v9019 = vlaneseq
        %v9020 = vshrl.u32 %v9019, 7
        %v9021 = vsub.s32 %v9018, %v9020
        %v9022 = vrot.slane %v9008, %v9021
        %v9023 = vcombine.high %v9007, 0.0
        %v9025 = vunpack.c.l.s4 1934713408
        %v9026 = vunpack.c.0.s8 %v9025
        %v9027 = vlaneseq
        %v9028 = vshrl.u32 %v9027, 7
        %v9029 = vsub.s32 %v9026, %v9028
        %v9030 = vrot.slane %v9007, %v9029
        %v9032 = vunpack.c.l.s4 1934713408
        %v9033 = vunpack.c.0.s8 %v9032
        %v9034 = vlaneseq
        %v9035 = vshrl.u32 %v9034, 7
        %v9036 = vsub.s32 %v9033, %v9035
        %v9037 = vrot.slane %v9023, %v9036
        %v9038 = vcombine.high %v9015, 0.0
        %v9039 = vcombine.high %v9022, 0.0
        %v9040 = vcombine.high %v9030, 0.0
        %v9041 = vcombine.high %v9037, 0.0
        %v9042 = vcombine.high %v1699, 0.0
        %v9044 = vunpack.c.l.s4 1983009808
        %v9045 = vunpack.c.0.s8 %v9044
        %v9046 = vlaneseq
        %v9047 = vshrl.u32 %v9046, 7
        %v9048 = vsub.s32 %v9045, %v9047
        %v9049 = vrot.slane %v1699, %v9048
        %v9051 = vunpack.c.l.s4 1983009808
        %v9052 = vunpack.c.0.s8 %v9051
        %v9053 = vlaneseq
        %v9054 = vshrl.u32 %v9053, 7
        %v9055 = vsub.s32 %v9052, %v9054
        %v9056 = vrot.slane %v9042, %v9055
        %v9057 = vcombine.high %v9049, 0.0
        %v9059 = vunpack.c.l.s4 1934713408
        %v9060 = vunpack.c.0.s8 %v9059
        %v9061 = vlaneseq
        %v9062 = vshrl.u32 %v9061, 7
        %v9063 = vsub.s32 %v9060, %v9062
        %v9064 = vrot.slane %v9049, %v9063
        %v9066 = vunpack.c.l.s4 1934713408
        %v9067 = vunpack.c.0.s8 %v9066
        %v9068 = vlaneseq
        %v9069 = vshrl.u32 %v9068, 7
        %v9070 = vsub.s32 %v9067, %v9069
        %v9071 = vrot.slane %v9057, %v9070
        %v9072 = vcombine.high %v9056, 0.0
        %v9074 = vunpack.c.l.s4 1934713408
        %v9075 = vunpack.c.0.s8 %v9074
        %v9076 = vlaneseq
        %v9077 = vshrl.u32 %v9076, 7
        %v9078 = vsub.s32 %v9075, %v9077
        %v9079 = vrot.slane %v9056, %v9078
        %v9081 = vunpack.c.l.s4 1934713408
        %v9082 = vunpack.c.0.s8 %v9081
        %v9083 = vlaneseq
        %v9084 = vshrl.u32 %v9083, 7
        %v9085 = vsub.s32 %v9082, %v9084
        %v9086 = vrot.slane %v9072, %v9085
        %v9087 = vcombine.high %v9064, 0.0
        %v9088 = vcombine.high %v9071, 0.0
        %v9089 = vcombine.high %v9079, 0.0
        %v9090 = vcombine.high %v9086, 0.0
        %v9091 = vcombine.high %v1700, 0.0
        %v9093 = vunpack.c.l.s4 1983009808
        %v9094 = vunpack.c.0.s8 %v9093
        %v9095 = vlaneseq
        %v9096 = vshrl.u32 %v9095, 7
        %v9097 = vsub.s32 %v9094, %v9096
        %v9098 = vrot.slane %v1700, %v9097
        %v9100 = vunpack.c.l.s4 1983009808
        %v9101 = vunpack.c.0.s8 %v9100
        %v9102 = vlaneseq
        %v9103 = vshrl.u32 %v9102, 7
        %v9104 = vsub.s32 %v9101, %v9103
        %v9105 = vrot.slane %v9091, %v9104
        %v9106 = vcombine.high %v9098, 0.0
        %v9108 = vunpack.c.l.s4 1934713408
        %v9109 = vunpack.c.0.s8 %v9108
        %v9110 = vlaneseq
        %v9111 = vshrl.u32 %v9110, 7
        %v9112 = vsub.s32 %v9109, %v9111
        %v9113 = vrot.slane %v9098, %v9112
        %v9115 = vunpack.c.l.s4 1934713408
        %v9116 = vunpack.c.0.s8 %v9115
        %v9117 = vlaneseq
        %v9118 = vshrl.u32 %v9117, 7
        %v9119 = vsub.s32 %v9116, %v9118
        %v9120 = vrot.slane %v9106, %v9119
        %v9121 = vcombine.high %v9105, 0.0
        %v9123 = vunpack.c.l.s4 1934713408
        %v9124 = vunpack.c.0.s8 %v9123
        %v9125 = vlaneseq
        %v9126 = vshrl.u32 %v9125, 7
        %v9127 = vsub.s32 %v9124, %v9126
        %v9128 = vrot.slane %v9105, %v9127
        %v9130 = vunpack.c.l.s4 1934713408
        %v9131 = vunpack.c.0.s8 %v9130
        %v9132 = vlaneseq
        %v9133 = vshrl.u32 %v9132, 7
        %v9134 = vsub.s32 %v9131, %v9133
        %v9135 = vrot.slane %v9121, %v9134
        %v9136 = vcombine.high %v9113, 0.0
        %v9137 = vcombine.high %v9120, 0.0
        %v9138 = vcombine.high %v9128, 0.0
        %v9139 = vcombine.high %v9135, 0.0
        %v9140 = vcombine.high %v1701, 0.0
        %v9142 = vunpack.c.l.s4 1983009808
        %v9143 = vunpack.c.0.s8 %v9142
        %v9144 = vlaneseq
        %v9145 = vshrl.u32 %v9144, 7
        %v9146 = vsub.s32 %v9143, %v9145
        %v9147 = vrot.slane %v1701, %v9146
        %v9149 = vunpack.c.l.s4 1983009808
        %v9150 = vunpack.c.0.s8 %v9149
        %v9151 = vlaneseq
        %v9152 = vshrl.u32 %v9151, 7
        %v9153 = vsub.s32 %v9150, %v9152
        %v9154 = vrot.slane %v9140, %v9153
        %v9155 = vcombine.high %v9147, 0.0
        %v9157 = vunpack.c.l.s4 1934713408
        %v9158 = vunpack.c.0.s8 %v9157
        %v9159 = vlaneseq
        %v9160 = vshrl.u32 %v9159, 7
        %v9161 = vsub.s32 %v9158, %v9160
        %v9162 = vrot.slane %v9147, %v9161
        %v9164 = vunpack.c.l.s4 1934713408
        %v9165 = vunpack.c.0.s8 %v9164
        %v9166 = vlaneseq
        %v9167 = vshrl.u32 %v9166, 7
        %v9168 = vsub.s32 %v9165, %v9167
        %v9169 = vrot.slane %v9155, %v9168
        %v9170 = vcombine.high %v9154, 0.0
        %v9172 = vunpack.c.l.s4 1934713408
        %v9173 = vunpack.c.0.s8 %v9172
        %v9174 = vlaneseq
        %v9175 = vshrl.u32 %v9174, 7
        %v9176 = vsub.s32 %v9173, %v9175
        %v9177 = vrot.slane %v9154, %v9176
        %v9179 = vunpack.c.l.s4 1934713408
        %v9180 = vunpack.c.0.s8 %v9179
        %v9181 = vlaneseq
        %v9182 = vshrl.u32 %v9181, 7
        %v9183 = vsub.s32 %v9180, %v9182
        %v9184 = vrot.slane %v9170, %v9183
        %v9185 = vcombine.high %v9162, 0.0
        %v9186 = vcombine.high %v9169, 0.0
        %v9187 = vcombine.high %v9177, 0.0
        %v9188 = vcombine.high %v9184, 0.0
        %v9189 = vcombine.high %v1702, 0.0
        %v9191 = vunpack.c.l.s4 1983009808
        %v9192 = vunpack.c.0.s8 %v9191
        %v9193 = vlaneseq
        %v9194 = vshrl.u32 %v9193, 7
        %v9195 = vsub.s32 %v9192, %v9194
        %v9196 = vrot.slane %v1702, %v9195
        %v9198 = vunpack.c.l.s4 1983009808
        %v9199 = vunpack.c.0.s8 %v9198
        %v9200 = vlaneseq
        %v9201 = vshrl.u32 %v9200, 7
        %v9202 = vsub.s32 %v9199, %v9201
        %v9203 = vrot.slane %v9189, %v9202
        %v9204 = vcombine.high %v9196, 0.0
        %v9206 = vunpack.c.l.s4 1934713408
        %v9207 = vunpack.c.0.s8 %v9206
        %v9208 = vlaneseq
        %v9209 = vshrl.u32 %v9208, 7
        %v9210 = vsub.s32 %v9207, %v9209
        %v9211 = vrot.slane %v9196, %v9210
        %v9213 = vunpack.c.l.s4 1934713408
        %v9214 = vunpack.c.0.s8 %v9213
        %v9215 = vlaneseq
        %v9216 = vshrl.u32 %v9215, 7
        %v9217 = vsub.s32 %v9214, %v9216
        %v9218 = vrot.slane %v9204, %v9217
        %v9219 = vcombine.high %v9203, 0.0
        %v9221 = vunpack.c.l.s4 1934713408
        %v9222 = vunpack.c.0.s8 %v9221
        %v9223 = vlaneseq
        %v9224 = vshrl.u32 %v9223, 7
        %v9225 = vsub.s32 %v9222, %v9224
        %v9226 = vrot.slane %v9203, %v9225
        %v9228 = vunpack.c.l.s4 1934713408
        %v9229 = vunpack.c.0.s8 %v9228
        %v9230 = vlaneseq
        %v9231 = vshrl.u32 %v9230, 7
        %v9232 = vsub.s32 %v9229, %v9231
        %v9233 = vrot.slane %v9219, %v9232
        %v9234 = vcombine.high %v9211, 0.0
        %v9235 = vcombine.high %v9218, 0.0
        %v9236 = vcombine.high %v9226, 0.0
        %v9237 = vcombine.high %v9233, 0.0
        %v9238 = vcombine.high %v1703, 0.0
        %v9240 = vunpack.c.l.s4 1983009808
        %v9241 = vunpack.c.0.s8 %v9240
        %v9242 = vlaneseq
        %v9243 = vshrl.u32 %v9242, 7
        %v9244 = vsub.s32 %v9241, %v9243
        %v9245 = vrot.slane %v1703, %v9244
        %v9247 = vunpack.c.l.s4 1983009808
        %v9248 = vunpack.c.0.s8 %v9247
        %v9249 = vlaneseq
        %v9250 = vshrl.u32 %v9249, 7
        %v9251 = vsub.s32 %v9248, %v9250
        %v9252 = vrot.slane %v9238, %v9251
        %v9253 = vcombine.high %v9245, 0.0
        %v9255 = vunpack.c.l.s4 1934713408
        %v9256 = vunpack.c.0.s8 %v9255
        %v9257 = vlaneseq
        %v9258 = vshrl.u32 %v9257, 7
        %v9259 = vsub.s32 %v9256, %v9258
        %v9260 = vrot.slane %v9245, %v9259
        %v9262 = vunpack.c.l.s4 1934713408
        %v9263 = vunpack.c.0.s8 %v9262
        %v9264 = vlaneseq
        %v9265 = vshrl.u32 %v9264, 7
        %v9266 = vsub.s32 %v9263, %v9265
        %v9267 = vrot.slane %v9253, %v9266
        %v9268 = vcombine.high %v9252, 0.0
        %v9270 = vunpack.c.l.s4 1934713408
        %v9271 = vunpack.c.0.s8 %v9270
        %v9272 = vlaneseq
        %v9273 = vshrl.u32 %v9272, 7
        %v9274 = vsub.s32 %v9271, %v9273
        %v9275 = vrot.slane %v9252, %v9274
        %v9277 = vunpack.c.l.s4 1934713408
        %v9278 = vunpack.c.0.s8 %v9277
        %v9279 = vlaneseq
        %v9280 = vshrl.u32 %v9279, 7
        %v9281 = vsub.s32 %v9278, %v9280
        %v9282 = vrot.slane %v9268, %v9281
        %v9283 = vcombine.high %v9260, 0.0
        %v9284 = vcombine.high %v9267, 0.0
        %v9285 = vcombine.high %v9275, 0.0
        %v9286 = vcombine.high %v9282, 0.0
        %v9287 = vcombine.high %v1704, 0.0
        %v9289 = vunpack.c.l.s4 1983009808
        %v9290 = vunpack.c.0.s8 %v9289
        %v9291 = vlaneseq
        %v9292 = vshrl.u32 %v9291, 7
        %v9293 = vsub.s32 %v9290, %v9292
        %v9294 = vrot.slane %v1704, %v9293
        %v9296 = vunpack.c.l.s4 1983009808
        %v9297 = vunpack.c.0.s8 %v9296
        %v9298 = vlaneseq
        %v9299 = vshrl.u32 %v9298, 7
        %v9300 = vsub.s32 %v9297, %v9299
        %v9301 = vrot.slane %v9287, %v9300
        %v9302 = vcombine.high %v9294, 0.0
        %v9304 = vunpack.c.l.s4 1934713408
        %v9305 = vunpack.c.0.s8 %v9304
        %v9306 = vlaneseq
        %v9307 = vshrl.u32 %v9306, 7
        %v9308 = vsub.s32 %v9305, %v9307
        %v9309 = vrot.slane %v9294, %v9308
        %v9311 = vunpack.c.l.s4 1934713408
        %v9312 = vunpack.c.0.s8 %v9311
        %v9313 = vlaneseq
        %v9314 = vshrl.u32 %v9313, 7
        %v9315 = vsub.s32 %v9312, %v9314
        %v9316 = vrot.slane %v9302, %v9315
        %v9317 = vcombine.high %v9301, 0.0
        %v9319 = vunpack.c.l.s4 1934713408
        %v9320 = vunpack.c.0.s8 %v9319
        %v9321 = vlaneseq
        %v9322 = vshrl.u32 %v9321, 7
        %v9323 = vsub.s32 %v9320, %v9322
        %v9324 = vrot.slane %v9301, %v9323
        %v9326 = vunpack.c.l.s4 1934713408
        %v9327 = vunpack.c.0.s8 %v9326
        %v9328 = vlaneseq
        %v9329 = vshrl.u32 %v9328, 7
        %v9330 = vsub.s32 %v9327, %v9329
        %v9331 = vrot.slane %v9317, %v9330
        %v9332 = vcombine.high %v9309, 0.0
        %v9333 = vcombine.high %v9316, 0.0
        %v9334 = vcombine.high %v9324, 0.0
        %v9335 = vcombine.high %v9331, 0.0
        %v9336 = vcombine.high %v1705, 0.0
        %v9338 = vunpack.c.l.s4 1983009808
        %v9339 = vunpack.c.0.s8 %v9338
        %v9340 = vlaneseq
        %v9341 = vshrl.u32 %v9340, 7
        %v9342 = vsub.s32 %v9339, %v9341
        %v9343 = vrot.slane %v1705, %v9342
        %v9345 = vunpack.c.l.s4 1983009808
        %v9346 = vunpack.c.0.s8 %v9345
        %v9347 = vlaneseq
        %v9348 = vshrl.u32 %v9347, 7
        %v9349 = vsub.s32 %v9346, %v9348
        %v9350 = vrot.slane %v9336, %v9349
        %v9351 = vcombine.high %v9343, 0.0
        %v9353 = vunpack.c.l.s4 1934713408
        %v9354 = vunpack.c.0.s8 %v9353
        %v9355 = vlaneseq
        %v9356 = vshrl.u32 %v9355, 7
        %v9357 = vsub.s32 %v9354, %v9356
        %v9358 = vrot.slane %v9343, %v9357
        %v9360 = vunpack.c.l.s4 1934713408
        %v9361 = vunpack.c.0.s8 %v9360
        %v9362 = vlaneseq
        %v9363 = vshrl.u32 %v9362, 7
        %v9364 = vsub.s32 %v9361, %v9363
        %v9365 = vrot.slane %v9351, %v9364
        %v9366 = vcombine.high %v9350, 0.0
        %v9368 = vunpack.c.l.s4 1934713408
        %v9369 = vunpack.c.0.s8 %v9368
        %v9370 = vlaneseq
        %v9371 = vshrl.u32 %v9370, 7
        %v9372 = vsub.s32 %v9369, %v9371
        %v9373 = vrot.slane %v9350, %v9372
        %v9375 = vunpack.c.l.s4 1934713408
        %v9376 = vunpack.c.0.s8 %v9375
        %v9377 = vlaneseq
        %v9378 = vshrl.u32 %v9377, 7
        %v9379 = vsub.s32 %v9376, %v9378
        %v9380 = vrot.slane %v9366, %v9379
        %v9381 = vcombine.high %v9358, 0.0
        %v9382 = vcombine.high %v9365, 0.0
        %v9383 = vcombine.high %v9373, 0.0
        %v9384 = vcombine.high %v9380, 0.0
        %v9385 = vcombine.high %v1706, 0.0
        %v9387 = vunpack.c.l.s4 1983009808
        %v9388 = vunpack.c.0.s8 %v9387
        %v9389 = vlaneseq
        %v9390 = vshrl.u32 %v9389, 7
        %v9391 = vsub.s32 %v9388, %v9390
        %v9392 = vrot.slane %v1706, %v9391
        %v9394 = vunpack.c.l.s4 1983009808
        %v9395 = vunpack.c.0.s8 %v9394
        %v9396 = vlaneseq
        %v9397 = vshrl.u32 %v9396, 7
        %v9398 = vsub.s32 %v9395, %v9397
        %v9399 = vrot.slane %v9385, %v9398
        %v9400 = vcombine.high %v9392, 0.0
        %v9402 = vunpack.c.l.s4 1934713408
        %v9403 = vunpack.c.0.s8 %v9402
        %v9404 = vlaneseq
        %v9405 = vshrl.u32 %v9404, 7
        %v9406 = vsub.s32 %v9403, %v9405
        %v9407 = vrot.slane %v9392, %v9406
        %v9409 = vunpack.c.l.s4 1934713408
        %v9410 = vunpack.c.0.s8 %v9409
        %v9411 = vlaneseq
        %v9412 = vshrl.u32 %v9411, 7
        %v9413 = vsub.s32 %v9410, %v9412
        %v9414 = vrot.slane %v9400, %v9413
        %v9415 = vcombine.high %v9399, 0.0
        %v9417 = vunpack.c.l.s4 1934713408
        %v9418 = vunpack.c.0.s8 %v9417
        %v9419 = vlaneseq
        %v9420 = vshrl.u32 %v9419, 7
        %v9421 = vsub.s32 %v9418, %v9420
        %v9422 = vrot.slane %v9399, %v9421
        %v9424 = vunpack.c.l.s4 1934713408
        %v9425 = vunpack.c.0.s8 %v9424
        %v9426 = vlaneseq
        %v9427 = vshrl.u32 %v9426, 7
        %v9428 = vsub.s32 %v9425, %v9427
        %v9429 = vrot.slane %v9415, %v9428
        %v9430 = vcombine.high %v9407, 0.0
        %v9431 = vcombine.high %v9414, 0.0
        %v9432 = vcombine.high %v9422, 0.0
        %v9433 = vcombine.high %v9429, 0.0
        %v9434 = vcombine.high %v1707, 0.0
        %v9436 = vunpack.c.l.s4 1983009808
        %v9437 = vunpack.c.0.s8 %v9436
        %v9438 = vlaneseq
        %v9439 = vshrl.u32 %v9438, 7
        %v9440 = vsub.s32 %v9437, %v9439
        %v9441 = vrot.slane %v1707, %v9440
        %v9443 = vunpack.c.l.s4 1983009808
        %v9444 = vunpack.c.0.s8 %v9443
        %v9445 = vlaneseq
        %v9446 = vshrl.u32 %v9445, 7
        %v9447 = vsub.s32 %v9444, %v9446
        %v9448 = vrot.slane %v9434, %v9447
        %v9449 = vcombine.high %v9441, 0.0
        %v9451 = vunpack.c.l.s4 1934713408
        %v9452 = vunpack.c.0.s8 %v9451
        %v9453 = vlaneseq
        %v9454 = vshrl.u32 %v9453, 7
        %v9455 = vsub.s32 %v9452, %v9454
        %v9456 = vrot.slane %v9441, %v9455
        %v9458 = vunpack.c.l.s4 1934713408
        %v9459 = vunpack.c.0.s8 %v9458
        %v9460 = vlaneseq
        %v9461 = vshrl.u32 %v9460, 7
        %v9462 = vsub.s32 %v9459, %v9461
        %v9463 = vrot.slane %v9449, %v9462
        %v9464 = vcombine.high %v9448, 0.0
        %v9466 = vunpack.c.l.s4 1934713408
        %v9467 = vunpack.c.0.s8 %v9466
        %v9468 = vlaneseq
        %v9469 = vshrl.u32 %v9468, 7
        %v9470 = vsub.s32 %v9467, %v9469
        %v9471 = vrot.slane %v9448, %v9470
        %v9473 = vunpack.c.l.s4 1934713408
        %v9474 = vunpack.c.0.s8 %v9473
        %v9475 = vlaneseq
        %v9476 = vshrl.u32 %v9475, 7
        %v9477 = vsub.s32 %v9474, %v9476
        %v9478 = vrot.slane %v9464, %v9477
        %v9479 = vcombine.high %v9456, 0.0
        %v9480 = vcombine.high %v9463, 0.0
        %v9481 = vcombine.high %v9471, 0.0
        %v9482 = vcombine.high %v9478, 0.0
        %v9483 = vcombine.high %v1708, 0.0
        %v9485 = vunpack.c.l.s4 1983009808
        %v9486 = vunpack.c.0.s8 %v9485
        %v9487 = vlaneseq
        %v9488 = vshrl.u32 %v9487, 7
        %v9489 = vsub.s32 %v9486, %v9488
        %v9490 = vrot.slane %v1708, %v9489
        %v9492 = vunpack.c.l.s4 1983009808
        %v9493 = vunpack.c.0.s8 %v9492
        %v9494 = vlaneseq
        %v9495 = vshrl.u32 %v9494, 7
        %v9496 = vsub.s32 %v9493, %v9495
        %v9497 = vrot.slane %v9483, %v9496
        %v9498 = vcombine.high %v9490, 0.0
        %v9500 = vunpack.c.l.s4 1934713408
        %v9501 = vunpack.c.0.s8 %v9500
        %v9502 = vlaneseq
        %v9503 = vshrl.u32 %v9502, 7
        %v9504 = vsub.s32 %v9501, %v9503
        %v9505 = vrot.slane %v9490, %v9504
        %v9507 = vunpack.c.l.s4 1934713408
        %v9508 = vunpack.c.0.s8 %v9507
        %v9509 = vlaneseq
        %v9510 = vshrl.u32 %v9509, 7
        %v9511 = vsub.s32 %v9508, %v9510
        %v9512 = vrot.slane %v9498, %v9511
        %v9513 = vcombine.high %v9497, 0.0
        %v9515 = vunpack.c.l.s4 1934713408
        %v9516 = vunpack.c.0.s8 %v9515
        %v9517 = vlaneseq
        %v9518 = vshrl.u32 %v9517, 7
        %v9519 = vsub.s32 %v9516, %v9518
        %v9520 = vrot.slane %v9497, %v9519
        %v9522 = vunpack.c.l.s4 1934713408
        %v9523 = vunpack.c.0.s8 %v9522
        %v9524 = vlaneseq
        %v9525 = vshrl.u32 %v9524, 7
        %v9526 = vsub.s32 %v9523, %v9525
        %v9527 = vrot.slane %v9513, %v9526
        %v9528 = vcombine.high %v9505, 0.0
        %v9529 = vcombine.high %v9512, 0.0
        %v9530 = vcombine.high %v9520, 0.0
        %v9531 = vcombine.high %v9527, 0.0
        %v9532 = vcombine.high %v1709, 0.0
        %v9534 = vunpack.c.l.s4 1983009808
        %v9535 = vunpack.c.0.s8 %v9534
        %v9536 = vlaneseq
        %v9537 = vshrl.u32 %v9536, 7
        %v9538 = vsub.s32 %v9535, %v9537
        %v9539 = vrot.slane %v1709, %v9538
        %v9541 = vunpack.c.l.s4 1983009808
        %v9542 = vunpack.c.0.s8 %v9541
        %v9543 = vlaneseq
        %v9544 = vshrl.u32 %v9543, 7
        %v9545 = vsub.s32 %v9542, %v9544
        %v9546 = vrot.slane %v9532, %v9545
        %v9547 = vcombine.high %v9539, 0.0
        %v9549 = vunpack.c.l.s4 1934713408
        %v9550 = vunpack.c.0.s8 %v9549
        %v9551 = vlaneseq
        %v9552 = vshrl.u32 %v9551, 7
        %v9553 = vsub.s32 %v9550, %v9552
        %v9554 = vrot.slane %v9539, %v9553
        %v9556 = vunpack.c.l.s4 1934713408
        %v9557 = vunpack.c.0.s8 %v9556
        %v9558 = vlaneseq
        %v9559 = vshrl.u32 %v9558, 7
        %v9560 = vsub.s32 %v9557, %v9559
        %v9561 = vrot.slane %v9547, %v9560
        %v9562 = vcombine.high %v9546, 0.0
        %v9564 = vunpack.c.l.s4 1934713408
        %v9565 = vunpack.c.0.s8 %v9564
        %v9566 = vlaneseq
        %v9567 = vshrl.u32 %v9566, 7
        %v9568 = vsub.s32 %v9565, %v9567
        %v9569 = vrot.slane %v9546, %v9568
        %v9571 = vunpack.c.l.s4 1934713408
        %v9572 = vunpack.c.0.s8 %v9571
        %v9573 = vlaneseq
        %v9574 = vshrl.u32 %v9573, 7
        %v9575 = vsub.s32 %v9572, %v9574
        %v9576 = vrot.slane %v9562, %v9575
        %v9577 = vcombine.high %v9554, 0.0
        %v9578 = vcombine.high %v9561, 0.0
        %v9579 = vcombine.high %v9569, 0.0
        %v9580 = vcombine.high %v9576, 0.0
        %v9581 = vcombine.high %v1710, 0.0
        %v9583 = vunpack.c.l.s4 1983009808
        %v9584 = vunpack.c.0.s8 %v9583
        %v9585 = vlaneseq
        %v9586 = vshrl.u32 %v9585, 7
        %v9587 = vsub.s32 %v9584, %v9586
        %v9588 = vrot.slane %v1710, %v9587
        %v9590 = vunpack.c.l.s4 1983009808
        %v9591 = vunpack.c.0.s8 %v9590
        %v9592 = vlaneseq
        %v9593 = vshrl.u32 %v9592, 7
        %v9594 = vsub.s32 %v9591, %v9593
        %v9595 = vrot.slane %v9581, %v9594
        %v9596 = vcombine.high %v9588, 0.0
        %v9598 = vunpack.c.l.s4 1934713408
        %v9599 = vunpack.c.0.s8 %v9598
        %v9600 = vlaneseq
        %v9601 = vshrl.u32 %v9600, 7
        %v9602 = vsub.s32 %v9599, %v9601
        %v9603 = vrot.slane %v9588, %v9602
        %v9605 = vunpack.c.l.s4 1934713408
        %v9606 = vunpack.c.0.s8 %v9605
        %v9607 = vlaneseq
        %v9608 = vshrl.u32 %v9607, 7
        %v9609 = vsub.s32 %v9606, %v9608
        %v9610 = vrot.slane %v9596, %v9609
        %v9611 = vcombine.high %v9595, 0.0
        %v9613 = vunpack.c.l.s4 1934713408
        %v9614 = vunpack.c.0.s8 %v9613
        %v9615 = vlaneseq
        %v9616 = vshrl.u32 %v9615, 7
        %v9617 = vsub.s32 %v9614, %v9616
        %v9618 = vrot.slane %v9595, %v9617
        %v9620 = vunpack.c.l.s4 1934713408
        %v9621 = vunpack.c.0.s8 %v9620
        %v9622 = vlaneseq
        %v9623 = vshrl.u32 %v9622, 7
        %v9624 = vsub.s32 %v9621, %v9623
        %v9625 = vrot.slane %v9611, %v9624
        %v9626 = vcombine.high %v9603, 0.0
        %v9627 = vcombine.high %v9610, 0.0
        %v9628 = vcombine.high %v9618, 0.0
        %v9629 = vcombine.high %v9625, 0.0
        %v9630 = vcombine.high %v1711, 0.0
        %v9632 = vunpack.c.l.s4 1983009808
        %v9633 = vunpack.c.0.s8 %v9632
        %v9634 = vlaneseq
        %v9635 = vshrl.u32 %v9634, 7
        %v9636 = vsub.s32 %v9633, %v9635
        %v9637 = vrot.slane %v1711, %v9636
        %v9639 = vunpack.c.l.s4 1983009808
        %v9640 = vunpack.c.0.s8 %v9639
        %v9641 = vlaneseq
        %v9642 = vshrl.u32 %v9641, 7
        %v9643 = vsub.s32 %v9640, %v9642
        %v9644 = vrot.slane %v9630, %v9643
        %v9645 = vcombine.high %v9637, 0.0
        %v9647 = vunpack.c.l.s4 1934713408
        %v9648 = vunpack.c.0.s8 %v9647
        %v9649 = vlaneseq
        %v9650 = vshrl.u32 %v9649, 7
        %v9651 = vsub.s32 %v9648, %v9650
        %v9652 = vrot.slane %v9637, %v9651
        %v9654 = vunpack.c.l.s4 1934713408
        %v9655 = vunpack.c.0.s8 %v9654
        %v9656 = vlaneseq
        %v9657 = vshrl.u32 %v9656, 7
        %v9658 = vsub.s32 %v9655, %v9657
        %v9659 = vrot.slane %v9645, %v9658
        %v9660 = vcombine.high %v9644, 0.0
        %v9662 = vunpack.c.l.s4 1934713408
        %v9663 = vunpack.c.0.s8 %v9662
        %v9664 = vlaneseq
        %v9665 = vshrl.u32 %v9664, 7
        %v9666 = vsub.s32 %v9663, %v9665
        %v9667 = vrot.slane %v9644, %v9666
        %v9669 = vunpack.c.l.s4 1934713408
        %v9670 = vunpack.c.0.s8 %v9669
        %v9671 = vlaneseq
        %v9672 = vshrl.u32 %v9671, 7
        %v9673 = vsub.s32 %v9670, %v9672
        %v9674 = vrot.slane %v9660, %v9673
        %v9675 = vcombine.high %v9652, 0.0
        %v9676 = vcombine.high %v9659, 0.0
        %v9677 = vcombine.high %v9667, 0.0
        %v9678 = vcombine.high %v9674, 0.0
        %v9679 = vcombine.high %v1712, 0.0
        %v9681 = vunpack.c.l.s4 1983009808
        %v9682 = vunpack.c.0.s8 %v9681
        %v9683 = vlaneseq
        %v9684 = vshrl.u32 %v9683, 7
        %v9685 = vsub.s32 %v9682, %v9684
        %v9686 = vrot.slane %v1712, %v9685
        %v9688 = vunpack.c.l.s4 1983009808
        %v9689 = vunpack.c.0.s8 %v9688
        %v9690 = vlaneseq
        %v9691 = vshrl.u32 %v9690, 7
        %v9692 = vsub.s32 %v9689, %v9691
        %v9693 = vrot.slane %v9679, %v9692
        %v9694 = vcombine.high %v9686, 0.0
        %v9696 = vunpack.c.l.s4 1934713408
        %v9697 = vunpack.c.0.s8 %v9696
        %v9698 = vlaneseq
        %v9699 = vshrl.u32 %v9698, 7
        %v9700 = vsub.s32 %v9697, %v9699
        %v9701 = vrot.slane %v9686, %v9700
        %v9703 = vunpack.c.l.s4 1934713408
        %v9704 = vunpack.c.0.s8 %v9703
        %v9705 = vlaneseq
        %v9706 = vshrl.u32 %v9705, 7
        %v9707 = vsub.s32 %v9704, %v9706
        %v9708 = vrot.slane %v9694, %v9707
        %v9709 = vcombine.high %v9693, 0.0
        %v9711 = vunpack.c.l.s4 1934713408
        %v9712 = vunpack.c.0.s8 %v9711
        %v9713 = vlaneseq
        %v9714 = vshrl.u32 %v9713, 7
        %v9715 = vsub.s32 %v9712, %v9714
        %v9716 = vrot.slane %v9693, %v9715
        %v9718 = vunpack.c.l.s4 1934713408
        %v9719 = vunpack.c.0.s8 %v9718
        %v9720 = vlaneseq
        %v9721 = vshrl.u32 %v9720, 7
        %v9722 = vsub.s32 %v9719, %v9721
        %v9723 = vrot.slane %v9709, %v9722
        %v9724 = vcombine.high %v9701, 0.0
        %v9725 = vcombine.high %v9708, 0.0
        %v9726 = vcombine.high %v9716, 0.0
        %v9727 = vcombine.high %v9723, 0.0
        %v9728 = vcombine.high %v1713, 0.0
        %v9730 = vunpack.c.l.s4 1983009808
        %v9731 = vunpack.c.0.s8 %v9730
        %v9732 = vlaneseq
        %v9733 = vshrl.u32 %v9732, 7
        %v9734 = vsub.s32 %v9731, %v9733
        %v9735 = vrot.slane %v1713, %v9734
        %v9737 = vunpack.c.l.s4 1983009808
        %v9738 = vunpack.c.0.s8 %v9737
        %v9739 = vlaneseq
        %v9740 = vshrl.u32 %v9739, 7
        %v9741 = vsub.s32 %v9738, %v9740
        %v9742 = vrot.slane %v9728, %v9741
        %v9743 = vcombine.high %v9735, 0.0
        %v9745 = vunpack.c.l.s4 1934713408
        %v9746 = vunpack.c.0.s8 %v9745
        %v9747 = vlaneseq
        %v9748 = vshrl.u32 %v9747, 7
        %v9749 = vsub.s32 %v9746, %v9748
        %v9750 = vrot.slane %v9735, %v9749
        %v9752 = vunpack.c.l.s4 1934713408
        %v9753 = vunpack.c.0.s8 %v9752
        %v9754 = vlaneseq
        %v9755 = vshrl.u32 %v9754, 7
        %v9756 = vsub.s32 %v9753, %v9755
        %v9757 = vrot.slane %v9743, %v9756
        %v9758 = vcombine.high %v9742, 0.0
        %v9760 = vunpack.c.l.s4 1934713408
        %v9761 = vunpack.c.0.s8 %v9760
        %v9762 = vlaneseq
        %v9763 = vshrl.u32 %v9762, 7
        %v9764 = vsub.s32 %v9761, %v9763
        %v9765 = vrot.slane %v9742, %v9764
        %v9767 = vunpack.c.l.s4 1934713408
        %v9768 = vunpack.c.0.s8 %v9767
        %v9769 = vlaneseq
        %v9770 = vshrl.u32 %v9769, 7
        %v9771 = vsub.s32 %v9768, %v9770
        %v9772 = vrot.slane %v9758, %v9771
        %v9773 = vcombine.high %v9750, 0.0
        %v9774 = vcombine.high %v9757, 0.0
        %v9775 = vcombine.high %v9765, 0.0
        %v9776 = vcombine.high %v9772, 0.0
        %v9777 = vcombine.high %v1714, 0.0
        %v9779 = vunpack.c.l.s4 1983009808
        %v9780 = vunpack.c.0.s8 %v9779
        %v9781 = vlaneseq
        %v9782 = vshrl.u32 %v9781, 7
        %v9783 = vsub.s32 %v9780, %v9782
        %v9784 = vrot.slane %v1714, %v9783
        %v9786 = vunpack.c.l.s4 1983009808
        %v9787 = vunpack.c.0.s8 %v9786
        %v9788 = vlaneseq
        %v9789 = vshrl.u32 %v9788, 7
        %v9790 = vsub.s32 %v9787, %v9789
        %v9791 = vrot.slane %v9777, %v9790
        %v9792 = vcombine.high %v9784, 0.0
        %v9794 = vunpack.c.l.s4 1934713408
        %v9795 = vunpack.c.0.s8 %v9794
        %v9796 = vlaneseq
        %v9797 = vshrl.u32 %v9796, 7
        %v9798 = vsub.s32 %v9795, %v9797
        %v9799 = vrot.slane %v9784, %v9798
        %v9801 = vunpack.c.l.s4 1934713408
        %v9802 = vunpack.c.0.s8 %v9801
        %v9803 = vlaneseq
        %v9804 = vshrl.u32 %v9803, 7
        %v9805 = vsub.s32 %v9802, %v9804
        %v9806 = vrot.slane %v9792, %v9805
        %v9807 = vcombine.high %v9791, 0.0
        %v9809 = vunpack.c.l.s4 1934713408
        %v9810 = vunpack.c.0.s8 %v9809
        %v9811 = vlaneseq
        %v9812 = vshrl.u32 %v9811, 7
        %v9813 = vsub.s32 %v9810, %v9812
        %v9814 = vrot.slane %v9791, %v9813
        %v9816 = vunpack.c.l.s4 1934713408
        %v9817 = vunpack.c.0.s8 %v9816
        %v9818 = vlaneseq
        %v9819 = vshrl.u32 %v9818, 7
        %v9820 = vsub.s32 %v9817, %v9819
        %v9821 = vrot.slane %v9807, %v9820
        %v9822 = vcombine.high %v9799, 0.0
        %v9823 = vcombine.high %v9806, 0.0
        %v9824 = vcombine.high %v9814, 0.0
        %v9825 = vcombine.high %v9821, 0.0
        %v9826 = vcombine.high %v1715, 0.0
        %v9828 = vunpack.c.l.s4 1983009808
        %v9829 = vunpack.c.0.s8 %v9828
        %v9830 = vlaneseq
        %v9831 = vshrl.u32 %v9830, 7
        %v9832 = vsub.s32 %v9829, %v9831
        %v9833 = vrot.slane %v1715, %v9832
        %v9835 = vunpack.c.l.s4 1983009808
        %v9836 = vunpack.c.0.s8 %v9835
        %v9837 = vlaneseq
        %v9838 = vshrl.u32 %v9837, 7
        %v9839 = vsub.s32 %v9836, %v9838
        %v9840 = vrot.slane %v9826, %v9839
        %v9841 = vcombine.high %v9833, 0.0
        %v9843 = vunpack.c.l.s4 1934713408
        %v9844 = vunpack.c.0.s8 %v9843
        %v9845 = vlaneseq
        %v9846 = vshrl.u32 %v9845, 7
        %v9847 = vsub.s32 %v9844, %v9846
        %v9848 = vrot.slane %v9833, %v9847
        %v9850 = vunpack.c.l.s4 1934713408
        %v9851 = vunpack.c.0.s8 %v9850
        %v9852 = vlaneseq
        %v9853 = vshrl.u32 %v9852, 7
        %v9854 = vsub.s32 %v9851, %v9853
        %v9855 = vrot.slane %v9841, %v9854
        %v9856 = vcombine.high %v9840, 0.0
        %v9858 = vunpack.c.l.s4 1934713408
        %v9859 = vunpack.c.0.s8 %v9858
        %v9860 = vlaneseq
        %v9861 = vshrl.u32 %v9860, 7
        %v9862 = vsub.s32 %v9859, %v9861
        %v9863 = vrot.slane %v9840, %v9862
        %v9865 = vunpack.c.l.s4 1934713408
        %v9866 = vunpack.c.0.s8 %v9865
        %v9867 = vlaneseq
        %v9868 = vshrl.u32 %v9867, 7
        %v9869 = vsub.s32 %v9866, %v9868
        %v9870 = vrot.slane %v9856, %v9869
        %v9871 = vcombine.high %v9848, 0.0
        %v9872 = vcombine.high %v9855, 0.0
        %v9873 = vcombine.high %v9863, 0.0
        %v9874 = vcombine.high %v9870, 0.0
        %v9875 = vcombine.high %v1716, 0.0
        %v9877 = vunpack.c.l.s4 1983009808
        %v9878 = vunpack.c.0.s8 %v9877
        %v9879 = vlaneseq
        %v9880 = vshrl.u32 %v9879, 7
        %v9881 = vsub.s32 %v9878, %v9880
        %v9882 = vrot.slane %v1716, %v9881
        %v9884 = vunpack.c.l.s4 1983009808
        %v9885 = vunpack.c.0.s8 %v9884
        %v9886 = vlaneseq
        %v9887 = vshrl.u32 %v9886, 7
        %v9888 = vsub.s32 %v9885, %v9887
        %v9889 = vrot.slane %v9875, %v9888
        %v9890 = vcombine.high %v9882, 0.0
        %v9892 = vunpack.c.l.s4 1934713408
        %v9893 = vunpack.c.0.s8 %v9892
        %v9894 = vlaneseq
        %v9895 = vshrl.u32 %v9894, 7
        %v9896 = vsub.s32 %v9893, %v9895
        %v9897 = vrot.slane %v9882, %v9896
        %v9899 = vunpack.c.l.s4 1934713408
        %v9900 = vunpack.c.0.s8 %v9899
        %v9901 = vlaneseq
        %v9902 = vshrl.u32 %v9901, 7
        %v9903 = vsub.s32 %v9900, %v9902
        %v9904 = vrot.slane %v9890, %v9903
        %v9905 = vcombine.high %v9889, 0.0
        %v9907 = vunpack.c.l.s4 1934713408
        %v9908 = vunpack.c.0.s8 %v9907
        %v9909 = vlaneseq
        %v9910 = vshrl.u32 %v9909, 7
        %v9911 = vsub.s32 %v9908, %v9910
        %v9912 = vrot.slane %v9889, %v9911
        %v9914 = vunpack.c.l.s4 1934713408
        %v9915 = vunpack.c.0.s8 %v9914
        %v9916 = vlaneseq
        %v9917 = vshrl.u32 %v9916, 7
        %v9918 = vsub.s32 %v9915, %v9917
        %v9919 = vrot.slane %v9905, %v9918
        %v9920 = vcombine.high %v9897, 0.0
        %v9921 = vcombine.high %v9904, 0.0
        %v9922 = vcombine.high %v9912, 0.0
        %v9923 = vcombine.high %v9919, 0.0
        %v9924 = vcombine.high %v1717, 0.0
        %v9926 = vunpack.c.l.s4 1983009808
        %v9927 = vunpack.c.0.s8 %v9926
        %v9928 = vlaneseq
        %v9929 = vshrl.u32 %v9928, 7
        %v9930 = vsub.s32 %v9927, %v9929
        %v9931 = vrot.slane %v1717, %v9930
        %v9933 = vunpack.c.l.s4 1983009808
        %v9934 = vunpack.c.0.s8 %v9933
        %v9935 = vlaneseq
        %v9936 = vshrl.u32 %v9935, 7
        %v9937 = vsub.s32 %v9934, %v9936
        %v9938 = vrot.slane %v9924, %v9937
        %v9939 = vcombine.high %v9931, 0.0
        %v9941 = vunpack.c.l.s4 1934713408
        %v9942 = vunpack.c.0.s8 %v9941
        %v9943 = vlaneseq
        %v9944 = vshrl.u32 %v9943, 7
        %v9945 = vsub.s32 %v9942, %v9944
        %v9946 = vrot.slane %v9931, %v9945
        %v9948 = vunpack.c.l.s4 1934713408
        %v9949 = vunpack.c.0.s8 %v9948
        %v9950 = vlaneseq
        %v9951 = vshrl.u32 %v9950, 7
        %v9952 = vsub.s32 %v9949, %v9951
        %v9953 = vrot.slane %v9939, %v9952
        %v9954 = vcombine.high %v9938, 0.0
        %v9956 = vunpack.c.l.s4 1934713408
        %v9957 = vunpack.c.0.s8 %v9956
        %v9958 = vlaneseq
        %v9959 = vshrl.u32 %v9958, 7
        %v9960 = vsub.s32 %v9957, %v9959
        %v9961 = vrot.slane %v9938, %v9960
        %v9963 = vunpack.c.l.s4 1934713408
        %v9964 = vunpack.c.0.s8 %v9963
        %v9965 = vlaneseq
        %v9966 = vshrl.u32 %v9965, 7
        %v9967 = vsub.s32 %v9964, %v9966
        %v9968 = vrot.slane %v9954, %v9967
        %v9969 = vcombine.high %v9946, 0.0
        %v9970 = vcombine.high %v9953, 0.0
        %v9971 = vcombine.high %v9961, 0.0
        %v9972 = vcombine.high %v9968, 0.0
        %v9973 = vcombine.high %v1718, 0.0
        %v9975 = vunpack.c.l.s4 1983009808
        %v9976 = vunpack.c.0.s8 %v9975
        %v9977 = vlaneseq
        %v9978 = vshrl.u32 %v9977, 7
        %v9979 = vsub.s32 %v9976, %v9978
        %v9980 = vrot.slane %v1718, %v9979
        %v9982 = vunpack.c.l.s4 1983009808
        %v9983 = vunpack.c.0.s8 %v9982
        %v9984 = vlaneseq
        %v9985 = vshrl.u32 %v9984, 7
        %v9986 = vsub.s32 %v9983, %v9985
        %v9987 = vrot.slane %v9973, %v9986
        %v9988 = vcombine.high %v9980, 0.0
        %v9990 = vunpack.c.l.s4 1934713408
        %v9991 = vunpack.c.0.s8 %v9990
        %v9992 = vlaneseq
        %v9993 = vshrl.u32 %v9992, 7
        %v9994 = vsub.s32 %v9991, %v9993
        %v9995 = vrot.slane %v9980, %v9994
        %v9997 = vunpack.c.l.s4 1934713408
        %v9998 = vunpack.c.0.s8 %v9997
        %v9999 = vlaneseq
        %v10000 = vshrl.u32 %v9999, 7
        %v10001 = vsub.s32 %v9998, %v10000
        %v10002 = vrot.slane %v9988, %v10001
        %v10003 = vcombine.high %v9987, 0.0
        %v10005 = vunpack.c.l.s4 1934713408
        %v10006 = vunpack.c.0.s8 %v10005
        %v10007 = vlaneseq
        %v10008 = vshrl.u32 %v10007, 7
        %v10009 = vsub.s32 %v10006, %v10008
        %v10010 = vrot.slane %v9987, %v10009
        %v10012 = vunpack.c.l.s4 1934713408
        %v10013 = vunpack.c.0.s8 %v10012
        %v10014 = vlaneseq
        %v10015 = vshrl.u32 %v10014, 7
        %v10016 = vsub.s32 %v10013, %v10015
        %v10017 = vrot.slane %v10003, %v10016
        %v10018 = vcombine.high %v9995, 0.0
        %v10019 = vcombine.high %v10002, 0.0
        %v10020 = vcombine.high %v10010, 0.0
        %v10021 = vcombine.high %v10017, 0.0
        %v10022 = vcombine.high %v1719, 0.0
        %v10024 = vunpack.c.l.s4 1983009808
        %v10025 = vunpack.c.0.s8 %v10024
        %v10026 = vlaneseq
        %v10027 = vshrl.u32 %v10026, 7
        %v10028 = vsub.s32 %v10025, %v10027
        %v10029 = vrot.slane %v1719, %v10028
        %v10031 = vunpack.c.l.s4 1983009808
        %v10032 = vunpack.c.0.s8 %v10031
        %v10033 = vlaneseq
        %v10034 = vshrl.u32 %v10033, 7
        %v10035 = vsub.s32 %v10032, %v10034
        %v10036 = vrot.slane %v10022, %v10035
        %v10037 = vcombine.high %v10029, 0.0
        %v10039 = vunpack.c.l.s4 1934713408
        %v10040 = vunpack.c.0.s8 %v10039
        %v10041 = vlaneseq
        %v10042 = vshrl.u32 %v10041, 7
        %v10043 = vsub.s32 %v10040, %v10042
        %v10044 = vrot.slane %v10029, %v10043
        %v10046 = vunpack.c.l.s4 1934713408
        %v10047 = vunpack.c.0.s8 %v10046
        %v10048 = vlaneseq
        %v10049 = vshrl.u32 %v10048, 7
        %v10050 = vsub.s32 %v10047, %v10049
        %v10051 = vrot.slane %v10037, %v10050
        %v10052 = vcombine.high %v10036, 0.0
        %v10054 = vunpack.c.l.s4 1934713408
        %v10055 = vunpack.c.0.s8 %v10054
        %v10056 = vlaneseq
        %v10057 = vshrl.u32 %v10056, 7
        %v10058 = vsub.s32 %v10055, %v10057
        %v10059 = vrot.slane %v10036, %v10058
        %v10061 = vunpack.c.l.s4 1934713408
        %v10062 = vunpack.c.0.s8 %v10061
        %v10063 = vlaneseq
        %v10064 = vshrl.u32 %v10063, 7
        %v10065 = vsub.s32 %v10062, %v10064
        %v10066 = vrot.slane %v10052, %v10065
        %v10067 = vcombine.high %v10044, 0.0
        %v10068 = vcombine.high %v10051, 0.0
        %v10069 = vcombine.high %v10059, 0.0
        %v10070 = vcombine.high %v10066, 0.0
        %v10071 = vcombine.high %v1720, 0.0
        %v10073 = vunpack.c.l.s4 1983009808
        %v10074 = vunpack.c.0.s8 %v10073
        %v10075 = vlaneseq
        %v10076 = vshrl.u32 %v10075, 7
        %v10077 = vsub.s32 %v10074, %v10076
        %v10078 = vrot.slane %v1720, %v10077
        %v10080 = vunpack.c.l.s4 1983009808
        %v10081 = vunpack.c.0.s8 %v10080
        %v10082 = vlaneseq
        %v10083 = vshrl.u32 %v10082, 7
        %v10084 = vsub.s32 %v10081, %v10083
        %v10085 = vrot.slane %v10071, %v10084
        %v10086 = vcombine.high %v10078, 0.0
        %v10088 = vunpack.c.l.s4 1934713408
        %v10089 = vunpack.c.0.s8 %v10088
        %v10090 = vlaneseq
        %v10091 = vshrl.u32 %v10090, 7
        %v10092 = vsub.s32 %v10089, %v10091
        %v10093 = vrot.slane %v10078, %v10092
        %v10095 = vunpack.c.l.s4 1934713408
        %v10096 = vunpack.c.0.s8 %v10095
        %v10097 = vlaneseq
        %v10098 = vshrl.u32 %v10097, 7
        %v10099 = vsub.s32 %v10096, %v10098
        %v10100 = vrot.slane %v10086, %v10099
        %v10101 = vcombine.high %v10085, 0.0
        %v10103 = vunpack.c.l.s4 1934713408
        %v10104 = vunpack.c.0.s8 %v10103
        %v10105 = vlaneseq
        %v10106 = vshrl.u32 %v10105, 7
        %v10107 = vsub.s32 %v10104, %v10106
        %v10108 = vrot.slane %v10085, %v10107
        %v10110 = vunpack.c.l.s4 1934713408
        %v10111 = vunpack.c.0.s8 %v10110
        %v10112 = vlaneseq
        %v10113 = vshrl.u32 %v10112, 7
        %v10114 = vsub.s32 %v10111, %v10113
        %v10115 = vrot.slane %v10101, %v10114
        %v10116 = vcombine.high %v10093, 0.0
        %v10117 = vcombine.high %v10100, 0.0
        %v10118 = vcombine.high %v10108, 0.0
        %v10119 = vcombine.high %v10115, 0.0
        %v10120 = vcombine.high %v1721, 0.0
        %v10122 = vunpack.c.l.s4 1983009808
        %v10123 = vunpack.c.0.s8 %v10122
        %v10124 = vlaneseq
        %v10125 = vshrl.u32 %v10124, 7
        %v10126 = vsub.s32 %v10123, %v10125
        %v10127 = vrot.slane %v1721, %v10126
        %v10129 = vunpack.c.l.s4 1983009808
        %v10130 = vunpack.c.0.s8 %v10129
        %v10131 = vlaneseq
        %v10132 = vshrl.u32 %v10131, 7
        %v10133 = vsub.s32 %v10130, %v10132
        %v10134 = vrot.slane %v10120, %v10133
        %v10135 = vcombine.high %v10127, 0.0
        %v10137 = vunpack.c.l.s4 1934713408
        %v10138 = vunpack.c.0.s8 %v10137
        %v10139 = vlaneseq
        %v10140 = vshrl.u32 %v10139, 7
        %v10141 = vsub.s32 %v10138, %v10140
        %v10142 = vrot.slane %v10127, %v10141
        %v10144 = vunpack.c.l.s4 1934713408
        %v10145 = vunpack.c.0.s8 %v10144
        %v10146 = vlaneseq
        %v10147 = vshrl.u32 %v10146, 7
        %v10148 = vsub.s32 %v10145, %v10147
        %v10149 = vrot.slane %v10135, %v10148
        %v10150 = vcombine.high %v10134, 0.0
        %v10152 = vunpack.c.l.s4 1934713408
        %v10153 = vunpack.c.0.s8 %v10152
        %v10154 = vlaneseq
        %v10155 = vshrl.u32 %v10154, 7
        %v10156 = vsub.s32 %v10153, %v10155
        %v10157 = vrot.slane %v10134, %v10156
        %v10159 = vunpack.c.l.s4 1934713408
        %v10160 = vunpack.c.0.s8 %v10159
        %v10161 = vlaneseq
        %v10162 = vshrl.u32 %v10161, 7
        %v10163 = vsub.s32 %v10160, %v10162
        %v10164 = vrot.slane %v10150, %v10163
        %v10165 = vcombine.high %v10142, 0.0
        %v10166 = vcombine.high %v10149, 0.0
        %v10167 = vcombine.high %v10157, 0.0
        %v10168 = vcombine.high %v10164, 0.0
        %v10169 = vcombine.high %v1722, 0.0
        %v10171 = vunpack.c.l.s4 1983009808
        %v10172 = vunpack.c.0.s8 %v10171
        %v10173 = vlaneseq
        %v10174 = vshrl.u32 %v10173, 7
        %v10175 = vsub.s32 %v10172, %v10174
        %v10176 = vrot.slane %v1722, %v10175
        %v10178 = vunpack.c.l.s4 1983009808
        %v10179 = vunpack.c.0.s8 %v10178
        %v10180 = vlaneseq
        %v10181 = vshrl.u32 %v10180, 7
        %v10182 = vsub.s32 %v10179, %v10181
        %v10183 = vrot.slane %v10169, %v10182
        %v10184 = vcombine.high %v10176, 0.0
        %v10186 = vunpack.c.l.s4 1934713408
        %v10187 = vunpack.c.0.s8 %v10186
        %v10188 = vlaneseq
        %v10189 = vshrl.u32 %v10188, 7
        %v10190 = vsub.s32 %v10187, %v10189
        %v10191 = vrot.slane %v10176, %v10190
        %v10193 = vunpack.c.l.s4 1934713408
        %v10194 = vunpack.c.0.s8 %v10193
        %v10195 = vlaneseq
        %v10196 = vshrl.u32 %v10195, 7
        %v10197 = vsub.s32 %v10194, %v10196
        %v10198 = vrot.slane %v10184, %v10197
        %v10199 = vcombine.high %v10183, 0.0
        %v10201 = vunpack.c.l.s4 1934713408
        %v10202 = vunpack.c.0.s8 %v10201
        %v10203 = vlaneseq
        %v10204 = vshrl.u32 %v10203, 7
        %v10205 = vsub.s32 %v10202, %v10204
        %v10206 = vrot.slane %v10183, %v10205
        %v10208 = vunpack.c.l.s4 1934713408
        %v10209 = vunpack.c.0.s8 %v10208
        %v10210 = vlaneseq
        %v10211 = vshrl.u32 %v10210, 7
        %v10212 = vsub.s32 %v10209, %v10211
        %v10213 = vrot.slane %v10199, %v10212
        %v10214 = vcombine.high %v10191, 0.0
        %v10215 = vcombine.high %v10198, 0.0
        %v10216 = vcombine.high %v10206, 0.0
        %v10217 = vcombine.high %v10213, 0.0
        %v10218 = vcombine.high %v1723, 0.0
        %v10220 = vunpack.c.l.s4 1983009808
        %v10221 = vunpack.c.0.s8 %v10220
        %v10222 = vlaneseq
        %v10223 = vshrl.u32 %v10222, 7
        %v10224 = vsub.s32 %v10221, %v10223
        %v10225 = vrot.slane %v1723, %v10224
        %v10227 = vunpack.c.l.s4 1983009808
        %v10228 = vunpack.c.0.s8 %v10227
        %v10229 = vlaneseq
        %v10230 = vshrl.u32 %v10229, 7
        %v10231 = vsub.s32 %v10228, %v10230
        %v10232 = vrot.slane %v10218, %v10231
        %v10233 = vcombine.high %v10225, 0.0
        %v10235 = vunpack.c.l.s4 1934713408
        %v10236 = vunpack.c.0.s8 %v10235
        %v10237 = vlaneseq
        %v10238 = vshrl.u32 %v10237, 7
        %v10239 = vsub.s32 %v10236, %v10238
        %v10240 = vrot.slane %v10225, %v10239
        %v10242 = vunpack.c.l.s4 1934713408
        %v10243 = vunpack.c.0.s8 %v10242
        %v10244 = vlaneseq
        %v10245 = vshrl.u32 %v10244, 7
        %v10246 = vsub.s32 %v10243, %v10245
        %v10247 = vrot.slane %v10233, %v10246
        %v10248 = vcombine.high %v10232, 0.0
        %v10250 = vunpack.c.l.s4 1934713408
        %v10251 = vunpack.c.0.s8 %v10250
        %v10252 = vlaneseq
        %v10253 = vshrl.u32 %v10252, 7
        %v10254 = vsub.s32 %v10251, %v10253
        %v10255 = vrot.slane %v10232, %v10254
        %v10257 = vunpack.c.l.s4 1934713408
        %v10258 = vunpack.c.0.s8 %v10257
        %v10259 = vlaneseq
        %v10260 = vshrl.u32 %v10259, 7
        %v10261 = vsub.s32 %v10258, %v10260
        %v10262 = vrot.slane %v10248, %v10261
        %v10263 = vcombine.high %v10240, 0.0
        %v10264 = vcombine.high %v10247, 0.0
        %v10265 = vcombine.high %v10255, 0.0
        %v10266 = vcombine.high %v10262, 0.0
        %v10267 = vcombine.high %v1724, 0.0
        %v10269 = vunpack.c.l.s4 1983009808
        %v10270 = vunpack.c.0.s8 %v10269
        %v10271 = vlaneseq
        %v10272 = vshrl.u32 %v10271, 7
        %v10273 = vsub.s32 %v10270, %v10272
        %v10274 = vrot.slane %v1724, %v10273
        %v10276 = vunpack.c.l.s4 1983009808
        %v10277 = vunpack.c.0.s8 %v10276
        %v10278 = vlaneseq
        %v10279 = vshrl.u32 %v10278, 7
        %v10280 = vsub.s32 %v10277, %v10279
        %v10281 = vrot.slane %v10267, %v10280
        %v10282 = vcombine.high %v10274, 0.0
        %v10284 = vunpack.c.l.s4 1934713408
        %v10285 = vunpack.c.0.s8 %v10284
        %v10286 = vlaneseq
        %v10287 = vshrl.u32 %v10286, 7
        %v10288 = vsub.s32 %v10285, %v10287
        %v10289 = vrot.slane %v10274, %v10288
        %v10291 = vunpack.c.l.s4 1934713408
        %v10292 = vunpack.c.0.s8 %v10291
        %v10293 = vlaneseq
        %v10294 = vshrl.u32 %v10293, 7
        %v10295 = vsub.s32 %v10292, %v10294
        %v10296 = vrot.slane %v10282, %v10295
        %v10297 = vcombine.high %v10281, 0.0
        %v10299 = vunpack.c.l.s4 1934713408
        %v10300 = vunpack.c.0.s8 %v10299
        %v10301 = vlaneseq
        %v10302 = vshrl.u32 %v10301, 7
        %v10303 = vsub.s32 %v10300, %v10302
        %v10304 = vrot.slane %v10281, %v10303
        %v10306 = vunpack.c.l.s4 1934713408
        %v10307 = vunpack.c.0.s8 %v10306
        %v10308 = vlaneseq
        %v10309 = vshrl.u32 %v10308, 7
        %v10310 = vsub.s32 %v10307, %v10309
        %v10311 = vrot.slane %v10297, %v10310
        %v10312 = vcombine.high %v10289, 0.0
        %v10313 = vcombine.high %v10296, 0.0
        %v10314 = vcombine.high %v10304, 0.0
        %v10315 = vcombine.high %v10311, 0.0
        %v10316 = vcombine.high %v1725, 0.0
        %v10318 = vunpack.c.l.s4 1983009808
        %v10319 = vunpack.c.0.s8 %v10318
        %v10320 = vlaneseq
        %v10321 = vshrl.u32 %v10320, 7
        %v10322 = vsub.s32 %v10319, %v10321
        %v10323 = vrot.slane %v1725, %v10322
        %v10325 = vunpack.c.l.s4 1983009808
        %v10326 = vunpack.c.0.s8 %v10325
        %v10327 = vlaneseq
        %v10328 = vshrl.u32 %v10327, 7
        %v10329 = vsub.s32 %v10326, %v10328
        %v10330 = vrot.slane %v10316, %v10329
        %v10331 = vcombine.high %v10323, 0.0
        %v10333 = vunpack.c.l.s4 1934713408
        %v10334 = vunpack.c.0.s8 %v10333
        %v10335 = vlaneseq
        %v10336 = vshrl.u32 %v10335, 7
        %v10337 = vsub.s32 %v10334, %v10336
        %v10338 = vrot.slane %v10323, %v10337
        %v10340 = vunpack.c.l.s4 1934713408
        %v10341 = vunpack.c.0.s8 %v10340
        %v10342 = vlaneseq
        %v10343 = vshrl.u32 %v10342, 7
        %v10344 = vsub.s32 %v10341, %v10343
        %v10345 = vrot.slane %v10331, %v10344
        %v10346 = vcombine.high %v10330, 0.0
        %v10348 = vunpack.c.l.s4 1934713408
        %v10349 = vunpack.c.0.s8 %v10348
        %v10350 = vlaneseq
        %v10351 = vshrl.u32 %v10350, 7
        %v10352 = vsub.s32 %v10349, %v10351
        %v10353 = vrot.slane %v10330, %v10352
        %v10355 = vunpack.c.l.s4 1934713408
        %v10356 = vunpack.c.0.s8 %v10355
        %v10357 = vlaneseq
        %v10358 = vshrl.u32 %v10357, 7
        %v10359 = vsub.s32 %v10356, %v10358
        %v10360 = vrot.slane %v10346, %v10359
        %v10361 = vcombine.high %v10338, 0.0
        %v10362 = vcombine.high %v10345, 0.0
        %v10363 = vcombine.high %v10353, 0.0
        %v10364 = vcombine.high %v10360, 0.0
        %v10365 = vcombine.high %v1726, 0.0
        %v10367 = vunpack.c.l.s4 1983009808
        %v10368 = vunpack.c.0.s8 %v10367
        %v10369 = vlaneseq
        %v10370 = vshrl.u32 %v10369, 7
        %v10371 = vsub.s32 %v10368, %v10370
        %v10372 = vrot.slane %v1726, %v10371
        %v10374 = vunpack.c.l.s4 1983009808
        %v10375 = vunpack.c.0.s8 %v10374
        %v10376 = vlaneseq
        %v10377 = vshrl.u32 %v10376, 7
        %v10378 = vsub.s32 %v10375, %v10377
        %v10379 = vrot.slane %v10365, %v10378
        %v10380 = vcombine.high %v10372, 0.0
        %v10382 = vunpack.c.l.s4 1934713408
        %v10383 = vunpack.c.0.s8 %v10382
        %v10384 = vlaneseq
        %v10385 = vshrl.u32 %v10384, 7
        %v10386 = vsub.s32 %v10383, %v10385
        %v10387 = vrot.slane %v10372, %v10386
        %v10389 = vunpack.c.l.s4 1934713408
        %v10390 = vunpack.c.0.s8 %v10389
        %v10391 = vlaneseq
        %v10392 = vshrl.u32 %v10391, 7
        %v10393 = vsub.s32 %v10390, %v10392
        %v10394 = vrot.slane %v10380, %v10393
        %v10395 = vcombine.high %v10379, 0.0
        %v10397 = vunpack.c.l.s4 1934713408
        %v10398 = vunpack.c.0.s8 %v10397
        %v10399 = vlaneseq
        %v10400 = vshrl.u32 %v10399, 7
        %v10401 = vsub.s32 %v10398, %v10400
        %v10402 = vrot.slane %v10379, %v10401
        %v10404 = vunpack.c.l.s4 1934713408
        %v10405 = vunpack.c.0.s8 %v10404
        %v10406 = vlaneseq
        %v10407 = vshrl.u32 %v10406, 7
        %v10408 = vsub.s32 %v10405, %v10407
        %v10409 = vrot.slane %v10395, %v10408
        %v10410 = vcombine.high %v10387, 0.0
        %v10411 = vcombine.high %v10394, 0.0
        %v10412 = vcombine.high %v10402, 0.0
        %v10413 = vcombine.high %v10409, 0.0
        %10446 = vrot.lane.b32.xlu0 %v7323, 2
        %v10447 = vpop.permute.xlu0 %10446
        %10448 = vrot.lane.b32.xlu0 %v7421, 2
        %v10449 = vpop.permute.xlu0 %10448
        %10450 = vrot.lane.b32.xlu0 %v7519, 2
        %v10451 = vpop.permute.xlu0 %10450
        %10452 = vrot.lane.b32.xlu0 %v7617, 2
        %v10453 = vpop.permute.xlu0 %10452
        %10454 = vrot.lane.b32.xlu0 %v7715, 2
        %v10455 = vpop.permute.xlu0 %10454
        %10456 = vrot.lane.b32.xlu0 %v7813, 2
        %v10457 = vpop.permute.xlu0 %10456
        %10458 = vrot.lane.b32.xlu0 %v7911, 2
        %v10459 = vpop.permute.xlu0 %10458
        %10460 = vrot.lane.b32.xlu0 %v8009, 2
        %v10461 = vpop.permute.xlu0 %10460
        %10462 = vrot.lane.b32.xlu0 %v8107, 2
        %v10463 = vpop.permute.xlu0 %10462
        %10464 = vrot.lane.b32.xlu0 %v8205, 2
        %v10465 = vpop.permute.xlu0 %10464
        %10466 = vrot.lane.b32.xlu0 %v8303, 2
        %v10467 = vpop.permute.xlu0 %10466
        %10468 = vrot.lane.b32.xlu0 %v8401, 2
        %v10469 = vpop.permute.xlu0 %10468
        %10470 = vrot.lane.b32.xlu0 %v8499, 2
        %v10471 = vpop.permute.xlu0 %10470
        %10472 = vrot.lane.b32.xlu0 %v8597, 2
        %v10473 = vpop.permute.xlu0 %10472
        %10474 = vrot.lane.b32.xlu0 %v8695, 2
        %v10475 = vpop.permute.xlu0 %10474
        %10476 = vrot.lane.b32.xlu0 %v8793, 2
        %v10477 = vpop.permute.xlu0 %10476
        %10478 = vrot.lane.b32.xlu0 %v8891, 2
        %v10479 = vpop.permute.xlu0 %10478
        %10480 = vrot.lane.b32.xlu0 %v8989, 2
        %v10481 = vpop.permute.xlu0 %10480
        %10482 = vrot.lane.b32.xlu0 %v9087, 2
        %v10483 = vpop.permute.xlu0 %10482
        %10484 = vrot.lane.b32.xlu0 %v9185, 2
        %v10485 = vpop.permute.xlu0 %10484
        %10486 = vrot.lane.b32.xlu0 %v9283, 2
        %v10487 = vpop.permute.xlu0 %10486
        %10488 = vrot.lane.b32.xlu0 %v9381, 2
        %v10489 = vpop.permute.xlu0 %10488
        %10490 = vrot.lane.b32.xlu0 %v9479, 2
        %v10491 = vpop.permute.xlu0 %10490
        %10492 = vrot.lane.b32.xlu0 %v9577, 2
        %v10493 = vpop.permute.xlu0 %10492
        %10494 = vrot.lane.b32.xlu0 %v9675, 2
        %v10495 = vpop.permute.xlu0 %10494
        %10496 = vrot.lane.b32.xlu0 %v9773, 2
        %v10497 = vpop.permute.xlu0 %10496
        %10498 = vrot.lane.b32.xlu0 %v9871, 2
        %v10499 = vpop.permute.xlu0 %10498
        %10500 = vrot.lane.b32.xlu0 %v9969, 2
        %v10501 = vpop.permute.xlu0 %10500
        %10502 = vrot.lane.b32.xlu0 %v10067, 2
        %v10503 = vpop.permute.xlu0 %10502
        %10504 = vrot.lane.b32.xlu0 %v10165, 2
        %v10505 = vpop.permute.xlu0 %10504
        %10506 = vrot.lane.b32.xlu0 %v10263, 2
        %v10507 = vpop.permute.xlu0 %10506
        %10508 = vrot.lane.b32.xlu0 %v10361, 2
        %v10509 = vpop.permute.xlu0 %10508
        %10574 = vrot.lane.b32.xlu0 %v7307, 4
        %v10575 = vpop.permute.xlu0 %10574
        %10576 = vrot.lane.b32.xlu0 %v7405, 4
        %v10577 = vpop.permute.xlu0 %10576
        %10578 = vrot.lane.b32.xlu0 %v7503, 4
        %v10579 = vpop.permute.xlu0 %10578
        %10580 = vrot.lane.b32.xlu0 %v7601, 4
        %v10581 = vpop.permute.xlu0 %10580
        %10582 = vrot.lane.b32.xlu0 %v7699, 4
        %v10583 = vpop.permute.xlu0 %10582
        %10584 = vrot.lane.b32.xlu0 %v7797, 4
        %v10585 = vpop.permute.xlu0 %10584
        %10586 = vrot.lane.b32.xlu0 %v7895, 4
        %v10587 = vpop.permute.xlu0 %10586
        %10588 = vrot.lane.b32.xlu0 %v7993, 4
        %v10589 = vpop.permute.xlu0 %10588
        %10590 = vrot.lane.b32.xlu0 %v8091, 4
        %v10591 = vpop.permute.xlu0 %10590
        %10592 = vrot.lane.b32.xlu0 %v8189, 4
        %v10593 = vpop.permute.xlu0 %10592
        %10594 = vrot.lane.b32.xlu0 %v8287, 4
        %v10595 = vpop.permute.xlu0 %10594
        %10596 = vrot.lane.b32.xlu0 %v8385, 4
        %v10597 = vpop.permute.xlu0 %10596
        %10598 = vrot.lane.b32.xlu0 %v8483, 4
        %v10599 = vpop.permute.xlu0 %10598
        %10600 = vrot.lane.b32.xlu0 %v8581, 4
        %v10601 = vpop.permute.xlu0 %10600
        %10602 = vrot.lane.b32.xlu0 %v8679, 4
        %v10603 = vpop.permute.xlu0 %10602
        %10604 = vrot.lane.b32.xlu0 %v8777, 4
        %v10605 = vpop.permute.xlu0 %10604
        %10606 = vrot.lane.b32.xlu0 %v8875, 4
        %v10607 = vpop.permute.xlu0 %10606
        %10608 = vrot.lane.b32.xlu0 %v8973, 4
        %v10609 = vpop.permute.xlu0 %10608
        %10610 = vrot.lane.b32.xlu0 %v9071, 4
        %v10611 = vpop.permute.xlu0 %10610
        %10612 = vrot.lane.b32.xlu0 %v9169, 4
        %v10613 = vpop.permute.xlu0 %10612
        %10614 = vrot.lane.b32.xlu0 %v9267, 4
        %v10615 = vpop.permute.xlu0 %10614
        %10616 = vrot.lane.b32.xlu0 %v9365, 4
        %v10617 = vpop.permute.xlu0 %10616
        %10618 = vrot.lane.b32.xlu0 %v9463, 4
        %v10619 = vpop.permute.xlu0 %10618
        %10620 = vrot.lane.b32.xlu0 %v9561, 4
        %v10621 = vpop.permute.xlu0 %10620
        %10622 = vrot.lane.b32.xlu0 %v9659, 4
        %v10623 = vpop.permute.xlu0 %10622
        %10624 = vrot.lane.b32.xlu0 %v9757, 4
        %v10625 = vpop.permute.xlu0 %10624
        %10626 = vrot.lane.b32.xlu0 %v9855, 4
        %v10627 = vpop.permute.xlu0 %10626
        %10628 = vrot.lane.b32.xlu0 %v9953, 4
        %v10629 = vpop.permute.xlu0 %10628
        %10630 = vrot.lane.b32.xlu0 %v10051, 4
        %v10631 = vpop.permute.xlu0 %10630
        %10632 = vrot.lane.b32.xlu0 %v10149, 4
        %v10633 = vpop.permute.xlu0 %10632
        %10634 = vrot.lane.b32.xlu0 %v10247, 4
        %v10635 = vpop.permute.xlu0 %10634
        %10636 = vrot.lane.b32.xlu0 %v10345, 4
        %v10637 = vpop.permute.xlu0 %10636
        %10702 = vrot.lane.b32.xlu0 %v7324, 6
        %v10703 = vpop.permute.xlu0 %10702
        %10704 = vrot.lane.b32.xlu0 %v7422, 6
        %v10705 = vpop.permute.xlu0 %10704
        %10706 = vrot.lane.b32.xlu0 %v7520, 6
        %v10707 = vpop.permute.xlu0 %10706
        %10708 = vrot.lane.b32.xlu0 %v7618, 6
        %v10709 = vpop.permute.xlu0 %10708
        %10710 = vrot.lane.b32.xlu0 %v7716, 6
        %v10711 = vpop.permute.xlu0 %10710
        %10712 = vrot.lane.b32.xlu0 %v7814, 6
        %v10713 = vpop.permute.xlu0 %10712
        %10714 = vrot.lane.b32.xlu0 %v7912, 6
        %v10715 = vpop.permute.xlu0 %10714
        %10716 = vrot.lane.b32.xlu0 %v8010, 6
        %v10717 = vpop.permute.xlu0 %10716
        %10718 = vrot.lane.b32.xlu0 %v8108, 6
        %v10719 = vpop.permute.xlu0 %10718
        %10720 = vrot.lane.b32.xlu0 %v8206, 6
        %v10721 = vpop.permute.xlu0 %10720
        %10722 = vrot.lane.b32.xlu0 %v8304, 6
        %v10723 = vpop.permute.xlu0 %10722
        %10724 = vrot.lane.b32.xlu0 %v8402, 6
        %v10725 = vpop.permute.xlu0 %10724
        %10726 = vrot.lane.b32.xlu0 %v8500, 6
        %v10727 = vpop.permute.xlu0 %10726
        %10728 = vrot.lane.b32.xlu0 %v8598, 6
        %v10729 = vpop.permute.xlu0 %10728
        %10730 = vrot.lane.b32.xlu0 %v8696, 6
        %v10731 = vpop.permute.xlu0 %10730
        %10732 = vrot.lane.b32.xlu0 %v8794, 6
        %v10733 = vpop.permute.xlu0 %10732
        %10734 = vrot.lane.b32.xlu0 %v8892, 6
        %v10735 = vpop.permute.xlu0 %10734
        %10736 = vrot.lane.b32.xlu0 %v8990, 6
        %v10737 = vpop.permute.xlu0 %10736
        %10738 = vrot.lane.b32.xlu0 %v9088, 6
        %v10739 = vpop.permute.xlu0 %10738
        %10740 = vrot.lane.b32.xlu0 %v9186, 6
        %v10741 = vpop.permute.xlu0 %10740
        %10742 = vrot.lane.b32.xlu0 %v9284, 6
        %v10743 = vpop.permute.xlu0 %10742
        %10744 = vrot.lane.b32.xlu0 %v9382, 6
        %v10745 = vpop.permute.xlu0 %10744
        %10746 = vrot.lane.b32.xlu0 %v9480, 6
        %v10747 = vpop.permute.xlu0 %10746
        %10748 = vrot.lane.b32.xlu0 %v9578, 6
        %v10749 = vpop.permute.xlu0 %10748
        %10750 = vrot.lane.b32.xlu0 %v9676, 6
        %v10751 = vpop.permute.xlu0 %10750
        %10752 = vrot.lane.b32.xlu0 %v9774, 6
        %v10753 = vpop.permute.xlu0 %10752
        %10754 = vrot.lane.b32.xlu0 %v9872, 6
        %v10755 = vpop.permute.xlu0 %10754
        %10756 = vrot.lane.b32.xlu0 %v9970, 6
        %v10757 = vpop.permute.xlu0 %10756
        %10758 = vrot.lane.b32.xlu0 %v10068, 6
        %v10759 = vpop.permute.xlu0 %10758
        %10760 = vrot.lane.b32.xlu0 %v10166, 6
        %v10761 = vpop.permute.xlu0 %10760
        %10762 = vrot.lane.b32.xlu0 %v10264, 6
        %v10763 = vpop.permute.xlu0 %10762
        %10764 = vrot.lane.b32.xlu0 %v10362, 6
        %v10765 = vpop.permute.xlu0 %10764
        %10830 = vrot.lane.b32.xlu0 %v7315, 8
        %v10831 = vpop.permute.xlu0 %10830
        %10832 = vrot.lane.b32.xlu0 %v7413, 8
        %v10833 = vpop.permute.xlu0 %10832
        %10834 = vrot.lane.b32.xlu0 %v7511, 8
        %v10835 = vpop.permute.xlu0 %10834
        %10836 = vrot.lane.b32.xlu0 %v7609, 8
        %v10837 = vpop.permute.xlu0 %10836
        %10838 = vrot.lane.b32.xlu0 %v7707, 8
        %v10839 = vpop.permute.xlu0 %10838
        %10840 = vrot.lane.b32.xlu0 %v7805, 8
        %v10841 = vpop.permute.xlu0 %10840
        %10842 = vrot.lane.b32.xlu0 %v7903, 8
        %v10843 = vpop.permute.xlu0 %10842
        %10844 = vrot.lane.b32.xlu0 %v8001, 8
        %v10845 = vpop.permute.xlu0 %10844
        %10846 = vrot.lane.b32.xlu0 %v8099, 8
        %v10847 = vpop.permute.xlu0 %10846
        %10848 = vrot.lane.b32.xlu0 %v8197, 8
        %v10849 = vpop.permute.xlu0 %10848
        %10850 = vrot.lane.b32.xlu0 %v8295, 8
        %v10851 = vpop.permute.xlu0 %10850
        %10852 = vrot.lane.b32.xlu0 %v8393, 8
        %v10853 = vpop.permute.xlu0 %10852
        %10854 = vrot.lane.b32.xlu0 %v8491, 8
        %v10855 = vpop.permute.xlu0 %10854
        %10856 = vrot.lane.b32.xlu0 %v8589, 8
        %v10857 = vpop.permute.xlu0 %10856
        %10858 = vrot.lane.b32.xlu0 %v8687, 8
        %v10859 = vpop.permute.xlu0 %10858
        %10860 = vrot.lane.b32.xlu0 %v8785, 8
        %v10861 = vpop.permute.xlu0 %10860
        %10862 = vrot.lane.b32.xlu0 %v8883, 8
        %v10863 = vpop.permute.xlu0 %10862
        %10864 = vrot.lane.b32.xlu0 %v8981, 8
        %v10865 = vpop.permute.xlu0 %10864
        %10866 = vrot.lane.b32.xlu0 %v9079, 8
        %v10867 = vpop.permute.xlu0 %10866
        %10868 = vrot.lane.b32.xlu0 %v9177, 8
        %v10869 = vpop.permute.xlu0 %10868
        %10870 = vrot.lane.b32.xlu0 %v9275, 8
        %v10871 = vpop.permute.xlu0 %10870
        %10872 = vrot.lane.b32.xlu0 %v9373, 8
        %v10873 = vpop.permute.xlu0 %10872
        %10874 = vrot.lane.b32.xlu0 %v9471, 8
        %v10875 = vpop.permute.xlu0 %10874
        %10876 = vrot.lane.b32.xlu0 %v9569, 8
        %v10877 = vpop.permute.xlu0 %10876
        %10878 = vrot.lane.b32.xlu0 %v9667, 8
        %v10879 = vpop.permute.xlu0 %10878
        %10880 = vrot.lane.b32.xlu0 %v9765, 8
        %v10881 = vpop.permute.xlu0 %10880
        %10882 = vrot.lane.b32.xlu0 %v9863, 8
        %v10883 = vpop.permute.xlu0 %10882
        %10884 = vrot.lane.b32.xlu0 %v9961, 8
        %v10885 = vpop.permute.xlu0 %10884
        %10886 = vrot.lane.b32.xlu0 %v10059, 8
        %v10887 = vpop.permute.xlu0 %10886
        %10888 = vrot.lane.b32.xlu0 %v10157, 8
        %v10889 = vpop.permute.xlu0 %10888
        %10890 = vrot.lane.b32.xlu0 %v10255, 8
        %v10891 = vpop.permute.xlu0 %10890
        %10892 = vrot.lane.b32.xlu0 %v10353, 8
        %v10893 = vpop.permute.xlu0 %10892
        %10958 = vrot.lane.b32.xlu0 %v7325, 10
        %v10959 = vpop.permute.xlu0 %10958
        %10960 = vrot.lane.b32.xlu0 %v7423, 10
        %v10961 = vpop.permute.xlu0 %10960
        %10962 = vrot.lane.b32.xlu0 %v7521, 10
        %v10963 = vpop.permute.xlu0 %10962
        %10964 = vrot.lane.b32.xlu0 %v7619, 10
        %v10965 = vpop.permute.xlu0 %10964
        %10966 = vrot.lane.b32.xlu0 %v7717, 10
        %v10967 = vpop.permute.xlu0 %10966
        %10968 = vrot.lane.b32.xlu0 %v7815, 10
        %v10969 = vpop.permute.xlu0 %10968
        %10970 = vrot.lane.b32.xlu0 %v7913, 10
        %v10971 = vpop.permute.xlu0 %10970
        %10972 = vrot.lane.b32.xlu0 %v8011, 10
        %v10973 = vpop.permute.xlu0 %10972
        %10974 = vrot.lane.b32.xlu0 %v8109, 10
        %v10975 = vpop.permute.xlu0 %10974
        %10976 = vrot.lane.b32.xlu0 %v8207, 10
        %v10977 = vpop.permute.xlu0 %10976
        %10978 = vrot.lane.b32.xlu0 %v8305, 10
        %v10979 = vpop.permute.xlu0 %10978
        %10980 = vrot.lane.b32.xlu0 %v8403, 10
        %v10981 = vpop.permute.xlu0 %10980
        %10982 = vrot.lane.b32.xlu0 %v8501, 10
        %v10983 = vpop.permute.xlu0 %10982
        %10984 = vrot.lane.b32.xlu0 %v8599, 10
        %v10985 = vpop.permute.xlu0 %10984
        %10986 = vrot.lane.b32.xlu0 %v8697, 10
        %v10987 = vpop.permute.xlu0 %10986
        %10988 = vrot.lane.b32.xlu0 %v8795, 10
        %v10989 = vpop.permute.xlu0 %10988
        %10990 = vrot.lane.b32.xlu0 %v8893, 10
        %v10991 = vpop.permute.xlu0 %10990
        %10992 = vrot.lane.b32.xlu0 %v8991, 10
        %v10993 = vpop.permute.xlu0 %10992
        %10994 = vrot.lane.b32.xlu0 %v9089, 10
        %v10995 = vpop.permute.xlu0 %10994
        %10996 = vrot.lane.b32.xlu0 %v9187, 10
        %v10997 = vpop.permute.xlu0 %10996
        %10998 = vrot.lane.b32.xlu0 %v9285, 10
        %v10999 = vpop.permute.xlu0 %10998
        %11000 = vrot.lane.b32.xlu0 %v9383, 10
        %v11001 = vpop.permute.xlu0 %11000
        %11002 = vrot.lane.b32.xlu0 %v9481, 10
        %v11003 = vpop.permute.xlu0 %11002
        %11004 = vrot.lane.b32.xlu0 %v9579, 10
        %v11005 = vpop.permute.xlu0 %11004
        %11006 = vrot.lane.b32.xlu0 %v9677, 10
        %v11007 = vpop.permute.xlu0 %11006
        %11008 = vrot.lane.b32.xlu0 %v9775, 10
        %v11009 = vpop.permute.xlu0 %11008
        %11010 = vrot.lane.b32.xlu0 %v9873, 10
        %v11011 = vpop.permute.xlu0 %11010
        %11012 = vrot.lane.b32.xlu0 %v9971, 10
        %v11013 = vpop.permute.xlu0 %11012
        %11014 = vrot.lane.b32.xlu0 %v10069, 10
        %v11015 = vpop.permute.xlu0 %11014
        %11016 = vrot.lane.b32.xlu0 %v10167, 10
        %v11017 = vpop.permute.xlu0 %11016
        %11018 = vrot.lane.b32.xlu0 %v10265, 10
        %v11019 = vpop.permute.xlu0 %11018
        %11020 = vrot.lane.b32.xlu0 %v10363, 10
        %v11021 = vpop.permute.xlu0 %11020
        %11086 = vrot.lane.b32.xlu0 %v7322, 12
        %v11087 = vpop.permute.xlu0 %11086
        %11088 = vrot.lane.b32.xlu0 %v7420, 12
        %v11089 = vpop.permute.xlu0 %11088
        %11090 = vrot.lane.b32.xlu0 %v7518, 12
        %v11091 = vpop.permute.xlu0 %11090
        %11092 = vrot.lane.b32.xlu0 %v7616, 12
        %v11093 = vpop.permute.xlu0 %11092
        %11094 = vrot.lane.b32.xlu0 %v7714, 12
        %v11095 = vpop.permute.xlu0 %11094
        %11096 = vrot.lane.b32.xlu0 %v7812, 12
        %v11097 = vpop.permute.xlu0 %11096
        %11098 = vrot.lane.b32.xlu0 %v7910, 12
        %v11099 = vpop.permute.xlu0 %11098
        %11100 = vrot.lane.b32.xlu0 %v8008, 12
        %v11101 = vpop.permute.xlu0 %11100
        %11102 = vrot.lane.b32.xlu0 %v8106, 12
        %v11103 = vpop.permute.xlu0 %11102
        %11104 = vrot.lane.b32.xlu0 %v8204, 12
        %v11105 = vpop.permute.xlu0 %11104
        %11106 = vrot.lane.b32.xlu0 %v8302, 12
        %v11107 = vpop.permute.xlu0 %11106
        %11108 = vrot.lane.b32.xlu0 %v8400, 12
        %v11109 = vpop.permute.xlu0 %11108
        %11110 = vrot.lane.b32.xlu0 %v8498, 12
        %v11111 = vpop.permute.xlu0 %11110
        %11112 = vrot.lane.b32.xlu0 %v8596, 12
        %v11113 = vpop.permute.xlu0 %11112
        %11114 = vrot.lane.b32.xlu0 %v8694, 12
        %v11115 = vpop.permute.xlu0 %11114
        %11116 = vrot.lane.b32.xlu0 %v8792, 12
        %v11117 = vpop.permute.xlu0 %11116
        %11118 = vrot.lane.b32.xlu0 %v8890, 12
        %v11119 = vpop.permute.xlu0 %11118
        %11120 = vrot.lane.b32.xlu0 %v8988, 12
        %v11121 = vpop.permute.xlu0 %11120
        %11122 = vrot.lane.b32.xlu0 %v9086, 12
        %v11123 = vpop.permute.xlu0 %11122
        %11124 = vrot.lane.b32.xlu0 %v9184, 12
        %v11125 = vpop.permute.xlu0 %11124
        %11126 = vrot.lane.b32.xlu0 %v9282, 12
        %v11127 = vpop.permute.xlu0 %11126
        %11128 = vrot.lane.b32.xlu0 %v9380, 12
        %v11129 = vpop.permute.xlu0 %11128
        %11130 = vrot.lane.b32.xlu0 %v9478, 12
        %v11131 = vpop.permute.xlu0 %11130
        %11132 = vrot.lane.b32.xlu0 %v9576, 12
        %v11133 = vpop.permute.xlu0 %11132
        %11134 = vrot.lane.b32.xlu0 %v9674, 12
        %v11135 = vpop.permute.xlu0 %11134
        %11136 = vrot.lane.b32.xlu0 %v9772, 12
        %v11137 = vpop.permute.xlu0 %11136
        %11138 = vrot.lane.b32.xlu0 %v9870, 12
        %v11139 = vpop.permute.xlu0 %11138
        %11140 = vrot.lane.b32.xlu0 %v9968, 12
        %v11141 = vpop.permute.xlu0 %11140
        %11142 = vrot.lane.b32.xlu0 %v10066, 12
        %v11143 = vpop.permute.xlu0 %11142
        %11144 = vrot.lane.b32.xlu0 %v10164, 12
        %v11145 = vpop.permute.xlu0 %11144
        %11146 = vrot.lane.b32.xlu0 %v10262, 12
        %v11147 = vpop.permute.xlu0 %11146
        %11148 = vrot.lane.b32.xlu0 %v10360, 12
        %v11149 = vpop.permute.xlu0 %11148
        %11214 = vrot.lane.b32.xlu0 %v7326, 14
        %v11215 = vpop.permute.xlu0 %11214
        %11216 = vrot.lane.b32.xlu0 %v7424, 14
        %v11217 = vpop.permute.xlu0 %11216
        %11218 = vrot.lane.b32.xlu0 %v7522, 14
        %v11219 = vpop.permute.xlu0 %11218
        %11220 = vrot.lane.b32.xlu0 %v7620, 14
        %v11221 = vpop.permute.xlu0 %11220
        %11222 = vrot.lane.b32.xlu0 %v7718, 14
        %v11223 = vpop.permute.xlu0 %11222
        %11224 = vrot.lane.b32.xlu0 %v7816, 14
        %v11225 = vpop.permute.xlu0 %11224
        %11226 = vrot.lane.b32.xlu0 %v7914, 14
        %v11227 = vpop.permute.xlu0 %11226
        %11228 = vrot.lane.b32.xlu0 %v8012, 14
        %v11229 = vpop.permute.xlu0 %11228
        %11230 = vrot.lane.b32.xlu0 %v8110, 14
        %v11231 = vpop.permute.xlu0 %11230
        %11232 = vrot.lane.b32.xlu0 %v8208, 14
        %v11233 = vpop.permute.xlu0 %11232
        %11234 = vrot.lane.b32.xlu0 %v8306, 14
        %v11235 = vpop.permute.xlu0 %11234
        %11236 = vrot.lane.b32.xlu0 %v8404, 14
        %v11237 = vpop.permute.xlu0 %11236
        %11238 = vrot.lane.b32.xlu0 %v8502, 14
        %v11239 = vpop.permute.xlu0 %11238
        %11240 = vrot.lane.b32.xlu0 %v8600, 14
        %v11241 = vpop.permute.xlu0 %11240
        %11242 = vrot.lane.b32.xlu0 %v8698, 14
        %v11243 = vpop.permute.xlu0 %11242
        %11244 = vrot.lane.b32.xlu0 %v8796, 14
        %v11245 = vpop.permute.xlu0 %11244
        %11246 = vrot.lane.b32.xlu0 %v8894, 14
        %v11247 = vpop.permute.xlu0 %11246
        %11248 = vrot.lane.b32.xlu0 %v8992, 14
        %v11249 = vpop.permute.xlu0 %11248
        %11250 = vrot.lane.b32.xlu0 %v9090, 14
        %v11251 = vpop.permute.xlu0 %11250
        %11252 = vrot.lane.b32.xlu0 %v9188, 14
        %v11253 = vpop.permute.xlu0 %11252
        %11254 = vrot.lane.b32.xlu0 %v9286, 14
        %v11255 = vpop.permute.xlu0 %11254
        %11256 = vrot.lane.b32.xlu0 %v9384, 14
        %v11257 = vpop.permute.xlu0 %11256
        %11258 = vrot.lane.b32.xlu0 %v9482, 14
        %v11259 = vpop.permute.xlu0 %11258
        %11260 = vrot.lane.b32.xlu0 %v9580, 14
        %v11261 = vpop.permute.xlu0 %11260
        %11262 = vrot.lane.b32.xlu0 %v9678, 14
        %v11263 = vpop.permute.xlu0 %11262
        %11264 = vrot.lane.b32.xlu0 %v9776, 14
        %v11265 = vpop.permute.xlu0 %11264
        %11266 = vrot.lane.b32.xlu0 %v9874, 14
        %v11267 = vpop.permute.xlu0 %11266
        %11268 = vrot.lane.b32.xlu0 %v9972, 14
        %v11269 = vpop.permute.xlu0 %11268
        %11270 = vrot.lane.b32.xlu0 %v10070, 14
        %v11271 = vpop.permute.xlu0 %11270
        %11272 = vrot.lane.b32.xlu0 %v10168, 14
        %v11273 = vpop.permute.xlu0 %11272
        %11274 = vrot.lane.b32.xlu0 %v10266, 14
        %v11275 = vpop.permute.xlu0 %11274
        %11276 = vrot.lane.b32.xlu0 %v10364, 14
        %v11277 = vpop.permute.xlu0 %11276
        %11342 = vrot.lane.b32.xlu0 %v7349, 16
        %v11343 = vpop.permute.xlu0 %11342
        %11344 = vrot.lane.b32.xlu0 %v7447, 16
        %v11345 = vpop.permute.xlu0 %11344
        %11346 = vrot.lane.b32.xlu0 %v7545, 16
        %v11347 = vpop.permute.xlu0 %11346
        %11348 = vrot.lane.b32.xlu0 %v7643, 16
        %v11349 = vpop.permute.xlu0 %11348
        %11350 = vrot.lane.b32.xlu0 %v7741, 16
        %v11351 = vpop.permute.xlu0 %11350
        %11352 = vrot.lane.b32.xlu0 %v7839, 16
        %v11353 = vpop.permute.xlu0 %11352
        %11354 = vrot.lane.b32.xlu0 %v7937, 16
        %v11355 = vpop.permute.xlu0 %11354
        %11356 = vrot.lane.b32.xlu0 %v8035, 16
        %v11357 = vpop.permute.xlu0 %11356
        %11358 = vrot.lane.b32.xlu0 %v8133, 16
        %v11359 = vpop.permute.xlu0 %11358
        %11360 = vrot.lane.b32.xlu0 %v8231, 16
        %v11361 = vpop.permute.xlu0 %11360
        %11362 = vrot.lane.b32.xlu0 %v8329, 16
        %v11363 = vpop.permute.xlu0 %11362
        %11364 = vrot.lane.b32.xlu0 %v8427, 16
        %v11365 = vpop.permute.xlu0 %11364
        %11366 = vrot.lane.b32.xlu0 %v8525, 16
        %v11367 = vpop.permute.xlu0 %11366
        %11368 = vrot.lane.b32.xlu0 %v8623, 16
        %v11369 = vpop.permute.xlu0 %11368
        %11370 = vrot.lane.b32.xlu0 %v8721, 16
        %v11371 = vpop.permute.xlu0 %11370
        %11372 = vrot.lane.b32.xlu0 %v8819, 16
        %v11373 = vpop.permute.xlu0 %11372
        %11374 = vrot.lane.b32.xlu0 %v8917, 16
        %v11375 = vpop.permute.xlu0 %11374
        %11376 = vrot.lane.b32.xlu0 %v9015, 16
        %v11377 = vpop.permute.xlu0 %11376
        %11378 = vrot.lane.b32.xlu0 %v9113, 16
        %v11379 = vpop.permute.xlu0 %11378
        %11380 = vrot.lane.b32.xlu0 %v9211, 16
        %v11381 = vpop.permute.xlu0 %11380
        %11382 = vrot.lane.b32.xlu0 %v9309, 16
        %v11383 = vpop.permute.xlu0 %11382
        %11384 = vrot.lane.b32.xlu0 %v9407, 16
        %v11385 = vpop.permute.xlu0 %11384
        %11386 = vrot.lane.b32.xlu0 %v9505, 16
        %v11387 = vpop.permute.xlu0 %11386
        %11388 = vrot.lane.b32.xlu0 %v9603, 16
        %v11389 = vpop.permute.xlu0 %11388
        %11390 = vrot.lane.b32.xlu0 %v9701, 16
        %v11391 = vpop.permute.xlu0 %11390
        %11392 = vrot.lane.b32.xlu0 %v9799, 16
        %v11393 = vpop.permute.xlu0 %11392
        %11394 = vrot.lane.b32.xlu0 %v9897, 16
        %v11395 = vpop.permute.xlu0 %11394
        %11396 = vrot.lane.b32.xlu0 %v9995, 16
        %v11397 = vpop.permute.xlu0 %11396
        %11398 = vrot.lane.b32.xlu0 %v10093, 16
        %v11399 = vpop.permute.xlu0 %11398
        %11400 = vrot.lane.b32.xlu0 %v10191, 16
        %v11401 = vpop.permute.xlu0 %11400
        %11402 = vrot.lane.b32.xlu0 %v10289, 16
        %v11403 = vpop.permute.xlu0 %11402
        %11404 = vrot.lane.b32.xlu0 %v10387, 16
        %v11405 = vpop.permute.xlu0 %11404
        %11470 = vrot.lane.b32.xlu0 %v7372, 18
        %v11471 = vpop.permute.xlu0 %11470
        %11472 = vrot.lane.b32.xlu0 %v7470, 18
        %v11473 = vpop.permute.xlu0 %11472
        %11474 = vrot.lane.b32.xlu0 %v7568, 18
        %v11475 = vpop.permute.xlu0 %11474
        %11476 = vrot.lane.b32.xlu0 %v7666, 18
        %v11477 = vpop.permute.xlu0 %11476
        %11478 = vrot.lane.b32.xlu0 %v7764, 18
        %v11479 = vpop.permute.xlu0 %11478
        %11480 = vrot.lane.b32.xlu0 %v7862, 18
        %v11481 = vpop.permute.xlu0 %11480
        %11482 = vrot.lane.b32.xlu0 %v7960, 18
        %v11483 = vpop.permute.xlu0 %11482
        %11484 = vrot.lane.b32.xlu0 %v8058, 18
        %v11485 = vpop.permute.xlu0 %11484
        %11486 = vrot.lane.b32.xlu0 %v8156, 18
        %v11487 = vpop.permute.xlu0 %11486
        %11488 = vrot.lane.b32.xlu0 %v8254, 18
        %v11489 = vpop.permute.xlu0 %11488
        %11490 = vrot.lane.b32.xlu0 %v8352, 18
        %v11491 = vpop.permute.xlu0 %11490
        %11492 = vrot.lane.b32.xlu0 %v8450, 18
        %v11493 = vpop.permute.xlu0 %11492
        %11494 = vrot.lane.b32.xlu0 %v8548, 18
        %v11495 = vpop.permute.xlu0 %11494
        %11496 = vrot.lane.b32.xlu0 %v8646, 18
        %v11497 = vpop.permute.xlu0 %11496
        %11498 = vrot.lane.b32.xlu0 %v8744, 18
        %v11499 = vpop.permute.xlu0 %11498
        %11500 = vrot.lane.b32.xlu0 %v8842, 18
        %v11501 = vpop.permute.xlu0 %11500
        %11502 = vrot.lane.b32.xlu0 %v8940, 18
        %v11503 = vpop.permute.xlu0 %11502
        %11504 = vrot.lane.b32.xlu0 %v9038, 18
        %v11505 = vpop.permute.xlu0 %11504
        %11506 = vrot.lane.b32.xlu0 %v9136, 18
        %v11507 = vpop.permute.xlu0 %11506
        %11508 = vrot.lane.b32.xlu0 %v9234, 18
        %v11509 = vpop.permute.xlu0 %11508
        %11510 = vrot.lane.b32.xlu0 %v9332, 18
        %v11511 = vpop.permute.xlu0 %11510
        %11512 = vrot.lane.b32.xlu0 %v9430, 18
        %v11513 = vpop.permute.xlu0 %11512
        %11514 = vrot.lane.b32.xlu0 %v9528, 18
        %v11515 = vpop.permute.xlu0 %11514
        %11516 = vrot.lane.b32.xlu0 %v9626, 18
        %v11517 = vpop.permute.xlu0 %11516
        %11518 = vrot.lane.b32.xlu0 %v9724, 18
        %v11519 = vpop.permute.xlu0 %11518
        %11520 = vrot.lane.b32.xlu0 %v9822, 18
        %v11521 = vpop.permute.xlu0 %11520
        %11522 = vrot.lane.b32.xlu0 %v9920, 18
        %v11523 = vpop.permute.xlu0 %11522
        %11524 = vrot.lane.b32.xlu0 %v10018, 18
        %v11525 = vpop.permute.xlu0 %11524
        %11526 = vrot.lane.b32.xlu0 %v10116, 18
        %v11527 = vpop.permute.xlu0 %11526
        %11528 = vrot.lane.b32.xlu0 %v10214, 18
        %v11529 = vpop.permute.xlu0 %11528
        %11530 = vrot.lane.b32.xlu0 %v10312, 18
        %v11531 = vpop.permute.xlu0 %11530
        %11532 = vrot.lane.b32.xlu0 %v10410, 18
        %v11533 = vpop.permute.xlu0 %11532
        %11598 = vrot.lane.b32.xlu0 %v7356, 20
        %v11599 = vpop.permute.xlu0 %11598
        %11600 = vrot.lane.b32.xlu0 %v7454, 20
        %v11601 = vpop.permute.xlu0 %11600
        %11602 = vrot.lane.b32.xlu0 %v7552, 20
        %v11603 = vpop.permute.xlu0 %11602
        %11604 = vrot.lane.b32.xlu0 %v7650, 20
        %v11605 = vpop.permute.xlu0 %11604
        %11606 = vrot.lane.b32.xlu0 %v7748, 20
        %v11607 = vpop.permute.xlu0 %11606
        %11608 = vrot.lane.b32.xlu0 %v7846, 20
        %v11609 = vpop.permute.xlu0 %11608
        %11610 = vrot.lane.b32.xlu0 %v7944, 20
        %v11611 = vpop.permute.xlu0 %11610
        %11612 = vrot.lane.b32.xlu0 %v8042, 20
        %v11613 = vpop.permute.xlu0 %11612
        %11614 = vrot.lane.b32.xlu0 %v8140, 20
        %v11615 = vpop.permute.xlu0 %11614
        %11616 = vrot.lane.b32.xlu0 %v8238, 20
        %v11617 = vpop.permute.xlu0 %11616
        %11618 = vrot.lane.b32.xlu0 %v8336, 20
        %v11619 = vpop.permute.xlu0 %11618
        %11620 = vrot.lane.b32.xlu0 %v8434, 20
        %v11621 = vpop.permute.xlu0 %11620
        %11622 = vrot.lane.b32.xlu0 %v8532, 20
        %v11623 = vpop.permute.xlu0 %11622
        %11624 = vrot.lane.b32.xlu0 %v8630, 20
        %v11625 = vpop.permute.xlu0 %11624
        %11626 = vrot.lane.b32.xlu0 %v8728, 20
        %v11627 = vpop.permute.xlu0 %11626
        %11628 = vrot.lane.b32.xlu0 %v8826, 20
        %v11629 = vpop.permute.xlu0 %11628
        %11630 = vrot.lane.b32.xlu0 %v8924, 20
        %v11631 = vpop.permute.xlu0 %11630
        %11632 = vrot.lane.b32.xlu0 %v9022, 20
        %v11633 = vpop.permute.xlu0 %11632
        %11634 = vrot.lane.b32.xlu0 %v9120, 20
        %v11635 = vpop.permute.xlu0 %11634
        %11636 = vrot.lane.b32.xlu0 %v9218, 20
        %v11637 = vpop.permute.xlu0 %11636
        %11638 = vrot.lane.b32.xlu0 %v9316, 20
        %v11639 = vpop.permute.xlu0 %11638
        %11640 = vrot.lane.b32.xlu0 %v9414, 20
        %v11641 = vpop.permute.xlu0 %11640
        %11642 = vrot.lane.b32.xlu0 %v9512, 20
        %v11643 = vpop.permute.xlu0 %11642
        %11644 = vrot.lane.b32.xlu0 %v9610, 20
        %v11645 = vpop.permute.xlu0 %11644
        %11646 = vrot.lane.b32.xlu0 %v9708, 20
        %v11647 = vpop.permute.xlu0 %11646
        %11648 = vrot.lane.b32.xlu0 %v9806, 20
        %v11649 = vpop.permute.xlu0 %11648
        %11650 = vrot.lane.b32.xlu0 %v9904, 20
        %v11651 = vpop.permute.xlu0 %11650
        %11652 = vrot.lane.b32.xlu0 %v10002, 20
        %v11653 = vpop.permute.xlu0 %11652
        %11654 = vrot.lane.b32.xlu0 %v10100, 20
        %v11655 = vpop.permute.xlu0 %11654
        %11656 = vrot.lane.b32.xlu0 %v10198, 20
        %v11657 = vpop.permute.xlu0 %11656
        %11658 = vrot.lane.b32.xlu0 %v10296, 20
        %v11659 = vpop.permute.xlu0 %11658
        %11660 = vrot.lane.b32.xlu0 %v10394, 20
        %v11661 = vpop.permute.xlu0 %11660
        %11726 = vrot.lane.b32.xlu0 %v7373, 22
        %v11727 = vpop.permute.xlu0 %11726
        %11728 = vrot.lane.b32.xlu0 %v7471, 22
        %v11729 = vpop.permute.xlu0 %11728
        %11730 = vrot.lane.b32.xlu0 %v7569, 22
        %v11731 = vpop.permute.xlu0 %11730
        %11732 = vrot.lane.b32.xlu0 %v7667, 22
        %v11733 = vpop.permute.xlu0 %11732
        %11734 = vrot.lane.b32.xlu0 %v7765, 22
        %v11735 = vpop.permute.xlu0 %11734
        %11736 = vrot.lane.b32.xlu0 %v7863, 22
        %v11737 = vpop.permute.xlu0 %11736
        %11738 = vrot.lane.b32.xlu0 %v7961, 22
        %v11739 = vpop.permute.xlu0 %11738
        %11740 = vrot.lane.b32.xlu0 %v8059, 22
        %v11741 = vpop.permute.xlu0 %11740
        %11742 = vrot.lane.b32.xlu0 %v8157, 22
        %v11743 = vpop.permute.xlu0 %11742
        %11744 = vrot.lane.b32.xlu0 %v8255, 22
        %v11745 = vpop.permute.xlu0 %11744
        %11746 = vrot.lane.b32.xlu0 %v8353, 22
        %v11747 = vpop.permute.xlu0 %11746
        %11748 = vrot.lane.b32.xlu0 %v8451, 22
        %v11749 = vpop.permute.xlu0 %11748
        %11750 = vrot.lane.b32.xlu0 %v8549, 22
        %v11751 = vpop.permute.xlu0 %11750
        %11752 = vrot.lane.b32.xlu0 %v8647, 22
        %v11753 = vpop.permute.xlu0 %11752
        %11754 = vrot.lane.b32.xlu0 %v8745, 22
        %v11755 = vpop.permute.xlu0 %11754
        %11756 = vrot.lane.b32.xlu0 %v8843, 22
        %v11757 = vpop.permute.xlu0 %11756
        %11758 = vrot.lane.b32.xlu0 %v8941, 22
        %v11759 = vpop.permute.xlu0 %11758
        %11760 = vrot.lane.b32.xlu0 %v9039, 22
        %v11761 = vpop.permute.xlu0 %11760
        %11762 = vrot.lane.b32.xlu0 %v9137, 22
        %v11763 = vpop.permute.xlu0 %11762
        %11764 = vrot.lane.b32.xlu0 %v9235, 22
        %v11765 = vpop.permute.xlu0 %11764
        %11766 = vrot.lane.b32.xlu0 %v9333, 22
        %v11767 = vpop.permute.xlu0 %11766
        %11768 = vrot.lane.b32.xlu0 %v9431, 22
        %v11769 = vpop.permute.xlu0 %11768
        %11770 = vrot.lane.b32.xlu0 %v9529, 22
        %v11771 = vpop.permute.xlu0 %11770
        %11772 = vrot.lane.b32.xlu0 %v9627, 22
        %v11773 = vpop.permute.xlu0 %11772
        %11774 = vrot.lane.b32.xlu0 %v9725, 22
        %v11775 = vpop.permute.xlu0 %11774
        %11776 = vrot.lane.b32.xlu0 %v9823, 22
        %v11777 = vpop.permute.xlu0 %11776
        %11778 = vrot.lane.b32.xlu0 %v9921, 22
        %v11779 = vpop.permute.xlu0 %11778
        %11780 = vrot.lane.b32.xlu0 %v10019, 22
        %v11781 = vpop.permute.xlu0 %11780
        %11782 = vrot.lane.b32.xlu0 %v10117, 22
        %v11783 = vpop.permute.xlu0 %11782
        %11784 = vrot.lane.b32.xlu0 %v10215, 22
        %v11785 = vpop.permute.xlu0 %11784
        %11786 = vrot.lane.b32.xlu0 %v10313, 22
        %v11787 = vpop.permute.xlu0 %11786
        %11788 = vrot.lane.b32.xlu0 %v10411, 22
        %v11789 = vpop.permute.xlu0 %11788
        %11854 = vrot.lane.b32.xlu0 %v7364, 24
        %v11855 = vpop.permute.xlu0 %11854
        %11856 = vrot.lane.b32.xlu0 %v7462, 24
        %v11857 = vpop.permute.xlu0 %11856
        %11858 = vrot.lane.b32.xlu0 %v7560, 24
        %v11859 = vpop.permute.xlu0 %11858
        %11860 = vrot.lane.b32.xlu0 %v7658, 24
        %v11861 = vpop.permute.xlu0 %11860
        %11862 = vrot.lane.b32.xlu0 %v7756, 24
        %v11863 = vpop.permute.xlu0 %11862
        %11864 = vrot.lane.b32.xlu0 %v7854, 24
        %v11865 = vpop.permute.xlu0 %11864
        %11866 = vrot.lane.b32.xlu0 %v7952, 24
        %v11867 = vpop.permute.xlu0 %11866
        %11868 = vrot.lane.b32.xlu0 %v8050, 24
        %v11869 = vpop.permute.xlu0 %11868
        %11870 = vrot.lane.b32.xlu0 %v8148, 24
        %v11871 = vpop.permute.xlu0 %11870
        %11872 = vrot.lane.b32.xlu0 %v8246, 24
        %v11873 = vpop.permute.xlu0 %11872
        %11874 = vrot.lane.b32.xlu0 %v8344, 24
        %v11875 = vpop.permute.xlu0 %11874
        %11876 = vrot.lane.b32.xlu0 %v8442, 24
        %v11877 = vpop.permute.xlu0 %11876
        %11878 = vrot.lane.b32.xlu0 %v8540, 24
        %v11879 = vpop.permute.xlu0 %11878
        %11880 = vrot.lane.b32.xlu0 %v8638, 24
        %v11881 = vpop.permute.xlu0 %11880
        %11882 = vrot.lane.b32.xlu0 %v8736, 24
        %v11883 = vpop.permute.xlu0 %11882
        %11884 = vrot.lane.b32.xlu0 %v8834, 24
        %v11885 = vpop.permute.xlu0 %11884
        %11886 = vrot.lane.b32.xlu0 %v8932, 24
        %v11887 = vpop.permute.xlu0 %11886
        %11888 = vrot.lane.b32.xlu0 %v9030, 24
        %v11889 = vpop.permute.xlu0 %11888
        %11890 = vrot.lane.b32.xlu0 %v9128, 24
        %v11891 = vpop.permute.xlu0 %11890
        %11892 = vrot.lane.b32.xlu0 %v9226, 24
        %v11893 = vpop.permute.xlu0 %11892
        %11894 = vrot.lane.b32.xlu0 %v9324, 24
        %v11895 = vpop.permute.xlu0 %11894
        %11896 = vrot.lane.b32.xlu0 %v9422, 24
        %v11897 = vpop.permute.xlu0 %11896
        %11898 = vrot.lane.b32.xlu0 %v9520, 24
        %v11899 = vpop.permute.xlu0 %11898
        %11900 = vrot.lane.b32.xlu0 %v9618, 24
        %v11901 = vpop.permute.xlu0 %11900
        %11902 = vrot.lane.b32.xlu0 %v9716, 24
        %v11903 = vpop.permute.xlu0 %11902
        %11904 = vrot.lane.b32.xlu0 %v9814, 24
        %v11905 = vpop.permute.xlu0 %11904
        %11906 = vrot.lane.b32.xlu0 %v9912, 24
        %v11907 = vpop.permute.xlu0 %11906
        %11908 = vrot.lane.b32.xlu0 %v10010, 24
        %v11909 = vpop.permute.xlu0 %11908
        %11910 = vrot.lane.b32.xlu0 %v10108, 24
        %v11911 = vpop.permute.xlu0 %11910
        %11912 = vrot.lane.b32.xlu0 %v10206, 24
        %v11913 = vpop.permute.xlu0 %11912
        %11914 = vrot.lane.b32.xlu0 %v10304, 24
        %v11915 = vpop.permute.xlu0 %11914
        %11916 = vrot.lane.b32.xlu0 %v10402, 24
        %v11917 = vpop.permute.xlu0 %11916
        %11982 = vrot.lane.b32.xlu0 %v7374, 26
        %v11983 = vpop.permute.xlu0 %11982
        %11984 = vrot.lane.b32.xlu0 %v7472, 26
        %v11985 = vpop.permute.xlu0 %11984
        %11986 = vrot.lane.b32.xlu0 %v7570, 26
        %v11987 = vpop.permute.xlu0 %11986
        %11988 = vrot.lane.b32.xlu0 %v7668, 26
        %v11989 = vpop.permute.xlu0 %11988
        %11990 = vrot.lane.b32.xlu0 %v7766, 26
        %v11991 = vpop.permute.xlu0 %11990
        %11992 = vrot.lane.b32.xlu0 %v7864, 26
        %v11993 = vpop.permute.xlu0 %11992
        %11994 = vrot.lane.b32.xlu0 %v7962, 26
        %v11995 = vpop.permute.xlu0 %11994
        %11996 = vrot.lane.b32.xlu0 %v8060, 26
        %v11997 = vpop.permute.xlu0 %11996
        %11998 = vrot.lane.b32.xlu0 %v8158, 26
        %v11999 = vpop.permute.xlu0 %11998
        %12000 = vrot.lane.b32.xlu0 %v8256, 26
        %v12001 = vpop.permute.xlu0 %12000
        %12002 = vrot.lane.b32.xlu0 %v8354, 26
        %v12003 = vpop.permute.xlu0 %12002
        %12004 = vrot.lane.b32.xlu0 %v8452, 26
        %v12005 = vpop.permute.xlu0 %12004
        %12006 = vrot.lane.b32.xlu0 %v8550, 26
        %v12007 = vpop.permute.xlu0 %12006
        %12008 = vrot.lane.b32.xlu0 %v8648, 26
        %v12009 = vpop.permute.xlu0 %12008
        %12010 = vrot.lane.b32.xlu0 %v8746, 26
        %v12011 = vpop.permute.xlu0 %12010
        %12012 = vrot.lane.b32.xlu0 %v8844, 26
        %v12013 = vpop.permute.xlu0 %12012
        %12014 = vrot.lane.b32.xlu0 %v8942, 26
        %v12015 = vpop.permute.xlu0 %12014
        %12016 = vrot.lane.b32.xlu0 %v9040, 26
        %v12017 = vpop.permute.xlu0 %12016
        %12018 = vrot.lane.b32.xlu0 %v9138, 26
        %v12019 = vpop.permute.xlu0 %12018
        %12020 = vrot.lane.b32.xlu0 %v9236, 26
        %v12021 = vpop.permute.xlu0 %12020
        %12022 = vrot.lane.b32.xlu0 %v9334, 26
        %v12023 = vpop.permute.xlu0 %12022
        %12024 = vrot.lane.b32.xlu0 %v9432, 26
        %v12025 = vpop.permute.xlu0 %12024
        %12026 = vrot.lane.b32.xlu0 %v9530, 26
        %v12027 = vpop.permute.xlu0 %12026
        %12028 = vrot.lane.b32.xlu0 %v9628, 26
        %v12029 = vpop.permute.xlu0 %12028
        %12030 = vrot.lane.b32.xlu0 %v9726, 26
        %v12031 = vpop.permute.xlu0 %12030
        %12032 = vrot.lane.b32.xlu0 %v9824, 26
        %v12033 = vpop.permute.xlu0 %12032
        %12034 = vrot.lane.b32.xlu0 %v9922, 26
        %v12035 = vpop.permute.xlu0 %12034
        %12036 = vrot.lane.b32.xlu0 %v10020, 26
        %v12037 = vpop.permute.xlu0 %12036
        %12038 = vrot.lane.b32.xlu0 %v10118, 26
        %v12039 = vpop.permute.xlu0 %12038
        %12040 = vrot.lane.b32.xlu0 %v10216, 26
        %v12041 = vpop.permute.xlu0 %12040
        %12042 = vrot.lane.b32.xlu0 %v10314, 26
        %v12043 = vpop.permute.xlu0 %12042
        %12044 = vrot.lane.b32.xlu0 %v10412, 26
        %v12045 = vpop.permute.xlu0 %12044
        %12110 = vrot.lane.b32.xlu0 %v7371, 28
        %v12111 = vpop.permute.xlu0 %12110
        %12112 = vrot.lane.b32.xlu0 %v7469, 28
        %v12113 = vpop.permute.xlu0 %12112
        %12114 = vrot.lane.b32.xlu0 %v7567, 28
        %v12115 = vpop.permute.xlu0 %12114
        %12116 = vrot.lane.b32.xlu0 %v7665, 28
        %v12117 = vpop.permute.xlu0 %12116
        %12118 = vrot.lane.b32.xlu0 %v7763, 28
        %v12119 = vpop.permute.xlu0 %12118
        %12120 = vrot.lane.b32.xlu0 %v7861, 28
        %v12121 = vpop.permute.xlu0 %12120
        %12122 = vrot.lane.b32.xlu0 %v7959, 28
        %v12123 = vpop.permute.xlu0 %12122
        %12124 = vrot.lane.b32.xlu0 %v8057, 28
        %v12125 = vpop.permute.xlu0 %12124
        %12126 = vrot.lane.b32.xlu0 %v8155, 28
        %v12127 = vpop.permute.xlu0 %12126
        %12128 = vrot.lane.b32.xlu0 %v8253, 28
        %v12129 = vpop.permute.xlu0 %12128
        %12130 = vrot.lane.b32.xlu0 %v8351, 28
        %v12131 = vpop.permute.xlu0 %12130
        %12132 = vrot.lane.b32.xlu0 %v8449, 28
        %v12133 = vpop.permute.xlu0 %12132
        %12134 = vrot.lane.b32.xlu0 %v8547, 28
        %v12135 = vpop.permute.xlu0 %12134
        %12136 = vrot.lane.b32.xlu0 %v8645, 28
        %v12137 = vpop.permute.xlu0 %12136
        %12138 = vrot.lane.b32.xlu0 %v8743, 28
        %v12139 = vpop.permute.xlu0 %12138
        %12140 = vrot.lane.b32.xlu0 %v8841, 28
        %v12141 = vpop.permute.xlu0 %12140
        %12142 = vrot.lane.b32.xlu0 %v8939, 28
        %v12143 = vpop.permute.xlu0 %12142
        %12144 = vrot.lane.b32.xlu0 %v9037, 28
        %v12145 = vpop.permute.xlu0 %12144
        %12146 = vrot.lane.b32.xlu0 %v9135, 28
        %v12147 = vpop.permute.xlu0 %12146
        %12148 = vrot.lane.b32.xlu0 %v9233, 28
        %v12149 = vpop.permute.xlu0 %12148
        %12150 = vrot.lane.b32.xlu0 %v9331, 28
        %v12151 = vpop.permute.xlu0 %12150
        %12152 = vrot.lane.b32.xlu0 %v9429, 28
        %v12153 = vpop.permute.xlu0 %12152
        %12154 = vrot.lane.b32.xlu0 %v9527, 28
        %v12155 = vpop.permute.xlu0 %12154
        %12156 = vrot.lane.b32.xlu0 %v9625, 28
        %v12157 = vpop.permute.xlu0 %12156
        %12158 = vrot.lane.b32.xlu0 %v9723, 28
        %v12159 = vpop.permute.xlu0 %12158
        %12160 = vrot.lane.b32.xlu0 %v9821, 28
        %v12161 = vpop.permute.xlu0 %12160
        %12162 = vrot.lane.b32.xlu0 %v9919, 28
        %v12163 = vpop.permute.xlu0 %12162
        %12164 = vrot.lane.b32.xlu0 %v10017, 28
        %v12165 = vpop.permute.xlu0 %12164
        %12166 = vrot.lane.b32.xlu0 %v10115, 28
        %v12167 = vpop.permute.xlu0 %12166
        %12168 = vrot.lane.b32.xlu0 %v10213, 28
        %v12169 = vpop.permute.xlu0 %12168
        %12170 = vrot.lane.b32.xlu0 %v10311, 28
        %v12171 = vpop.permute.xlu0 %12170
        %12172 = vrot.lane.b32.xlu0 %v10409, 28
        %v12173 = vpop.permute.xlu0 %12172
        %12238 = vrot.lane.b32.xlu0 %v7375, 30
        %v12239 = vpop.permute.xlu0 %12238
        %12240 = vrot.lane.b32.xlu0 %v7473, 30
        %v12241 = vpop.permute.xlu0 %12240
        %12242 = vrot.lane.b32.xlu0 %v7571, 30
        %v12243 = vpop.permute.xlu0 %12242
        %12244 = vrot.lane.b32.xlu0 %v7669, 30
        %v12245 = vpop.permute.xlu0 %12244
        %12246 = vrot.lane.b32.xlu0 %v7767, 30
        %v12247 = vpop.permute.xlu0 %12246
        %12248 = vrot.lane.b32.xlu0 %v7865, 30
        %v12249 = vpop.permute.xlu0 %12248
        %12250 = vrot.lane.b32.xlu0 %v7963, 30
        %v12251 = vpop.permute.xlu0 %12250
        %12252 = vrot.lane.b32.xlu0 %v8061, 30
        %v12253 = vpop.permute.xlu0 %12252
        %12254 = vrot.lane.b32.xlu0 %v8159, 30
        %v12255 = vpop.permute.xlu0 %12254
        %12256 = vrot.lane.b32.xlu0 %v8257, 30
        %v12257 = vpop.permute.xlu0 %12256
        %12258 = vrot.lane.b32.xlu0 %v8355, 30
        %v12259 = vpop.permute.xlu0 %12258
        %12260 = vrot.lane.b32.xlu0 %v8453, 30
        %v12261 = vpop.permute.xlu0 %12260
        %12262 = vrot.lane.b32.xlu0 %v8551, 30
        %v12263 = vpop.permute.xlu0 %12262
        %12264 = vrot.lane.b32.xlu0 %v8649, 30
        %v12265 = vpop.permute.xlu0 %12264
        %12266 = vrot.lane.b32.xlu0 %v8747, 30
        %v12267 = vpop.permute.xlu0 %12266
        %12268 = vrot.lane.b32.xlu0 %v8845, 30
        %v12269 = vpop.permute.xlu0 %12268
        %12270 = vrot.lane.b32.xlu0 %v8943, 30
        %v12271 = vpop.permute.xlu0 %12270
        %12272 = vrot.lane.b32.xlu0 %v9041, 30
        %v12273 = vpop.permute.xlu0 %12272
        %12274 = vrot.lane.b32.xlu0 %v9139, 30
        %v12275 = vpop.permute.xlu0 %12274
        %12276 = vrot.lane.b32.xlu0 %v9237, 30
        %v12277 = vpop.permute.xlu0 %12276
        %12278 = vrot.lane.b32.xlu0 %v9335, 30
        %v12279 = vpop.permute.xlu0 %12278
        %12280 = vrot.lane.b32.xlu0 %v9433, 30
        %v12281 = vpop.permute.xlu0 %12280
        %12282 = vrot.lane.b32.xlu0 %v9531, 30
        %v12283 = vpop.permute.xlu0 %12282
        %12284 = vrot.lane.b32.xlu0 %v9629, 30
        %v12285 = vpop.permute.xlu0 %12284
        %12286 = vrot.lane.b32.xlu0 %v9727, 30
        %v12287 = vpop.permute.xlu0 %12286
        %12288 = vrot.lane.b32.xlu0 %v9825, 30
        %v12289 = vpop.permute.xlu0 %12288
        %12290 = vrot.lane.b32.xlu0 %v9923, 30
        %v12291 = vpop.permute.xlu0 %12290
        %12292 = vrot.lane.b32.xlu0 %v10021, 30
        %v12293 = vpop.permute.xlu0 %12292
        %12294 = vrot.lane.b32.xlu0 %v10119, 30
        %v12295 = vpop.permute.xlu0 %12294
        %12296 = vrot.lane.b32.xlu0 %v10217, 30
        %v12297 = vpop.permute.xlu0 %12296
        %12298 = vrot.lane.b32.xlu0 %v10315, 30
        %v12299 = vpop.permute.xlu0 %12298
        %12300 = vrot.lane.b32.xlu0 %v10413, 30
        %v12301 = vpop.permute.xlu0 %12300
        %v12334 = vsel %vm6783, %v7300, %v10447
        %v12335 = vsel %vm6783, %v7398, %v10449
        %v12336 = vsel %vm6783, %v7496, %v10451
        %v12337 = vsel %vm6783, %v7594, %v10453
        %v12338 = vsel %vm6783, %v7692, %v10455
        %v12339 = vsel %vm6783, %v7790, %v10457
        %v12340 = vsel %vm6783, %v7888, %v10459
        %v12341 = vsel %vm6783, %v7986, %v10461
        %v12342 = vsel %vm6783, %v8084, %v10463
        %v12343 = vsel %vm6783, %v8182, %v10465
        %v12344 = vsel %vm6783, %v8280, %v10467
        %v12345 = vsel %vm6783, %v8378, %v10469
        %v12346 = vsel %vm6783, %v8476, %v10471
        %v12347 = vsel %vm6783, %v8574, %v10473
        %v12348 = vsel %vm6783, %v8672, %v10475
        %v12349 = vsel %vm6783, %v8770, %v10477
        %v12350 = vsel %vm6783, %v8868, %v10479
        %v12351 = vsel %vm6783, %v8966, %v10481
        %v12352 = vsel %vm6783, %v9064, %v10483
        %v12353 = vsel %vm6783, %v9162, %v10485
        %v12354 = vsel %vm6783, %v9260, %v10487
        %v12355 = vsel %vm6783, %v9358, %v10489
        %v12356 = vsel %vm6783, %v9456, %v10491
        %v12357 = vsel %vm6783, %v9554, %v10493
        %v12358 = vsel %vm6783, %v9652, %v10495
        %v12359 = vsel %vm6783, %v9750, %v10497
        %v12360 = vsel %vm6783, %v9848, %v10499
        %v12361 = vsel %vm6783, %v9946, %v10501
        %v12362 = vsel %vm6783, %v10044, %v10503
        %v12363 = vsel %vm6783, %v10142, %v10505
        %v12364 = vsel %vm6783, %v10240, %v10507
        %v12365 = vsel %vm6783, %v10338, %v10509
        %v12366 = vsel %vm6816, %v12334, %v10575
        %v12367 = vsel %vm6816, %v12335, %v10577
        %v12368 = vsel %vm6816, %v12336, %v10579
        %v12369 = vsel %vm6816, %v12337, %v10581
        %v12370 = vsel %vm6816, %v12338, %v10583
        %v12371 = vsel %vm6816, %v12339, %v10585
        %v12372 = vsel %vm6816, %v12340, %v10587
        %v12373 = vsel %vm6816, %v12341, %v10589
        %v12374 = vsel %vm6816, %v12342, %v10591
        %v12375 = vsel %vm6816, %v12343, %v10593
        %v12376 = vsel %vm6816, %v12344, %v10595
        %v12377 = vsel %vm6816, %v12345, %v10597
        %v12378 = vsel %vm6816, %v12346, %v10599
        %v12379 = vsel %vm6816, %v12347, %v10601
        %v12380 = vsel %vm6816, %v12348, %v10603
        %v12381 = vsel %vm6816, %v12349, %v10605
        %v12382 = vsel %vm6816, %v12350, %v10607
        %v12383 = vsel %vm6816, %v12351, %v10609
        %v12384 = vsel %vm6816, %v12352, %v10611
        %v12385 = vsel %vm6816, %v12353, %v10613
        %v12386 = vsel %vm6816, %v12354, %v10615
        %v12387 = vsel %vm6816, %v12355, %v10617
        %v12388 = vsel %vm6816, %v12356, %v10619
        %v12389 = vsel %vm6816, %v12357, %v10621
        %v12390 = vsel %vm6816, %v12358, %v10623
        %v12391 = vsel %vm6816, %v12359, %v10625
        %v12392 = vsel %vm6816, %v12360, %v10627
        %v12393 = vsel %vm6816, %v12361, %v10629
        %v12394 = vsel %vm6816, %v12362, %v10631
        %v12395 = vsel %vm6816, %v12363, %v10633
        %v12396 = vsel %vm6816, %v12364, %v10635
        %v12397 = vsel %vm6816, %v12365, %v10637
        %v12398 = vsel %vm6849, %v12366, %v10703
        %v12399 = vsel %vm6849, %v12367, %v10705
        %v12400 = vsel %vm6849, %v12368, %v10707
        %v12401 = vsel %vm6849, %v12369, %v10709
        %v12402 = vsel %vm6849, %v12370, %v10711
        %v12403 = vsel %vm6849, %v12371, %v10713
        %v12404 = vsel %vm6849, %v12372, %v10715
        %v12405 = vsel %vm6849, %v12373, %v10717
        %v12406 = vsel %vm6849, %v12374, %v10719
        %v12407 = vsel %vm6849, %v12375, %v10721
        %v12408 = vsel %vm6849, %v12376, %v10723
        %v12409 = vsel %vm6849, %v12377, %v10725
        %v12410 = vsel %vm6849, %v12378, %v10727
        %v12411 = vsel %vm6849, %v12379, %v10729
        %v12412 = vsel %vm6849, %v12380, %v10731
        %v12413 = vsel %vm6849, %v12381, %v10733
        %v12414 = vsel %vm6849, %v12382, %v10735
        %v12415 = vsel %vm6849, %v12383, %v10737
        %v12416 = vsel %vm6849, %v12384, %v10739
        %v12417 = vsel %vm6849, %v12385, %v10741
        %v12418 = vsel %vm6849, %v12386, %v10743
        %v12419 = vsel %vm6849, %v12387, %v10745
        %v12420 = vsel %vm6849, %v12388, %v10747
        %v12421 = vsel %vm6849, %v12389, %v10749
        %v12422 = vsel %vm6849, %v12390, %v10751
        %v12423 = vsel %vm6849, %v12391, %v10753
        %v12424 = vsel %vm6849, %v12392, %v10755
        %v12425 = vsel %vm6849, %v12393, %v10757
        %v12426 = vsel %vm6849, %v12394, %v10759
        %v12427 = vsel %vm6849, %v12395, %v10761
        %v12428 = vsel %vm6849, %v12396, %v10763
        %v12429 = vsel %vm6849, %v12397, %v10765
        %v12430 = vsel %vm6882, %v12398, %v10831
        %v12431 = vsel %vm6882, %v12399, %v10833
        %v12432 = vsel %vm6882, %v12400, %v10835
        %v12433 = vsel %vm6882, %v12401, %v10837
        %v12434 = vsel %vm6882, %v12402, %v10839
        %v12435 = vsel %vm6882, %v12403, %v10841
        %v12436 = vsel %vm6882, %v12404, %v10843
        %v12437 = vsel %vm6882, %v12405, %v10845
        %v12438 = vsel %vm6882, %v12406, %v10847
        %v12439 = vsel %vm6882, %v12407, %v10849
        %v12440 = vsel %vm6882, %v12408, %v10851
        %v12441 = vsel %vm6882, %v12409, %v10853
        %v12442 = vsel %vm6882, %v12410, %v10855
        %v12443 = vsel %vm6882, %v12411, %v10857
        %v12444 = vsel %vm6882, %v12412, %v10859
        %v12445 = vsel %vm6882, %v12413, %v10861
        %v12446 = vsel %vm6882, %v12414, %v10863
        %v12447 = vsel %vm6882, %v12415, %v10865
        %v12448 = vsel %vm6882, %v12416, %v10867
        %v12449 = vsel %vm6882, %v12417, %v10869
        %v12450 = vsel %vm6882, %v12418, %v10871
        %v12451 = vsel %vm6882, %v12419, %v10873
        %v12452 = vsel %vm6882, %v12420, %v10875
        %v12453 = vsel %vm6882, %v12421, %v10877
        %v12454 = vsel %vm6882, %v12422, %v10879
        %v12455 = vsel %vm6882, %v12423, %v10881
        %v12456 = vsel %vm6882, %v12424, %v10883
        %v12457 = vsel %vm6882, %v12425, %v10885
        %v12458 = vsel %vm6882, %v12426, %v10887
        %v12459 = vsel %vm6882, %v12427, %v10889
        %v12460 = vsel %vm6882, %v12428, %v10891
        %v12461 = vsel %vm6882, %v12429, %v10893
        %v12462 = vsel %vm6915, %v12430, %v10959
        %v12463 = vsel %vm6915, %v12431, %v10961
        %v12464 = vsel %vm6915, %v12432, %v10963
        %v12465 = vsel %vm6915, %v12433, %v10965
        %v12466 = vsel %vm6915, %v12434, %v10967
        %v12467 = vsel %vm6915, %v12435, %v10969
        %v12468 = vsel %vm6915, %v12436, %v10971
        %v12469 = vsel %vm6915, %v12437, %v10973
        %v12470 = vsel %vm6915, %v12438, %v10975
        %v12471 = vsel %vm6915, %v12439, %v10977
        %v12472 = vsel %vm6915, %v12440, %v10979
        %v12473 = vsel %vm6915, %v12441, %v10981
        %v12474 = vsel %vm6915, %v12442, %v10983
        %v12475 = vsel %vm6915, %v12443, %v10985
        %v12476 = vsel %vm6915, %v12444, %v10987
        %v12477 = vsel %vm6915, %v12445, %v10989
        %v12478 = vsel %vm6915, %v12446, %v10991
        %v12479 = vsel %vm6915, %v12447, %v10993
        %v12480 = vsel %vm6915, %v12448, %v10995
        %v12481 = vsel %vm6915, %v12449, %v10997
        %v12482 = vsel %vm6915, %v12450, %v10999
        %v12483 = vsel %vm6915, %v12451, %v11001
        %v12484 = vsel %vm6915, %v12452, %v11003
        %v12485 = vsel %vm6915, %v12453, %v11005
        %v12486 = vsel %vm6915, %v12454, %v11007
        %v12487 = vsel %vm6915, %v12455, %v11009
        %v12488 = vsel %vm6915, %v12456, %v11011
        %v12489 = vsel %vm6915, %v12457, %v11013
        %v12490 = vsel %vm6915, %v12458, %v11015
        %v12491 = vsel %vm6915, %v12459, %v11017
        %v12492 = vsel %vm6915, %v12460, %v11019
        %v12493 = vsel %vm6915, %v12461, %v11021
        %v12494 = vsel %vm6948, %v12462, %v11087
        %v12495 = vsel %vm6948, %v12463, %v11089
        %v12496 = vsel %vm6948, %v12464, %v11091
        %v12497 = vsel %vm6948, %v12465, %v11093
        %v12498 = vsel %vm6948, %v12466, %v11095
        %v12499 = vsel %vm6948, %v12467, %v11097
        %v12500 = vsel %vm6948, %v12468, %v11099
        %v12501 = vsel %vm6948, %v12469, %v11101
        %v12502 = vsel %vm6948, %v12470, %v11103
        %v12503 = vsel %vm6948, %v12471, %v11105
        %v12504 = vsel %vm6948, %v12472, %v11107
        %v12505 = vsel %vm6948, %v12473, %v11109
        %v12506 = vsel %vm6948, %v12474, %v11111
        %v12507 = vsel %vm6948, %v12475, %v11113
        %v12508 = vsel %vm6948, %v12476, %v11115
        %v12509 = vsel %vm6948, %v12477, %v11117
        %v12510 = vsel %vm6948, %v12478, %v11119
        %v12511 = vsel %vm6948, %v12479, %v11121
        %v12512 = vsel %vm6948, %v12480, %v11123
        %v12513 = vsel %vm6948, %v12481, %v11125
        %v12514 = vsel %vm6948, %v12482, %v11127
        %v12515 = vsel %vm6948, %v12483, %v11129
        %v12516 = vsel %vm6948, %v12484, %v11131
        %v12517 = vsel %vm6948, %v12485, %v11133
        %v12518 = vsel %vm6948, %v12486, %v11135
        %v12519 = vsel %vm6948, %v12487, %v11137
        %v12520 = vsel %vm6948, %v12488, %v11139
        %v12521 = vsel %vm6948, %v12489, %v11141
        %v12522 = vsel %vm6948, %v12490, %v11143
        %v12523 = vsel %vm6948, %v12491, %v11145
        %v12524 = vsel %vm6948, %v12492, %v11147
        %v12525 = vsel %vm6948, %v12493, %v11149
        %v12526 = vsel %vm6981, %v12494, %v11215
        %v12527 = vsel %vm6981, %v12495, %v11217
        %v12528 = vsel %vm6981, %v12496, %v11219
        %v12529 = vsel %vm6981, %v12497, %v11221
        %v12530 = vsel %vm6981, %v12498, %v11223
        %v12531 = vsel %vm6981, %v12499, %v11225
        %v12532 = vsel %vm6981, %v12500, %v11227
        %v12533 = vsel %vm6981, %v12501, %v11229
        %v12534 = vsel %vm6981, %v12502, %v11231
        %v12535 = vsel %vm6981, %v12503, %v11233
        %v12536 = vsel %vm6981, %v12504, %v11235
        %v12537 = vsel %vm6981, %v12505, %v11237
        %v12538 = vsel %vm6981, %v12506, %v11239
        %v12539 = vsel %vm6981, %v12507, %v11241
        %v12540 = vsel %vm6981, %v12508, %v11243
        %v12541 = vsel %vm6981, %v12509, %v11245
        %v12542 = vsel %vm6981, %v12510, %v11247
        %v12543 = vsel %vm6981, %v12511, %v11249
        %v12544 = vsel %vm6981, %v12512, %v11251
        %v12545 = vsel %vm6981, %v12513, %v11253
        %v12546 = vsel %vm6981, %v12514, %v11255
        %v12547 = vsel %vm6981, %v12515, %v11257
        %v12548 = vsel %vm6981, %v12516, %v11259
        %v12549 = vsel %vm6981, %v12517, %v11261
        %v12550 = vsel %vm6981, %v12518, %v11263
        %v12551 = vsel %vm6981, %v12519, %v11265
        %v12552 = vsel %vm6981, %v12520, %v11267
        %v12553 = vsel %vm6981, %v12521, %v11269
        %v12554 = vsel %vm6981, %v12522, %v11271
        %v12555 = vsel %vm6981, %v12523, %v11273
        %v12556 = vsel %vm6981, %v12524, %v11275
        %v12557 = vsel %vm6981, %v12525, %v11277
        %v12558 = vsel %vm7014, %v12526, %v11343
        %v12559 = vsel %vm7014, %v12527, %v11345
        %v12560 = vsel %vm7014, %v12528, %v11347
        %v12561 = vsel %vm7014, %v12529, %v11349
        %v12562 = vsel %vm7014, %v12530, %v11351
        %v12563 = vsel %vm7014, %v12531, %v11353
        %v12564 = vsel %vm7014, %v12532, %v11355
        %v12565 = vsel %vm7014, %v12533, %v11357
        %v12566 = vsel %vm7014, %v12534, %v11359
        %v12567 = vsel %vm7014, %v12535, %v11361
        %v12568 = vsel %vm7014, %v12536, %v11363
        %v12569 = vsel %vm7014, %v12537, %v11365
        %v12570 = vsel %vm7014, %v12538, %v11367
        %v12571 = vsel %vm7014, %v12539, %v11369
        %v12572 = vsel %vm7014, %v12540, %v11371
        %v12573 = vsel %vm7014, %v12541, %v11373
        %v12574 = vsel %vm7014, %v12542, %v11375
        %v12575 = vsel %vm7014, %v12543, %v11377
        %v12576 = vsel %vm7014, %v12544, %v11379
        %v12577 = vsel %vm7014, %v12545, %v11381
        %v12578 = vsel %vm7014, %v12546, %v11383
        %v12579 = vsel %vm7014, %v12547, %v11385
        %v12580 = vsel %vm7014, %v12548, %v11387
        %v12581 = vsel %vm7014, %v12549, %v11389
        %v12582 = vsel %vm7014, %v12550, %v11391
        %v12583 = vsel %vm7014, %v12551, %v11393
        %v12584 = vsel %vm7014, %v12552, %v11395
        %v12585 = vsel %vm7014, %v12553, %v11397
        %v12586 = vsel %vm7014, %v12554, %v11399
        %v12587 = vsel %vm7014, %v12555, %v11401
        %v12588 = vsel %vm7014, %v12556, %v11403
        %v12589 = vsel %vm7014, %v12557, %v11405
        %v12590 = vsel %vm7047, %v12558, %v11471
        %v12591 = vsel %vm7047, %v12559, %v11473
        %v12592 = vsel %vm7047, %v12560, %v11475
        %v12593 = vsel %vm7047, %v12561, %v11477
        %v12594 = vsel %vm7047, %v12562, %v11479
        %v12595 = vsel %vm7047, %v12563, %v11481
        %v12596 = vsel %vm7047, %v12564, %v11483
        %v12597 = vsel %vm7047, %v12565, %v11485
        %v12598 = vsel %vm7047, %v12566, %v11487
        %v12599 = vsel %vm7047, %v12567, %v11489
        %v12600 = vsel %vm7047, %v12568, %v11491
        %v12601 = vsel %vm7047, %v12569, %v11493
        %v12602 = vsel %vm7047, %v12570, %v11495
        %v12603 = vsel %vm7047, %v12571, %v11497
        %v12604 = vsel %vm7047, %v12572, %v11499
        %v12605 = vsel %vm7047, %v12573, %v11501
        %v12606 = vsel %vm7047, %v12574, %v11503
        %v12607 = vsel %vm7047, %v12575, %v11505
        %v12608 = vsel %vm7047, %v12576, %v11507
        %v12609 = vsel %vm7047, %v12577, %v11509
        %v12610 = vsel %vm7047, %v12578, %v11511
        %v12611 = vsel %vm7047, %v12579, %v11513
        %v12612 = vsel %vm7047, %v12580, %v11515
        %v12613 = vsel %vm7047, %v12581, %v11517
        %v12614 = vsel %vm7047, %v12582, %v11519
        %v12615 = vsel %vm7047, %v12583, %v11521
        %v12616 = vsel %vm7047, %v12584, %v11523
        %v12617 = vsel %vm7047, %v12585, %v11525
        %v12618 = vsel %vm7047, %v12586, %v11527
        %v12619 = vsel %vm7047, %v12587, %v11529
        %v12620 = vsel %vm7047, %v12588, %v11531
        %v12621 = vsel %vm7047, %v12589, %v11533
        %v12622 = vsel %vm7080, %v12590, %v11599
        %v12623 = vsel %vm7080, %v12591, %v11601
        %v12624 = vsel %vm7080, %v12592, %v11603
        %v12625 = vsel %vm7080, %v12593, %v11605
        %v12626 = vsel %vm7080, %v12594, %v11607
        %v12627 = vsel %vm7080, %v12595, %v11609
        %v12628 = vsel %vm7080, %v12596, %v11611
        %v12629 = vsel %vm7080, %v12597, %v11613
        %v12630 = vsel %vm7080, %v12598, %v11615
        %v12631 = vsel %vm7080, %v12599, %v11617
        %v12632 = vsel %vm7080, %v12600, %v11619
        %v12633 = vsel %vm7080, %v12601, %v11621
        %v12634 = vsel %vm7080, %v12602, %v11623
        %v12635 = vsel %vm7080, %v12603, %v11625
        %v12636 = vsel %vm7080, %v12604, %v11627
        %v12637 = vsel %vm7080, %v12605, %v11629
        %v12638 = vsel %vm7080, %v12606, %v11631
        %v12639 = vsel %vm7080, %v12607, %v11633
        %v12640 = vsel %vm7080, %v12608, %v11635
        %v12641 = vsel %vm7080, %v12609, %v11637
        %v12642 = vsel %vm7080, %v12610, %v11639
        %v12643 = vsel %vm7080, %v12611, %v11641
        %v12644 = vsel %vm7080, %v12612, %v11643
        %v12645 = vsel %vm7080, %v12613, %v11645
        %v12646 = vsel %vm7080, %v12614, %v11647
        %v12647 = vsel %vm7080, %v12615, %v11649
        %v12648 = vsel %vm7080, %v12616, %v11651
        %v12649 = vsel %vm7080, %v12617, %v11653
        %v12650 = vsel %vm7080, %v12618, %v11655
        %v12651 = vsel %vm7080, %v12619, %v11657
        %v12652 = vsel %vm7080, %v12620, %v11659
        %v12653 = vsel %vm7080, %v12621, %v11661
        %v12654 = vsel %vm7113, %v12622, %v11727
        %v12655 = vsel %vm7113, %v12623, %v11729
        %v12656 = vsel %vm7113, %v12624, %v11731
        %v12657 = vsel %vm7113, %v12625, %v11733
        %v12658 = vsel %vm7113, %v12626, %v11735
        %v12659 = vsel %vm7113, %v12627, %v11737
        %v12660 = vsel %vm7113, %v12628, %v11739
        %v12661 = vsel %vm7113, %v12629, %v11741
        %v12662 = vsel %vm7113, %v12630, %v11743
        %v12663 = vsel %vm7113, %v12631, %v11745
        %v12664 = vsel %vm7113, %v12632, %v11747
        %v12665 = vsel %vm7113, %v12633, %v11749
        %v12666 = vsel %vm7113, %v12634, %v11751
        %v12667 = vsel %vm7113, %v12635, %v11753
        %v12668 = vsel %vm7113, %v12636, %v11755
        %v12669 = vsel %vm7113, %v12637, %v11757
        %v12670 = vsel %vm7113, %v12638, %v11759
        %v12671 = vsel %vm7113, %v12639, %v11761
        %v12672 = vsel %vm7113, %v12640, %v11763
        %v12673 = vsel %vm7113, %v12641, %v11765
        %v12674 = vsel %vm7113, %v12642, %v11767
        %v12675 = vsel %vm7113, %v12643, %v11769
        %v12676 = vsel %vm7113, %v12644, %v11771
        %v12677 = vsel %vm7113, %v12645, %v11773
        %v12678 = vsel %vm7113, %v12646, %v11775
        %v12679 = vsel %vm7113, %v12647, %v11777
        %v12680 = vsel %vm7113, %v12648, %v11779
        %v12681 = vsel %vm7113, %v12649, %v11781
        %v12682 = vsel %vm7113, %v12650, %v11783
        %v12683 = vsel %vm7113, %v12651, %v11785
        %v12684 = vsel %vm7113, %v12652, %v11787
        %v12685 = vsel %vm7113, %v12653, %v11789
        %v12686 = vsel %vm7146, %v12654, %v11855
        %v12687 = vsel %vm7146, %v12655, %v11857
        %v12688 = vsel %vm7146, %v12656, %v11859
        %v12689 = vsel %vm7146, %v12657, %v11861
        %v12690 = vsel %vm7146, %v12658, %v11863
        %v12691 = vsel %vm7146, %v12659, %v11865
        %v12692 = vsel %vm7146, %v12660, %v11867
        %v12693 = vsel %vm7146, %v12661, %v11869
        %v12694 = vsel %vm7146, %v12662, %v11871
        %v12695 = vsel %vm7146, %v12663, %v11873
        %v12696 = vsel %vm7146, %v12664, %v11875
        %v12697 = vsel %vm7146, %v12665, %v11877
        %v12698 = vsel %vm7146, %v12666, %v11879
        %v12699 = vsel %vm7146, %v12667, %v11881
        %v12700 = vsel %vm7146, %v12668, %v11883
        %v12701 = vsel %vm7146, %v12669, %v11885
        %v12702 = vsel %vm7146, %v12670, %v11887
        %v12703 = vsel %vm7146, %v12671, %v11889
        %v12704 = vsel %vm7146, %v12672, %v11891
        %v12705 = vsel %vm7146, %v12673, %v11893
        %v12706 = vsel %vm7146, %v12674, %v11895
        %v12707 = vsel %vm7146, %v12675, %v11897
        %v12708 = vsel %vm7146, %v12676, %v11899
        %v12709 = vsel %vm7146, %v12677, %v11901
        %v12710 = vsel %vm7146, %v12678, %v11903
        %v12711 = vsel %vm7146, %v12679, %v11905
        %v12712 = vsel %vm7146, %v12680, %v11907
        %v12713 = vsel %vm7146, %v12681, %v11909
        %v12714 = vsel %vm7146, %v12682, %v11911
        %v12715 = vsel %vm7146, %v12683, %v11913
        %v12716 = vsel %vm7146, %v12684, %v11915
        %v12717 = vsel %vm7146, %v12685, %v11917
        %v12718 = vsel %vm7179, %v12686, %v11983
        %v12719 = vsel %vm7179, %v12687, %v11985
        %v12720 = vsel %vm7179, %v12688, %v11987
        %v12721 = vsel %vm7179, %v12689, %v11989
        %v12722 = vsel %vm7179, %v12690, %v11991
        %v12723 = vsel %vm7179, %v12691, %v11993
        %v12724 = vsel %vm7179, %v12692, %v11995
        %v12725 = vsel %vm7179, %v12693, %v11997
        %v12726 = vsel %vm7179, %v12694, %v11999
        %v12727 = vsel %vm7179, %v12695, %v12001
        %v12728 = vsel %vm7179, %v12696, %v12003
        %v12729 = vsel %vm7179, %v12697, %v12005
        %v12730 = vsel %vm7179, %v12698, %v12007
        %v12731 = vsel %vm7179, %v12699, %v12009
        %v12732 = vsel %vm7179, %v12700, %v12011
        %v12733 = vsel %vm7179, %v12701, %v12013
        %v12734 = vsel %vm7179, %v12702, %v12015
        %v12735 = vsel %vm7179, %v12703, %v12017
        %v12736 = vsel %vm7179, %v12704, %v12019
        %v12737 = vsel %vm7179, %v12705, %v12021
        %v12738 = vsel %vm7179, %v12706, %v12023
        %v12739 = vsel %vm7179, %v12707, %v12025
        %v12740 = vsel %vm7179, %v12708, %v12027
        %v12741 = vsel %vm7179, %v12709, %v12029
        %v12742 = vsel %vm7179, %v12710, %v12031
        %v12743 = vsel %vm7179, %v12711, %v12033
        %v12744 = vsel %vm7179, %v12712, %v12035
        %v12745 = vsel %vm7179, %v12713, %v12037
        %v12746 = vsel %vm7179, %v12714, %v12039
        %v12747 = vsel %vm7179, %v12715, %v12041
        %v12748 = vsel %vm7179, %v12716, %v12043
        %v12749 = vsel %vm7179, %v12717, %v12045
        %v12750 = vsel %vm7212, %v12718, %v12111
        %v12751 = vsel %vm7212, %v12719, %v12113
        %v12752 = vsel %vm7212, %v12720, %v12115
        %v12753 = vsel %vm7212, %v12721, %v12117
        %v12754 = vsel %vm7212, %v12722, %v12119
        %v12755 = vsel %vm7212, %v12723, %v12121
        %v12756 = vsel %vm7212, %v12724, %v12123
        %v12757 = vsel %vm7212, %v12725, %v12125
        %v12758 = vsel %vm7212, %v12726, %v12127
        %v12759 = vsel %vm7212, %v12727, %v12129
        %v12760 = vsel %vm7212, %v12728, %v12131
        %v12761 = vsel %vm7212, %v12729, %v12133
        %v12762 = vsel %vm7212, %v12730, %v12135
        %v12763 = vsel %vm7212, %v12731, %v12137
        %v12764 = vsel %vm7212, %v12732, %v12139
        %v12765 = vsel %vm7212, %v12733, %v12141
        %v12766 = vsel %vm7212, %v12734, %v12143
        %v12767 = vsel %vm7212, %v12735, %v12145
        %v12768 = vsel %vm7212, %v12736, %v12147
        %v12769 = vsel %vm7212, %v12737, %v12149
        %v12770 = vsel %vm7212, %v12738, %v12151
        %v12771 = vsel %vm7212, %v12739, %v12153
        %v12772 = vsel %vm7212, %v12740, %v12155
        %v12773 = vsel %vm7212, %v12741, %v12157
        %v12774 = vsel %vm7212, %v12742, %v12159
        %v12775 = vsel %vm7212, %v12743, %v12161
        %v12776 = vsel %vm7212, %v12744, %v12163
        %v12777 = vsel %vm7212, %v12745, %v12165
        %v12778 = vsel %vm7212, %v12746, %v12167
        %v12779 = vsel %vm7212, %v12747, %v12169
        %v12780 = vsel %vm7212, %v12748, %v12171
        %v12781 = vsel %vm7212, %v12749, %v12173
        %v12782 = vsel %vm7245, %v12750, %v12239
        %v12783 = vsel %vm7245, %v12751, %v12241
        %v12784 = vsel %vm7245, %v12752, %v12243
        %v12785 = vsel %vm7245, %v12753, %v12245
        %v12786 = vsel %vm7245, %v12754, %v12247
        %v12787 = vsel %vm7245, %v12755, %v12249
        %v12788 = vsel %vm7245, %v12756, %v12251
        %v12789 = vsel %vm7245, %v12757, %v12253
        %v12790 = vsel %vm7245, %v12758, %v12255
        %v12791 = vsel %vm7245, %v12759, %v12257
        %v12792 = vsel %vm7245, %v12760, %v12259
        %v12793 = vsel %vm7245, %v12761, %v12261
        %v12794 = vsel %vm7245, %v12762, %v12263
        %v12795 = vsel %vm7245, %v12763, %v12265
        %v12796 = vsel %vm7245, %v12764, %v12267
        %v12797 = vsel %vm7245, %v12765, %v12269
        %v12798 = vsel %vm7245, %v12766, %v12271
        %v12799 = vsel %vm7245, %v12767, %v12273
        %v12800 = vsel %vm7245, %v12768, %v12275
        %v12801 = vsel %vm7245, %v12769, %v12277
        %v12802 = vsel %vm7245, %v12770, %v12279
        %v12803 = vsel %vm7245, %v12771, %v12281
        %v12804 = vsel %vm7245, %v12772, %v12283
        %v12805 = vsel %vm7245, %v12773, %v12285
        %v12806 = vsel %vm7245, %v12774, %v12287
        %v12807 = vsel %vm7245, %v12775, %v12289
        %v12808 = vsel %vm7245, %v12776, %v12291
        %v12809 = vsel %vm7245, %v12777, %v12293
        %v12810 = vsel %vm7245, %v12778, %v12295
        %v12811 = vsel %vm7245, %v12779, %v12297
        %v12812 = vsel %vm7245, %v12780, %v12299
        %v12813 = vsel %vm7245, %v12781, %v12301
        %v12846 = vrot.slane %v12782, 7
        %v12847 = vrot.slane %v12783, 7
        %v12848 = vrot.slane %v12784, 7
        %v12849 = vrot.slane %v12785, 7
        %v12850 = vrot.slane %v12786, 7
        %v12851 = vrot.slane %v12787, 7
        %v12852 = vrot.slane %v12788, 7
        %v12853 = vrot.slane %v12789, 7
        %v12854 = vrot.slane %v12790, 7
        %v12855 = vrot.slane %v12791, 7
        %v12856 = vrot.slane %v12792, 7
        %v12857 = vrot.slane %v12793, 7
        %v12858 = vrot.slane %v12794, 7
        %v12859 = vrot.slane %v12795, 7
        %v12860 = vrot.slane %v12796, 7
        %v12861 = vrot.slane %v12797, 7
        %v12862 = vrot.slane %v12798, 7
        %v12863 = vrot.slane %v12799, 7
        %v12864 = vrot.slane %v12800, 7
        %v12865 = vrot.slane %v12801, 7
        %v12866 = vrot.slane %v12802, 7
        %v12867 = vrot.slane %v12803, 7
        %v12868 = vrot.slane %v12804, 7
        %v12869 = vrot.slane %v12805, 7
        %v12870 = vrot.slane %v12806, 7
        %v12871 = vrot.slane %v12807, 7
        %v12872 = vrot.slane %v12808, 7
        %v12873 = vrot.slane %v12809, 7
        %v12874 = vrot.slane %v12810, 7
        %v12875 = vrot.slane %v12811, 7
        %v12876 = vrot.slane %v12812, 7
        %v12877 = vrot.slane %v12813, 7
        %vm12910 = vcmask 1040384
        %v12911 = vsel %vm12910, %v7246, %v12846
        %v12912 = vsel %vm12910, %v7247, %v12847
        %v12913 = vsel %vm12910, %v7248, %v12848
        %v12914 = vsel %vm12910, %v7249, %v12849
        %v12915 = vsel %vm12910, %v7250, %v12850
        %v12916 = vsel %vm12910, %v7251, %v12851
        %v12917 = vsel %vm12910, %v7252, %v12852
        %v12918 = vsel %vm12910, %v7253, %v12853
        %v12919 = vsel %vm12910, %v7254, %v12854
        %v12920 = vsel %vm12910, %v7255, %v12855
        %v12921 = vsel %vm12910, %v7256, %v12856
        %v12922 = vsel %vm12910, %v7257, %v12857
        %v12923 = vsel %vm12910, %v7258, %v12858
        %v12924 = vsel %vm12910, %v7259, %v12859
        %v12925 = vsel %vm12910, %v7260, %v12860
        %v12926 = vsel %vm12910, %v7261, %v12861
        %v12927 = vsel %vm12910, %v7262, %v12862
        %v12928 = vsel %vm12910, %v7263, %v12863
        %v12929 = vsel %vm12910, %v7264, %v12864
        %v12930 = vsel %vm12910, %v7265, %v12865
        %v12931 = vsel %vm12910, %v7266, %v12866
        %v12932 = vsel %vm12910, %v7267, %v12867
        %v12933 = vsel %vm12910, %v7268, %v12868
        %v12934 = vsel %vm12910, %v7269, %v12869
        %v12935 = vsel %vm12910, %v7270, %v12870
        %v12936 = vsel %vm12910, %v7271, %v12871
        %v12937 = vsel %vm12910, %v7272, %v12872
        %v12938 = vsel %vm12910, %v7273, %v12873
        %v12939 = vsel %vm12910, %v7274, %v12874
        %v12940 = vsel %vm12910, %v7275, %v12875
        %v12941 = vsel %vm12910, %v7276, %v12876
        %v12942 = vsel %vm12910, %v7277, %v12877
        %v12975 = vcombine.low %v12911, %v12912
        %v12976 = vcombine.low %v12913, %v12914
        %v12978 = vunpack.c.l.s4 1983009808
        %v12979 = vunpack.c.0.s8 %v12978
        %v12980 = vlaneseq
        %v12981 = vshrl.u32 %v12980, 7
        %v12982 = vsub.s32 %v12979, %v12981
        %v12983 = vrot.slane %v12975, %v12982
        %v12985 = vunpack.c.l.s4 1983009808
        %v12986 = vunpack.c.0.s8 %v12985
        %v12987 = vlaneseq
        %v12988 = vshrl.u32 %v12987, 7
        %v12989 = vsub.s32 %v12986, %v12988
        %v12990 = vrot.slane %v12976, %v12989
        %v12991 = vcombine.low %v12983, %v12990
        %v12992 = vcombine.low %v12915, %v12916
        %v12993 = vcombine.low %v12917, %v12918
        %v12995 = vunpack.c.l.s4 1983009808
        %v12996 = vunpack.c.0.s8 %v12995
        %v12997 = vlaneseq
        %v12998 = vshrl.u32 %v12997, 7
        %v12999 = vsub.s32 %v12996, %v12998
        %v13000 = vrot.slane %v12992, %v12999
        %v13002 = vunpack.c.l.s4 1983009808
        %v13003 = vunpack.c.0.s8 %v13002
        %v13004 = vlaneseq
        %v13005 = vshrl.u32 %v13004, 7
        %v13006 = vsub.s32 %v13003, %v13005
        %v13007 = vrot.slane %v12993, %v13006
        %v13008 = vcombine.low %v13000, %v13007
        %v13009 = vcombine.low %v12919, %v12920
        %v13010 = vcombine.low %v12921, %v12922
        %v13012 = vunpack.c.l.s4 1983009808
        %v13013 = vunpack.c.0.s8 %v13012
        %v13014 = vlaneseq
        %v13015 = vshrl.u32 %v13014, 7
        %v13016 = vsub.s32 %v13013, %v13015
        %v13017 = vrot.slane %v13009, %v13016
        %v13019 = vunpack.c.l.s4 1983009808
        %v13020 = vunpack.c.0.s8 %v13019
        %v13021 = vlaneseq
        %v13022 = vshrl.u32 %v13021, 7
        %v13023 = vsub.s32 %v13020, %v13022
        %v13024 = vrot.slane %v13010, %v13023
        %v13025 = vcombine.low %v13017, %v13024
        %v13026 = vcombine.low %v12923, %v12924
        %v13027 = vcombine.low %v12925, %v12926
        %v13029 = vunpack.c.l.s4 1983009808
        %v13030 = vunpack.c.0.s8 %v13029
        %v13031 = vlaneseq
        %v13032 = vshrl.u32 %v13031, 7
        %v13033 = vsub.s32 %v13030, %v13032
        %v13034 = vrot.slane %v13026, %v13033
        %v13036 = vunpack.c.l.s4 1983009808
        %v13037 = vunpack.c.0.s8 %v13036
        %v13038 = vlaneseq
        %v13039 = vshrl.u32 %v13038, 7
        %v13040 = vsub.s32 %v13037, %v13039
        %v13041 = vrot.slane %v13027, %v13040
        %v13042 = vcombine.low %v13034, %v13041
        %v13043 = vcombine.low %v12927, %v12928
        %v13044 = vcombine.low %v12929, %v12930
        %v13046 = vunpack.c.l.s4 1983009808
        %v13047 = vunpack.c.0.s8 %v13046
        %v13048 = vlaneseq
        %v13049 = vshrl.u32 %v13048, 7
        %v13050 = vsub.s32 %v13047, %v13049
        %v13051 = vrot.slane %v13043, %v13050
        %v13053 = vunpack.c.l.s4 1983009808
        %v13054 = vunpack.c.0.s8 %v13053
        %v13055 = vlaneseq
        %v13056 = vshrl.u32 %v13055, 7
        %v13057 = vsub.s32 %v13054, %v13056
        %v13058 = vrot.slane %v13044, %v13057
        %v13059 = vcombine.low %v13051, %v13058
        %v13060 = vcombine.low %v12931, %v12932
        %v13061 = vcombine.low %v12933, %v12934
        %v13063 = vunpack.c.l.s4 1983009808
        %v13064 = vunpack.c.0.s8 %v13063
        %v13065 = vlaneseq
        %v13066 = vshrl.u32 %v13065, 7
        %v13067 = vsub.s32 %v13064, %v13066
        %v13068 = vrot.slane %v13060, %v13067
        %v13070 = vunpack.c.l.s4 1983009808
        %v13071 = vunpack.c.0.s8 %v13070
        %v13072 = vlaneseq
        %v13073 = vshrl.u32 %v13072, 7
        %v13074 = vsub.s32 %v13071, %v13073
        %v13075 = vrot.slane %v13061, %v13074
        %v13076 = vcombine.low %v13068, %v13075
        %v13077 = vcombine.low %v12935, %v12936
        %v13078 = vcombine.low %v12937, %v12938
        %v13080 = vunpack.c.l.s4 1983009808
        %v13081 = vunpack.c.0.s8 %v13080
        %v13082 = vlaneseq
        %v13083 = vshrl.u32 %v13082, 7
        %v13084 = vsub.s32 %v13081, %v13083
        %v13085 = vrot.slane %v13077, %v13084
        %v13087 = vunpack.c.l.s4 1983009808
        %v13088 = vunpack.c.0.s8 %v13087
        %v13089 = vlaneseq
        %v13090 = vshrl.u32 %v13089, 7
        %v13091 = vsub.s32 %v13088, %v13090
        %v13092 = vrot.slane %v13078, %v13091
        %v13093 = vcombine.low %v13085, %v13092
        %v13094 = vcombine.low %v12939, %v12940
        %v13095 = vcombine.low %v12941, %v12942
        %v13097 = vunpack.c.l.s4 1983009808
        %v13098 = vunpack.c.0.s8 %v13097
        %v13099 = vlaneseq
        %v13100 = vshrl.u32 %v13099, 7
        %v13101 = vsub.s32 %v13098, %v13100
        %v13102 = vrot.slane %v13094, %v13101
        %v13104 = vunpack.c.l.s4 1983009808
        %v13105 = vunpack.c.0.s8 %v13104
        %v13106 = vlaneseq
        %v13107 = vshrl.u32 %v13106, 7
        %v13108 = vsub.s32 %v13105, %v13107
        %v13109 = vrot.slane %v13095, %v13108
        %v13110 = vcombine.low %v13102, %v13109
        %vm13119 = vcmask 261120
        %13120 = vst.msk [vmem:[%s166] sm:$0xff] %vm13119, %v12991
        %13121 = vst.msk [vmem:[%s166 + $0x8] sm:$0xff] %vm13119, %v13008
        %13122 = vst.msk [vmem:[%s166 + $0x10] sm:$0xff] %vm13119, %v13025
        %13123 = vst.msk [vmem:[%s166 + $0x18] sm:$0xff] %vm13119, %v13042
        %13124 = vst.msk [vmem:[%s166 + $0x20] sm:$0xff] %vm13119, %v13059
        %13125 = vst.msk [vmem:[%s166 + $0x28] sm:$0xff] %vm13119, %v13076
        %13126 = vst.msk [vmem:[%s166 + $0x30] sm:$0xff] %vm13119, %v13093
        %13127 = vst.msk [vmem:[%s166 + $0x38] sm:$0xff] %vm13119, %v13110
        %s13128 = sand.u32 %s79, 1
        %s13129 = scalar_lea.sflag [#allocation4], %s13128
        %s13130 = sand.u32 %s79, 1
        %s13131 = smul.addr %s13130, 64
        %s13132 = scalar_lea.vmem [#allocation5], %s13131
        // Predicated region
        $region29: #{tpu_custom_call.1} parent=23 // pred_check
          %p13133 = pneg %p89
        $region30: #{tpu_custom_call.1} parent=23 // pred_check_branch
          %13135 = sbr.rel (%p13133) target = $region32
        $region31: #{tpu_custom_call.1} parent=23 // pred_region
          %s13136 = smul.u32 2, %s24
          %s13137 = smul.u32 4, %s25
          %s13139 = ssub.s32 1024, 1024
          %13140 = vsyncadd %s13129, %s13139
          %s13141 = smul.addr %s13136, 4
          %s13142 = sadd.s32 %s13137, %s13141
          %s13143 = smul.addr %s23, 8
          %s13144 = sadd.s32 %s13142, %s13143
          %s13145 = smul.addr %s13144, 128
          %s13146 = scalar_lea.hbm %s1, %s13145
          %s13147 = sshll.u32 %s13132, 4
          %s13148 = int_to_ptr.vmem [resolvable:$true] %s13147
          %13153 = dma.vmem_to_hbm [thread:$0]  %s13148, 1024, %s13146, %s13129, 128, 128, 8
        $region32: #{tpu_custom_call.1} parent=23 // pred_fallthru
          _
      $region24: #{tpu_custom_call.1} parent=5 // pred_fallthru
        _
      %p13154 = scmp.le.s32.totalorder 2, %s13
      // Predicated region
      $region33: #{tpu_custom_call.1} parent=5 // pred_check
        %p13155 = pneg %p13154
      $region34: #{tpu_custom_call.1} parent=5 // pred_check_branch
        %13157 = sbr.rel (%p13155) target = $region36
      $region35: #{tpu_custom_call.1} parent=5 // pred_region
        %s13158 = ssub.s32 %s13, 2
        // Predicated region
        $region37: #{tpu_custom_call.1} parent=35 // pred_check
          %p13159 = pneg %p95
        $region38: #{tpu_custom_call.1} parent=35 // pred_check_branch
          %13161 = sbr.rel (%p13159) target = $region40
        $region39: #{tpu_custom_call.1} parent=35 // pred_region
          %s13162 = sand.u32 %s80, 1
          %s13163 = scalar_lea.sflag [#allocation4], %s13162
          %s13164 = sand.u32 %s80, 1
          %s13165 = smul.addr %s13164, 64
          %s13166 = scalar_lea.vmem [#allocation5], %s13165
          %13167 = dma.done %s13163, 1024
        $region40: #{tpu_custom_call.1} parent=35 // pred_fallthru
          _
      $region36: #{tpu_custom_call.1} parent=5 // pred_fallthru
        _
    $region6: #{tpu_custom_call.1} parent=1 // loop_footer
      %s17 = sadd.s32 1, %s13
    $region7: #{tpu_custom_call.1} parent=1 // loop_footer_branch
      %12 = sbr.rel target = $region3
    $region8: #{tpu_custom_call.1} parent=1 // loop_exit
      _
    %13168 = vsyncpa [#allocation3], 1
    %s13169 = scalar_lea.sflag [#allocation3], 1
    %13170 = vsyncpa %s13169, 1
    %13171 = vsyncpa [#allocation4], 1
    %s13172 = scalar_lea.sflag [#allocation4], 1
    %13173 = vsyncpa %s13172, 1

</llo_original>
